<compile_context>
chip_gen: v6e
topology: v6e:2x2x1
jax: 0.10.0
libtpu: 0.0.40
codegen_flags: <defaults>
</compile_context>

<pallas_src>
import functools

import jax
import jax.numpy as jnp
import numpy as np
from jax import lax
from jax.experimental import pallas as pl
from jax.experimental.pallas import tpu as pltpu

LAYERS = [2, 50, 50, 50, 50, 50, 50, 50, 50, 50, 1]
N_LINEARS = len(LAYERS) - 1   # 10 linear layers
N_HIDDEN = len(LAYERS) - 2    # 9 tanh-activated layers
N_MID = N_HIDDEN - 1          # 8 interior (50,50) layers
HID = LAYERS[1]               # 50
D_IN = LAYERS[0]              # 2
D_OUT = LAYERS[-1]            # 1


def _tpu_flavor():
    """(bf16_fast, two_tensorcores) from the local device kind string."""
    kind = ""
    try:
        kind = jax.devices()[0].device_kind.lower()
    except Exception:
        pass
    bf16_fast = any(t in kind for t in ("v6", "v7", "trillium"))
    two_cores = any(t in kind for t in ("v7", "v4", "v5p"))
    return bf16_fast, two_cores


def _pinn_kernel(x_ref,
                 w_first_ref, b_first_ref,
                 w_mid_ref, b_mid_ref,
                 w_last_ref, b_last_ref,
                 o_ref, *, compute_dtype):
    """Transposed layout: batch on the lane axis.

    x_ref:       (2, TILE_M)   raw input points (x, t), one column per point
    w_first_ref: (50, 2)  f32  normalization-folded first layer (out, in)
    b_first_ref: (50, 1)  f32
    w_mid_ref:   (8, 50, 50)   stacked interior weights (compute_dtype)
    b_mid_ref:   (8, 50, 1)    stacked interior biases (f32)
    w_last_ref:  (1, 50)  f32
    b_last_ref:  (1, 1)   f32
    o_ref:       (1, TILE_M)   lane-dense output
    """
    # First hidden layer in f32 (normalization already folded into W1'/b1').
    z = jnp.dot(w_first_ref[...], x_ref[...],
                preferred_element_type=jnp.float32) + b_first_ref[...]
    h = jnp.tanh(z.astype(compute_dtype))                         # (50, TM)

    # Eight interior hidden layers; fori_loop bounds weight live ranges.
    def body(k, h):
        zk = jnp.dot(w_mid_ref[k], h,
                     preferred_element_type=jnp.float32) + b_mid_ref[k]
        return jnp.tanh(zk.astype(compute_dtype))

    h = lax.fori_loop(0, N_MID, body, h, unroll=True)

    # Final linear layer, kept in f32: (1, 50) @ (50, TM) -> (1, TM).
    y = jnp.dot(w_last_ref[...], h.astype(jnp.float32),
                preferred_element_type=jnp.float32) + b_last_ref[...]
    o_ref[...] = y.astype(o_ref.dtype)


def pinns_forward(x, lower_bound, upper_bound, weights, biases, *,
                  tile_m=2048, compute_dtype="auto"):
    """PINNs MLP forward pass on TPU via Pallas.

    x:            (N, 2) float32 collocation points (x, t)
    lower_bound:  (2,)   float32
    upper_bound:  (2,)   float32
    weights[i]:   (LAYERS[i+1], LAYERS[i]) float32  -- PyTorch nn.Linear layout
    biases[i]:    (LAYERS[i+1],)           float32
    compute_dtype: "auto" (bf16 hidden layers on v6e/v7x, f32 elsewhere),
                   jnp.float32, or jnp.bfloat16.  First/last layers are always
                   f32; matmuls always accumulate in f32.
    returns:      (N, 1) float32
    """
    n, d_in = x.shape
    assert d_in == D_IN

    bf16_fast, two_cores = _tpu_flavor()
    if compute_dtype == "auto":
        compute_dtype = jnp.bfloat16 if bf16_fast else jnp.float32
    elif compute_dtype == jnp.bfloat16 and not bf16_fast:
        # v5e has no bf16 VPU/EUP; bf16 would only add casts.  Silent override.
        compute_dtype = jnp.float32

    # Grid sizing.  Only pad to an even number of tiles when the chip has two
    # TensorCores sharing the "parallel" axis (v7x); on single-TC v5e/v6e an
    # extra tile is pure wasted work.
    num_tiles = pl.cdiv(n, tile_m)
    if two_cores and (num_tiles % 2):
        num_tiles += 1
    n_pad = num_tiles * tile_m

    # Transpose so the batch rides the lane axis; pad with zeros.
    # TODO(synk): have the data pipeline hand over x already laid out (2, N)
    # to avoid this extra HBM read+write of the input.
    x_t = jnp.zeros((D_IN, n_pad), jnp.float32).at[:, :n].set(x.T)

    lb = jnp.asarray(lower_bound, jnp.float32).reshape(D_IN, 1)
    ub = jnp.asarray(upper_bound, jnp.float32).reshape(D_IN, 1)
    # Note: degenerate bounds (ub == lb) give inf, same as the PyTorch ref.
    scale = 1.0 / (ub - lb)                                       # (2, 1)

    # Fold the normalization (x - lb) * scale into the first layer:
    #   W1' = W1 * scale^T ,  b1' = b1 - W1' @ lb
    w1 = jnp.asarray(weights[0], jnp.float32)                     # (50, 2)
    w_first = w1 * scale.reshape(1, D_IN)                         # (50, 2) f32
    b_first = (jnp.asarray(biases[0], jnp.float32).reshape(HID, 1)
               - w_first @ lb)                                    # (50, 1) f32

    # Pack remaining parameters; PyTorch (out, in) layout kept (no transposes).
    w_mid = jnp.stack(
        [jnp.asarray(w, jnp.float32) for w in weights[1:N_LINEARS - 1]]
    ).astype(compute_dtype)                                       # (8, 50, 50)
    b_mid = jnp.stack(
        [jnp.asarray(b, jnp.float32).reshape(HID, 1)
         for b in biases[1:N_LINEARS - 1]]
    )                                                             # (8, 50, 1)
    w_last = jnp.asarray(weights[-1], jnp.float32)                # (1, 50)
    b_last = jnp.asarray(biases[-1], jnp.float32).reshape(D_OUT, 1)  # (1, 1)

    def const(shape):
        return pl.BlockSpec(shape, lambda i, _s=shape: tuple(0 for _ in _s))

    grid_spec = pltpu.PrefetchScalarGridSpec(
        num_scalar_prefetch=0,
        grid=(num_tiles,),
        in_specs=[
            pl.BlockSpec((D_IN, tile_m), lambda i: (0, i)),   # x, batch on lanes
            const((HID, D_IN)),                               # w_first (folded)
            const((HID, 1)),                                  # b_first (folded)
            const((N_MID, HID, HID)),                         # w_mid (stacked)
            const((N_MID, HID, 1)),                           # b_mid (stacked)
            const((D_OUT, HID)),                              # w_last
            const((D_OUT, 1)),                                # b_last
        ],
        out_specs=pl.BlockSpec((D_OUT, tile_m), lambda i: (0, i)),
    )

    # Scheduling hint for XLA when this custom call sits inside the training graph.
    flops_per_pt = 2 * (D_IN * HID + N_MID * HID * HID + HID * D_OUT)
    param_bytes = sum(int(np.prod(a.shape)) * a.dtype.itemsize
                      for a in (w_first, b_first, w_mid, b_mid, w_last, b_last))
    cost = pl.CostEstimate(
        flops=flops_per_pt * n_pad,
        transcendentals=N_HIDDEN * HID * n_pad,
        bytes_accessed=(D_IN + D_OUT) * 4 * n_pad + param_bytes,
    )

    y_t = pl.pallas_call(
        functools.partial(_pinn_kernel, compute_dtype=compute_dtype),
        out_shape=jax.ShapeDtypeStruct((D_OUT, n_pad), jnp.float32),
        grid_spec=grid_spec,
        compiler_params=pltpu.CompilerParams(
            dimension_semantics=("parallel",),
        ),
        cost_estimate=cost,
    )(x_t, w_first, b_first, w_mid, b_mid, w_last, b_last)

    return y_t[:, :n].T                                          # (N, 1)


def init_params(key):
    """Xavier-normal weights (gain=1.0) and zero biases, matching
    nn.init.xavier_normal_ / nn.init.zeros_, in PyTorch (out, in) layout."""
    weights, biases = [], []
    for i in range(N_LINEARS):
        key, sub = jax.random.split(key)
        fan_in, fan_out = LAYERS[i], LAYERS[i + 1]
        std = np.sqrt(2.0 / (fan_in + fan_out))               # gain = 1.0
        w = std * jax.random.normal(sub, (fan_out, fan_in), dtype=jnp.float32)
        b = jnp.zeros((fan_out,), dtype=jnp.float32)
        weights.append(w)
        biases.append(b)
    return weights, biases


def reference_forward(x, lb, ub, weights, biases):
    """Plain-JAX reference matching the PyTorch forward()."""
    h = (x - lb) / (ub - lb)
    for i in range(N_HIDDEN):
        h = jnp.tanh(h @ weights[i].T + biases[i])
    return h @ weights[-1].T + biases[-1]


# TODO(synk): loss_pde / autograd.grad PDE residual and the LBFGS training loop
# are training-time machinery, not part of the forward pass ported here.

if __name__ == "__main__":
    key = jax.random.PRNGKey(0)
    key, kx = jax.random.split(key)

    # Small deterministic batch of 256 collocation points (x, t).
    N = 256
    x = jax.random.uniform(kx, (N, 2), dtype=jnp.float32, minval=-1.0, maxval=1.0)

    # Domain bounds: x in [-1, 1), t in [0, 1]  (lower_bound = x_test[0],
    # upper_bound = x_test[-1] in the original script).
    lower_bound = jnp.array([-1.0, 0.0], dtype=jnp.float32)
    upper_bound = jnp.array([1.0 - 2.0 / 256.0, 1.0], dtype=jnp.float32)

    weights, biases = init_params(key)
    y_ref = reference_forward(x, lower_bound, upper_bound, weights, biases)

    # Explicit f32 path (correct & fast on every TPU generation).
    y = pinns_forward(x, lower_bound, upper_bound, weights, biases,
                      tile_m=2048, compute_dtype=jnp.float32)
    y = jax.block_until_ready(y)
    assert y.shape == (N, 1)
    np.testing.assert_allclose(np.asarray(y), np.asarray(y_ref),
                               rtol=1e-5, atol=1e-5)

    # Auto path (bf16 hidden layers on v6e/v7x, f32 on v5e); loose tolerance
    # covers the bf16 case, f32 passes trivially.
    y_auto = pinns_forward(x, lower_bound, upper_bound, weights, biases,
                           tile_m=2048, compute_dtype="auto")
    y_auto = jax.block_until_ready(y_auto)
    np.testing.assert_allclose(np.asarray(y_auto), np.asarray(y_ref),
                               rtol=5e-2, atol=5e-2)

    print("KERNEL_OK")
</pallas_src>

<mosaic_0001>
module attributes {stable_mosaic.version = 11 : i64} {
  func.func @_pinn_kernel(%arg0: i32, %arg1: memref<2x2048xf32, #tpu.memory_space<vmem>>, %arg2: memref<50x2xf32, #tpu.memory_space<vmem>>, %arg3: memref<50x1xf32, #tpu.memory_space<vmem>>, %arg4: memref<8x50x50xf32, #tpu.memory_space<vmem>>, %arg5: memref<8x50x1xf32, #tpu.memory_space<vmem>>, %arg6: memref<1x50xf32, #tpu.memory_space<vmem>>, %arg7: memref<1x1xf32, #tpu.memory_space<vmem>>, %arg8: memref<1x2048xf32, #tpu.memory_space<vmem>>) attributes {dimension_semantics = [#tpu.dimension_semantics<parallel>], iteration_bounds = array<i64: 1>, scalar_prefetch = 0 : i64, scratch_operands = 0 : i64, tpu.core_type = #tpu.core_type<tc>, window_params = [{transform_indices = @transform_0, window_bounds = array<i64: 2, 2048>}, {pipeline_mode = #tpu.pipeline_mode<synchronous>, transform_indices = @transform_1, window_bounds = array<i64: 50, 2>}, {pipeline_mode = #tpu.pipeline_mode<synchronous>, transform_indices = @transform_2, window_bounds = array<i64: 50, 1>}, {pipeline_mode = #tpu.pipeline_mode<synchronous>, transform_indices = @transform_3, window_bounds = array<i64: 8, 50, 50>}, {pipeline_mode = #tpu.pipeline_mode<synchronous>, transform_indices = @transform_4, window_bounds = array<i64: 8, 50, 1>}, {pipeline_mode = #tpu.pipeline_mode<synchronous>, transform_indices = @transform_5, window_bounds = array<i64: 1, 50>}, {pipeline_mode = #tpu.pipeline_mode<synchronous>, transform_indices = @transform_6, window_bounds = array<i64: 1, 1>}, {transform_indices = @transform_7, window_bounds = array<i64: 1, 2048>}]} {
    %c0 = arith.constant 0 : index
    %c0_0 = arith.constant 0 : index
    %0 = vector.load %arg2[%c0, %c0_0] : memref<50x2xf32, #tpu.memory_space<vmem>>, vector<50x2xf32>
    %c0_1 = arith.constant 0 : index
    %c0_2 = arith.constant 0 : index
    %1 = vector.load %arg1[%c0_1, %c0_2] : memref<2x2048xf32, #tpu.memory_space<vmem>>, vector<2x2048xf32>
    %cst = arith.constant dense<0.000000e+00> : vector<50x2048xf32>
    %2 = tpu.matmul %0, %1, %cst {dimension_numbers = #tpu.dot_dimension_numbers<[1], [0], [0], [1], [0, 0, 1, 1], [], []>} : vector<50x2xf32>, vector<2x2048xf32>, vector<50x2048xf32> -> vector<50x2048xf32>
    %c0_3 = arith.constant 0 : index
    %c0_4 = arith.constant 0 : index
    %3 = vector.load %arg3[%c0_3, %c0_4] : memref<50x1xf32, #tpu.memory_space<vmem>>, vector<50x1xf32>
    %4 = vector.broadcast %3 : vector<50x1xf32> to vector<50x2048xf32>
    %5 = arith.addf %2, %4 : vector<50x2048xf32>
    %6 = math.tanh %5 : vector<50x2048xf32>
    %c0_i32 = arith.constant 0 : i32
    %7 = arith.index_cast %c0_i32 : i32 to index
    %c0_5 = arith.constant 0 : index
    %c0_6 = arith.constant 0 : index
    %8 = vector.load %arg4[%7, %c0_5, %c0_6] : memref<8x50x50xf32, #tpu.memory_space<vmem>>, vector<1x50x50xf32>
    %9 = vector.shape_cast %8 : vector<1x50x50xf32> to vector<50x50xf32>
    %cst_7 = arith.constant dense<0.000000e+00> : vector<50x2048xf32>
    %10 = tpu.matmul %9, %6, %cst_7 {dimension_numbers = #tpu.dot_dimension_numbers<[1], [0], [0], [1], [0, 0, 1, 1], [], []>} : vector<50x50xf32>, vector<50x2048xf32>, vector<50x2048xf32> -> vector<50x2048xf32>
    %11 = arith.index_cast %c0_i32 : i32 to index
    %c0_8 = arith.constant 0 : index
    %c0_9 = arith.constant 0 : index
    %12 = vector.load %arg5[%11, %c0_8, %c0_9] : memref<8x50x1xf32, #tpu.memory_space<vmem>>, vector<1x50x1xf32>
    %13 = vector.shape_cast %12 : vector<1x50x1xf32> to vector<50x1xf32>
    %14 = vector.broadcast %13 : vector<50x1xf32> to vector<50x2048xf32>
    %15 = arith.addf %10, %14 : vector<50x2048xf32>
    %16 = math.tanh %15 : vector<50x2048xf32>
    %c1_i32 = arith.constant 1 : i32
    %17 = arith.index_cast %c1_i32 : i32 to index
    %c0_10 = arith.constant 0 : index
    %c0_11 = arith.constant 0 : index
    %18 = vector.load %arg4[%17, %c0_10, %c0_11] : memref<8x50x50xf32, #tpu.memory_space<vmem>>, vector<1x50x50xf32>
    %19 = vector.shape_cast %18 : vector<1x50x50xf32> to vector<50x50xf32>
    %cst_12 = arith.constant dense<0.000000e+00> : vector<50x2048xf32>
    %20 = tpu.matmul %19, %16, %cst_12 {dimension_numbers = #tpu.dot_dimension_numbers<[1], [0], [0], [1], [0, 0, 1, 1], [], []>} : vector<50x50xf32>, vector<50x2048xf32>, vector<50x2048xf32> -> vector<50x2048xf32>
    %21 = arith.index_cast %c1_i32 : i32 to index
    %c0_13 = arith.constant 0 : index
    %c0_14 = arith.constant 0 : index
    %22 = vector.load %arg5[%21, %c0_13, %c0_14] : memref<8x50x1xf32, #tpu.memory_space<vmem>>, vector<1x50x1xf32>
    %23 = vector.shape_cast %22 : vector<1x50x1xf32> to vector<50x1xf32>
    %24 = vector.broadcast %23 : vector<50x1xf32> to vector<50x2048xf32>
    %25 = arith.addf %20, %24 : vector<50x2048xf32>
    %26 = math.tanh %25 : vector<50x2048xf32>
    %c2_i32 = arith.constant 2 : i32
    %27 = arith.index_cast %c2_i32 : i32 to index
    %c0_15 = arith.constant 0 : index
    %c0_16 = arith.constant 0 : index
    %28 = vector.load %arg4[%27, %c0_15, %c0_16] : memref<8x50x50xf32, #tpu.memory_space<vmem>>, vector<1x50x50xf32>
    %29 = vector.shape_cast %28 : vector<1x50x50xf32> to vector<50x50xf32>
    %cst_17 = arith.constant dense<0.000000e+00> : vector<50x2048xf32>
    %30 = tpu.matmul %29, %26, %cst_17 {dimension_numbers = #tpu.dot_dimension_numbers<[1], [0], [0], [1], [0, 0, 1, 1], [], []>} : vector<50x50xf32>, vector<50x2048xf32>, vector<50x2048xf32> -> vector<50x2048xf32>
    %31 = arith.index_cast %c2_i32 : i32 to index
    %c0_18 = arith.constant 0 : index
    %c0_19 = arith.constant 0 : index
    %32 = vector.load %arg5[%31, %c0_18, %c0_19] : memref<8x50x1xf32, #tpu.memory_space<vmem>>, vector<1x50x1xf32>
    %33 = vector.shape_cast %32 : vector<1x50x1xf32> to vector<50x1xf32>
    %34 = vector.broadcast %33 : vector<50x1xf32> to vector<50x2048xf32>
    %35 = arith.addf %30, %34 : vector<50x2048xf32>
    %36 = math.tanh %35 : vector<50x2048xf32>
    %c3_i32 = arith.constant 3 : i32
    %37 = arith.index_cast %c3_i32 : i32 to index
    %c0_20 = arith.constant 0 : index
    %c0_21 = arith.constant 0 : index
    %38 = vector.load %arg4[%37, %c0_20, %c0_21] : memref<8x50x50xf32, #tpu.memory_space<vmem>>, vector<1x50x50xf32>
    %39 = vector.shape_cast %38 : vector<1x50x50xf32> to vector<50x50xf32>
    %cst_22 = arith.constant dense<0.000000e+00> : vector<50x2048xf32>
    %40 = tpu.matmul %39, %36, %cst_22 {dimension_numbers = #tpu.dot_dimension_numbers<[1], [0], [0], [1], [0, 0, 1, 1], [], []>} : vector<50x50xf32>, vector<50x2048xf32>, vector<50x2048xf32> -> vector<50x2048xf32>
    %41 = arith.index_cast %c3_i32 : i32 to index
    %c0_23 = arith.constant 0 : index
    %c0_24 = arith.constant 0 : index
    %42 = vector.load %arg5[%41, %c0_23, %c0_24] : memref<8x50x1xf32, #tpu.memory_space<vmem>>, vector<1x50x1xf32>
    %43 = vector.shape_cast %42 : vector<1x50x1xf32> to vector<50x1xf32>
    %44 = vector.broadcast %43 : vector<50x1xf32> to vector<50x2048xf32>
    %45 = arith.addf %40, %44 : vector<50x2048xf32>
    %46 = math.tanh %45 : vector<50x2048xf32>
    %c4_i32 = arith.constant 4 : i32
    %47 = arith.index_cast %c4_i32 : i32 to index
    %c0_25 = arith.constant 0 : index
    %c0_26 = arith.constant 0 : index
    %48 = vector.load %arg4[%47, %c0_25, %c0_26] : memref<8x50x50xf32, #tpu.memory_space<vmem>>, vector<1x50x50xf32>
    %49 = vector.shape_cast %48 : vector<1x50x50xf32> to vector<50x50xf32>
    %cst_27 = arith.constant dense<0.000000e+00> : vector<50x2048xf32>
    %50 = tpu.matmul %49, %46, %cst_27 {dimension_numbers = #tpu.dot_dimension_numbers<[1], [0], [0], [1], [0, 0, 1, 1], [], []>} : vector<50x50xf32>, vector<50x2048xf32>, vector<50x2048xf32> -> vector<50x2048xf32>
    %51 = arith.index_cast %c4_i32 : i32 to index
    %c0_28 = arith.constant 0 : index
    %c0_29 = arith.constant 0 : index
    %52 = vector.load %arg5[%51, %c0_28, %c0_29] : memref<8x50x1xf32, #tpu.memory_space<vmem>>, vector<1x50x1xf32>
    %53 = vector.shape_cast %52 : vector<1x50x1xf32> to vector<50x1xf32>
    %54 = vector.broadcast %53 : vector<50x1xf32> to vector<50x2048xf32>
    %55 = arith.addf %50, %54 : vector<50x2048xf32>
    %56 = math.tanh %55 : vector<50x2048xf32>
    %c5_i32 = arith.constant 5 : i32
    %57 = arith.index_cast %c5_i32 : i32 to index
    %c0_30 = arith.constant 0 : index
    %c0_31 = arith.constant 0 : index
    %58 = vector.load %arg4[%57, %c0_30, %c0_31] : memref<8x50x50xf32, #tpu.memory_space<vmem>>, vector<1x50x50xf32>
    %59 = vector.shape_cast %58 : vector<1x50x50xf32> to vector<50x50xf32>
    %cst_32 = arith.constant dense<0.000000e+00> : vector<50x2048xf32>
    %60 = tpu.matmul %59, %56, %cst_32 {dimension_numbers = #tpu.dot_dimension_numbers<[1], [0], [0], [1], [0, 0, 1, 1], [], []>} : vector<50x50xf32>, vector<50x2048xf32>, vector<50x2048xf32> -> vector<50x2048xf32>
    %61 = arith.index_cast %c5_i32 : i32 to index
    %c0_33 = arith.constant 0 : index
    %c0_34 = arith.constant 0 : index
    %62 = vector.load %arg5[%61, %c0_33, %c0_34] : memref<8x50x1xf32, #tpu.memory_space<vmem>>, vector<1x50x1xf32>
    %63 = vector.shape_cast %62 : vector<1x50x1xf32> to vector<50x1xf32>
    %64 = vector.broadcast %63 : vector<50x1xf32> to vector<50x2048xf32>
    %65 = arith.addf %60, %64 : vector<50x2048xf32>
    %66 = math.tanh %65 : vector<50x2048xf32>
    %c6_i32 = arith.constant 6 : i32
    %67 = arith.index_cast %c6_i32 : i32 to index
    %c0_35 = arith.constant 0 : index
    %c0_36 = arith.constant 0 : index
    %68 = vector.load %arg4[%67, %c0_35, %c0_36] : memref<8x50x50xf32, #tpu.memory_space<vmem>>, vector<1x50x50xf32>
    %69 = vector.shape_cast %68 : vector<1x50x50xf32> to vector<50x50xf32>
    %cst_37 = arith.constant dense<0.000000e+00> : vector<50x2048xf32>
    %70 = tpu.matmul %69, %66, %cst_37 {dimension_numbers = #tpu.dot_dimension_numbers<[1], [0], [0], [1], [0, 0, 1, 1], [], []>} : vector<50x50xf32>, vector<50x2048xf32>, vector<50x2048xf32> -> vector<50x2048xf32>
    %71 = arith.index_cast %c6_i32 : i32 to index
    %c0_38 = arith.constant 0 : index
    %c0_39 = arith.constant 0 : index
    %72 = vector.load %arg5[%71, %c0_38, %c0_39] : memref<8x50x1xf32, #tpu.memory_space<vmem>>, vector<1x50x1xf32>
    %73 = vector.shape_cast %72 : vector<1x50x1xf32> to vector<50x1xf32>
    %74 = vector.broadcast %73 : vector<50x1xf32> to vector<50x2048xf32>
    %75 = arith.addf %70, %74 : vector<50x2048xf32>
    %76 = math.tanh %75 : vector<50x2048xf32>
    %c7_i32 = arith.constant 7 : i32
    %77 = arith.index_cast %c7_i32 : i32 to index
    %c0_40 = arith.constant 0 : index
    %c0_41 = arith.constant 0 : index
    %78 = vector.load %arg4[%77, %c0_40, %c0_41] : memref<8x50x50xf32, #tpu.memory_space<vmem>>, vector<1x50x50xf32>
    %79 = vector.shape_cast %78 : vector<1x50x50xf32> to vector<50x50xf32>
    %cst_42 = arith.constant dense<0.000000e+00> : vector<50x2048xf32>
    %80 = tpu.matmul %79, %76, %cst_42 {dimension_numbers = #tpu.dot_dimension_numbers<[1], [0], [0], [1], [0, 0, 1, 1], [], []>} : vector<50x50xf32>, vector<50x2048xf32>, vector<50x2048xf32> -> vector<50x2048xf32>
    %81 = arith.index_cast %c7_i32 : i32 to index
    %c0_43 = arith.constant 0 : index
    %c0_44 = arith.constant 0 : index
    %82 = vector.load %arg5[%81, %c0_43, %c0_44] : memref<8x50x1xf32, #tpu.memory_space<vmem>>, vector<1x50x1xf32>
    %83 = vector.shape_cast %82 : vector<1x50x1xf32> to vector<50x1xf32>
    %84 = vector.broadcast %83 : vector<50x1xf32> to vector<50x2048xf32>
    %85 = arith.addf %80, %84 : vector<50x2048xf32>
    %86 = math.tanh %85 : vector<50x2048xf32>
    %c8_i32 = arith.constant 8 : i32
    %c0_45 = arith.constant 0 : index
    %c0_46 = arith.constant 0 : index
    %87 = vector.load %arg6[%c0_45, %c0_46] : memref<1x50xf32, #tpu.memory_space<vmem>>, vector<1x50xf32>
    %cst_47 = arith.constant dense<0.000000e+00> : vector<1x2048xf32>
    %88 = tpu.matmul %87, %86, %cst_47 {dimension_numbers = #tpu.dot_dimension_numbers<[1], [0], [0], [1], [0, 0, 1, 1], [], []>} : vector<1x50xf32>, vector<50x2048xf32>, vector<1x2048xf32> -> vector<1x2048xf32>
    %c0_48 = arith.constant 0 : index
    %c0_49 = arith.constant 0 : index
    %89 = vector.load %arg7[%c0_48, %c0_49] : memref<1x1xf32, #tpu.memory_space<vmem>>, vector<1x1xf32>
    %90 = vector.broadcast %89 : vector<1x1xf32> to vector<1x2048xf32>
    %91 = arith.addf %88, %90 : vector<1x2048xf32>
    %c0_50 = arith.constant 0 : index
    %c0_51 = arith.constant 0 : index
    %92 = vector.load %arg8[%c0_50, %c0_51] : memref<1x2048xf32, #tpu.memory_space<vmem>>, vector<1x2048xf32>
    tpu.vector_store %arg8[%c0_50, %c0_51], %91 {strides = array<i32>} : memref<1x2048xf32, #tpu.memory_space<vmem>>, vector<1x2048xf32>,
    return
  }
  func.func @transform_0(%arg0: i32) -> (i32, i32) {
    %c0_i32 = arith.constant 0 : i32
    %c0_i32_0 = arith.constant 0 : i32
    return %c0_i32, %arg0 : i32, i32
  }
  func.func @transform_1(%arg0: i32) -> (i32, i32) {
    %c0_i32 = arith.constant 0 : i32
    %c0_i32_0 = arith.constant 0 : i32
    %c0_i32_1 = arith.constant 0 : i32
    return %c0_i32, %c0_i32_0 : i32, i32
  }
  func.func @transform_2(%arg0: i32) -> (i32, i32) {
    %c0_i32 = arith.constant 0 : i32
    %c0_i32_0 = arith.constant 0 : i32
    %c0_i32_1 = arith.constant 0 : i32
    return %c0_i32, %c0_i32_0 : i32, i32
  }
  func.func @transform_3(%arg0: i32) -> (i32, i32, i32) {
    %c0_i32 = arith.constant 0 : i32
    %c0_i32_0 = arith.constant 0 : i32
    %c0_i32_1 = arith.constant 0 : i32
    %c0_i32_2 = arith.constant 0 : i32
    return %c0_i32, %c0_i32_0, %c0_i32_1 : i32, i32, i32
  }
  func.func @transform_4(%arg0: i32) -> (i32, i32, i32) {
    %c0_i32 = arith.constant 0 : i32
    %c0_i32_0 = arith.constant 0 : i32
    %c0_i32_1 = arith.constant 0 : i32
    %c0_i32_2 = arith.constant 0 : i32
    return %c0_i32, %c0_i32_0, %c0_i32_1 : i32, i32, i32
  }
  func.func @transform_5(%arg0: i32) -> (i32, i32) {
    %c0_i32 = arith.constant 0 : i32
    %c0_i32_0 = arith.constant 0 : i32
    %c0_i32_1 = arith.constant 0 : i32
    return %c0_i32, %c0_i32_0 : i32, i32
  }
  func.func @transform_6(%arg0: i32) -> (i32, i32) {
    %c0_i32 = arith.constant 0 : i32
    %c0_i32_0 = arith.constant 0 : i32
    %c0_i32_1 = arith.constant 0 : i32
    return %c0_i32, %c0_i32_0 : i32, i32
  }
  func.func @transform_7(%arg0: i32) -> (i32, i32) {
    %c0_i32 = arith.constant 0 : i32
    %c0_i32_0 = arith.constant 0 : i32
    return %c0_i32, %arg0 : i32, i32
  }
}

</mosaic_0001>

<llo_original>
// kernel: tpu_custom_call.1
$region0: #{tpu_custom_call.1}
  #allocation0 [shape = 'u32[]', space=smem, size = 0x4, offset = 0x4, fixed_abs, tag = 'smem constant byte address 0x4 - core index']
  #allocation1 [shape = 'u32[144,128]{1,0:T(1,128)}', space=vmem, size = 0x12000, scoped, tag = 'internal scratch']
  #allocation2 [shape = 'f32[1,1]{1,0:T(1,128)S(1)}', space=vmem, size = 0x200, scoped, tag = 'scoped memory for tpu_custom_call.1']
  %s0 = inlined_call_operand.vmem [shape: f32[2,2048], index: 0, kind: input, shape index: {}]
  %s1 = inlined_call_operand.vmem [shape: f32[50,2], index: 1, kind: input, shape index: {}]
  %s2 = inlined_call_operand.vmem [shape: f32[50,1], index: 2, kind: input, shape index: {}]
  %s3 = inlined_call_operand.vmem [shape: f32[8,50,50], index: 3, kind: input, shape index: {}]
  %s4 = inlined_call_operand.vmem [shape: f32[8,50,1], index: 4, kind: input, shape index: {}]
  %s5 = inlined_call_operand.vmem [shape: f32[1,50], index: 5, kind: input, shape index: {}]
  %s6 = inlined_call_operand.<no memory space> [shape: f32[1,1], index: 6, kind: input, shape index: {}]
  %s7 = inlined_call_operand.hbm [shape: f32[1,2048], index: 7, kind: output, shape index: {}]
  %s8 = sld [smem:[#allocation0]]
  $region38: #{tpu_custom_call.1} parent=0
    _
  %s10 = ssub.s32 1, %s8
  %s11 = scalar_select 0, %s10, %s8
  %v12 = vstv %s6
  %13 = vst [vmem:[#allocation2] sm:$0x1] %v12
  $region1: #{tpu_custom_call.1} parent=0
    #allocation3 [shape = 'u8[8192]{0}', space=vmem, size = 0x2000, scoped, tag = 'output window, operand 0, single buffered']
    #allocation4 [shape = 's32[1]{0}', space=sflag, size = 0x4, scoped, tag = 'scoped memory for tpu_custom_call.1']
    %14 = vsyncpa [#allocation4], 0
    // Predicated region
    $region2: #{tpu_custom_call.1} parent=1 // pred_check
      _
    $region3: #{tpu_custom_call.1} parent=1 // pred_check_branch
      %16 = sbr.rel (0) target = $region5
    $region4: #{tpu_custom_call.1} parent=1 // pred_region
      _
    $region5: #{tpu_custom_call.1} parent=1 // pred_fallthru
      _
    // Predicated region
    $region6: #{tpu_custom_call.1} parent=1 // pred_check
      _
    $region7: #{tpu_custom_call.1} parent=1 // pred_check_branch
      %18 = sbr.rel (0) target = $region9
    $region8: #{tpu_custom_call.1} parent=1 // pred_region
      _
    $region9: #{tpu_custom_call.1} parent=1 // pred_fallthru
      _
    // Predicated region
    $region10: #{tpu_custom_call.1} parent=1 // pred_check
      _
    $region11: #{tpu_custom_call.1} parent=1 // pred_check_branch
      %20 = sbr.rel (0) target = $region13
    $region12: #{tpu_custom_call.1} parent=1 // pred_region
      _
    $region13: #{tpu_custom_call.1} parent=1 // pred_fallthru
      _
    // Predicated region
    $region14: #{tpu_custom_call.1} parent=1 // pred_check
      _
    $region15: #{tpu_custom_call.1} parent=1 // pred_check_branch
      %22 = sbr.rel (0) target = $region17
    $region16: #{tpu_custom_call.1} parent=1 // pred_region
      _
    $region17: #{tpu_custom_call.1} parent=1 // pred_fallthru
      _
    // Predicated region
    $region18: #{tpu_custom_call.1} parent=1 // pred_check
      _
    $region19: #{tpu_custom_call.1} parent=1 // pred_check_branch
      %24 = sbr.rel (0) target = $region21
    $region20: #{tpu_custom_call.1} parent=1 // pred_region
      _
    $region21: #{tpu_custom_call.1} parent=1 // pred_fallthru
      _
    // Predicated region
    $region22: #{tpu_custom_call.1} parent=1 // pred_check
      _
    $region23: #{tpu_custom_call.1} parent=1 // pred_check_branch
      %26 = sbr.rel (0) target = $region25
    $region24: #{tpu_custom_call.1} parent=1 // pred_region
      _
    $region25: #{tpu_custom_call.1} parent=1 // pred_fallthru
      _
    // Predicated region
    $region26: #{tpu_custom_call.1} parent=1 // pred_check
      _
    $region27: #{tpu_custom_call.1} parent=1 // pred_check_branch
      %28 = sbr.rel (0) target = $region29
    $region28: #{tpu_custom_call.1} parent=1 // pred_region
      _
    $region29: #{tpu_custom_call.1} parent=1 // pred_fallthru
      _
    %v29 = vld [vmem:[%s1] sm:$0xff]
    %v30 = vld [vmem:[%s1 + $0x8] sm:$0xff]
    %v31 = vld [vmem:[%s1 + $0x10] sm:$0xff]
    %v32 = vld [vmem:[%s1 + $0x18] sm:$0xff]
    %v33 = vld [vmem:[%s1 + $0x20] sm:$0xff]
    %v34 = vld [vmem:[%s1 + $0x28] sm:$0xff]
    %v35 = vld [vmem:[%s1 + $0x30] sm:$0x3]
    %v36 = vld [vmem:[%s0] sm:$0xff]
    %v37 = vld [vmem:[%s0 + $0x8] sm:$0xff]
    %v38 = vld [vmem:[%s0 + $0x10] sm:$0xff]
    %v39 = vld [vmem:[%s0 + $0x18] sm:$0xff]
    %v40 = vld [vmem:[%s2] sm:$0xff]
    %v41 = vld [vmem:[%s2 + $0x8] sm:$0xff]
    %v42 = vld [vmem:[%s2 + $0x10] sm:$0xff]
    %v43 = vld [vmem:[%s2 + $0x18] sm:$0xff]
    %v44 = vld [vmem:[%s2 + $0x20] sm:$0xff]
    %v45 = vld [vmem:[%s2 + $0x28] sm:$0xff]
    %v46 = vld [vmem:[%s2 + $0x30] sm:$0x3]
    %48 = vset.pattern.permute.xlu0 0
    %49 = vperm.xlu0 %48, %v40
    %v50 = vpop.permute.xlu0 %49
    %53 = vset.pattern.permute.xlu0 0
    %54 = vperm.xlu0 %53, %v41
    %v55 = vpop.permute.xlu0 %54
    %58 = vset.pattern.permute.xlu0 0
    %59 = vperm.xlu0 %58, %v42
    %v60 = vpop.permute.xlu0 %59
    %63 = vset.pattern.permute.xlu0 0
    %64 = vperm.xlu0 %63, %v43
    %v65 = vpop.permute.xlu0 %64
    %68 = vset.pattern.permute.xlu0 0
    %69 = vperm.xlu0 %68, %v44
    %v70 = vpop.permute.xlu0 %69
    %73 = vset.pattern.permute.xlu0 0
    %74 = vperm.xlu0 %73, %v45
    %v75 = vpop.permute.xlu0 %74
    %78 = vset.pattern.permute.xlu0 0
    %79 = vperm.xlu0 %78, %v46
    %v80 = vpop.permute.xlu0 %79
    %v86 = vcombine.high %v36, %v36
    %v88 = vunpack.c.l.s4 1983009808
    %v89 = vunpack.c.0.s8 %v88
    %v90 = vlaneseq
    %v91 = vshrl.u32 %v90, 7
    %v92 = vsub.s32 %v89, %v91
    %v93 = vrot.slane %v36, %v92
    %v95 = vunpack.c.l.s4 1983009808
    %v96 = vunpack.c.0.s8 %v95
    %v97 = vlaneseq
    %v98 = vshrl.u32 %v97, 7
    %v99 = vsub.s32 %v96, %v98
    %v100 = vrot.slane %v86, %v99
    %v101 = vcombine.high %v93, %v93
    %v102 = vcombine.high %v100, %v100
    %v103 = vcombine.high %v37, %v37
    %v105 = vunpack.c.l.s4 1983009808
    %v106 = vunpack.c.0.s8 %v105
    %v107 = vlaneseq
    %v108 = vshrl.u32 %v107, 7
    %v109 = vsub.s32 %v106, %v108
    %v110 = vrot.slane %v37, %v109
    %v112 = vunpack.c.l.s4 1983009808
    %v113 = vunpack.c.0.s8 %v112
    %v114 = vlaneseq
    %v115 = vshrl.u32 %v114, 7
    %v116 = vsub.s32 %v113, %v115
    %v117 = vrot.slane %v103, %v116
    %v118 = vcombine.high %v110, %v110
    %v119 = vcombine.high %v117, %v117
    %v120 = vcombine.high %v38, %v38
    %v122 = vunpack.c.l.s4 1983009808
    %v123 = vunpack.c.0.s8 %v122
    %v124 = vlaneseq
    %v125 = vshrl.u32 %v124, 7
    %v126 = vsub.s32 %v123, %v125
    %v127 = vrot.slane %v38, %v126
    %v129 = vunpack.c.l.s4 1983009808
    %v130 = vunpack.c.0.s8 %v129
    %v131 = vlaneseq
    %v132 = vshrl.u32 %v131, 7
    %v133 = vsub.s32 %v130, %v132
    %v134 = vrot.slane %v120, %v133
    %v135 = vcombine.high %v127, %v127
    %v136 = vcombine.high %v134, %v134
    %v137 = vcombine.high %v39, %v39
    %v139 = vunpack.c.l.s4 1983009808
    %v140 = vunpack.c.0.s8 %v139
    %v141 = vlaneseq
    %v142 = vshrl.u32 %v141, 7
    %v143 = vsub.s32 %v140, %v142
    %v144 = vrot.slane %v39, %v143
    %v146 = vunpack.c.l.s4 1983009808
    %v147 = vunpack.c.0.s8 %v146
    %v148 = vlaneseq
    %v149 = vshrl.u32 %v148, 7
    %v150 = vsub.s32 %v147, %v149
    %v151 = vrot.slane %v137, %v150
    %v152 = vcombine.high %v144, %v144
    %v153 = vcombine.high %v151, %v151
    %vm154 = vcmask 15360
    %v156 = vsel %vm154, %v29, 0
    %v159 = vsel %vm154, %v30, 0
    %v162 = vsel %vm154, %v31, 0
    %v165 = vsel %vm154, %v32, 0
    %v168 = vsel %vm154, %v33, 0
    %v171 = vsel %vm154, %v34, 0
    %v174 = vsel %vm154, %v35, 0
    %vm176 = vcmask 1041408
    %v177 = vsel %vm176, %v93, 0
    %v179 = vsel %vm176, %v101, 0
    %v181 = vsel %vm176, %v100, 0
    %v183 = vsel %vm176, %v102, 0
    %v185 = vsel %vm176, %v110, 0
    %v187 = vsel %vm176, %v118, 0
    %v189 = vsel %vm176, %v117, 0
    %v191 = vsel %vm176, %v119, 0
    %v193 = vsel %vm176, %v127, 0
    %v195 = vsel %vm176, %v135, 0
    %v197 = vsel %vm176, %v134, 0
    %v199 = vsel %vm176, %v136, 0
    %v201 = vsel %vm176, %v144, 0
    %v203 = vsel %vm176, %v152, 0
    %v205 = vsel %vm176, %v151, 0
    %v207 = vsel %vm176, %v153, 0
    %209 = vmatprep.subr.mxu0 0.0
    %210 = vmatpush1.msra.mxu0 0.0
    %211 = vmatprep.subr.mxu0 0.0
    %212 = vmatpush1.msra.mxu0 0.0
    %213 = vmatprep.subr.mxu0 0.0
    %214 = vmatpush1.msra.mxu0 0.0
    %215 = vmatprep.subr.mxu0 0.0
    %216 = vmatpush1.msra.mxu0 0.0
    %217 = vmatprep.subr.mxu0 0.0
    %218 = vmatpush1.msra.mxu0 0.0
    %219 = vmatprep.subr.mxu0 0.0
    %220 = vmatpush1.msra.mxu0 0.0
    %221 = vmatprep.subr.mxu0 0.0
    %222 = vmatpush1.msra.mxu0 0.0
    %223 = vmatprep.subr.mxu0 0.0
    %224 = vmatpush1.msra.mxu0 0.0
    %225 = vmatprep.subr.mxu0 0.0
    %226 = vmatpush1.msra.mxu0 0.0
    %227 = vmatprep.subr.mxu0 0.0
    %228 = vmatpush1.msra.mxu0 0.0
    %229 = vmatprep.subr.mxu0 0.0
    %230 = vmatpush1.msra.mxu0 0.0
    %231 = vmatprep.subr.mxu0 0.0
    %232 = vmatpush1.msra.mxu0 0.0
    %233 = vmatprep.subr.mxu0 0.0
    %234 = vmatpush1.msra.mxu0 0.0
    %235 = vmatprep.subr.mxu0 0.0
    %236 = vmatpush1.msra.mxu0 0.0
    %237 = vmatprep.subr.mxu0 0.0
    %238 = vmatpush1.msra.mxu0 0.0
    %239 = vmatprep.subr.mxu0 %v179
    %240 = vmatpush1.msra.mxu0 %v177
    %241 = vmatprep.subr.mxu0 0.0
    %242 = vmatpush2.msra.mxu0 0.0
    %243 = vmatprep.subr.mxu0 0.0
    %244 = vmatpush2.msra.mxu0 0.0
    %245 = vmatprep.subr.mxu0 0.0
    %246 = vmatpush2.msra.mxu0 0.0
    %247 = vmatprep.subr.mxu0 0.0
    %248 = vmatpush2.msra.mxu0 0.0
    %249 = vmatprep.subr.mxu0 0.0
    %250 = vmatpush2.msra.mxu0 0.0
    %251 = vmatprep.subr.mxu0 0.0
    %252 = vmatpush2.msra.mxu0 0.0
    %253 = vmatprep.subr.mxu0 0.0
    %254 = vmatpush2.msra.mxu0 0.0
    %255 = vmatprep.subr.mxu0 0.0
    %256 = vmatpush2.msra.mxu0 0.0
    %257 = vmatprep.subr.mxu0 0.0
    %258 = vmatpush2.msra.mxu0 0.0
    %259 = vmatprep.subr.mxu0 0.0
    %260 = vmatpush2.msra.mxu0 0.0
    %261 = vmatprep.subr.mxu0 0.0
    %262 = vmatpush2.msra.mxu0 0.0
    %263 = vmatprep.subr.mxu0 0.0
    %264 = vmatpush2.msra.mxu0 0.0
    %265 = vmatprep.subr.mxu0 0.0
    %266 = vmatpush2.msra.mxu0 0.0
    %267 = vmatprep.subr.mxu0 0.0
    %268 = vmatpush2.msra.mxu0 0.0
    %269 = vmatprep.subr.mxu0 0.0
    %270 = vmatpush2.msra.mxu0 0.0
    %271 = vmatprep.subr.mxu0 0.0
    %272 = vmatpush2.msra.mxu0 0.0
    %273 = vmatprep.mubr.f32.mxu0 0.0
    %274 = vmatmul.mubr.f32.gmra.mxu0 %v156
    %v275 = vpop.f32.mrf.mxu0
    %v276 = vadd.f32 %v50, %v275
    %v277 = vpop.f32.mrf.mxu0
    %v278 = vadd.f32 %v50, %v277
    %279 = vmatprep.mubr.f32.mxu0 0.0
    %280 = vmatmul.mubr.f32.gmra.mxu0 %v159
    %v281 = vpop.f32.mrf.mxu0
    %v282 = vadd.f32 %v55, %v281
    %v283 = vpop.f32.mrf.mxu0
    %v284 = vadd.f32 %v55, %v283
    %285 = vmatprep.mubr.f32.mxu0 0.0
    %286 = vmatmul.mubr.f32.gmra.mxu0 %v162
    %v287 = vpop.f32.mrf.mxu0
    %v288 = vadd.f32 %v60, %v287
    %v289 = vpop.f32.mrf.mxu0
    %v290 = vadd.f32 %v60, %v289
    %291 = vmatprep.mubr.f32.mxu0 0.0
    %292 = vmatmul.mubr.f32.gmra.mxu0 %v165
    %v293 = vpop.f32.mrf.mxu0
    %v294 = vadd.f32 %v65, %v293
    %v295 = vpop.f32.mrf.mxu0
    %v296 = vadd.f32 %v65, %v295
    %297 = vmatprep.mubr.f32.mxu0 0.0
    %298 = vmatmul.mubr.f32.gmra.mxu0 %v168
    %v299 = vpop.f32.mrf.mxu0
    %v300 = vadd.f32 %v70, %v299
    %v301 = vpop.f32.mrf.mxu0
    %v302 = vadd.f32 %v70, %v301
    %303 = vmatprep.mubr.f32.mxu0 0.0
    %304 = vmatmul.mubr.f32.gmra.mxu0 %v171
    %v305 = vpop.f32.mrf.mxu0
    %v306 = vadd.f32 %v75, %v305
    %v307 = vpop.f32.mrf.mxu0
    %v308 = vadd.f32 %v75, %v307
    %309 = vmatprep.mubr.f32.mxu0 0.0
    %310 = vmatmul.mubr.f32.gmra.mxu0 %v174
    %v311 = vpop.f32.mrf.mxu0
    %v312 = vadd.f32 %v80, %v311
    %v313 = vpop.f32.mrf.mxu0
    %v314 = vadd.f32 %v80, %v313
    %315 = vdwg.mxu0
    %316 = vmatprep.subr.mxu0 0.0
    %317 = vmatpush1.msra.mxu0 0.0
    %318 = vmatprep.subr.mxu0 0.0
    %319 = vmatpush1.msra.mxu0 0.0
    %320 = vmatprep.subr.mxu0 0.0
    %321 = vmatpush1.msra.mxu0 0.0
    %322 = vmatprep.subr.mxu0 0.0
    %323 = vmatpush1.msra.mxu0 0.0
    %324 = vmatprep.subr.mxu0 0.0
    %325 = vmatpush1.msra.mxu0 0.0
    %326 = vmatprep.subr.mxu0 0.0
    %327 = vmatpush1.msra.mxu0 0.0
    %328 = vmatprep.subr.mxu0 0.0
    %329 = vmatpush1.msra.mxu0 0.0
    %330 = vmatprep.subr.mxu0 0.0
    %331 = vmatpush1.msra.mxu0 0.0
    %332 = vmatprep.subr.mxu0 0.0
    %333 = vmatpush1.msra.mxu0 0.0
    %334 = vmatprep.subr.mxu0 0.0
    %335 = vmatpush1.msra.mxu0 0.0
    %336 = vmatprep.subr.mxu0 0.0
    %337 = vmatpush1.msra.mxu0 0.0
    %338 = vmatprep.subr.mxu0 0.0
    %339 = vmatpush1.msra.mxu0 0.0
    %340 = vmatprep.subr.mxu0 0.0
    %341 = vmatpush1.msra.mxu0 0.0
    %342 = vmatprep.subr.mxu0 0.0
    %343 = vmatpush1.msra.mxu0 0.0
    %344 = vmatprep.subr.mxu0 0.0
    %345 = vmatpush1.msra.mxu0 0.0
    %346 = vmatprep.subr.mxu0 %v183
    %347 = vmatpush1.msra.mxu0 %v181
    %348 = vmatprep.subr.mxu0 0.0
    %349 = vmatpush2.msra.mxu0 0.0
    %350 = vmatprep.subr.mxu0 0.0
    %351 = vmatpush2.msra.mxu0 0.0
    %352 = vmatprep.subr.mxu0 0.0
    %353 = vmatpush2.msra.mxu0 0.0
    %354 = vmatprep.subr.mxu0 0.0
    %355 = vmatpush2.msra.mxu0 0.0
    %356 = vmatprep.subr.mxu0 0.0
    %357 = vmatpush2.msra.mxu0 0.0
    %358 = vmatprep.subr.mxu0 0.0
    %359 = vmatpush2.msra.mxu0 0.0
    %360 = vmatprep.subr.mxu0 0.0
    %361 = vmatpush2.msra.mxu0 0.0
    %362 = vmatprep.subr.mxu0 0.0
    %363 = vmatpush2.msra.mxu0 0.0
    %364 = vmatprep.subr.mxu0 0.0
    %365 = vmatpush2.msra.mxu0 0.0
    %366 = vmatprep.subr.mxu0 0.0
    %367 = vmatpush2.msra.mxu0 0.0
    %368 = vmatprep.subr.mxu0 0.0
    %369 = vmatpush2.msra.mxu0 0.0
    %370 = vmatprep.subr.mxu0 0.0
    %371 = vmatpush2.msra.mxu0 0.0
    %372 = vmatprep.subr.mxu0 0.0
    %373 = vmatpush2.msra.mxu0 0.0
    %374 = vmatprep.subr.mxu0 0.0
    %375 = vmatpush2.msra.mxu0 0.0
    %376 = vmatprep.subr.mxu0 0.0
    %377 = vmatpush2.msra.mxu0 0.0
    %378 = vmatprep.subr.mxu0 0.0
    %379 = vmatpush2.msra.mxu0 0.0
    %380 = vmatprep.mubr.f32.mxu0 0.0
    %381 = vmatmul.mubr.f32.gmra.mxu0 %v156
    %v382 = vpop.f32.mrf.mxu0
    %v383 = vadd.f32 %v50, %v382
    %v384 = vpop.f32.mrf.mxu0
    %v385 = vadd.f32 %v50, %v384
    %386 = vmatprep.mubr.f32.mxu0 0.0
    %387 = vmatmul.mubr.f32.gmra.mxu0 %v159
    %v388 = vpop.f32.mrf.mxu0
    %v389 = vadd.f32 %v55, %v388
    %v390 = vpop.f32.mrf.mxu0
    %v391 = vadd.f32 %v55, %v390
    %392 = vmatprep.mubr.f32.mxu0 0.0
    %393 = vmatmul.mubr.f32.gmra.mxu0 %v162
    %v394 = vpop.f32.mrf.mxu0
    %v395 = vadd.f32 %v60, %v394
    %v396 = vpop.f32.mrf.mxu0
    %v397 = vadd.f32 %v60, %v396
    %398 = vmatprep.mubr.f32.mxu0 0.0
    %399 = vmatmul.mubr.f32.gmra.mxu0 %v165
    %v400 = vpop.f32.mrf.mxu0
    %v401 = vadd.f32 %v65, %v400
    %v402 = vpop.f32.mrf.mxu0
    %v403 = vadd.f32 %v65, %v402
    %404 = vmatprep.mubr.f32.mxu0 0.0
    %405 = vmatmul.mubr.f32.gmra.mxu0 %v168
    %v406 = vpop.f32.mrf.mxu0
    %v407 = vadd.f32 %v70, %v406
    %v408 = vpop.f32.mrf.mxu0
    %v409 = vadd.f32 %v70, %v408
    %410 = vmatprep.mubr.f32.mxu0 0.0
    %411 = vmatmul.mubr.f32.gmra.mxu0 %v171
    %v412 = vpop.f32.mrf.mxu0
    %v413 = vadd.f32 %v75, %v412
    %v414 = vpop.f32.mrf.mxu0
    %v415 = vadd.f32 %v75, %v414
    %416 = vmatprep.mubr.f32.mxu0 0.0
    %417 = vmatmul.mubr.f32.gmra.mxu0 %v174
    %v418 = vpop.f32.mrf.mxu0
    %v419 = vadd.f32 %v80, %v418
    %v420 = vpop.f32.mrf.mxu0
    %v421 = vadd.f32 %v80, %v420
    %422 = vdwg.mxu0
    %423 = vmatprep.subr.mxu0 0.0
    %424 = vmatpush1.msra.mxu0 0.0
    %425 = vmatprep.subr.mxu0 0.0
    %426 = vmatpush1.msra.mxu0 0.0
    %427 = vmatprep.subr.mxu0 0.0
    %428 = vmatpush1.msra.mxu0 0.0
    %429 = vmatprep.subr.mxu0 0.0
    %430 = vmatpush1.msra.mxu0 0.0
    %431 = vmatprep.subr.mxu0 0.0
    %432 = vmatpush1.msra.mxu0 0.0
    %433 = vmatprep.subr.mxu0 0.0
    %434 = vmatpush1.msra.mxu0 0.0
    %435 = vmatprep.subr.mxu0 0.0
    %436 = vmatpush1.msra.mxu0 0.0
    %437 = vmatprep.subr.mxu0 0.0
    %438 = vmatpush1.msra.mxu0 0.0
    %439 = vmatprep.subr.mxu0 0.0
    %440 = vmatpush1.msra.mxu0 0.0
    %441 = vmatprep.subr.mxu0 0.0
    %442 = vmatpush1.msra.mxu0 0.0
    %443 = vmatprep.subr.mxu0 0.0
    %444 = vmatpush1.msra.mxu0 0.0
    %445 = vmatprep.subr.mxu0 0.0
    %446 = vmatpush1.msra.mxu0 0.0
    %447 = vmatprep.subr.mxu0 0.0
    %448 = vmatpush1.msra.mxu0 0.0
    %449 = vmatprep.subr.mxu0 0.0
    %450 = vmatpush1.msra.mxu0 0.0
    %451 = vmatprep.subr.mxu0 0.0
    %452 = vmatpush1.msra.mxu0 0.0
    %453 = vmatprep.subr.mxu0 %v187
    %454 = vmatpush1.msra.mxu0 %v185
    %455 = vmatprep.subr.mxu0 0.0
    %456 = vmatpush2.msra.mxu0 0.0
    %457 = vmatprep.subr.mxu0 0.0
    %458 = vmatpush2.msra.mxu0 0.0
    %459 = vmatprep.subr.mxu0 0.0
    %460 = vmatpush2.msra.mxu0 0.0
    %461 = vmatprep.subr.mxu0 0.0
    %462 = vmatpush2.msra.mxu0 0.0
    %463 = vmatprep.subr.mxu0 0.0
    %464 = vmatpush2.msra.mxu0 0.0
    %465 = vmatprep.subr.mxu0 0.0
    %466 = vmatpush2.msra.mxu0 0.0
    %467 = vmatprep.subr.mxu0 0.0
    %468 = vmatpush2.msra.mxu0 0.0
    %469 = vmatprep.subr.mxu0 0.0
    %470 = vmatpush2.msra.mxu0 0.0
    %471 = vmatprep.subr.mxu0 0.0
    %472 = vmatpush2.msra.mxu0 0.0
    %473 = vmatprep.subr.mxu0 0.0
    %474 = vmatpush2.msra.mxu0 0.0
    %475 = vmatprep.subr.mxu0 0.0
    %476 = vmatpush2.msra.mxu0 0.0
    %477 = vmatprep.subr.mxu0 0.0
    %478 = vmatpush2.msra.mxu0 0.0
    %479 = vmatprep.subr.mxu0 0.0
    %480 = vmatpush2.msra.mxu0 0.0
    %481 = vmatprep.subr.mxu0 0.0
    %482 = vmatpush2.msra.mxu0 0.0
    %483 = vmatprep.subr.mxu0 0.0
    %484 = vmatpush2.msra.mxu0 0.0
    %485 = vmatprep.subr.mxu0 0.0
    %486 = vmatpush2.msra.mxu0 0.0
    %487 = vmatprep.mubr.f32.mxu0 0.0
    %488 = vmatmul.mubr.f32.gmra.mxu0 %v156
    %v489 = vpop.f32.mrf.mxu0
    %v490 = vadd.f32 %v50, %v489
    %v491 = vpop.f32.mrf.mxu0
    %v492 = vadd.f32 %v50, %v491
    %493 = vmatprep.mubr.f32.mxu0 0.0
    %494 = vmatmul.mubr.f32.gmra.mxu0 %v159
    %v495 = vpop.f32.mrf.mxu0
    %v496 = vadd.f32 %v55, %v495
    %v497 = vpop.f32.mrf.mxu0
    %v498 = vadd.f32 %v55, %v497
    %499 = vmatprep.mubr.f32.mxu0 0.0
    %500 = vmatmul.mubr.f32.gmra.mxu0 %v162
    %v501 = vpop.f32.mrf.mxu0
    %v502 = vadd.f32 %v60, %v501
    %v503 = vpop.f32.mrf.mxu0
    %v504 = vadd.f32 %v60, %v503
    %505 = vmatprep.mubr.f32.mxu0 0.0
    %506 = vmatmul.mubr.f32.gmra.mxu0 %v165
    %v507 = vpop.f32.mrf.mxu0
    %v508 = vadd.f32 %v65, %v507
    %v509 = vpop.f32.mrf.mxu0
    %v510 = vadd.f32 %v65, %v509
    %511 = vmatprep.mubr.f32.mxu0 0.0
    %512 = vmatmul.mubr.f32.gmra.mxu0 %v168
    %v513 = vpop.f32.mrf.mxu0
    %v514 = vadd.f32 %v70, %v513
    %v515 = vpop.f32.mrf.mxu0
    %v516 = vadd.f32 %v70, %v515
    %517 = vmatprep.mubr.f32.mxu0 0.0
    %518 = vmatmul.mubr.f32.gmra.mxu0 %v171
    %v519 = vpop.f32.mrf.mxu0
    %v520 = vadd.f32 %v75, %v519
    %v521 = vpop.f32.mrf.mxu0
    %v522 = vadd.f32 %v75, %v521
    %523 = vmatprep.mubr.f32.mxu0 0.0
    %524 = vmatmul.mubr.f32.gmra.mxu0 %v174
    %v525 = vpop.f32.mrf.mxu0
    %v526 = vadd.f32 %v80, %v525
    %v527 = vpop.f32.mrf.mxu0
    %v528 = vadd.f32 %v80, %v527
    %529 = vdwg.mxu0
    %530 = vmatprep.subr.mxu0 0.0
    %531 = vmatpush1.msra.mxu0 0.0
    %532 = vmatprep.subr.mxu0 0.0
    %533 = vmatpush1.msra.mxu0 0.0
    %534 = vmatprep.subr.mxu0 0.0
    %535 = vmatpush1.msra.mxu0 0.0
    %536 = vmatprep.subr.mxu0 0.0
    %537 = vmatpush1.msra.mxu0 0.0
    %538 = vmatprep.subr.mxu0 0.0
    %539 = vmatpush1.msra.mxu0 0.0
    %540 = vmatprep.subr.mxu0 0.0
    %541 = vmatpush1.msra.mxu0 0.0
    %542 = vmatprep.subr.mxu0 0.0
    %543 = vmatpush1.msra.mxu0 0.0
    %544 = vmatprep.subr.mxu0 0.0
    %545 = vmatpush1.msra.mxu0 0.0
    %546 = vmatprep.subr.mxu0 0.0
    %547 = vmatpush1.msra.mxu0 0.0
    %548 = vmatprep.subr.mxu0 0.0
    %549 = vmatpush1.msra.mxu0 0.0
    %550 = vmatprep.subr.mxu0 0.0
    %551 = vmatpush1.msra.mxu0 0.0
    %552 = vmatprep.subr.mxu0 0.0
    %553 = vmatpush1.msra.mxu0 0.0
    %554 = vmatprep.subr.mxu0 0.0
    %555 = vmatpush1.msra.mxu0 0.0
    %556 = vmatprep.subr.mxu0 0.0
    %557 = vmatpush1.msra.mxu0 0.0
    %558 = vmatprep.subr.mxu0 0.0
    %559 = vmatpush1.msra.mxu0 0.0
    %560 = vmatprep.subr.mxu0 %v191
    %561 = vmatpush1.msra.mxu0 %v189
    %562 = vmatprep.subr.mxu0 0.0
    %563 = vmatpush2.msra.mxu0 0.0
    %564 = vmatprep.subr.mxu0 0.0
    %565 = vmatpush2.msra.mxu0 0.0
    %566 = vmatprep.subr.mxu0 0.0
    %567 = vmatpush2.msra.mxu0 0.0
    %568 = vmatprep.subr.mxu0 0.0
    %569 = vmatpush2.msra.mxu0 0.0
    %570 = vmatprep.subr.mxu0 0.0
    %571 = vmatpush2.msra.mxu0 0.0
    %572 = vmatprep.subr.mxu0 0.0
    %573 = vmatpush2.msra.mxu0 0.0
    %574 = vmatprep.subr.mxu0 0.0
    %575 = vmatpush2.msra.mxu0 0.0
    %576 = vmatprep.subr.mxu0 0.0
    %577 = vmatpush2.msra.mxu0 0.0
    %578 = vmatprep.subr.mxu0 0.0
    %579 = vmatpush2.msra.mxu0 0.0
    %580 = vmatprep.subr.mxu0 0.0
    %581 = vmatpush2.msra.mxu0 0.0
    %582 = vmatprep.subr.mxu0 0.0
    %583 = vmatpush2.msra.mxu0 0.0
    %584 = vmatprep.subr.mxu0 0.0
    %585 = vmatpush2.msra.mxu0 0.0
    %586 = vmatprep.subr.mxu0 0.0
    %587 = vmatpush2.msra.mxu0 0.0
    %588 = vmatprep.subr.mxu0 0.0
    %589 = vmatpush2.msra.mxu0 0.0
    %590 = vmatprep.subr.mxu0 0.0
    %591 = vmatpush2.msra.mxu0 0.0
    %592 = vmatprep.subr.mxu0 0.0
    %593 = vmatpush2.msra.mxu0 0.0
    %594 = vmatprep.mubr.f32.mxu0 0.0
    %595 = vmatmul.mubr.f32.gmra.mxu0 %v156
    %v596 = vpop.f32.mrf.mxu0
    %v597 = vadd.f32 %v50, %v596
    %v598 = vpop.f32.mrf.mxu0
    %v599 = vadd.f32 %v50, %v598
    %600 = vmatprep.mubr.f32.mxu0 0.0
    %601 = vmatmul.mubr.f32.gmra.mxu0 %v159
    %v602 = vpop.f32.mrf.mxu0
    %v603 = vadd.f32 %v55, %v602
    %v604 = vpop.f32.mrf.mxu0
    %v605 = vadd.f32 %v55, %v604
    %606 = vmatprep.mubr.f32.mxu0 0.0
    %607 = vmatmul.mubr.f32.gmra.mxu0 %v162
    %v608 = vpop.f32.mrf.mxu0
    %v609 = vadd.f32 %v60, %v608
    %v610 = vpop.f32.mrf.mxu0
    %v611 = vadd.f32 %v60, %v610
    %612 = vmatprep.mubr.f32.mxu0 0.0
    %613 = vmatmul.mubr.f32.gmra.mxu0 %v165
    %v614 = vpop.f32.mrf.mxu0
    %v615 = vadd.f32 %v65, %v614
    %v616 = vpop.f32.mrf.mxu0
    %v617 = vadd.f32 %v65, %v616
    %618 = vmatprep.mubr.f32.mxu0 0.0
    %619 = vmatmul.mubr.f32.gmra.mxu0 %v168
    %v620 = vpop.f32.mrf.mxu0
    %v621 = vadd.f32 %v70, %v620
    %v622 = vpop.f32.mrf.mxu0
    %v623 = vadd.f32 %v70, %v622
    %624 = vmatprep.mubr.f32.mxu0 0.0
    %625 = vmatmul.mubr.f32.gmra.mxu0 %v171
    %v626 = vpop.f32.mrf.mxu0
    %v627 = vadd.f32 %v75, %v626
    %v628 = vpop.f32.mrf.mxu0
    %v629 = vadd.f32 %v75, %v628
    %630 = vmatprep.mubr.f32.mxu0 0.0
    %631 = vmatmul.mubr.f32.gmra.mxu0 %v174
    %v632 = vpop.f32.mrf.mxu0
    %v633 = vadd.f32 %v80, %v632
    %v634 = vpop.f32.mrf.mxu0
    %v635 = vadd.f32 %v80, %v634
    %636 = vdwg.mxu0
    %637 = vmatprep.subr.mxu0 0.0
    %638 = vmatpush1.msra.mxu0 0.0
    %639 = vmatprep.subr.mxu0 0.0
    %640 = vmatpush1.msra.mxu0 0.0
    %641 = vmatprep.subr.mxu0 0.0
    %642 = vmatpush1.msra.mxu0 0.0
    %643 = vmatprep.subr.mxu0 0.0
    %644 = vmatpush1.msra.mxu0 0.0
    %645 = vmatprep.subr.mxu0 0.0
    %646 = vmatpush1.msra.mxu0 0.0
    %647 = vmatprep.subr.mxu0 0.0
    %648 = vmatpush1.msra.mxu0 0.0
    %649 = vmatprep.subr.mxu0 0.0
    %650 = vmatpush1.msra.mxu0 0.0
    %651 = vmatprep.subr.mxu0 0.0
    %652 = vmatpush1.msra.mxu0 0.0
    %653 = vmatprep.subr.mxu0 0.0
    %654 = vmatpush1.msra.mxu0 0.0
    %655 = vmatprep.subr.mxu0 0.0
    %656 = vmatpush1.msra.mxu0 0.0
    %657 = vmatprep.subr.mxu0 0.0
    %658 = vmatpush1.msra.mxu0 0.0
    %659 = vmatprep.subr.mxu0 0.0
    %660 = vmatpush1.msra.mxu0 0.0
    %661 = vmatprep.subr.mxu0 0.0
    %662 = vmatpush1.msra.mxu0 0.0
    %663 = vmatprep.subr.mxu0 0.0
    %664 = vmatpush1.msra.mxu0 0.0
    %665 = vmatprep.subr.mxu0 0.0
    %666 = vmatpush1.msra.mxu0 0.0
    %667 = vmatprep.subr.mxu0 %v195
    %668 = vmatpush1.msra.mxu0 %v193
    %669 = vmatprep.subr.mxu0 0.0
    %670 = vmatpush2.msra.mxu0 0.0
    %671 = vmatprep.subr.mxu0 0.0
    %672 = vmatpush2.msra.mxu0 0.0
    %673 = vmatprep.subr.mxu0 0.0
    %674 = vmatpush2.msra.mxu0 0.0
    %675 = vmatprep.subr.mxu0 0.0
    %676 = vmatpush2.msra.mxu0 0.0
    %677 = vmatprep.subr.mxu0 0.0
    %678 = vmatpush2.msra.mxu0 0.0
    %679 = vmatprep.subr.mxu0 0.0
    %680 = vmatpush2.msra.mxu0 0.0
    %681 = vmatprep.subr.mxu0 0.0
    %682 = vmatpush2.msra.mxu0 0.0
    %683 = vmatprep.subr.mxu0 0.0
    %684 = vmatpush2.msra.mxu0 0.0
    %685 = vmatprep.subr.mxu0 0.0
    %686 = vmatpush2.msra.mxu0 0.0
    %687 = vmatprep.subr.mxu0 0.0
    %688 = vmatpush2.msra.mxu0 0.0
    %689 = vmatprep.subr.mxu0 0.0
    %690 = vmatpush2.msra.mxu0 0.0
    %691 = vmatprep.subr.mxu0 0.0
    %692 = vmatpush2.msra.mxu0 0.0
    %693 = vmatprep.subr.mxu0 0.0
    %694 = vmatpush2.msra.mxu0 0.0
    %695 = vmatprep.subr.mxu0 0.0
    %696 = vmatpush2.msra.mxu0 0.0
    %697 = vmatprep.subr.mxu0 0.0
    %698 = vmatpush2.msra.mxu0 0.0
    %699 = vmatprep.subr.mxu0 0.0
    %700 = vmatpush2.msra.mxu0 0.0
    %701 = vmatprep.mubr.f32.mxu0 0.0
    %702 = vmatmul.mubr.f32.gmra.mxu0 %v156
    %v703 = vpop.f32.mrf.mxu0
    %v704 = vadd.f32 %v50, %v703
    %v705 = vpop.f32.mrf.mxu0
    %v706 = vadd.f32 %v50, %v705
    %707 = vmatprep.mubr.f32.mxu0 0.0
    %708 = vmatmul.mubr.f32.gmra.mxu0 %v159
    %v709 = vpop.f32.mrf.mxu0
    %v710 = vadd.f32 %v55, %v709
    %v711 = vpop.f32.mrf.mxu0
    %v712 = vadd.f32 %v55, %v711
    %713 = vmatprep.mubr.f32.mxu0 0.0
    %714 = vmatmul.mubr.f32.gmra.mxu0 %v162
    %v715 = vpop.f32.mrf.mxu0
    %v716 = vadd.f32 %v60, %v715
    %v717 = vpop.f32.mrf.mxu0
    %v718 = vadd.f32 %v60, %v717
    %719 = vmatprep.mubr.f32.mxu0 0.0
    %720 = vmatmul.mubr.f32.gmra.mxu0 %v165
    %v721 = vpop.f32.mrf.mxu0
    %v722 = vadd.f32 %v65, %v721
    %v723 = vpop.f32.mrf.mxu0
    %v724 = vadd.f32 %v65, %v723
    %725 = vmatprep.mubr.f32.mxu0 0.0
    %726 = vmatmul.mubr.f32.gmra.mxu0 %v168
    %v727 = vpop.f32.mrf.mxu0
    %v728 = vadd.f32 %v70, %v727
    %v729 = vpop.f32.mrf.mxu0
    %v730 = vadd.f32 %v70, %v729
    %731 = vmatprep.mubr.f32.mxu0 0.0
    %732 = vmatmul.mubr.f32.gmra.mxu0 %v171
    %v733 = vpop.f32.mrf.mxu0
    %v734 = vadd.f32 %v75, %v733
    %v735 = vpop.f32.mrf.mxu0
    %v736 = vadd.f32 %v75, %v735
    %737 = vmatprep.mubr.f32.mxu0 0.0
    %738 = vmatmul.mubr.f32.gmra.mxu0 %v174
    %v739 = vpop.f32.mrf.mxu0
    %v740 = vadd.f32 %v80, %v739
    %v741 = vpop.f32.mrf.mxu0
    %v742 = vadd.f32 %v80, %v741
    %743 = vdwg.mxu0
    %744 = vmatprep.subr.mxu0 0.0
    %745 = vmatpush1.msra.mxu0 0.0
    %746 = vmatprep.subr.mxu0 0.0
    %747 = vmatpush1.msra.mxu0 0.0
    %748 = vmatprep.subr.mxu0 0.0
    %749 = vmatpush1.msra.mxu0 0.0
    %750 = vmatprep.subr.mxu0 0.0
    %751 = vmatpush1.msra.mxu0 0.0
    %752 = vmatprep.subr.mxu0 0.0
    %753 = vmatpush1.msra.mxu0 0.0
    %754 = vmatprep.subr.mxu0 0.0
    %755 = vmatpush1.msra.mxu0 0.0
    %756 = vmatprep.subr.mxu0 0.0
    %757 = vmatpush1.msra.mxu0 0.0
    %758 = vmatprep.subr.mxu0 0.0
    %759 = vmatpush1.msra.mxu0 0.0
    %760 = vmatprep.subr.mxu0 0.0
    %761 = vmatpush1.msra.mxu0 0.0
    %762 = vmatprep.subr.mxu0 0.0
    %763 = vmatpush1.msra.mxu0 0.0
    %764 = vmatprep.subr.mxu0 0.0
    %765 = vmatpush1.msra.mxu0 0.0
    %766 = vmatprep.subr.mxu0 0.0
    %767 = vmatpush1.msra.mxu0 0.0
    %768 = vmatprep.subr.mxu0 0.0
    %769 = vmatpush1.msra.mxu0 0.0
    %770 = vmatprep.subr.mxu0 0.0
    %771 = vmatpush1.msra.mxu0 0.0
    %772 = vmatprep.subr.mxu0 0.0
    %773 = vmatpush1.msra.mxu0 0.0
    %774 = vmatprep.subr.mxu0 %v199
    %775 = vmatpush1.msra.mxu0 %v197
    %776 = vmatprep.subr.mxu0 0.0
    %777 = vmatpush2.msra.mxu0 0.0
    %778 = vmatprep.subr.mxu0 0.0
    %779 = vmatpush2.msra.mxu0 0.0
    %780 = vmatprep.subr.mxu0 0.0
    %781 = vmatpush2.msra.mxu0 0.0
    %782 = vmatprep.subr.mxu0 0.0
    %783 = vmatpush2.msra.mxu0 0.0
    %784 = vmatprep.subr.mxu0 0.0
    %785 = vmatpush2.msra.mxu0 0.0
    %786 = vmatprep.subr.mxu0 0.0
    %787 = vmatpush2.msra.mxu0 0.0
    %788 = vmatprep.subr.mxu0 0.0
    %789 = vmatpush2.msra.mxu0 0.0
    %790 = vmatprep.subr.mxu0 0.0
    %791 = vmatpush2.msra.mxu0 0.0
    %792 = vmatprep.subr.mxu0 0.0
    %793 = vmatpush2.msra.mxu0 0.0
    %794 = vmatprep.subr.mxu0 0.0
    %795 = vmatpush2.msra.mxu0 0.0
    %796 = vmatprep.subr.mxu0 0.0
    %797 = vmatpush2.msra.mxu0 0.0
    %798 = vmatprep.subr.mxu0 0.0
    %799 = vmatpush2.msra.mxu0 0.0
    %800 = vmatprep.subr.mxu0 0.0
    %801 = vmatpush2.msra.mxu0 0.0
    %802 = vmatprep.subr.mxu0 0.0
    %803 = vmatpush2.msra.mxu0 0.0
    %804 = vmatprep.subr.mxu0 0.0
    %805 = vmatpush2.msra.mxu0 0.0
    %806 = vmatprep.subr.mxu0 0.0
    %807 = vmatpush2.msra.mxu0 0.0
    %808 = vmatprep.mubr.f32.mxu0 0.0
    %809 = vmatmul.mubr.f32.gmra.mxu0 %v156
    %v810 = vpop.f32.mrf.mxu0
    %v811 = vadd.f32 %v50, %v810
    %v812 = vpop.f32.mrf.mxu0
    %v813 = vadd.f32 %v50, %v812
    %814 = vmatprep.mubr.f32.mxu0 0.0
    %815 = vmatmul.mubr.f32.gmra.mxu0 %v159
    %v816 = vpop.f32.mrf.mxu0
    %v817 = vadd.f32 %v55, %v816
    %v818 = vpop.f32.mrf.mxu0
    %v819 = vadd.f32 %v55, %v818
    %820 = vmatprep.mubr.f32.mxu0 0.0
    %821 = vmatmul.mubr.f32.gmra.mxu0 %v162
    %v822 = vpop.f32.mrf.mxu0
    %v823 = vadd.f32 %v60, %v822
    %v824 = vpop.f32.mrf.mxu0
    %v825 = vadd.f32 %v60, %v824
    %826 = vmatprep.mubr.f32.mxu0 0.0
    %827 = vmatmul.mubr.f32.gmra.mxu0 %v165
    %v828 = vpop.f32.mrf.mxu0
    %v829 = vadd.f32 %v65, %v828
    %v830 = vpop.f32.mrf.mxu0
    %v831 = vadd.f32 %v65, %v830
    %832 = vmatprep.mubr.f32.mxu0 0.0
    %833 = vmatmul.mubr.f32.gmra.mxu0 %v168
    %v834 = vpop.f32.mrf.mxu0
    %v835 = vadd.f32 %v70, %v834
    %v836 = vpop.f32.mrf.mxu0
    %v837 = vadd.f32 %v70, %v836
    %838 = vmatprep.mubr.f32.mxu0 0.0
    %839 = vmatmul.mubr.f32.gmra.mxu0 %v171
    %v840 = vpop.f32.mrf.mxu0
    %v841 = vadd.f32 %v75, %v840
    %v842 = vpop.f32.mrf.mxu0
    %v843 = vadd.f32 %v75, %v842
    %844 = vmatprep.mubr.f32.mxu0 0.0
    %845 = vmatmul.mubr.f32.gmra.mxu0 %v174
    %v846 = vpop.f32.mrf.mxu0
    %v847 = vadd.f32 %v80, %v846
    %v848 = vpop.f32.mrf.mxu0
    %v849 = vadd.f32 %v80, %v848
    %850 = vdwg.mxu0
    %851 = vmatprep.subr.mxu0 0.0
    %852 = vmatpush1.msra.mxu0 0.0
    %853 = vmatprep.subr.mxu0 0.0
    %854 = vmatpush1.msra.mxu0 0.0
    %855 = vmatprep.subr.mxu0 0.0
    %856 = vmatpush1.msra.mxu0 0.0
    %857 = vmatprep.subr.mxu0 0.0
    %858 = vmatpush1.msra.mxu0 0.0
    %859 = vmatprep.subr.mxu0 0.0
    %860 = vmatpush1.msra.mxu0 0.0
    %861 = vmatprep.subr.mxu0 0.0
    %862 = vmatpush1.msra.mxu0 0.0
    %863 = vmatprep.subr.mxu0 0.0
    %864 = vmatpush1.msra.mxu0 0.0
    %865 = vmatprep.subr.mxu0 0.0
    %866 = vmatpush1.msra.mxu0 0.0
    %867 = vmatprep.subr.mxu0 0.0
    %868 = vmatpush1.msra.mxu0 0.0
    %869 = vmatprep.subr.mxu0 0.0
    %870 = vmatpush1.msra.mxu0 0.0
    %871 = vmatprep.subr.mxu0 0.0
    %872 = vmatpush1.msra.mxu0 0.0
    %873 = vmatprep.subr.mxu0 0.0
    %874 = vmatpush1.msra.mxu0 0.0
    %875 = vmatprep.subr.mxu0 0.0
    %876 = vmatpush1.msra.mxu0 0.0
    %877 = vmatprep.subr.mxu0 0.0
    %878 = vmatpush1.msra.mxu0 0.0
    %879 = vmatprep.subr.mxu0 0.0
    %880 = vmatpush1.msra.mxu0 0.0
    %881 = vmatprep.subr.mxu0 %v203
    %882 = vmatpush1.msra.mxu0 %v201
    %883 = vmatprep.subr.mxu0 0.0
    %884 = vmatpush2.msra.mxu0 0.0
    %885 = vmatprep.subr.mxu0 0.0
    %886 = vmatpush2.msra.mxu0 0.0
    %887 = vmatprep.subr.mxu0 0.0
    %888 = vmatpush2.msra.mxu0 0.0
    %889 = vmatprep.subr.mxu0 0.0
    %890 = vmatpush2.msra.mxu0 0.0
    %891 = vmatprep.subr.mxu0 0.0
    %892 = vmatpush2.msra.mxu0 0.0
    %893 = vmatprep.subr.mxu0 0.0
    %894 = vmatpush2.msra.mxu0 0.0
    %895 = vmatprep.subr.mxu0 0.0
    %896 = vmatpush2.msra.mxu0 0.0
    %897 = vmatprep.subr.mxu0 0.0
    %898 = vmatpush2.msra.mxu0 0.0
    %899 = vmatprep.subr.mxu0 0.0
    %900 = vmatpush2.msra.mxu0 0.0
    %901 = vmatprep.subr.mxu0 0.0
    %902 = vmatpush2.msra.mxu0 0.0
    %903 = vmatprep.subr.mxu0 0.0
    %904 = vmatpush2.msra.mxu0 0.0
    %905 = vmatprep.subr.mxu0 0.0
    %906 = vmatpush2.msra.mxu0 0.0
    %907 = vmatprep.subr.mxu0 0.0
    %908 = vmatpush2.msra.mxu0 0.0
    %909 = vmatprep.subr.mxu0 0.0
    %910 = vmatpush2.msra.mxu0 0.0
    %911 = vmatprep.subr.mxu0 0.0
    %912 = vmatpush2.msra.mxu0 0.0
    %913 = vmatprep.subr.mxu0 0.0
    %914 = vmatpush2.msra.mxu0 0.0
    %915 = vmatprep.mubr.f32.mxu0 0.0
    %916 = vmatmul.mubr.f32.gmra.mxu0 %v156
    %v917 = vpop.f32.mrf.mxu0
    %v918 = vadd.f32 %v50, %v917
    %v919 = vpop.f32.mrf.mxu0
    %v920 = vadd.f32 %v50, %v919
    %921 = vmatprep.mubr.f32.mxu0 0.0
    %922 = vmatmul.mubr.f32.gmra.mxu0 %v159
    %v923 = vpop.f32.mrf.mxu0
    %v924 = vadd.f32 %v55, %v923
    %v925 = vpop.f32.mrf.mxu0
    %v926 = vadd.f32 %v55, %v925
    %927 = vmatprep.mubr.f32.mxu0 0.0
    %928 = vmatmul.mubr.f32.gmra.mxu0 %v162
    %v929 = vpop.f32.mrf.mxu0
    %v930 = vadd.f32 %v60, %v929
    %v931 = vpop.f32.mrf.mxu0
    %v932 = vadd.f32 %v60, %v931
    %933 = vmatprep.mubr.f32.mxu0 0.0
    %934 = vmatmul.mubr.f32.gmra.mxu0 %v165
    %v935 = vpop.f32.mrf.mxu0
    %v936 = vadd.f32 %v65, %v935
    %v937 = vpop.f32.mrf.mxu0
    %v938 = vadd.f32 %v65, %v937
    %939 = vmatprep.mubr.f32.mxu0 0.0
    %940 = vmatmul.mubr.f32.gmra.mxu0 %v168
    %v941 = vpop.f32.mrf.mxu0
    %v942 = vadd.f32 %v70, %v941
    %v943 = vpop.f32.mrf.mxu0
    %v944 = vadd.f32 %v70, %v943
    %945 = vmatprep.mubr.f32.mxu0 0.0
    %946 = vmatmul.mubr.f32.gmra.mxu0 %v171
    %v947 = vpop.f32.mrf.mxu0
    %v948 = vadd.f32 %v75, %v947
    %v949 = vpop.f32.mrf.mxu0
    %v950 = vadd.f32 %v75, %v949
    %951 = vmatprep.mubr.f32.mxu0 0.0
    %952 = vmatmul.mubr.f32.gmra.mxu0 %v174
    %v953 = vpop.f32.mrf.mxu0
    %v954 = vadd.f32 %v80, %v953
    %v955 = vpop.f32.mrf.mxu0
    %v956 = vadd.f32 %v80, %v955
    %957 = vdwg.mxu0
    %958 = vmatprep.subr.mxu0 0.0
    %959 = vmatpush1.msra.mxu0 0.0
    %960 = vmatprep.subr.mxu0 0.0
    %961 = vmatpush1.msra.mxu0 0.0
    %962 = vmatprep.subr.mxu0 0.0
    %963 = vmatpush1.msra.mxu0 0.0
    %964 = vmatprep.subr.mxu0 0.0
    %965 = vmatpush1.msra.mxu0 0.0
    %966 = vmatprep.subr.mxu0 0.0
    %967 = vmatpush1.msra.mxu0 0.0
    %968 = vmatprep.subr.mxu0 0.0
    %969 = vmatpush1.msra.mxu0 0.0
    %970 = vmatprep.subr.mxu0 0.0
    %971 = vmatpush1.msra.mxu0 0.0
    %972 = vmatprep.subr.mxu0 0.0
    %973 = vmatpush1.msra.mxu0 0.0
    %974 = vmatprep.subr.mxu0 0.0
    %975 = vmatpush1.msra.mxu0 0.0
    %976 = vmatprep.subr.mxu0 0.0
    %977 = vmatpush1.msra.mxu0 0.0
    %978 = vmatprep.subr.mxu0 0.0
    %979 = vmatpush1.msra.mxu0 0.0
    %980 = vmatprep.subr.mxu0 0.0
    %981 = vmatpush1.msra.mxu0 0.0
    %982 = vmatprep.subr.mxu0 0.0
    %983 = vmatpush1.msra.mxu0 0.0
    %984 = vmatprep.subr.mxu0 0.0
    %985 = vmatpush1.msra.mxu0 0.0
    %986 = vmatprep.subr.mxu0 0.0
    %987 = vmatpush1.msra.mxu0 0.0
    %988 = vmatprep.subr.mxu0 %v207
    %989 = vmatpush1.msra.mxu0 %v205
    %990 = vmatprep.subr.mxu0 0.0
    %991 = vmatpush2.msra.mxu0 0.0
    %992 = vmatprep.subr.mxu0 0.0
    %993 = vmatpush2.msra.mxu0 0.0
    %994 = vmatprep.subr.mxu0 0.0
    %995 = vmatpush2.msra.mxu0 0.0
    %996 = vmatprep.subr.mxu0 0.0
    %997 = vmatpush2.msra.mxu0 0.0
    %998 = vmatprep.subr.mxu0 0.0
    %999 = vmatpush2.msra.mxu0 0.0
    %1000 = vmatprep.subr.mxu0 0.0
    %1001 = vmatpush2.msra.mxu0 0.0
    %1002 = vmatprep.subr.mxu0 0.0
    %1003 = vmatpush2.msra.mxu0 0.0
    %1004 = vmatprep.subr.mxu0 0.0
    %1005 = vmatpush2.msra.mxu0 0.0
    %1006 = vmatprep.subr.mxu0 0.0
    %1007 = vmatpush2.msra.mxu0 0.0
    %1008 = vmatprep.subr.mxu0 0.0
    %1009 = vmatpush2.msra.mxu0 0.0
    %1010 = vmatprep.subr.mxu0 0.0
    %1011 = vmatpush2.msra.mxu0 0.0
    %1012 = vmatprep.subr.mxu0 0.0
    %1013 = vmatpush2.msra.mxu0 0.0
    %1014 = vmatprep.subr.mxu0 0.0
    %1015 = vmatpush2.msra.mxu0 0.0
    %1016 = vmatprep.subr.mxu0 0.0
    %1017 = vmatpush2.msra.mxu0 0.0
    %1018 = vmatprep.subr.mxu0 0.0
    %1019 = vmatpush2.msra.mxu0 0.0
    %1020 = vmatprep.subr.mxu0 0.0
    %1021 = vmatpush2.msra.mxu0 0.0
    %1022 = vmatprep.mubr.f32.mxu0 0.0
    %1023 = vmatmul.mubr.f32.gmra.mxu0 %v156
    %v1024 = vpop.f32.mrf.mxu0
    %v1025 = vadd.f32 %v50, %v1024
    %v1026 = vpop.f32.mrf.mxu0
    %v1027 = vadd.f32 %v50, %v1026
    %1028 = vmatprep.mubr.f32.mxu0 0.0
    %1029 = vmatmul.mubr.f32.gmra.mxu0 %v159
    %v1030 = vpop.f32.mrf.mxu0
    %v1031 = vadd.f32 %v55, %v1030
    %v1032 = vpop.f32.mrf.mxu0
    %v1033 = vadd.f32 %v55, %v1032
    %1034 = vmatprep.mubr.f32.mxu0 0.0
    %1035 = vmatmul.mubr.f32.gmra.mxu0 %v162
    %v1036 = vpop.f32.mrf.mxu0
    %v1037 = vadd.f32 %v60, %v1036
    %v1038 = vpop.f32.mrf.mxu0
    %v1039 = vadd.f32 %v60, %v1038
    %1040 = vmatprep.mubr.f32.mxu0 0.0
    %1041 = vmatmul.mubr.f32.gmra.mxu0 %v165
    %v1042 = vpop.f32.mrf.mxu0
    %v1043 = vadd.f32 %v65, %v1042
    %v1044 = vpop.f32.mrf.mxu0
    %v1045 = vadd.f32 %v65, %v1044
    %1046 = vmatprep.mubr.f32.mxu0 0.0
    %1047 = vmatmul.mubr.f32.gmra.mxu0 %v168
    %v1048 = vpop.f32.mrf.mxu0
    %v1049 = vadd.f32 %v70, %v1048
    %v1050 = vpop.f32.mrf.mxu0
    %v1051 = vadd.f32 %v70, %v1050
    %1052 = vmatprep.mubr.f32.mxu0 0.0
    %1053 = vmatmul.mubr.f32.gmra.mxu0 %v171
    %v1054 = vpop.f32.mrf.mxu0
    %v1055 = vadd.f32 %v75, %v1054
    %v1056 = vpop.f32.mrf.mxu0
    %v1057 = vadd.f32 %v75, %v1056
    %1058 = vmatprep.mubr.f32.mxu0 0.0
    %1059 = vmatmul.mubr.f32.gmra.mxu0 %v174
    %v1060 = vpop.f32.mrf.mxu0
    %v1061 = vadd.f32 %v80, %v1060
    %v1062 = vpop.f32.mrf.mxu0
    %v1063 = vadd.f32 %v80, %v1062
    %1064 = vdwg.mxu0
    %v1065 = vtanh.pop %v276
    %v1066 = vtanh.pop %v278
    %v1067 = vtanh.pop %v383
    %v1068 = vtanh.pop %v385
    %v1069 = vtanh.pop %v490
    %v1070 = vtanh.pop %v492
    %v1071 = vtanh.pop %v597
    %v1072 = vtanh.pop %v599
    %v1073 = vtanh.pop %v704
    %v1074 = vtanh.pop %v706
    %v1075 = vtanh.pop %v811
    %v1076 = vtanh.pop %v813
    %v1077 = vtanh.pop %v918
    %v1078 = vtanh.pop %v920
    %v1079 = vtanh.pop %v1025
    %v1080 = vtanh.pop %v1027
    %v1081 = vtanh.pop %v282
    %v1082 = vtanh.pop %v284
    %v1083 = vtanh.pop %v389
    %v1084 = vtanh.pop %v391
    %v1085 = vtanh.pop %v496
    %v1086 = vtanh.pop %v498
    %v1087 = vtanh.pop %v603
    %v1088 = vtanh.pop %v605
    %v1089 = vtanh.pop %v710
    %v1090 = vtanh.pop %v712
    %v1091 = vtanh.pop %v817
    %v1092 = vtanh.pop %v819
    %v1093 = vtanh.pop %v924
    %v1094 = vtanh.pop %v926
    %v1095 = vtanh.pop %v1031
    %v1096 = vtanh.pop %v1033
    %v1097 = vtanh.pop %v288
    %v1098 = vtanh.pop %v290
    %v1099 = vtanh.pop %v395
    %v1100 = vtanh.pop %v397
    %v1101 = vtanh.pop %v502
    %v1102 = vtanh.pop %v504
    %v1103 = vtanh.pop %v609
    %v1104 = vtanh.pop %v611
    %v1105 = vtanh.pop %v716
    %v1106 = vtanh.pop %v718
    %v1107 = vtanh.pop %v823
    %v1108 = vtanh.pop %v825
    %v1109 = vtanh.pop %v930
    %v1110 = vtanh.pop %v932
    %v1111 = vtanh.pop %v1037
    %v1112 = vtanh.pop %v1039
    %v1113 = vtanh.pop %v294
    %v1114 = vtanh.pop %v296
    %v1115 = vtanh.pop %v401
    %v1116 = vtanh.pop %v403
    %v1117 = vtanh.pop %v508
    %v1118 = vtanh.pop %v510
    %v1119 = vtanh.pop %v615
    %v1120 = vtanh.pop %v617
    %v1121 = vtanh.pop %v722
    %v1122 = vtanh.pop %v724
    %v1123 = vtanh.pop %v829
    %v1124 = vtanh.pop %v831
    %v1125 = vtanh.pop %v936
    %v1126 = vtanh.pop %v938
    %v1127 = vtanh.pop %v1043
    %v1128 = vtanh.pop %v1045
    %v1129 = vtanh.pop %v300
    %v1130 = vtanh.pop %v302
    %v1131 = vtanh.pop %v407
    %v1132 = vtanh.pop %v409
    %v1133 = vtanh.pop %v514
    %v1134 = vtanh.pop %v516
    %v1135 = vtanh.pop %v621
    %v1136 = vtanh.pop %v623
    %v1137 = vtanh.pop %v728
    %v1138 = vtanh.pop %v730
    %v1139 = vtanh.pop %v835
    %v1140 = vtanh.pop %v837
    %v1141 = vtanh.pop %v942
    %v1142 = vtanh.pop %v944
    %v1143 = vtanh.pop %v1049
    %v1144 = vtanh.pop %v1051
    %v1145 = vtanh.pop %v306
    %v1146 = vtanh.pop %v308
    %v1147 = vtanh.pop %v413
    %v1148 = vtanh.pop %v415
    %v1149 = vtanh.pop %v520
    %v1150 = vtanh.pop %v522
    %v1151 = vtanh.pop %v627
    %v1152 = vtanh.pop %v629
    %v1153 = vtanh.pop %v734
    %v1154 = vtanh.pop %v736
    %v1155 = vtanh.pop %v841
    %v1156 = vtanh.pop %v843
    %v1157 = vtanh.pop %v948
    %v1158 = vtanh.pop %v950
    %v1159 = vtanh.pop %v1055
    %v1160 = vtanh.pop %v1057
    %v1161 = vtanh.pop %v312
    %v1162 = vtanh.pop %v314
    %v1163 = vtanh.pop %v419
    %v1164 = vtanh.pop %v421
    %v1165 = vtanh.pop %v526
    %v1166 = vtanh.pop %v528
    %v1167 = vtanh.pop %v633
    %v1168 = vtanh.pop %v635
    %v1169 = vtanh.pop %v740
    %v1170 = vtanh.pop %v742
    %v1171 = vtanh.pop %v847
    %v1172 = vtanh.pop %v849
    %v1173 = vtanh.pop %v954
    %v1174 = vtanh.pop %v956
    %v1175 = vtanh.pop %v1061
    %v1176 = vtanh.pop %v1063
    %v1177 = vld [vmem:[%s3] sm:$0xff]
    %v1178 = vld [vmem:[%s3 + $0x8] sm:$0xff]
    %v1179 = vld [vmem:[%s3 + $0x10] sm:$0xff]
    %v1180 = vld [vmem:[%s3 + $0x18] sm:$0xff]
    %v1181 = vld [vmem:[%s3 + $0x20] sm:$0xff]
    %v1182 = vld [vmem:[%s3 + $0x28] sm:$0xff]
    %v1183 = vld [vmem:[%s3 + $0x30] sm:$0x3]
    %v1184 = vld [vmem:[%s4] sm:$0xff]
    %v1185 = vld [vmem:[%s4 + $0x8] sm:$0xff]
    %v1186 = vld [vmem:[%s4 + $0x10] sm:$0xff]
    %v1187 = vld [vmem:[%s4 + $0x18] sm:$0xff]
    %v1188 = vld [vmem:[%s4 + $0x20] sm:$0xff]
    %v1189 = vld [vmem:[%s4 + $0x28] sm:$0xff]
    %v1190 = vld [vmem:[%s4 + $0x30] sm:$0x3]
    %1192 = vset.pattern.permute.xlu0 0
    %1193 = vperm.xlu0 %1192, %v1184
    %v1194 = vpop.permute.xlu0 %1193
    %1197 = vset.pattern.permute.xlu0 0
    %1198 = vperm.xlu0 %1197, %v1185
    %v1199 = vpop.permute.xlu0 %1198
    %1202 = vset.pattern.permute.xlu0 0
    %1203 = vperm.xlu0 %1202, %v1186
    %v1204 = vpop.permute.xlu0 %1203
    %1207 = vset.pattern.permute.xlu0 0
    %1208 = vperm.xlu0 %1207, %v1187
    %v1209 = vpop.permute.xlu0 %1208
    %1212 = vset.pattern.permute.xlu0 0
    %1213 = vperm.xlu0 %1212, %v1188
    %v1214 = vpop.permute.xlu0 %1213
    %1217 = vset.pattern.permute.xlu0 0
    %1218 = vperm.xlu0 %1217, %v1189
    %v1219 = vpop.permute.xlu0 %1218
    %1222 = vset.pattern.permute.xlu0 0
    %1223 = vperm.xlu0 %1222, %v1190
    %v1224 = vpop.permute.xlu0 %1223
    %vm1226 = vcmask 408576
    %v1228 = vsel %vm1226, %v1177, 0
    %v1231 = vsel %vm1226, %v1178, 0
    %v1234 = vsel %vm1226, %v1179, 0
    %v1237 = vsel %vm1226, %v1180, 0
    %v1240 = vsel %vm1226, %v1181, 0
    %v1243 = vsel %vm1226, %v1182, 0
    %v1246 = vsel %vm1226, %v1183, 0
    %v1249 = vsel %vm176, %v1161, 0
    %v1252 = vsel %vm176, %v1162, 0
    %v1255 = vsel %vm176, %v1163, 0
    %v1258 = vsel %vm176, %v1164, 0
    %v1261 = vsel %vm176, %v1165, 0
    %v1264 = vsel %vm176, %v1166, 0
    %v1267 = vsel %vm176, %v1167, 0
    %v1270 = vsel %vm176, %v1168, 0
    %v1273 = vsel %vm176, %v1169, 0
    %v1276 = vsel %vm176, %v1170, 0
    %v1279 = vsel %vm176, %v1171, 0
    %v1282 = vsel %vm176, %v1172, 0
    %v1285 = vsel %vm176, %v1173, 0
    %v1288 = vsel %vm176, %v1174, 0
    %v1291 = vsel %vm176, %v1175, 0
    %v1294 = vsel %vm176, %v1176, 0
    %1296 = vmatprep.subr.mxu0 0.0
    %1297 = vmatpush1.msra.mxu0 0.0
    %1298 = vmatprep.subr.mxu0 0.0
    %1299 = vmatpush1.msra.mxu0 0.0
    %1300 = vmatprep.subr.mxu0 0.0
    %1301 = vmatpush1.msra.mxu0 0.0
    %1302 = vmatprep.subr.mxu0 0.0
    %1303 = vmatpush1.msra.mxu0 0.0
    %1304 = vmatprep.subr.mxu0 0.0
    %1305 = vmatpush1.msra.mxu0 0.0
    %1306 = vmatprep.subr.mxu0 0.0
    %1307 = vmatpush1.msra.mxu0 0.0
    %1308 = vmatprep.subr.mxu0 0.0
    %1309 = vmatpush1.msra.mxu0 0.0
    %1310 = vmatprep.subr.mxu0 0.0
    %1311 = vmatpush1.msra.mxu0 0.0
    %1312 = vmatprep.subr.mxu0 0.0
    %1313 = vmatpush1.msra.mxu0 0.0
    %1314 = vmatprep.subr.mxu0 %v1252
    %1315 = vmatpush1.msra.mxu0 %v1249
    %1316 = vmatprep.subr.mxu0 %v1146
    %1317 = vmatpush1.msra.mxu0 %v1145
    %1318 = vmatprep.subr.mxu0 %v1130
    %1319 = vmatpush1.msra.mxu0 %v1129
    %1320 = vmatprep.subr.mxu0 %v1114
    %1321 = vmatpush1.msra.mxu0 %v1113
    %1322 = vmatprep.subr.mxu0 %v1098
    %1323 = vmatpush1.msra.mxu0 %v1097
    %1324 = vmatprep.subr.mxu0 %v1082
    %1325 = vmatpush1.msra.mxu0 %v1081
    %1326 = vmatprep.subr.mxu0 %v1066
    %1327 = vmatpush1.msra.mxu0 %v1065
    %1328 = vmatprep.subr.mxu0 0.0
    %1329 = vmatpush2.msra.mxu0 0.0
    %1330 = vmatprep.subr.mxu0 0.0
    %1331 = vmatpush2.msra.mxu0 0.0
    %1332 = vmatprep.subr.mxu0 0.0
    %1333 = vmatpush2.msra.mxu0 0.0
    %1334 = vmatprep.subr.mxu0 0.0
    %1335 = vmatpush2.msra.mxu0 0.0
    %1336 = vmatprep.subr.mxu0 0.0
    %1337 = vmatpush2.msra.mxu0 0.0
    %1338 = vmatprep.subr.mxu0 0.0
    %1339 = vmatpush2.msra.mxu0 0.0
    %1340 = vmatprep.subr.mxu0 0.0
    %1341 = vmatpush2.msra.mxu0 0.0
    %1342 = vmatprep.subr.mxu0 0.0
    %1343 = vmatpush2.msra.mxu0 0.0
    %1344 = vmatprep.subr.mxu0 0.0
    %1345 = vmatpush2.msra.mxu0 0.0
    %1346 = vmatprep.subr.mxu0 0.0
    %1347 = vmatpush2.msra.mxu0 0.0
    %1348 = vmatprep.subr.mxu0 0.0
    %1349 = vmatpush2.msra.mxu0 0.0
    %1350 = vmatprep.subr.mxu0 0.0
    %1351 = vmatpush2.msra.mxu0 0.0
    %1352 = vmatprep.subr.mxu0 0.0
    %1353 = vmatpush2.msra.mxu0 0.0
    %1354 = vmatprep.subr.mxu0 0.0
    %1355 = vmatpush2.msra.mxu0 0.0
    %1356 = vmatprep.subr.mxu0 0.0
    %1357 = vmatpush2.msra.mxu0 0.0
    %1358 = vmatprep.subr.mxu0 0.0
    %1359 = vmatpush2.msra.mxu0 0.0
    %1360 = vmatprep.mubr.f32.mxu0 0.0
    %1361 = vmatmul.mubr.f32.gmra.mxu0 %v1228
    %v1362 = vpop.f32.mrf.mxu0
    %v1363 = vadd.f32 %v1194, %v1362
    %v1364 = vpop.f32.mrf.mxu0
    %v1365 = vadd.f32 %v1194, %v1364
    %1366 = vmatprep.mubr.f32.mxu0 0.0
    %1367 = vmatmul.mubr.f32.gmra.mxu0 %v1231
    %v1368 = vpop.f32.mrf.mxu0
    %v1369 = vadd.f32 %v1199, %v1368
    %v1370 = vpop.f32.mrf.mxu0
    %v1371 = vadd.f32 %v1199, %v1370
    %1372 = vmatprep.mubr.f32.mxu0 0.0
    %1373 = vmatmul.mubr.f32.gmra.mxu0 %v1234
    %v1374 = vpop.f32.mrf.mxu0
    %v1375 = vadd.f32 %v1204, %v1374
    %v1376 = vpop.f32.mrf.mxu0
    %v1377 = vadd.f32 %v1204, %v1376
    %1378 = vmatprep.mubr.f32.mxu0 0.0
    %1379 = vmatmul.mubr.f32.gmra.mxu0 %v1237
    %v1380 = vpop.f32.mrf.mxu0
    %v1381 = vadd.f32 %v1209, %v1380
    %v1382 = vpop.f32.mrf.mxu0
    %v1383 = vadd.f32 %v1209, %v1382
    %1384 = vmatprep.mubr.f32.mxu0 0.0
    %1385 = vmatmul.mubr.f32.gmra.mxu0 %v1240
    %v1386 = vpop.f32.mrf.mxu0
    %v1387 = vadd.f32 %v1214, %v1386
    %v1388 = vpop.f32.mrf.mxu0
    %v1389 = vadd.f32 %v1214, %v1388
    %1390 = vmatprep.mubr.f32.mxu0 0.0
    %1391 = vmatmul.mubr.f32.gmra.mxu0 %v1243
    %v1392 = vpop.f32.mrf.mxu0
    %v1393 = vadd.f32 %v1219, %v1392
    %v1394 = vpop.f32.mrf.mxu0
    %v1395 = vadd.f32 %v1219, %v1394
    %1396 = vmatprep.mubr.f32.mxu0 0.0
    %1397 = vmatmul.mubr.f32.gmra.mxu0 %v1246
    %v1398 = vpop.f32.mrf.mxu0
    %v1399 = vadd.f32 %v1224, %v1398
    %v1400 = vpop.f32.mrf.mxu0
    %v1401 = vadd.f32 %v1224, %v1400
    %1402 = vdwg.mxu0
    %1403 = vmatprep.subr.mxu0 0.0
    %1404 = vmatpush1.msra.mxu0 0.0
    %1405 = vmatprep.subr.mxu0 0.0
    %1406 = vmatpush1.msra.mxu0 0.0
    %1407 = vmatprep.subr.mxu0 0.0
    %1408 = vmatpush1.msra.mxu0 0.0
    %1409 = vmatprep.subr.mxu0 0.0
    %1410 = vmatpush1.msra.mxu0 0.0
    %1411 = vmatprep.subr.mxu0 0.0
    %1412 = vmatpush1.msra.mxu0 0.0
    %1413 = vmatprep.subr.mxu0 0.0
    %1414 = vmatpush1.msra.mxu0 0.0
    %1415 = vmatprep.subr.mxu0 0.0
    %1416 = vmatpush1.msra.mxu0 0.0
    %1417 = vmatprep.subr.mxu0 0.0
    %1418 = vmatpush1.msra.mxu0 0.0
    %1419 = vmatprep.subr.mxu0 0.0
    %1420 = vmatpush1.msra.mxu0 0.0
    %1421 = vmatprep.subr.mxu0 %v1258
    %1422 = vmatpush1.msra.mxu0 %v1255
    %1423 = vmatprep.subr.mxu0 %v1148
    %1424 = vmatpush1.msra.mxu0 %v1147
    %1425 = vmatprep.subr.mxu0 %v1132
    %1426 = vmatpush1.msra.mxu0 %v1131
    %1427 = vmatprep.subr.mxu0 %v1116
    %1428 = vmatpush1.msra.mxu0 %v1115
    %1429 = vmatprep.subr.mxu0 %v1100
    %1430 = vmatpush1.msra.mxu0 %v1099
    %1431 = vmatprep.subr.mxu0 %v1084
    %1432 = vmatpush1.msra.mxu0 %v1083
    %1433 = vmatprep.subr.mxu0 %v1068
    %1434 = vmatpush1.msra.mxu0 %v1067
    %1435 = vmatprep.subr.mxu0 0.0
    %1436 = vmatpush2.msra.mxu0 0.0
    %1437 = vmatprep.subr.mxu0 0.0
    %1438 = vmatpush2.msra.mxu0 0.0
    %1439 = vmatprep.subr.mxu0 0.0
    %1440 = vmatpush2.msra.mxu0 0.0
    %1441 = vmatprep.subr.mxu0 0.0
    %1442 = vmatpush2.msra.mxu0 0.0
    %1443 = vmatprep.subr.mxu0 0.0
    %1444 = vmatpush2.msra.mxu0 0.0
    %1445 = vmatprep.subr.mxu0 0.0
    %1446 = vmatpush2.msra.mxu0 0.0
    %1447 = vmatprep.subr.mxu0 0.0
    %1448 = vmatpush2.msra.mxu0 0.0
    %1449 = vmatprep.subr.mxu0 0.0
    %1450 = vmatpush2.msra.mxu0 0.0
    %1451 = vmatprep.subr.mxu0 0.0
    %1452 = vmatpush2.msra.mxu0 0.0
    %1453 = vmatprep.subr.mxu0 0.0
    %1454 = vmatpush2.msra.mxu0 0.0
    %1455 = vmatprep.subr.mxu0 0.0
    %1456 = vmatpush2.msra.mxu0 0.0
    %1457 = vmatprep.subr.mxu0 0.0
    %1458 = vmatpush2.msra.mxu0 0.0
    %1459 = vmatprep.subr.mxu0 0.0
    %1460 = vmatpush2.msra.mxu0 0.0
    %1461 = vmatprep.subr.mxu0 0.0
    %1462 = vmatpush2.msra.mxu0 0.0
    %1463 = vmatprep.subr.mxu0 0.0
    %1464 = vmatpush2.msra.mxu0 0.0
    %1465 = vmatprep.subr.mxu0 0.0
    %1466 = vmatpush2.msra.mxu0 0.0
    %1467 = vmatprep.mubr.f32.mxu0 0.0
    %1468 = vmatmul.mubr.f32.gmra.mxu0 %v1228
    %v1469 = vpop.f32.mrf.mxu0
    %v1470 = vadd.f32 %v1194, %v1469
    %v1471 = vpop.f32.mrf.mxu0
    %v1472 = vadd.f32 %v1194, %v1471
    %1473 = vmatprep.mubr.f32.mxu0 0.0
    %1474 = vmatmul.mubr.f32.gmra.mxu0 %v1231
    %v1475 = vpop.f32.mrf.mxu0
    %v1476 = vadd.f32 %v1199, %v1475
    %v1477 = vpop.f32.mrf.mxu0
    %v1478 = vadd.f32 %v1199, %v1477
    %1479 = vmatprep.mubr.f32.mxu0 0.0
    %1480 = vmatmul.mubr.f32.gmra.mxu0 %v1234
    %v1481 = vpop.f32.mrf.mxu0
    %v1482 = vadd.f32 %v1204, %v1481
    %v1483 = vpop.f32.mrf.mxu0
    %v1484 = vadd.f32 %v1204, %v1483
    %1485 = vmatprep.mubr.f32.mxu0 0.0
    %1486 = vmatmul.mubr.f32.gmra.mxu0 %v1237
    %v1487 = vpop.f32.mrf.mxu0
    %v1488 = vadd.f32 %v1209, %v1487
    %v1489 = vpop.f32.mrf.mxu0
    %v1490 = vadd.f32 %v1209, %v1489
    %1491 = vmatprep.mubr.f32.mxu0 0.0
    %1492 = vmatmul.mubr.f32.gmra.mxu0 %v1240
    %v1493 = vpop.f32.mrf.mxu0
    %v1494 = vadd.f32 %v1214, %v1493
    %v1495 = vpop.f32.mrf.mxu0
    %v1496 = vadd.f32 %v1214, %v1495
    %1497 = vmatprep.mubr.f32.mxu0 0.0
    %1498 = vmatmul.mubr.f32.gmra.mxu0 %v1243
    %v1499 = vpop.f32.mrf.mxu0
    %v1500 = vadd.f32 %v1219, %v1499
    %v1501 = vpop.f32.mrf.mxu0
    %v1502 = vadd.f32 %v1219, %v1501
    %1503 = vmatprep.mubr.f32.mxu0 0.0
    %1504 = vmatmul.mubr.f32.gmra.mxu0 %v1246
    %v1505 = vpop.f32.mrf.mxu0
    %v1506 = vadd.f32 %v1224, %v1505
    %v1507 = vpop.f32.mrf.mxu0
    %v1508 = vadd.f32 %v1224, %v1507
    %1509 = vdwg.mxu0
    %1510 = vmatprep.subr.mxu0 0.0
    %1511 = vmatpush1.msra.mxu0 0.0
    %1512 = vmatprep.subr.mxu0 0.0
    %1513 = vmatpush1.msra.mxu0 0.0
    %1514 = vmatprep.subr.mxu0 0.0
    %1515 = vmatpush1.msra.mxu0 0.0
    %1516 = vmatprep.subr.mxu0 0.0
    %1517 = vmatpush1.msra.mxu0 0.0
    %1518 = vmatprep.subr.mxu0 0.0
    %1519 = vmatpush1.msra.mxu0 0.0
    %1520 = vmatprep.subr.mxu0 0.0
    %1521 = vmatpush1.msra.mxu0 0.0
    %1522 = vmatprep.subr.mxu0 0.0
    %1523 = vmatpush1.msra.mxu0 0.0
    %1524 = vmatprep.subr.mxu0 0.0
    %1525 = vmatpush1.msra.mxu0 0.0
    %1526 = vmatprep.subr.mxu0 0.0
    %1527 = vmatpush1.msra.mxu0 0.0
    %1528 = vmatprep.subr.mxu0 %v1264
    %1529 = vmatpush1.msra.mxu0 %v1261
    %1530 = vmatprep.subr.mxu0 %v1150
    %1531 = vmatpush1.msra.mxu0 %v1149
    %1532 = vmatprep.subr.mxu0 %v1134
    %1533 = vmatpush1.msra.mxu0 %v1133
    %1534 = vmatprep.subr.mxu0 %v1118
    %1535 = vmatpush1.msra.mxu0 %v1117
    %1536 = vmatprep.subr.mxu0 %v1102
    %1537 = vmatpush1.msra.mxu0 %v1101
    %1538 = vmatprep.subr.mxu0 %v1086
    %1539 = vmatpush1.msra.mxu0 %v1085
    %1540 = vmatprep.subr.mxu0 %v1070
    %1541 = vmatpush1.msra.mxu0 %v1069
    %1542 = vmatprep.subr.mxu0 0.0
    %1543 = vmatpush2.msra.mxu0 0.0
    %1544 = vmatprep.subr.mxu0 0.0
    %1545 = vmatpush2.msra.mxu0 0.0
    %1546 = vmatprep.subr.mxu0 0.0
    %1547 = vmatpush2.msra.mxu0 0.0
    %1548 = vmatprep.subr.mxu0 0.0
    %1549 = vmatpush2.msra.mxu0 0.0
    %1550 = vmatprep.subr.mxu0 0.0
    %1551 = vmatpush2.msra.mxu0 0.0
    %1552 = vmatprep.subr.mxu0 0.0
    %1553 = vmatpush2.msra.mxu0 0.0
    %1554 = vmatprep.subr.mxu0 0.0
    %1555 = vmatpush2.msra.mxu0 0.0
    %1556 = vmatprep.subr.mxu0 0.0
    %1557 = vmatpush2.msra.mxu0 0.0
    %1558 = vmatprep.subr.mxu0 0.0
    %1559 = vmatpush2.msra.mxu0 0.0
    %1560 = vmatprep.subr.mxu0 0.0
    %1561 = vmatpush2.msra.mxu0 0.0
    %1562 = vmatprep.subr.mxu0 0.0
    %1563 = vmatpush2.msra.mxu0 0.0
    %1564 = vmatprep.subr.mxu0 0.0
    %1565 = vmatpush2.msra.mxu0 0.0
    %1566 = vmatprep.subr.mxu0 0.0
    %1567 = vmatpush2.msra.mxu0 0.0
    %1568 = vmatprep.subr.mxu0 0.0
    %1569 = vmatpush2.msra.mxu0 0.0
    %1570 = vmatprep.subr.mxu0 0.0
    %1571 = vmatpush2.msra.mxu0 0.0
    %1572 = vmatprep.subr.mxu0 0.0
    %1573 = vmatpush2.msra.mxu0 0.0
    %1574 = vmatprep.mubr.f32.mxu0 0.0
    %1575 = vmatmul.mubr.f32.gmra.mxu0 %v1228
    %v1576 = vpop.f32.mrf.mxu0
    %v1577 = vadd.f32 %v1194, %v1576
    %v1578 = vpop.f32.mrf.mxu0
    %v1579 = vadd.f32 %v1194, %v1578
    %1580 = vmatprep.mubr.f32.mxu0 0.0
    %1581 = vmatmul.mubr.f32.gmra.mxu0 %v1231
    %v1582 = vpop.f32.mrf.mxu0
    %v1583 = vadd.f32 %v1199, %v1582
    %v1584 = vpop.f32.mrf.mxu0
    %v1585 = vadd.f32 %v1199, %v1584
    %1586 = vmatprep.mubr.f32.mxu0 0.0
    %1587 = vmatmul.mubr.f32.gmra.mxu0 %v1234
    %v1588 = vpop.f32.mrf.mxu0
    %v1589 = vadd.f32 %v1204, %v1588
    %v1590 = vpop.f32.mrf.mxu0
    %v1591 = vadd.f32 %v1204, %v1590
    %1592 = vmatprep.mubr.f32.mxu0 0.0
    %1593 = vmatmul.mubr.f32.gmra.mxu0 %v1237
    %v1594 = vpop.f32.mrf.mxu0
    %v1595 = vadd.f32 %v1209, %v1594
    %v1596 = vpop.f32.mrf.mxu0
    %v1597 = vadd.f32 %v1209, %v1596
    %1598 = vmatprep.mubr.f32.mxu0 0.0
    %1599 = vmatmul.mubr.f32.gmra.mxu0 %v1240
    %v1600 = vpop.f32.mrf.mxu0
    %v1601 = vadd.f32 %v1214, %v1600
    %v1602 = vpop.f32.mrf.mxu0
    %v1603 = vadd.f32 %v1214, %v1602
    %1604 = vmatprep.mubr.f32.mxu0 0.0
    %1605 = vmatmul.mubr.f32.gmra.mxu0 %v1243
    %v1606 = vpop.f32.mrf.mxu0
    %v1607 = vadd.f32 %v1219, %v1606
    %v1608 = vpop.f32.mrf.mxu0
    %v1609 = vadd.f32 %v1219, %v1608
    %1610 = vmatprep.mubr.f32.mxu0 0.0
    %1611 = vmatmul.mubr.f32.gmra.mxu0 %v1246
    %v1612 = vpop.f32.mrf.mxu0
    %v1613 = vadd.f32 %v1224, %v1612
    %v1614 = vpop.f32.mrf.mxu0
    %v1615 = vadd.f32 %v1224, %v1614
    %1616 = vdwg.mxu0
    %1617 = vmatprep.subr.mxu0 0.0
    %1618 = vmatpush1.msra.mxu0 0.0
    %1619 = vmatprep.subr.mxu0 0.0
    %1620 = vmatpush1.msra.mxu0 0.0
    %1621 = vmatprep.subr.mxu0 0.0
    %1622 = vmatpush1.msra.mxu0 0.0
    %1623 = vmatprep.subr.mxu0 0.0
    %1624 = vmatpush1.msra.mxu0 0.0
    %1625 = vmatprep.subr.mxu0 0.0
    %1626 = vmatpush1.msra.mxu0 0.0
    %1627 = vmatprep.subr.mxu0 0.0
    %1628 = vmatpush1.msra.mxu0 0.0
    %1629 = vmatprep.subr.mxu0 0.0
    %1630 = vmatpush1.msra.mxu0 0.0
    %1631 = vmatprep.subr.mxu0 0.0
    %1632 = vmatpush1.msra.mxu0 0.0
    %1633 = vmatprep.subr.mxu0 0.0
    %1634 = vmatpush1.msra.mxu0 0.0
    %1635 = vmatprep.subr.mxu0 %v1270
    %1636 = vmatpush1.msra.mxu0 %v1267
    %1637 = vmatprep.subr.mxu0 %v1152
    %1638 = vmatpush1.msra.mxu0 %v1151
    %1639 = vmatprep.subr.mxu0 %v1136
    %1640 = vmatpush1.msra.mxu0 %v1135
    %1641 = vmatprep.subr.mxu0 %v1120
    %1642 = vmatpush1.msra.mxu0 %v1119
    %1643 = vmatprep.subr.mxu0 %v1104
    %1644 = vmatpush1.msra.mxu0 %v1103
    %1645 = vmatprep.subr.mxu0 %v1088
    %1646 = vmatpush1.msra.mxu0 %v1087
    %1647 = vmatprep.subr.mxu0 %v1072
    %1648 = vmatpush1.msra.mxu0 %v1071
    %1649 = vmatprep.subr.mxu0 0.0
    %1650 = vmatpush2.msra.mxu0 0.0
    %1651 = vmatprep.subr.mxu0 0.0
    %1652 = vmatpush2.msra.mxu0 0.0
    %1653 = vmatprep.subr.mxu0 0.0
    %1654 = vmatpush2.msra.mxu0 0.0
    %1655 = vmatprep.subr.mxu0 0.0
    %1656 = vmatpush2.msra.mxu0 0.0
    %1657 = vmatprep.subr.mxu0 0.0
    %1658 = vmatpush2.msra.mxu0 0.0
    %1659 = vmatprep.subr.mxu0 0.0
    %1660 = vmatpush2.msra.mxu0 0.0
    %1661 = vmatprep.subr.mxu0 0.0
    %1662 = vmatpush2.msra.mxu0 0.0
    %1663 = vmatprep.subr.mxu0 0.0
    %1664 = vmatpush2.msra.mxu0 0.0
    %1665 = vmatprep.subr.mxu0 0.0
    %1666 = vmatpush2.msra.mxu0 0.0
    %1667 = vmatprep.subr.mxu0 0.0
    %1668 = vmatpush2.msra.mxu0 0.0
    %1669 = vmatprep.subr.mxu0 0.0
    %1670 = vmatpush2.msra.mxu0 0.0
    %1671 = vmatprep.subr.mxu0 0.0
    %1672 = vmatpush2.msra.mxu0 0.0
    %1673 = vmatprep.subr.mxu0 0.0
    %1674 = vmatpush2.msra.mxu0 0.0
    %1675 = vmatprep.subr.mxu0 0.0
    %1676 = vmatpush2.msra.mxu0 0.0
    %1677 = vmatprep.subr.mxu0 0.0
    %1678 = vmatpush2.msra.mxu0 0.0
    %1679 = vmatprep.subr.mxu0 0.0
    %1680 = vmatpush2.msra.mxu0 0.0
    %1681 = vmatprep.mubr.f32.mxu0 0.0
    %1682 = vmatmul.mubr.f32.gmra.mxu0 %v1228
    %v1683 = vpop.f32.mrf.mxu0
    %v1684 = vadd.f32 %v1194, %v1683
    %v1685 = vpop.f32.mrf.mxu0
    %v1686 = vadd.f32 %v1194, %v1685
    %1687 = vmatprep.mubr.f32.mxu0 0.0
    %1688 = vmatmul.mubr.f32.gmra.mxu0 %v1231
    %v1689 = vpop.f32.mrf.mxu0
    %v1690 = vadd.f32 %v1199, %v1689
    %v1691 = vpop.f32.mrf.mxu0
    %v1692 = vadd.f32 %v1199, %v1691
    %1693 = vmatprep.mubr.f32.mxu0 0.0
    %1694 = vmatmul.mubr.f32.gmra.mxu0 %v1234
    %v1695 = vpop.f32.mrf.mxu0
    %v1696 = vadd.f32 %v1204, %v1695
    %v1697 = vpop.f32.mrf.mxu0
    %v1698 = vadd.f32 %v1204, %v1697
    %1699 = vmatprep.mubr.f32.mxu0 0.0
    %1700 = vmatmul.mubr.f32.gmra.mxu0 %v1237
    %v1701 = vpop.f32.mrf.mxu0
    %v1702 = vadd.f32 %v1209, %v1701
    %v1703 = vpop.f32.mrf.mxu0
    %v1704 = vadd.f32 %v1209, %v1703
    %1705 = vmatprep.mubr.f32.mxu0 0.0
    %1706 = vmatmul.mubr.f32.gmra.mxu0 %v1240
    %v1707 = vpop.f32.mrf.mxu0
    %v1708 = vadd.f32 %v1214, %v1707
    %v1709 = vpop.f32.mrf.mxu0
    %v1710 = vadd.f32 %v1214, %v1709
    %1711 = vmatprep.mubr.f32.mxu0 0.0
    %1712 = vmatmul.mubr.f32.gmra.mxu0 %v1243
    %v1713 = vpop.f32.mrf.mxu0
    %v1714 = vadd.f32 %v1219, %v1713
    %v1715 = vpop.f32.mrf.mxu0
    %v1716 = vadd.f32 %v1219, %v1715
    %1717 = vmatprep.mubr.f32.mxu0 0.0
    %1718 = vmatmul.mubr.f32.gmra.mxu0 %v1246
    %v1719 = vpop.f32.mrf.mxu0
    %v1720 = vadd.f32 %v1224, %v1719
    %v1721 = vpop.f32.mrf.mxu0
    %v1722 = vadd.f32 %v1224, %v1721
    %1723 = vdwg.mxu0
    %1724 = vmatprep.subr.mxu0 0.0
    %1725 = vmatpush1.msra.mxu0 0.0
    %1726 = vmatprep.subr.mxu0 0.0
    %1727 = vmatpush1.msra.mxu0 0.0
    %1728 = vmatprep.subr.mxu0 0.0
    %1729 = vmatpush1.msra.mxu0 0.0
    %1730 = vmatprep.subr.mxu0 0.0
    %1731 = vmatpush1.msra.mxu0 0.0
    %1732 = vmatprep.subr.mxu0 0.0
    %1733 = vmatpush1.msra.mxu0 0.0
    %1734 = vmatprep.subr.mxu0 0.0
    %1735 = vmatpush1.msra.mxu0 0.0
    %1736 = vmatprep.subr.mxu0 0.0
    %1737 = vmatpush1.msra.mxu0 0.0
    %1738 = vmatprep.subr.mxu0 0.0
    %1739 = vmatpush1.msra.mxu0 0.0
    %1740 = vmatprep.subr.mxu0 0.0
    %1741 = vmatpush1.msra.mxu0 0.0
    %1742 = vmatprep.subr.mxu0 %v1276
    %1743 = vmatpush1.msra.mxu0 %v1273
    %1744 = vmatprep.subr.mxu0 %v1154
    %1745 = vmatpush1.msra.mxu0 %v1153
    %1746 = vmatprep.subr.mxu0 %v1138
    %1747 = vmatpush1.msra.mxu0 %v1137
    %1748 = vmatprep.subr.mxu0 %v1122
    %1749 = vmatpush1.msra.mxu0 %v1121
    %1750 = vmatprep.subr.mxu0 %v1106
    %1751 = vmatpush1.msra.mxu0 %v1105
    %1752 = vmatprep.subr.mxu0 %v1090
    %1753 = vmatpush1.msra.mxu0 %v1089
    %1754 = vmatprep.subr.mxu0 %v1074
    %1755 = vmatpush1.msra.mxu0 %v1073
    %1756 = vmatprep.subr.mxu0 0.0
    %1757 = vmatpush2.msra.mxu0 0.0
    %1758 = vmatprep.subr.mxu0 0.0
    %1759 = vmatpush2.msra.mxu0 0.0
    %1760 = vmatprep.subr.mxu0 0.0
    %1761 = vmatpush2.msra.mxu0 0.0
    %1762 = vmatprep.subr.mxu0 0.0
    %1763 = vmatpush2.msra.mxu0 0.0
    %1764 = vmatprep.subr.mxu0 0.0
    %1765 = vmatpush2.msra.mxu0 0.0
    %1766 = vmatprep.subr.mxu0 0.0
    %1767 = vmatpush2.msra.mxu0 0.0
    %1768 = vmatprep.subr.mxu0 0.0
    %1769 = vmatpush2.msra.mxu0 0.0
    %1770 = vmatprep.subr.mxu0 0.0
    %1771 = vmatpush2.msra.mxu0 0.0
    %1772 = vmatprep.subr.mxu0 0.0
    %1773 = vmatpush2.msra.mxu0 0.0
    %1774 = vmatprep.subr.mxu0 0.0
    %1775 = vmatpush2.msra.mxu0 0.0
    %1776 = vmatprep.subr.mxu0 0.0
    %1777 = vmatpush2.msra.mxu0 0.0
    %1778 = vmatprep.subr.mxu0 0.0
    %1779 = vmatpush2.msra.mxu0 0.0
    %1780 = vmatprep.subr.mxu0 0.0
    %1781 = vmatpush2.msra.mxu0 0.0
    %1782 = vmatprep.subr.mxu0 0.0
    %1783 = vmatpush2.msra.mxu0 0.0
    %1784 = vmatprep.subr.mxu0 0.0
    %1785 = vmatpush2.msra.mxu0 0.0
    %1786 = vmatprep.subr.mxu0 0.0
    %1787 = vmatpush2.msra.mxu0 0.0
    %1788 = vmatprep.mubr.f32.mxu0 0.0
    %1789 = vmatmul.mubr.f32.gmra.mxu0 %v1228
    %v1790 = vpop.f32.mrf.mxu0
    %v1791 = vadd.f32 %v1194, %v1790
    %v1792 = vpop.f32.mrf.mxu0
    %v1793 = vadd.f32 %v1194, %v1792
    %1794 = vmatprep.mubr.f32.mxu0 0.0
    %1795 = vmatmul.mubr.f32.gmra.mxu0 %v1231
    %v1796 = vpop.f32.mrf.mxu0
    %v1797 = vadd.f32 %v1199, %v1796
    %v1798 = vpop.f32.mrf.mxu0
    %v1799 = vadd.f32 %v1199, %v1798
    %1800 = vmatprep.mubr.f32.mxu0 0.0
    %1801 = vmatmul.mubr.f32.gmra.mxu0 %v1234
    %v1802 = vpop.f32.mrf.mxu0
    %v1803 = vadd.f32 %v1204, %v1802
    %v1804 = vpop.f32.mrf.mxu0
    %v1805 = vadd.f32 %v1204, %v1804
    %1806 = vmatprep.mubr.f32.mxu0 0.0
    %1807 = vmatmul.mubr.f32.gmra.mxu0 %v1237
    %v1808 = vpop.f32.mrf.mxu0
    %v1809 = vadd.f32 %v1209, %v1808
    %v1810 = vpop.f32.mrf.mxu0
    %v1811 = vadd.f32 %v1209, %v1810
    %1812 = vmatprep.mubr.f32.mxu0 0.0
    %1813 = vmatmul.mubr.f32.gmra.mxu0 %v1240
    %v1814 = vpop.f32.mrf.mxu0
    %v1815 = vadd.f32 %v1214, %v1814
    %v1816 = vpop.f32.mrf.mxu0
    %v1817 = vadd.f32 %v1214, %v1816
    %1818 = vmatprep.mubr.f32.mxu0 0.0
    %1819 = vmatmul.mubr.f32.gmra.mxu0 %v1243
    %v1820 = vpop.f32.mrf.mxu0
    %v1821 = vadd.f32 %v1219, %v1820
    %v1822 = vpop.f32.mrf.mxu0
    %v1823 = vadd.f32 %v1219, %v1822
    %1824 = vmatprep.mubr.f32.mxu0 0.0
    %1825 = vmatmul.mubr.f32.gmra.mxu0 %v1246
    %v1826 = vpop.f32.mrf.mxu0
    %v1827 = vadd.f32 %v1224, %v1826
    %v1828 = vpop.f32.mrf.mxu0
    %v1829 = vadd.f32 %v1224, %v1828
    %1830 = vdwg.mxu0
    %1831 = vmatprep.subr.mxu0 0.0
    %1832 = vmatpush1.msra.mxu0 0.0
    %1833 = vmatprep.subr.mxu0 0.0
    %1834 = vmatpush1.msra.mxu0 0.0
    %1835 = vmatprep.subr.mxu0 0.0
    %1836 = vmatpush1.msra.mxu0 0.0
    %1837 = vmatprep.subr.mxu0 0.0
    %1838 = vmatpush1.msra.mxu0 0.0
    %1839 = vmatprep.subr.mxu0 0.0
    %1840 = vmatpush1.msra.mxu0 0.0
    %1841 = vmatprep.subr.mxu0 0.0
    %1842 = vmatpush1.msra.mxu0 0.0
    %1843 = vmatprep.subr.mxu0 0.0
    %1844 = vmatpush1.msra.mxu0 0.0
    %1845 = vmatprep.subr.mxu0 0.0
    %1846 = vmatpush1.msra.mxu0 0.0
    %1847 = vmatprep.subr.mxu0 0.0
    %1848 = vmatpush1.msra.mxu0 0.0
    %1849 = vmatprep.subr.mxu0 %v1282
    %1850 = vmatpush1.msra.mxu0 %v1279
    %1851 = vmatprep.subr.mxu0 %v1156
    %1852 = vmatpush1.msra.mxu0 %v1155
    %1853 = vmatprep.subr.mxu0 %v1140
    %1854 = vmatpush1.msra.mxu0 %v1139
    %1855 = vmatprep.subr.mxu0 %v1124
    %1856 = vmatpush1.msra.mxu0 %v1123
    %1857 = vmatprep.subr.mxu0 %v1108
    %1858 = vmatpush1.msra.mxu0 %v1107
    %1859 = vmatprep.subr.mxu0 %v1092
    %1860 = vmatpush1.msra.mxu0 %v1091
    %1861 = vmatprep.subr.mxu0 %v1076
    %1862 = vmatpush1.msra.mxu0 %v1075
    %1863 = vmatprep.subr.mxu0 0.0
    %1864 = vmatpush2.msra.mxu0 0.0
    %1865 = vmatprep.subr.mxu0 0.0
    %1866 = vmatpush2.msra.mxu0 0.0
    %1867 = vmatprep.subr.mxu0 0.0
    %1868 = vmatpush2.msra.mxu0 0.0
    %1869 = vmatprep.subr.mxu0 0.0
    %1870 = vmatpush2.msra.mxu0 0.0
    %1871 = vmatprep.subr.mxu0 0.0
    %1872 = vmatpush2.msra.mxu0 0.0
    %1873 = vmatprep.subr.mxu0 0.0
    %1874 = vmatpush2.msra.mxu0 0.0
    %1875 = vmatprep.subr.mxu0 0.0
    %1876 = vmatpush2.msra.mxu0 0.0
    %1877 = vmatprep.subr.mxu0 0.0
    %1878 = vmatpush2.msra.mxu0 0.0
    %1879 = vmatprep.subr.mxu0 0.0
    %1880 = vmatpush2.msra.mxu0 0.0
    %1881 = vmatprep.subr.mxu0 0.0
    %1882 = vmatpush2.msra.mxu0 0.0
    %1883 = vmatprep.subr.mxu0 0.0
    %1884 = vmatpush2.msra.mxu0 0.0
    %1885 = vmatprep.subr.mxu0 0.0
    %1886 = vmatpush2.msra.mxu0 0.0
    %1887 = vmatprep.subr.mxu0 0.0
    %1888 = vmatpush2.msra.mxu0 0.0
    %1889 = vmatprep.subr.mxu0 0.0
    %1890 = vmatpush2.msra.mxu0 0.0
    %1891 = vmatprep.subr.mxu0 0.0
    %1892 = vmatpush2.msra.mxu0 0.0
    %1893 = vmatprep.subr.mxu0 0.0
    %1894 = vmatpush2.msra.mxu0 0.0
    %1895 = vmatprep.mubr.f32.mxu0 0.0
    %1896 = vmatmul.mubr.f32.gmra.mxu0 %v1228
    %v1897 = vpop.f32.mrf.mxu0
    %v1898 = vadd.f32 %v1194, %v1897
    %v1899 = vpop.f32.mrf.mxu0
    %v1900 = vadd.f32 %v1194, %v1899
    %1901 = vmatprep.mubr.f32.mxu0 0.0
    %1902 = vmatmul.mubr.f32.gmra.mxu0 %v1231
    %v1903 = vpop.f32.mrf.mxu0
    %v1904 = vadd.f32 %v1199, %v1903
    %v1905 = vpop.f32.mrf.mxu0
    %v1906 = vadd.f32 %v1199, %v1905
    %1907 = vmatprep.mubr.f32.mxu0 0.0
    %1908 = vmatmul.mubr.f32.gmra.mxu0 %v1234
    %v1909 = vpop.f32.mrf.mxu0
    %v1910 = vadd.f32 %v1204, %v1909
    %v1911 = vpop.f32.mrf.mxu0
    %v1912 = vadd.f32 %v1204, %v1911
    %1913 = vmatprep.mubr.f32.mxu0 0.0
    %1914 = vmatmul.mubr.f32.gmra.mxu0 %v1237
    %v1915 = vpop.f32.mrf.mxu0
    %v1916 = vadd.f32 %v1209, %v1915
    %v1917 = vpop.f32.mrf.mxu0
    %v1918 = vadd.f32 %v1209, %v1917
    %1919 = vmatprep.mubr.f32.mxu0 0.0
    %1920 = vmatmul.mubr.f32.gmra.mxu0 %v1240
    %v1921 = vpop.f32.mrf.mxu0
    %v1922 = vadd.f32 %v1214, %v1921
    %v1923 = vpop.f32.mrf.mxu0
    %v1924 = vadd.f32 %v1214, %v1923
    %1925 = vmatprep.mubr.f32.mxu0 0.0
    %1926 = vmatmul.mubr.f32.gmra.mxu0 %v1243
    %v1927 = vpop.f32.mrf.mxu0
    %v1928 = vadd.f32 %v1219, %v1927
    %v1929 = vpop.f32.mrf.mxu0
    %v1930 = vadd.f32 %v1219, %v1929
    %1931 = vmatprep.mubr.f32.mxu0 0.0
    %1932 = vmatmul.mubr.f32.gmra.mxu0 %v1246
    %v1933 = vpop.f32.mrf.mxu0
    %v1934 = vadd.f32 %v1224, %v1933
    %v1935 = vpop.f32.mrf.mxu0
    %v1936 = vadd.f32 %v1224, %v1935
    %1937 = vdwg.mxu0
    %1938 = vmatprep.subr.mxu0 0.0
    %1939 = vmatpush1.msra.mxu0 0.0
    %1940 = vmatprep.subr.mxu0 0.0
    %1941 = vmatpush1.msra.mxu0 0.0
    %1942 = vmatprep.subr.mxu0 0.0
    %1943 = vmatpush1.msra.mxu0 0.0
    %1944 = vmatprep.subr.mxu0 0.0
    %1945 = vmatpush1.msra.mxu0 0.0
    %1946 = vmatprep.subr.mxu0 0.0
    %1947 = vmatpush1.msra.mxu0 0.0
    %1948 = vmatprep.subr.mxu0 0.0
    %1949 = vmatpush1.msra.mxu0 0.0
    %1950 = vmatprep.subr.mxu0 0.0
    %1951 = vmatpush1.msra.mxu0 0.0
    %1952 = vmatprep.subr.mxu0 0.0
    %1953 = vmatpush1.msra.mxu0 0.0
    %1954 = vmatprep.subr.mxu0 0.0
    %1955 = vmatpush1.msra.mxu0 0.0
    %1956 = vmatprep.subr.mxu0 %v1288
    %1957 = vmatpush1.msra.mxu0 %v1285
    %1958 = vmatprep.subr.mxu0 %v1158
    %1959 = vmatpush1.msra.mxu0 %v1157
    %1960 = vmatprep.subr.mxu0 %v1142
    %1961 = vmatpush1.msra.mxu0 %v1141
    %1962 = vmatprep.subr.mxu0 %v1126
    %1963 = vmatpush1.msra.mxu0 %v1125
    %1964 = vmatprep.subr.mxu0 %v1110
    %1965 = vmatpush1.msra.mxu0 %v1109
    %1966 = vmatprep.subr.mxu0 %v1094
    %1967 = vmatpush1.msra.mxu0 %v1093
    %1968 = vmatprep.subr.mxu0 %v1078
    %1969 = vmatpush1.msra.mxu0 %v1077
    %1970 = vmatprep.subr.mxu0 0.0
    %1971 = vmatpush2.msra.mxu0 0.0
    %1972 = vmatprep.subr.mxu0 0.0
    %1973 = vmatpush2.msra.mxu0 0.0
    %1974 = vmatprep.subr.mxu0 0.0
    %1975 = vmatpush2.msra.mxu0 0.0
    %1976 = vmatprep.subr.mxu0 0.0
    %1977 = vmatpush2.msra.mxu0 0.0
    %1978 = vmatprep.subr.mxu0 0.0
    %1979 = vmatpush2.msra.mxu0 0.0
    %1980 = vmatprep.subr.mxu0 0.0
    %1981 = vmatpush2.msra.mxu0 0.0
    %1982 = vmatprep.subr.mxu0 0.0
    %1983 = vmatpush2.msra.mxu0 0.0
    %1984 = vmatprep.subr.mxu0 0.0
    %1985 = vmatpush2.msra.mxu0 0.0
    %1986 = vmatprep.subr.mxu0 0.0
    %1987 = vmatpush2.msra.mxu0 0.0
    %1988 = vmatprep.subr.mxu0 0.0
    %1989 = vmatpush2.msra.mxu0 0.0
    %1990 = vmatprep.subr.mxu0 0.0
    %1991 = vmatpush2.msra.mxu0 0.0
    %1992 = vmatprep.subr.mxu0 0.0
    %1993 = vmatpush2.msra.mxu0 0.0
    %1994 = vmatprep.subr.mxu0 0.0
    %1995 = vmatpush2.msra.mxu0 0.0
    %1996 = vmatprep.subr.mxu0 0.0
    %1997 = vmatpush2.msra.mxu0 0.0
    %1998 = vmatprep.subr.mxu0 0.0
    %1999 = vmatpush2.msra.mxu0 0.0
    %2000 = vmatprep.subr.mxu0 0.0
    %2001 = vmatpush2.msra.mxu0 0.0
    %2002 = vmatprep.mubr.f32.mxu0 0.0
    %2003 = vmatmul.mubr.f32.gmra.mxu0 %v1228
    %v2004 = vpop.f32.mrf.mxu0
    %v2005 = vadd.f32 %v1194, %v2004
    %v2006 = vpop.f32.mrf.mxu0
    %v2007 = vadd.f32 %v1194, %v2006
    %2008 = vmatprep.mubr.f32.mxu0 0.0
    %2009 = vmatmul.mubr.f32.gmra.mxu0 %v1231
    %v2010 = vpop.f32.mrf.mxu0
    %v2011 = vadd.f32 %v1199, %v2010
    %v2012 = vpop.f32.mrf.mxu0
    %v2013 = vadd.f32 %v1199, %v2012
    %2014 = vmatprep.mubr.f32.mxu0 0.0
    %2015 = vmatmul.mubr.f32.gmra.mxu0 %v1234
    %v2016 = vpop.f32.mrf.mxu0
    %v2017 = vadd.f32 %v1204, %v2016
    %v2018 = vpop.f32.mrf.mxu0
    %v2019 = vadd.f32 %v1204, %v2018
    %2020 = vmatprep.mubr.f32.mxu0 0.0
    %2021 = vmatmul.mubr.f32.gmra.mxu0 %v1237
    %v2022 = vpop.f32.mrf.mxu0
    %v2023 = vadd.f32 %v1209, %v2022
    %v2024 = vpop.f32.mrf.mxu0
    %v2025 = vadd.f32 %v1209, %v2024
    %2026 = vmatprep.mubr.f32.mxu0 0.0
    %2027 = vmatmul.mubr.f32.gmra.mxu0 %v1240
    %v2028 = vpop.f32.mrf.mxu0
    %v2029 = vadd.f32 %v1214, %v2028
    %v2030 = vpop.f32.mrf.mxu0
    %v2031 = vadd.f32 %v1214, %v2030
    %2032 = vmatprep.mubr.f32.mxu0 0.0
    %2033 = vmatmul.mubr.f32.gmra.mxu0 %v1243
    %v2034 = vpop.f32.mrf.mxu0
    %v2035 = vadd.f32 %v1219, %v2034
    %v2036 = vpop.f32.mrf.mxu0
    %v2037 = vadd.f32 %v1219, %v2036
    %2038 = vmatprep.mubr.f32.mxu0 0.0
    %2039 = vmatmul.mubr.f32.gmra.mxu0 %v1246
    %v2040 = vpop.f32.mrf.mxu0
    %v2041 = vadd.f32 %v1224, %v2040
    %v2042 = vpop.f32.mrf.mxu0
    %v2043 = vadd.f32 %v1224, %v2042
    %2044 = vdwg.mxu0
    %2045 = vmatprep.subr.mxu0 0.0
    %2046 = vmatpush1.msra.mxu0 0.0
    %2047 = vmatprep.subr.mxu0 0.0
    %2048 = vmatpush1.msra.mxu0 0.0
    %2049 = vmatprep.subr.mxu0 0.0
    %2050 = vmatpush1.msra.mxu0 0.0
    %2051 = vmatprep.subr.mxu0 0.0
    %2052 = vmatpush1.msra.mxu0 0.0
    %2053 = vmatprep.subr.mxu0 0.0
    %2054 = vmatpush1.msra.mxu0 0.0
    %2055 = vmatprep.subr.mxu0 0.0
    %2056 = vmatpush1.msra.mxu0 0.0
    %2057 = vmatprep.subr.mxu0 0.0
    %2058 = vmatpush1.msra.mxu0 0.0
    %2059 = vmatprep.subr.mxu0 0.0
    %2060 = vmatpush1.msra.mxu0 0.0
    %2061 = vmatprep.subr.mxu0 0.0
    %2062 = vmatpush1.msra.mxu0 0.0
    %2063 = vmatprep.subr.mxu0 %v1294
    %2064 = vmatpush1.msra.mxu0 %v1291
    %2065 = vmatprep.subr.mxu0 %v1160
    %2066 = vmatpush1.msra.mxu0 %v1159
    %2067 = vmatprep.subr.mxu0 %v1144
    %2068 = vmatpush1.msra.mxu0 %v1143
    %2069 = vmatprep.subr.mxu0 %v1128
    %2070 = vmatpush1.msra.mxu0 %v1127
    %2071 = vmatprep.subr.mxu0 %v1112
    %2072 = vmatpush1.msra.mxu0 %v1111
    %2073 = vmatprep.subr.mxu0 %v1096
    %2074 = vmatpush1.msra.mxu0 %v1095
    %2075 = vmatprep.subr.mxu0 %v1080
    %2076 = vmatpush1.msra.mxu0 %v1079
    %2077 = vmatprep.subr.mxu0 0.0
    %2078 = vmatpush2.msra.mxu0 0.0
    %2079 = vmatprep.subr.mxu0 0.0
    %2080 = vmatpush2.msra.mxu0 0.0
    %2081 = vmatprep.subr.mxu0 0.0
    %2082 = vmatpush2.msra.mxu0 0.0
    %2083 = vmatprep.subr.mxu0 0.0
    %2084 = vmatpush2.msra.mxu0 0.0
    %2085 = vmatprep.subr.mxu0 0.0
    %2086 = vmatpush2.msra.mxu0 0.0
    %2087 = vmatprep.subr.mxu0 0.0
    %2088 = vmatpush2.msra.mxu0 0.0
    %2089 = vmatprep.subr.mxu0 0.0
    %2090 = vmatpush2.msra.mxu0 0.0
    %2091 = vmatprep.subr.mxu0 0.0
    %2092 = vmatpush2.msra.mxu0 0.0
    %2093 = vmatprep.subr.mxu0 0.0
    %2094 = vmatpush2.msra.mxu0 0.0
    %2095 = vmatprep.subr.mxu0 0.0
    %2096 = vmatpush2.msra.mxu0 0.0
    %2097 = vmatprep.subr.mxu0 0.0
    %2098 = vmatpush2.msra.mxu0 0.0
    %2099 = vmatprep.subr.mxu0 0.0
    %2100 = vmatpush2.msra.mxu0 0.0
    %2101 = vmatprep.subr.mxu0 0.0
    %2102 = vmatpush2.msra.mxu0 0.0
    %2103 = vmatprep.subr.mxu0 0.0
    %2104 = vmatpush2.msra.mxu0 0.0
    %2105 = vmatprep.subr.mxu0 0.0
    %2106 = vmatpush2.msra.mxu0 0.0
    %2107 = vmatprep.subr.mxu0 0.0
    %2108 = vmatpush2.msra.mxu0 0.0
    %2109 = vmatprep.mubr.f32.mxu0 0.0
    %2110 = vmatmul.mubr.f32.gmra.mxu0 %v1228
    %v2111 = vpop.f32.mrf.mxu0
    %v2112 = vadd.f32 %v1194, %v2111
    %v2113 = vpop.f32.mrf.mxu0
    %v2114 = vadd.f32 %v1194, %v2113
    %2115 = vmatprep.mubr.f32.mxu0 0.0
    %2116 = vmatmul.mubr.f32.gmra.mxu0 %v1231
    %v2117 = vpop.f32.mrf.mxu0
    %v2118 = vadd.f32 %v1199, %v2117
    %v2119 = vpop.f32.mrf.mxu0
    %v2120 = vadd.f32 %v1199, %v2119
    %2121 = vmatprep.mubr.f32.mxu0 0.0
    %2122 = vmatmul.mubr.f32.gmra.mxu0 %v1234
    %v2123 = vpop.f32.mrf.mxu0
    %v2124 = vadd.f32 %v1204, %v2123
    %v2125 = vpop.f32.mrf.mxu0
    %v2126 = vadd.f32 %v1204, %v2125
    %2127 = vmatprep.mubr.f32.mxu0 0.0
    %2128 = vmatmul.mubr.f32.gmra.mxu0 %v1237
    %v2129 = vpop.f32.mrf.mxu0
    %v2130 = vadd.f32 %v1209, %v2129
    %v2131 = vpop.f32.mrf.mxu0
    %v2132 = vadd.f32 %v1209, %v2131
    %2133 = vmatprep.mubr.f32.mxu0 0.0
    %2134 = vmatmul.mubr.f32.gmra.mxu0 %v1240
    %v2135 = vpop.f32.mrf.mxu0
    %v2136 = vadd.f32 %v1214, %v2135
    %v2137 = vpop.f32.mrf.mxu0
    %v2138 = vadd.f32 %v1214, %v2137
    %2139 = vmatprep.mubr.f32.mxu0 0.0
    %2140 = vmatmul.mubr.f32.gmra.mxu0 %v1243
    %v2141 = vpop.f32.mrf.mxu0
    %v2142 = vadd.f32 %v1219, %v2141
    %v2143 = vpop.f32.mrf.mxu0
    %v2144 = vadd.f32 %v1219, %v2143
    %2145 = vmatprep.mubr.f32.mxu0 0.0
    %2146 = vmatmul.mubr.f32.gmra.mxu0 %v1246
    %v2147 = vpop.f32.mrf.mxu0
    %v2148 = vadd.f32 %v1224, %v2147
    %v2149 = vpop.f32.mrf.mxu0
    %v2150 = vadd.f32 %v1224, %v2149
    %2151 = vdwg.mxu0
    %v2152 = vtanh.pop %v1363
    %v2153 = vtanh.pop %v1365
    %v2154 = vtanh.pop %v1470
    %v2155 = vtanh.pop %v1472
    %v2156 = vtanh.pop %v1577
    %v2157 = vtanh.pop %v1579
    %v2158 = vtanh.pop %v1684
    %v2159 = vtanh.pop %v1686
    %v2160 = vtanh.pop %v1791
    %v2161 = vtanh.pop %v1793
    %v2162 = vtanh.pop %v1898
    %v2163 = vtanh.pop %v1900
    %v2164 = vtanh.pop %v2005
    %v2165 = vtanh.pop %v2007
    %v2166 = vtanh.pop %v2112
    %v2167 = vtanh.pop %v2114
    %v2168 = vtanh.pop %v1369
    %v2169 = vtanh.pop %v1371
    %v2170 = vtanh.pop %v1476
    %v2171 = vtanh.pop %v1478
    %v2172 = vtanh.pop %v1583
    %v2173 = vtanh.pop %v1585
    %v2174 = vtanh.pop %v1690
    %v2175 = vtanh.pop %v1692
    %v2176 = vtanh.pop %v1797
    %v2177 = vtanh.pop %v1799
    %v2178 = vtanh.pop %v1904
    %v2179 = vtanh.pop %v1906
    %v2180 = vtanh.pop %v2011
    %v2181 = vtanh.pop %v2013
    %v2182 = vtanh.pop %v2118
    %v2183 = vtanh.pop %v2120
    %v2184 = vtanh.pop %v1375
    %v2185 = vtanh.pop %v1377
    %v2186 = vtanh.pop %v1482
    %v2187 = vtanh.pop %v1484
    %v2188 = vtanh.pop %v1589
    %v2189 = vtanh.pop %v1591
    %v2190 = vtanh.pop %v1696
    %v2191 = vtanh.pop %v1698
    %v2192 = vtanh.pop %v1803
    %v2193 = vtanh.pop %v1805
    %v2194 = vtanh.pop %v1910
    %v2195 = vtanh.pop %v1912
    %v2196 = vtanh.pop %v2017
    %v2197 = vtanh.pop %v2019
    %v2198 = vtanh.pop %v2124
    %v2199 = vtanh.pop %v2126
    %v2200 = vtanh.pop %v1381
    %v2201 = vtanh.pop %v1383
    %v2202 = vtanh.pop %v1488
    %v2203 = vtanh.pop %v1490
    %v2204 = vtanh.pop %v1595
    %v2205 = vtanh.pop %v1597
    %v2206 = vtanh.pop %v1702
    %v2207 = vtanh.pop %v1704
    %v2208 = vtanh.pop %v1809
    %v2209 = vtanh.pop %v1811
    %v2210 = vtanh.pop %v1916
    %v2211 = vtanh.pop %v1918
    %v2212 = vtanh.pop %v2023
    %v2213 = vtanh.pop %v2025
    %v2214 = vtanh.pop %v2130
    %v2215 = vtanh.pop %v2132
    %v2216 = vtanh.pop %v1387
    %v2217 = vtanh.pop %v1389
    %v2218 = vtanh.pop %v1494
    %v2219 = vtanh.pop %v1496
    %v2220 = vtanh.pop %v1601
    %v2221 = vtanh.pop %v1603
    %v2222 = vtanh.pop %v1708
    %v2223 = vtanh.pop %v1710
    %v2224 = vtanh.pop %v1815
    %v2225 = vtanh.pop %v1817
    %v2226 = vtanh.pop %v1922
    %v2227 = vtanh.pop %v1924
    %v2228 = vtanh.pop %v2029
    %v2229 = vtanh.pop %v2031
    %v2230 = vtanh.pop %v2136
    %v2231 = vtanh.pop %v2138
    %v2232 = vtanh.pop %v1393
    %v2233 = vtanh.pop %v1395
    %v2234 = vtanh.pop %v1500
    %v2235 = vtanh.pop %v1502
    %v2236 = vtanh.pop %v1607
    %v2237 = vtanh.pop %v1609
    %v2238 = vtanh.pop %v1714
    %v2239 = vtanh.pop %v1716
    %v2240 = vtanh.pop %v1821
    %v2241 = vtanh.pop %v1823
    %v2242 = vtanh.pop %v1928
    %v2243 = vtanh.pop %v1930
    %v2244 = vtanh.pop %v2035
    %v2245 = vtanh.pop %v2037
    %v2246 = vtanh.pop %v2142
    %v2247 = vtanh.pop %v2144
    %v2248 = vtanh.pop %v1399
    %v2249 = vtanh.pop %v1401
    %v2250 = vtanh.pop %v1506
    %v2251 = vtanh.pop %v1508
    %v2252 = vtanh.pop %v1613
    %v2253 = vtanh.pop %v1615
    %v2254 = vtanh.pop %v1720
    %v2255 = vtanh.pop %v1722
    %v2256 = vtanh.pop %v1827
    %v2257 = vtanh.pop %v1829
    %v2258 = vtanh.pop %v1934
    %v2259 = vtanh.pop %v1936
    %v2260 = vtanh.pop %v2041
    %v2261 = vtanh.pop %v2043
    %v2262 = vtanh.pop %v2148
    %v2263 = vtanh.pop %v2150
    %s2264 = scalar_lea.vmem %s3, 56
    %v2265 = vld [vmem:[%s2264] sm:$0xff]
    %v2266 = vld [vmem:[%s2264 + $0x8] sm:$0xff]
    %v2267 = vld [vmem:[%s2264 + $0x10] sm:$0xff]
    %v2268 = vld [vmem:[%s2264 + $0x18] sm:$0xff]
    %v2269 = vld [vmem:[%s2264 + $0x20] sm:$0xff]
    %v2270 = vld [vmem:[%s2264 + $0x28] sm:$0xff]
    %v2271 = vld [vmem:[%s2264 + $0x30] sm:$0x3]
    %s2272 = scalar_lea.vmem %s4, 56
    %v2273 = vld [vmem:[%s2272] sm:$0xff]
    %v2274 = vld [vmem:[%s2272 + $0x8] sm:$0xff]
    %v2275 = vld [vmem:[%s2272 + $0x10] sm:$0xff]
    %v2276 = vld [vmem:[%s2272 + $0x18] sm:$0xff]
    %v2277 = vld [vmem:[%s2272 + $0x20] sm:$0xff]
    %v2278 = vld [vmem:[%s2272 + $0x28] sm:$0xff]
    %v2279 = vld [vmem:[%s2272 + $0x30] sm:$0x3]
    %2281 = vset.pattern.permute.xlu0 0
    %2282 = vperm.xlu0 %2281, %v2273
    %v2283 = vpop.permute.xlu0 %2282
    %2286 = vset.pattern.permute.xlu0 0
    %2287 = vperm.xlu0 %2286, %v2274
    %v2288 = vpop.permute.xlu0 %2287
    %2291 = vset.pattern.permute.xlu0 0
    %2292 = vperm.xlu0 %2291, %v2275
    %v2293 = vpop.permute.xlu0 %2292
    %2296 = vset.pattern.permute.xlu0 0
    %2297 = vperm.xlu0 %2296, %v2276
    %v2298 = vpop.permute.xlu0 %2297
    %2301 = vset.pattern.permute.xlu0 0
    %2302 = vperm.xlu0 %2301, %v2277
    %v2303 = vpop.permute.xlu0 %2302
    %2306 = vset.pattern.permute.xlu0 0
    %2307 = vperm.xlu0 %2306, %v2278
    %v2308 = vpop.permute.xlu0 %2307
    %2311 = vset.pattern.permute.xlu0 0
    %2312 = vperm.xlu0 %2311, %v2279
    %v2313 = vpop.permute.xlu0 %2312
    %v2316 = vsel %vm1226, %v2265, 0
    %v2319 = vsel %vm1226, %v2266, 0
    %v2322 = vsel %vm1226, %v2267, 0
    %v2325 = vsel %vm1226, %v2268, 0
    %v2328 = vsel %vm1226, %v2269, 0
    %v2331 = vsel %vm1226, %v2270, 0
    %v2334 = vsel %vm1226, %v2271, 0
    %v2337 = vsel %vm176, %v2248, 0
    %v2340 = vsel %vm176, %v2249, 0
    %v2343 = vsel %vm176, %v2250, 0
    %v2346 = vsel %vm176, %v2251, 0
    %v2349 = vsel %vm176, %v2252, 0
    %v2352 = vsel %vm176, %v2253, 0
    %v2355 = vsel %vm176, %v2254, 0
    %v2358 = vsel %vm176, %v2255, 0
    %v2361 = vsel %vm176, %v2256, 0
    %v2364 = vsel %vm176, %v2257, 0
    %v2367 = vsel %vm176, %v2258, 0
    %v2370 = vsel %vm176, %v2259, 0
    %v2373 = vsel %vm176, %v2260, 0
    %v2376 = vsel %vm176, %v2261, 0
    %v2379 = vsel %vm176, %v2262, 0
    %v2382 = vsel %vm176, %v2263, 0
    %2384 = vmatprep.subr.mxu0 0.0
    %2385 = vmatpush1.msra.mxu0 0.0
    %2386 = vmatprep.subr.mxu0 0.0
    %2387 = vmatpush1.msra.mxu0 0.0
    %2388 = vmatprep.subr.mxu0 0.0
    %2389 = vmatpush1.msra.mxu0 0.0
    %2390 = vmatprep.subr.mxu0 0.0
    %2391 = vmatpush1.msra.mxu0 0.0
    %2392 = vmatprep.subr.mxu0 0.0
    %2393 = vmatpush1.msra.mxu0 0.0
    %2394 = vmatprep.subr.mxu0 0.0
    %2395 = vmatpush1.msra.mxu0 0.0
    %2396 = vmatprep.subr.mxu0 0.0
    %2397 = vmatpush1.msra.mxu0 0.0
    %2398 = vmatprep.subr.mxu0 0.0
    %2399 = vmatpush1.msra.mxu0 0.0
    %2400 = vmatprep.subr.mxu0 0.0
    %2401 = vmatpush1.msra.mxu0 0.0
    %2402 = vmatprep.subr.mxu0 %v2340
    %2403 = vmatpush1.msra.mxu0 %v2337
    %2404 = vmatprep.subr.mxu0 %v2233
    %2405 = vmatpush1.msra.mxu0 %v2232
    %2406 = vmatprep.subr.mxu0 %v2217
    %2407 = vmatpush1.msra.mxu0 %v2216
    %2408 = vmatprep.subr.mxu0 %v2201
    %2409 = vmatpush1.msra.mxu0 %v2200
    %2410 = vmatprep.subr.mxu0 %v2185
    %2411 = vmatpush1.msra.mxu0 %v2184
    %2412 = vmatprep.subr.mxu0 %v2169
    %2413 = vmatpush1.msra.mxu0 %v2168
    %2414 = vmatprep.subr.mxu0 %v2153
    %2415 = vmatpush1.msra.mxu0 %v2152
    %2416 = vmatprep.subr.mxu0 0.0
    %2417 = vmatpush2.msra.mxu0 0.0
    %2418 = vmatprep.subr.mxu0 0.0
    %2419 = vmatpush2.msra.mxu0 0.0
    %2420 = vmatprep.subr.mxu0 0.0
    %2421 = vmatpush2.msra.mxu0 0.0
    %2422 = vmatprep.subr.mxu0 0.0
    %2423 = vmatpush2.msra.mxu0 0.0
    %2424 = vmatprep.subr.mxu0 0.0
    %2425 = vmatpush2.msra.mxu0 0.0
    %2426 = vmatprep.subr.mxu0 0.0
    %2427 = vmatpush2.msra.mxu0 0.0
    %2428 = vmatprep.subr.mxu0 0.0
    %2429 = vmatpush2.msra.mxu0 0.0
    %2430 = vmatprep.subr.mxu0 0.0
    %2431 = vmatpush2.msra.mxu0 0.0
    %2432 = vmatprep.subr.mxu0 0.0
    %2433 = vmatpush2.msra.mxu0 0.0
    %2434 = vmatprep.subr.mxu0 0.0
    %2435 = vmatpush2.msra.mxu0 0.0
    %2436 = vmatprep.subr.mxu0 0.0
    %2437 = vmatpush2.msra.mxu0 0.0
    %2438 = vmatprep.subr.mxu0 0.0
    %2439 = vmatpush2.msra.mxu0 0.0
    %2440 = vmatprep.subr.mxu0 0.0
    %2441 = vmatpush2.msra.mxu0 0.0
    %2442 = vmatprep.subr.mxu0 0.0
    %2443 = vmatpush2.msra.mxu0 0.0
    %2444 = vmatprep.subr.mxu0 0.0
    %2445 = vmatpush2.msra.mxu0 0.0
    %2446 = vmatprep.subr.mxu0 0.0
    %2447 = vmatpush2.msra.mxu0 0.0
    %2448 = vmatprep.mubr.f32.mxu0 0.0
    %2449 = vmatmul.mubr.f32.gmra.mxu0 %v2316
    %v2450 = vpop.f32.mrf.mxu0
    %v2451 = vadd.f32 %v2283, %v2450
    %v2452 = vpop.f32.mrf.mxu0
    %v2453 = vadd.f32 %v2283, %v2452
    %2454 = vmatprep.mubr.f32.mxu0 0.0
    %2455 = vmatmul.mubr.f32.gmra.mxu0 %v2319
    %v2456 = vpop.f32.mrf.mxu0
    %v2457 = vadd.f32 %v2288, %v2456
    %v2458 = vpop.f32.mrf.mxu0
    %v2459 = vadd.f32 %v2288, %v2458
    %2460 = vmatprep.mubr.f32.mxu0 0.0
    %2461 = vmatmul.mubr.f32.gmra.mxu0 %v2322
    %v2462 = vpop.f32.mrf.mxu0
    %v2463 = vadd.f32 %v2293, %v2462
    %v2464 = vpop.f32.mrf.mxu0
    %v2465 = vadd.f32 %v2293, %v2464
    %2466 = vmatprep.mubr.f32.mxu0 0.0
    %2467 = vmatmul.mubr.f32.gmra.mxu0 %v2325
    %v2468 = vpop.f32.mrf.mxu0
    %v2469 = vadd.f32 %v2298, %v2468
    %v2470 = vpop.f32.mrf.mxu0
    %v2471 = vadd.f32 %v2298, %v2470
    %2472 = vmatprep.mubr.f32.mxu0 0.0
    %2473 = vmatmul.mubr.f32.gmra.mxu0 %v2328
    %v2474 = vpop.f32.mrf.mxu0
    %v2475 = vadd.f32 %v2303, %v2474
    %v2476 = vpop.f32.mrf.mxu0
    %v2477 = vadd.f32 %v2303, %v2476
    %2478 = vmatprep.mubr.f32.mxu0 0.0
    %2479 = vmatmul.mubr.f32.gmra.mxu0 %v2331
    %v2480 = vpop.f32.mrf.mxu0
    %v2481 = vadd.f32 %v2308, %v2480
    %v2482 = vpop.f32.mrf.mxu0
    %v2483 = vadd.f32 %v2308, %v2482
    %2484 = vmatprep.mubr.f32.mxu0 0.0
    %2485 = vmatmul.mubr.f32.gmra.mxu0 %v2334
    %v2486 = vpop.f32.mrf.mxu0
    %v2487 = vadd.f32 %v2313, %v2486
    %v2488 = vpop.f32.mrf.mxu0
    %v2489 = vadd.f32 %v2313, %v2488
    %2490 = vdwg.mxu0
    %2491 = vmatprep.subr.mxu0 0.0
    %2492 = vmatpush1.msra.mxu0 0.0
    %2493 = vmatprep.subr.mxu0 0.0
    %2494 = vmatpush1.msra.mxu0 0.0
    %2495 = vmatprep.subr.mxu0 0.0
    %2496 = vmatpush1.msra.mxu0 0.0
    %2497 = vmatprep.subr.mxu0 0.0
    %2498 = vmatpush1.msra.mxu0 0.0
    %2499 = vmatprep.subr.mxu0 0.0
    %2500 = vmatpush1.msra.mxu0 0.0
    %2501 = vmatprep.subr.mxu0 0.0
    %2502 = vmatpush1.msra.mxu0 0.0
    %2503 = vmatprep.subr.mxu0 0.0
    %2504 = vmatpush1.msra.mxu0 0.0
    %2505 = vmatprep.subr.mxu0 0.0
    %2506 = vmatpush1.msra.mxu0 0.0
    %2507 = vmatprep.subr.mxu0 0.0
    %2508 = vmatpush1.msra.mxu0 0.0
    %2509 = vmatprep.subr.mxu0 %v2346
    %2510 = vmatpush1.msra.mxu0 %v2343
    %2511 = vmatprep.subr.mxu0 %v2235
    %2512 = vmatpush1.msra.mxu0 %v2234
    %2513 = vmatprep.subr.mxu0 %v2219
    %2514 = vmatpush1.msra.mxu0 %v2218
    %2515 = vmatprep.subr.mxu0 %v2203
    %2516 = vmatpush1.msra.mxu0 %v2202
    %2517 = vmatprep.subr.mxu0 %v2187
    %2518 = vmatpush1.msra.mxu0 %v2186
    %2519 = vmatprep.subr.mxu0 %v2171
    %2520 = vmatpush1.msra.mxu0 %v2170
    %2521 = vmatprep.subr.mxu0 %v2155
    %2522 = vmatpush1.msra.mxu0 %v2154
    %2523 = vmatprep.subr.mxu0 0.0
    %2524 = vmatpush2.msra.mxu0 0.0
    %2525 = vmatprep.subr.mxu0 0.0
    %2526 = vmatpush2.msra.mxu0 0.0
    %2527 = vmatprep.subr.mxu0 0.0
    %2528 = vmatpush2.msra.mxu0 0.0
    %2529 = vmatprep.subr.mxu0 0.0
    %2530 = vmatpush2.msra.mxu0 0.0
    %2531 = vmatprep.subr.mxu0 0.0
    %2532 = vmatpush2.msra.mxu0 0.0
    %2533 = vmatprep.subr.mxu0 0.0
    %2534 = vmatpush2.msra.mxu0 0.0
    %2535 = vmatprep.subr.mxu0 0.0
    %2536 = vmatpush2.msra.mxu0 0.0
    %2537 = vmatprep.subr.mxu0 0.0
    %2538 = vmatpush2.msra.mxu0 0.0
    %2539 = vmatprep.subr.mxu0 0.0
    %2540 = vmatpush2.msra.mxu0 0.0
    %2541 = vmatprep.subr.mxu0 0.0
    %2542 = vmatpush2.msra.mxu0 0.0
    %2543 = vmatprep.subr.mxu0 0.0
    %2544 = vmatpush2.msra.mxu0 0.0
    %2545 = vmatprep.subr.mxu0 0.0
    %2546 = vmatpush2.msra.mxu0 0.0
    %2547 = vmatprep.subr.mxu0 0.0
    %2548 = vmatpush2.msra.mxu0 0.0
    %2549 = vmatprep.subr.mxu0 0.0
    %2550 = vmatpush2.msra.mxu0 0.0
    %2551 = vmatprep.subr.mxu0 0.0
    %2552 = vmatpush2.msra.mxu0 0.0
    %2553 = vmatprep.subr.mxu0 0.0
    %2554 = vmatpush2.msra.mxu0 0.0
    %2555 = vmatprep.mubr.f32.mxu0 0.0
    %2556 = vmatmul.mubr.f32.gmra.mxu0 %v2316
    %v2557 = vpop.f32.mrf.mxu0
    %v2558 = vadd.f32 %v2283, %v2557
    %v2559 = vpop.f32.mrf.mxu0
    %v2560 = vadd.f32 %v2283, %v2559
    %2561 = vmatprep.mubr.f32.mxu0 0.0
    %2562 = vmatmul.mubr.f32.gmra.mxu0 %v2319
    %v2563 = vpop.f32.mrf.mxu0
    %v2564 = vadd.f32 %v2288, %v2563
    %v2565 = vpop.f32.mrf.mxu0
    %v2566 = vadd.f32 %v2288, %v2565
    %2567 = vmatprep.mubr.f32.mxu0 0.0
    %2568 = vmatmul.mubr.f32.gmra.mxu0 %v2322
    %v2569 = vpop.f32.mrf.mxu0
    %v2570 = vadd.f32 %v2293, %v2569
    %v2571 = vpop.f32.mrf.mxu0
    %v2572 = vadd.f32 %v2293, %v2571
    %2573 = vmatprep.mubr.f32.mxu0 0.0
    %2574 = vmatmul.mubr.f32.gmra.mxu0 %v2325
    %v2575 = vpop.f32.mrf.mxu0
    %v2576 = vadd.f32 %v2298, %v2575
    %v2577 = vpop.f32.mrf.mxu0
    %v2578 = vadd.f32 %v2298, %v2577
    %2579 = vmatprep.mubr.f32.mxu0 0.0
    %2580 = vmatmul.mubr.f32.gmra.mxu0 %v2328
    %v2581 = vpop.f32.mrf.mxu0
    %v2582 = vadd.f32 %v2303, %v2581
    %v2583 = vpop.f32.mrf.mxu0
    %v2584 = vadd.f32 %v2303, %v2583
    %2585 = vmatprep.mubr.f32.mxu0 0.0
    %2586 = vmatmul.mubr.f32.gmra.mxu0 %v2331
    %v2587 = vpop.f32.mrf.mxu0
    %v2588 = vadd.f32 %v2308, %v2587
    %v2589 = vpop.f32.mrf.mxu0
    %v2590 = vadd.f32 %v2308, %v2589
    %2591 = vmatprep.mubr.f32.mxu0 0.0
    %2592 = vmatmul.mubr.f32.gmra.mxu0 %v2334
    %v2593 = vpop.f32.mrf.mxu0
    %v2594 = vadd.f32 %v2313, %v2593
    %v2595 = vpop.f32.mrf.mxu0
    %v2596 = vadd.f32 %v2313, %v2595
    %2597 = vdwg.mxu0
    %2598 = vmatprep.subr.mxu0 0.0
    %2599 = vmatpush1.msra.mxu0 0.0
    %2600 = vmatprep.subr.mxu0 0.0
    %2601 = vmatpush1.msra.mxu0 0.0
    %2602 = vmatprep.subr.mxu0 0.0
    %2603 = vmatpush1.msra.mxu0 0.0
    %2604 = vmatprep.subr.mxu0 0.0
    %2605 = vmatpush1.msra.mxu0 0.0
    %2606 = vmatprep.subr.mxu0 0.0
    %2607 = vmatpush1.msra.mxu0 0.0
    %2608 = vmatprep.subr.mxu0 0.0
    %2609 = vmatpush1.msra.mxu0 0.0
    %2610 = vmatprep.subr.mxu0 0.0
    %2611 = vmatpush1.msra.mxu0 0.0
    %2612 = vmatprep.subr.mxu0 0.0
    %2613 = vmatpush1.msra.mxu0 0.0
    %2614 = vmatprep.subr.mxu0 0.0
    %2615 = vmatpush1.msra.mxu0 0.0
    %2616 = vmatprep.subr.mxu0 %v2352
    %2617 = vmatpush1.msra.mxu0 %v2349
    %2618 = vmatprep.subr.mxu0 %v2237
    %2619 = vmatpush1.msra.mxu0 %v2236
    %2620 = vmatprep.subr.mxu0 %v2221
    %2621 = vmatpush1.msra.mxu0 %v2220
    %2622 = vmatprep.subr.mxu0 %v2205
    %2623 = vmatpush1.msra.mxu0 %v2204
    %2624 = vmatprep.subr.mxu0 %v2189
    %2625 = vmatpush1.msra.mxu0 %v2188
    %2626 = vmatprep.subr.mxu0 %v2173
    %2627 = vmatpush1.msra.mxu0 %v2172
    %2628 = vmatprep.subr.mxu0 %v2157
    %2629 = vmatpush1.msra.mxu0 %v2156
    %2630 = vmatprep.subr.mxu0 0.0
    %2631 = vmatpush2.msra.mxu0 0.0
    %2632 = vmatprep.subr.mxu0 0.0
    %2633 = vmatpush2.msra.mxu0 0.0
    %2634 = vmatprep.subr.mxu0 0.0
    %2635 = vmatpush2.msra.mxu0 0.0
    %2636 = vmatprep.subr.mxu0 0.0
    %2637 = vmatpush2.msra.mxu0 0.0
    %2638 = vmatprep.subr.mxu0 0.0
    %2639 = vmatpush2.msra.mxu0 0.0
    %2640 = vmatprep.subr.mxu0 0.0
    %2641 = vmatpush2.msra.mxu0 0.0
    %2642 = vmatprep.subr.mxu0 0.0
    %2643 = vmatpush2.msra.mxu0 0.0
    %2644 = vmatprep.subr.mxu0 0.0
    %2645 = vmatpush2.msra.mxu0 0.0
    %2646 = vmatprep.subr.mxu0 0.0
    %2647 = vmatpush2.msra.mxu0 0.0
    %2648 = vmatprep.subr.mxu0 0.0
    %2649 = vmatpush2.msra.mxu0 0.0
    %2650 = vmatprep.subr.mxu0 0.0
    %2651 = vmatpush2.msra.mxu0 0.0
    %2652 = vmatprep.subr.mxu0 0.0
    %2653 = vmatpush2.msra.mxu0 0.0
    %2654 = vmatprep.subr.mxu0 0.0
    %2655 = vmatpush2.msra.mxu0 0.0
    %2656 = vmatprep.subr.mxu0 0.0
    %2657 = vmatpush2.msra.mxu0 0.0
    %2658 = vmatprep.subr.mxu0 0.0
    %2659 = vmatpush2.msra.mxu0 0.0
    %2660 = vmatprep.subr.mxu0 0.0
    %2661 = vmatpush2.msra.mxu0 0.0
    %2662 = vmatprep.mubr.f32.mxu0 0.0
    %2663 = vmatmul.mubr.f32.gmra.mxu0 %v2316
    %v2664 = vpop.f32.mrf.mxu0
    %v2665 = vadd.f32 %v2283, %v2664
    %v2666 = vpop.f32.mrf.mxu0
    %v2667 = vadd.f32 %v2283, %v2666
    %2668 = vmatprep.mubr.f32.mxu0 0.0
    %2669 = vmatmul.mubr.f32.gmra.mxu0 %v2319
    %v2670 = vpop.f32.mrf.mxu0
    %v2671 = vadd.f32 %v2288, %v2670
    %v2672 = vpop.f32.mrf.mxu0
    %v2673 = vadd.f32 %v2288, %v2672
    %2674 = vmatprep.mubr.f32.mxu0 0.0
    %2675 = vmatmul.mubr.f32.gmra.mxu0 %v2322
    %v2676 = vpop.f32.mrf.mxu0
    %v2677 = vadd.f32 %v2293, %v2676
    %v2678 = vpop.f32.mrf.mxu0
    %v2679 = vadd.f32 %v2293, %v2678
    %2680 = vmatprep.mubr.f32.mxu0 0.0
    %2681 = vmatmul.mubr.f32.gmra.mxu0 %v2325
    %v2682 = vpop.f32.mrf.mxu0
    %v2683 = vadd.f32 %v2298, %v2682
    %v2684 = vpop.f32.mrf.mxu0
    %v2685 = vadd.f32 %v2298, %v2684
    %2686 = vmatprep.mubr.f32.mxu0 0.0
    %2687 = vmatmul.mubr.f32.gmra.mxu0 %v2328
    %v2688 = vpop.f32.mrf.mxu0
    %v2689 = vadd.f32 %v2303, %v2688
    %v2690 = vpop.f32.mrf.mxu0
    %v2691 = vadd.f32 %v2303, %v2690
    %2692 = vmatprep.mubr.f32.mxu0 0.0
    %2693 = vmatmul.mubr.f32.gmra.mxu0 %v2331
    %v2694 = vpop.f32.mrf.mxu0
    %v2695 = vadd.f32 %v2308, %v2694
    %v2696 = vpop.f32.mrf.mxu0
    %v2697 = vadd.f32 %v2308, %v2696
    %2698 = vmatprep.mubr.f32.mxu0 0.0
    %2699 = vmatmul.mubr.f32.gmra.mxu0 %v2334
    %v2700 = vpop.f32.mrf.mxu0
    %v2701 = vadd.f32 %v2313, %v2700
    %v2702 = vpop.f32.mrf.mxu0
    %v2703 = vadd.f32 %v2313, %v2702
    %2704 = vdwg.mxu0
    %2705 = vmatprep.subr.mxu0 0.0
    %2706 = vmatpush1.msra.mxu0 0.0
    %2707 = vmatprep.subr.mxu0 0.0
    %2708 = vmatpush1.msra.mxu0 0.0
    %2709 = vmatprep.subr.mxu0 0.0
    %2710 = vmatpush1.msra.mxu0 0.0
    %2711 = vmatprep.subr.mxu0 0.0
    %2712 = vmatpush1.msra.mxu0 0.0
    %2713 = vmatprep.subr.mxu0 0.0
    %2714 = vmatpush1.msra.mxu0 0.0
    %2715 = vmatprep.subr.mxu0 0.0
    %2716 = vmatpush1.msra.mxu0 0.0
    %2717 = vmatprep.subr.mxu0 0.0
    %2718 = vmatpush1.msra.mxu0 0.0
    %2719 = vmatprep.subr.mxu0 0.0
    %2720 = vmatpush1.msra.mxu0 0.0
    %2721 = vmatprep.subr.mxu0 0.0
    %2722 = vmatpush1.msra.mxu0 0.0
    %2723 = vmatprep.subr.mxu0 %v2358
    %2724 = vmatpush1.msra.mxu0 %v2355
    %2725 = vmatprep.subr.mxu0 %v2239
    %2726 = vmatpush1.msra.mxu0 %v2238
    %2727 = vmatprep.subr.mxu0 %v2223
    %2728 = vmatpush1.msra.mxu0 %v2222
    %2729 = vmatprep.subr.mxu0 %v2207
    %2730 = vmatpush1.msra.mxu0 %v2206
    %2731 = vmatprep.subr.mxu0 %v2191
    %2732 = vmatpush1.msra.mxu0 %v2190
    %2733 = vmatprep.subr.mxu0 %v2175
    %2734 = vmatpush1.msra.mxu0 %v2174
    %2735 = vmatprep.subr.mxu0 %v2159
    %2736 = vmatpush1.msra.mxu0 %v2158
    %2737 = vmatprep.subr.mxu0 0.0
    %2738 = vmatpush2.msra.mxu0 0.0
    %2739 = vmatprep.subr.mxu0 0.0
    %2740 = vmatpush2.msra.mxu0 0.0
    %2741 = vmatprep.subr.mxu0 0.0
    %2742 = vmatpush2.msra.mxu0 0.0
    %2743 = vmatprep.subr.mxu0 0.0
    %2744 = vmatpush2.msra.mxu0 0.0
    %2745 = vmatprep.subr.mxu0 0.0
    %2746 = vmatpush2.msra.mxu0 0.0
    %2747 = vmatprep.subr.mxu0 0.0
    %2748 = vmatpush2.msra.mxu0 0.0
    %2749 = vmatprep.subr.mxu0 0.0
    %2750 = vmatpush2.msra.mxu0 0.0
    %2751 = vmatprep.subr.mxu0 0.0
    %2752 = vmatpush2.msra.mxu0 0.0
    %2753 = vmatprep.subr.mxu0 0.0
    %2754 = vmatpush2.msra.mxu0 0.0
    %2755 = vmatprep.subr.mxu0 0.0
    %2756 = vmatpush2.msra.mxu0 0.0
    %2757 = vmatprep.subr.mxu0 0.0
    %2758 = vmatpush2.msra.mxu0 0.0
    %2759 = vmatprep.subr.mxu0 0.0
    %2760 = vmatpush2.msra.mxu0 0.0
    %2761 = vmatprep.subr.mxu0 0.0
    %2762 = vmatpush2.msra.mxu0 0.0
    %2763 = vmatprep.subr.mxu0 0.0
    %2764 = vmatpush2.msra.mxu0 0.0
    %2765 = vmatprep.subr.mxu0 0.0
    %2766 = vmatpush2.msra.mxu0 0.0
    %2767 = vmatprep.subr.mxu0 0.0
    %2768 = vmatpush2.msra.mxu0 0.0
    %2769 = vmatprep.mubr.f32.mxu0 0.0
    %2770 = vmatmul.mubr.f32.gmra.mxu0 %v2316
    %v2771 = vpop.f32.mrf.mxu0
    %v2772 = vadd.f32 %v2283, %v2771
    %v2773 = vpop.f32.mrf.mxu0
    %v2774 = vadd.f32 %v2283, %v2773
    %2775 = vmatprep.mubr.f32.mxu0 0.0
    %2776 = vmatmul.mubr.f32.gmra.mxu0 %v2319
    %v2777 = vpop.f32.mrf.mxu0
    %v2778 = vadd.f32 %v2288, %v2777
    %v2779 = vpop.f32.mrf.mxu0
    %v2780 = vadd.f32 %v2288, %v2779
    %2781 = vmatprep.mubr.f32.mxu0 0.0
    %2782 = vmatmul.mubr.f32.gmra.mxu0 %v2322
    %v2783 = vpop.f32.mrf.mxu0
    %v2784 = vadd.f32 %v2293, %v2783
    %v2785 = vpop.f32.mrf.mxu0
    %v2786 = vadd.f32 %v2293, %v2785
    %2787 = vmatprep.mubr.f32.mxu0 0.0
    %2788 = vmatmul.mubr.f32.gmra.mxu0 %v2325
    %v2789 = vpop.f32.mrf.mxu0
    %v2790 = vadd.f32 %v2298, %v2789
    %v2791 = vpop.f32.mrf.mxu0
    %v2792 = vadd.f32 %v2298, %v2791
    %2793 = vmatprep.mubr.f32.mxu0 0.0
    %2794 = vmatmul.mubr.f32.gmra.mxu0 %v2328
    %v2795 = vpop.f32.mrf.mxu0
    %v2796 = vadd.f32 %v2303, %v2795
    %v2797 = vpop.f32.mrf.mxu0
    %v2798 = vadd.f32 %v2303, %v2797
    %2799 = vmatprep.mubr.f32.mxu0 0.0
    %2800 = vmatmul.mubr.f32.gmra.mxu0 %v2331
    %v2801 = vpop.f32.mrf.mxu0
    %v2802 = vadd.f32 %v2308, %v2801
    %v2803 = vpop.f32.mrf.mxu0
    %v2804 = vadd.f32 %v2308, %v2803
    %2805 = vmatprep.mubr.f32.mxu0 0.0
    %2806 = vmatmul.mubr.f32.gmra.mxu0 %v2334
    %v2807 = vpop.f32.mrf.mxu0
    %v2808 = vadd.f32 %v2313, %v2807
    %v2809 = vpop.f32.mrf.mxu0
    %v2810 = vadd.f32 %v2313, %v2809
    %2811 = vdwg.mxu0
    %2812 = vmatprep.subr.mxu0 0.0
    %2813 = vmatpush1.msra.mxu0 0.0
    %2814 = vmatprep.subr.mxu0 0.0
    %2815 = vmatpush1.msra.mxu0 0.0
    %2816 = vmatprep.subr.mxu0 0.0
    %2817 = vmatpush1.msra.mxu0 0.0
    %2818 = vmatprep.subr.mxu0 0.0
    %2819 = vmatpush1.msra.mxu0 0.0
    %2820 = vmatprep.subr.mxu0 0.0
    %2821 = vmatpush1.msra.mxu0 0.0
    %2822 = vmatprep.subr.mxu0 0.0
    %2823 = vmatpush1.msra.mxu0 0.0
    %2824 = vmatprep.subr.mxu0 0.0
    %2825 = vmatpush1.msra.mxu0 0.0
    %2826 = vmatprep.subr.mxu0 0.0
    %2827 = vmatpush1.msra.mxu0 0.0
    %2828 = vmatprep.subr.mxu0 0.0
    %2829 = vmatpush1.msra.mxu0 0.0
    %2830 = vmatprep.subr.mxu0 %v2364
    %2831 = vmatpush1.msra.mxu0 %v2361
    %2832 = vmatprep.subr.mxu0 %v2241
    %2833 = vmatpush1.msra.mxu0 %v2240
    %2834 = vmatprep.subr.mxu0 %v2225
    %2835 = vmatpush1.msra.mxu0 %v2224
    %2836 = vmatprep.subr.mxu0 %v2209
    %2837 = vmatpush1.msra.mxu0 %v2208
    %2838 = vmatprep.subr.mxu0 %v2193
    %2839 = vmatpush1.msra.mxu0 %v2192
    %2840 = vmatprep.subr.mxu0 %v2177
    %2841 = vmatpush1.msra.mxu0 %v2176
    %2842 = vmatprep.subr.mxu0 %v2161
    %2843 = vmatpush1.msra.mxu0 %v2160
    %2844 = vmatprep.subr.mxu0 0.0
    %2845 = vmatpush2.msra.mxu0 0.0
    %2846 = vmatprep.subr.mxu0 0.0
    %2847 = vmatpush2.msra.mxu0 0.0
    %2848 = vmatprep.subr.mxu0 0.0
    %2849 = vmatpush2.msra.mxu0 0.0
    %2850 = vmatprep.subr.mxu0 0.0
    %2851 = vmatpush2.msra.mxu0 0.0
    %2852 = vmatprep.subr.mxu0 0.0
    %2853 = vmatpush2.msra.mxu0 0.0
    %2854 = vmatprep.subr.mxu0 0.0
    %2855 = vmatpush2.msra.mxu0 0.0
    %2856 = vmatprep.subr.mxu0 0.0
    %2857 = vmatpush2.msra.mxu0 0.0
    %2858 = vmatprep.subr.mxu0 0.0
    %2859 = vmatpush2.msra.mxu0 0.0
    %2860 = vmatprep.subr.mxu0 0.0
    %2861 = vmatpush2.msra.mxu0 0.0
    %2862 = vmatprep.subr.mxu0 0.0
    %2863 = vmatpush2.msra.mxu0 0.0
    %2864 = vmatprep.subr.mxu0 0.0
    %2865 = vmatpush2.msra.mxu0 0.0
    %2866 = vmatprep.subr.mxu0 0.0
    %2867 = vmatpush2.msra.mxu0 0.0
    %2868 = vmatprep.subr.mxu0 0.0
    %2869 = vmatpush2.msra.mxu0 0.0
    %2870 = vmatprep.subr.mxu0 0.0
    %2871 = vmatpush2.msra.mxu0 0.0
    %2872 = vmatprep.subr.mxu0 0.0
    %2873 = vmatpush2.msra.mxu0 0.0
    %2874 = vmatprep.subr.mxu0 0.0
    %2875 = vmatpush2.msra.mxu0 0.0
    %2876 = vmatprep.mubr.f32.mxu0 0.0
    %2877 = vmatmul.mubr.f32.gmra.mxu0 %v2316
    %v2878 = vpop.f32.mrf.mxu0
    %v2879 = vadd.f32 %v2283, %v2878
    %v2880 = vpop.f32.mrf.mxu0
    %v2881 = vadd.f32 %v2283, %v2880
    %2882 = vmatprep.mubr.f32.mxu0 0.0
    %2883 = vmatmul.mubr.f32.gmra.mxu0 %v2319
    %v2884 = vpop.f32.mrf.mxu0
    %v2885 = vadd.f32 %v2288, %v2884
    %v2886 = vpop.f32.mrf.mxu0
    %v2887 = vadd.f32 %v2288, %v2886
    %2888 = vmatprep.mubr.f32.mxu0 0.0
    %2889 = vmatmul.mubr.f32.gmra.mxu0 %v2322
    %v2890 = vpop.f32.mrf.mxu0
    %v2891 = vadd.f32 %v2293, %v2890
    %v2892 = vpop.f32.mrf.mxu0
    %v2893 = vadd.f32 %v2293, %v2892
    %2894 = vmatprep.mubr.f32.mxu0 0.0
    %2895 = vmatmul.mubr.f32.gmra.mxu0 %v2325
    %v2896 = vpop.f32.mrf.mxu0
    %v2897 = vadd.f32 %v2298, %v2896
    %v2898 = vpop.f32.mrf.mxu0
    %v2899 = vadd.f32 %v2298, %v2898
    %2900 = vmatprep.mubr.f32.mxu0 0.0
    %2901 = vmatmul.mubr.f32.gmra.mxu0 %v2328
    %v2902 = vpop.f32.mrf.mxu0
    %v2903 = vadd.f32 %v2303, %v2902
    %v2904 = vpop.f32.mrf.mxu0
    %v2905 = vadd.f32 %v2303, %v2904
    %2906 = vmatprep.mubr.f32.mxu0 0.0
    %2907 = vmatmul.mubr.f32.gmra.mxu0 %v2331
    %v2908 = vpop.f32.mrf.mxu0
    %v2909 = vadd.f32 %v2308, %v2908
    %v2910 = vpop.f32.mrf.mxu0
    %v2911 = vadd.f32 %v2308, %v2910
    %2912 = vmatprep.mubr.f32.mxu0 0.0
    %2913 = vmatmul.mubr.f32.gmra.mxu0 %v2334
    %v2914 = vpop.f32.mrf.mxu0
    %v2915 = vadd.f32 %v2313, %v2914
    %v2916 = vpop.f32.mrf.mxu0
    %v2917 = vadd.f32 %v2313, %v2916
    %2918 = vdwg.mxu0
    %2919 = vmatprep.subr.mxu0 0.0
    %2920 = vmatpush1.msra.mxu0 0.0
    %2921 = vmatprep.subr.mxu0 0.0
    %2922 = vmatpush1.msra.mxu0 0.0
    %2923 = vmatprep.subr.mxu0 0.0
    %2924 = vmatpush1.msra.mxu0 0.0
    %2925 = vmatprep.subr.mxu0 0.0
    %2926 = vmatpush1.msra.mxu0 0.0
    %2927 = vmatprep.subr.mxu0 0.0
    %2928 = vmatpush1.msra.mxu0 0.0
    %2929 = vmatprep.subr.mxu0 0.0
    %2930 = vmatpush1.msra.mxu0 0.0
    %2931 = vmatprep.subr.mxu0 0.0
    %2932 = vmatpush1.msra.mxu0 0.0
    %2933 = vmatprep.subr.mxu0 0.0
    %2934 = vmatpush1.msra.mxu0 0.0
    %2935 = vmatprep.subr.mxu0 0.0
    %2936 = vmatpush1.msra.mxu0 0.0
    %2937 = vmatprep.subr.mxu0 %v2370
    %2938 = vmatpush1.msra.mxu0 %v2367
    %2939 = vmatprep.subr.mxu0 %v2243
    %2940 = vmatpush1.msra.mxu0 %v2242
    %2941 = vmatprep.subr.mxu0 %v2227
    %2942 = vmatpush1.msra.mxu0 %v2226
    %2943 = vmatprep.subr.mxu0 %v2211
    %2944 = vmatpush1.msra.mxu0 %v2210
    %2945 = vmatprep.subr.mxu0 %v2195
    %2946 = vmatpush1.msra.mxu0 %v2194
    %2947 = vmatprep.subr.mxu0 %v2179
    %2948 = vmatpush1.msra.mxu0 %v2178
    %2949 = vmatprep.subr.mxu0 %v2163
    %2950 = vmatpush1.msra.mxu0 %v2162
    %2951 = vmatprep.subr.mxu0 0.0
    %2952 = vmatpush2.msra.mxu0 0.0
    %2953 = vmatprep.subr.mxu0 0.0
    %2954 = vmatpush2.msra.mxu0 0.0
    %2955 = vmatprep.subr.mxu0 0.0
    %2956 = vmatpush2.msra.mxu0 0.0
    %2957 = vmatprep.subr.mxu0 0.0
    %2958 = vmatpush2.msra.mxu0 0.0
    %2959 = vmatprep.subr.mxu0 0.0
    %2960 = vmatpush2.msra.mxu0 0.0
    %2961 = vmatprep.subr.mxu0 0.0
    %2962 = vmatpush2.msra.mxu0 0.0
    %2963 = vmatprep.subr.mxu0 0.0
    %2964 = vmatpush2.msra.mxu0 0.0
    %2965 = vmatprep.subr.mxu0 0.0
    %2966 = vmatpush2.msra.mxu0 0.0
    %2967 = vmatprep.subr.mxu0 0.0
    %2968 = vmatpush2.msra.mxu0 0.0
    %2969 = vmatprep.subr.mxu0 0.0
    %2970 = vmatpush2.msra.mxu0 0.0
    %2971 = vmatprep.subr.mxu0 0.0
    %2972 = vmatpush2.msra.mxu0 0.0
    %2973 = vmatprep.subr.mxu0 0.0
    %2974 = vmatpush2.msra.mxu0 0.0
    %2975 = vmatprep.subr.mxu0 0.0
    %2976 = vmatpush2.msra.mxu0 0.0
    %2977 = vmatprep.subr.mxu0 0.0
    %2978 = vmatpush2.msra.mxu0 0.0
    %2979 = vmatprep.subr.mxu0 0.0
    %2980 = vmatpush2.msra.mxu0 0.0
    %2981 = vmatprep.subr.mxu0 0.0
    %2982 = vmatpush2.msra.mxu0 0.0
    %2983 = vmatprep.mubr.f32.mxu0 0.0
    %2984 = vmatmul.mubr.f32.gmra.mxu0 %v2316
    %v2985 = vpop.f32.mrf.mxu0
    %v2986 = vadd.f32 %v2283, %v2985
    %v2987 = vpop.f32.mrf.mxu0
    %v2988 = vadd.f32 %v2283, %v2987
    %2989 = vmatprep.mubr.f32.mxu0 0.0
    %2990 = vmatmul.mubr.f32.gmra.mxu0 %v2319
    %v2991 = vpop.f32.mrf.mxu0
    %v2992 = vadd.f32 %v2288, %v2991
    %v2993 = vpop.f32.mrf.mxu0
    %v2994 = vadd.f32 %v2288, %v2993
    %2995 = vmatprep.mubr.f32.mxu0 0.0
    %2996 = vmatmul.mubr.f32.gmra.mxu0 %v2322
    %v2997 = vpop.f32.mrf.mxu0
    %v2998 = vadd.f32 %v2293, %v2997
    %v2999 = vpop.f32.mrf.mxu0
    %v3000 = vadd.f32 %v2293, %v2999
    %3001 = vmatprep.mubr.f32.mxu0 0.0
    %3002 = vmatmul.mubr.f32.gmra.mxu0 %v2325
    %v3003 = vpop.f32.mrf.mxu0
    %v3004 = vadd.f32 %v2298, %v3003
    %v3005 = vpop.f32.mrf.mxu0
    %v3006 = vadd.f32 %v2298, %v3005
    %3007 = vmatprep.mubr.f32.mxu0 0.0
    %3008 = vmatmul.mubr.f32.gmra.mxu0 %v2328
    %v3009 = vpop.f32.mrf.mxu0
    %v3010 = vadd.f32 %v2303, %v3009
    %v3011 = vpop.f32.mrf.mxu0
    %v3012 = vadd.f32 %v2303, %v3011
    %3013 = vmatprep.mubr.f32.mxu0 0.0
    %3014 = vmatmul.mubr.f32.gmra.mxu0 %v2331
    %v3015 = vpop.f32.mrf.mxu0
    %v3016 = vadd.f32 %v2308, %v3015
    %v3017 = vpop.f32.mrf.mxu0
    %v3018 = vadd.f32 %v2308, %v3017
    %3019 = vmatprep.mubr.f32.mxu0 0.0
    %3020 = vmatmul.mubr.f32.gmra.mxu0 %v2334
    %v3021 = vpop.f32.mrf.mxu0
    %v3022 = vadd.f32 %v2313, %v3021
    %v3023 = vpop.f32.mrf.mxu0
    %v3024 = vadd.f32 %v2313, %v3023
    %3025 = vdwg.mxu0
    %3026 = vmatprep.subr.mxu0 0.0
    %3027 = vmatpush1.msra.mxu0 0.0
    %3028 = vmatprep.subr.mxu0 0.0
    %3029 = vmatpush1.msra.mxu0 0.0
    %3030 = vmatprep.subr.mxu0 0.0
    %3031 = vmatpush1.msra.mxu0 0.0
    %3032 = vmatprep.subr.mxu0 0.0
    %3033 = vmatpush1.msra.mxu0 0.0
    %3034 = vmatprep.subr.mxu0 0.0
    %3035 = vmatpush1.msra.mxu0 0.0
    %3036 = vmatprep.subr.mxu0 0.0
    %3037 = vmatpush1.msra.mxu0 0.0
    %3038 = vmatprep.subr.mxu0 0.0
    %3039 = vmatpush1.msra.mxu0 0.0
    %3040 = vmatprep.subr.mxu0 0.0
    %3041 = vmatpush1.msra.mxu0 0.0
    %3042 = vmatprep.subr.mxu0 0.0
    %3043 = vmatpush1.msra.mxu0 0.0
    %3044 = vmatprep.subr.mxu0 %v2376
    %3045 = vmatpush1.msra.mxu0 %v2373
    %3046 = vmatprep.subr.mxu0 %v2245
    %3047 = vmatpush1.msra.mxu0 %v2244
    %3048 = vmatprep.subr.mxu0 %v2229
    %3049 = vmatpush1.msra.mxu0 %v2228
    %3050 = vmatprep.subr.mxu0 %v2213
    %3051 = vmatpush1.msra.mxu0 %v2212
    %3052 = vmatprep.subr.mxu0 %v2197
    %3053 = vmatpush1.msra.mxu0 %v2196
    %3054 = vmatprep.subr.mxu0 %v2181
    %3055 = vmatpush1.msra.mxu0 %v2180
    %3056 = vmatprep.subr.mxu0 %v2165
    %3057 = vmatpush1.msra.mxu0 %v2164
    %3058 = vmatprep.subr.mxu0 0.0
    %3059 = vmatpush2.msra.mxu0 0.0
    %3060 = vmatprep.subr.mxu0 0.0
    %3061 = vmatpush2.msra.mxu0 0.0
    %3062 = vmatprep.subr.mxu0 0.0
    %3063 = vmatpush2.msra.mxu0 0.0
    %3064 = vmatprep.subr.mxu0 0.0
    %3065 = vmatpush2.msra.mxu0 0.0
    %3066 = vmatprep.subr.mxu0 0.0
    %3067 = vmatpush2.msra.mxu0 0.0
    %3068 = vmatprep.subr.mxu0 0.0
    %3069 = vmatpush2.msra.mxu0 0.0
    %3070 = vmatprep.subr.mxu0 0.0
    %3071 = vmatpush2.msra.mxu0 0.0
    %3072 = vmatprep.subr.mxu0 0.0
    %3073 = vmatpush2.msra.mxu0 0.0
    %3074 = vmatprep.subr.mxu0 0.0
    %3075 = vmatpush2.msra.mxu0 0.0
    %3076 = vmatprep.subr.mxu0 0.0
    %3077 = vmatpush2.msra.mxu0 0.0
    %3078 = vmatprep.subr.mxu0 0.0
    %3079 = vmatpush2.msra.mxu0 0.0
    %3080 = vmatprep.subr.mxu0 0.0
    %3081 = vmatpush2.msra.mxu0 0.0
    %3082 = vmatprep.subr.mxu0 0.0
    %3083 = vmatpush2.msra.mxu0 0.0
    %3084 = vmatprep.subr.mxu0 0.0
    %3085 = vmatpush2.msra.mxu0 0.0
    %3086 = vmatprep.subr.mxu0 0.0
    %3087 = vmatpush2.msra.mxu0 0.0
    %3088 = vmatprep.subr.mxu0 0.0
    %3089 = vmatpush2.msra.mxu0 0.0
    %3090 = vmatprep.mubr.f32.mxu0 0.0
    %3091 = vmatmul.mubr.f32.gmra.mxu0 %v2316
    %v3092 = vpop.f32.mrf.mxu0
    %v3093 = vadd.f32 %v2283, %v3092
    %v3094 = vpop.f32.mrf.mxu0
    %v3095 = vadd.f32 %v2283, %v3094
    %3096 = vmatprep.mubr.f32.mxu0 0.0
    %3097 = vmatmul.mubr.f32.gmra.mxu0 %v2319
    %v3098 = vpop.f32.mrf.mxu0
    %v3099 = vadd.f32 %v2288, %v3098
    %v3100 = vpop.f32.mrf.mxu0
    %v3101 = vadd.f32 %v2288, %v3100
    %3102 = vmatprep.mubr.f32.mxu0 0.0
    %3103 = vmatmul.mubr.f32.gmra.mxu0 %v2322
    %v3104 = vpop.f32.mrf.mxu0
    %v3105 = vadd.f32 %v2293, %v3104
    %v3106 = vpop.f32.mrf.mxu0
    %v3107 = vadd.f32 %v2293, %v3106
    %3108 = vmatprep.mubr.f32.mxu0 0.0
    %3109 = vmatmul.mubr.f32.gmra.mxu0 %v2325
    %v3110 = vpop.f32.mrf.mxu0
    %v3111 = vadd.f32 %v2298, %v3110
    %v3112 = vpop.f32.mrf.mxu0
    %v3113 = vadd.f32 %v2298, %v3112
    %3114 = vmatprep.mubr.f32.mxu0 0.0
    %3115 = vmatmul.mubr.f32.gmra.mxu0 %v2328
    %v3116 = vpop.f32.mrf.mxu0
    %v3117 = vadd.f32 %v2303, %v3116
    %v3118 = vpop.f32.mrf.mxu0
    %v3119 = vadd.f32 %v2303, %v3118
    %3120 = vmatprep.mubr.f32.mxu0 0.0
    %3121 = vmatmul.mubr.f32.gmra.mxu0 %v2331
    %v3122 = vpop.f32.mrf.mxu0
    %v3123 = vadd.f32 %v2308, %v3122
    %v3124 = vpop.f32.mrf.mxu0
    %v3125 = vadd.f32 %v2308, %v3124
    %3126 = vmatprep.mubr.f32.mxu0 0.0
    %3127 = vmatmul.mubr.f32.gmra.mxu0 %v2334
    %v3128 = vpop.f32.mrf.mxu0
    %v3129 = vadd.f32 %v2313, %v3128
    %v3130 = vpop.f32.mrf.mxu0
    %v3131 = vadd.f32 %v2313, %v3130
    %3132 = vdwg.mxu0
    %3133 = vmatprep.subr.mxu0 0.0
    %3134 = vmatpush1.msra.mxu0 0.0
    %3135 = vmatprep.subr.mxu0 0.0
    %3136 = vmatpush1.msra.mxu0 0.0
    %3137 = vmatprep.subr.mxu0 0.0
    %3138 = vmatpush1.msra.mxu0 0.0
    %3139 = vmatprep.subr.mxu0 0.0
    %3140 = vmatpush1.msra.mxu0 0.0
    %3141 = vmatprep.subr.mxu0 0.0
    %3142 = vmatpush1.msra.mxu0 0.0
    %3143 = vmatprep.subr.mxu0 0.0
    %3144 = vmatpush1.msra.mxu0 0.0
    %3145 = vmatprep.subr.mxu0 0.0
    %3146 = vmatpush1.msra.mxu0 0.0
    %3147 = vmatprep.subr.mxu0 0.0
    %3148 = vmatpush1.msra.mxu0 0.0
    %3149 = vmatprep.subr.mxu0 0.0
    %3150 = vmatpush1.msra.mxu0 0.0
    %3151 = vmatprep.subr.mxu0 %v2382
    %3152 = vmatpush1.msra.mxu0 %v2379
    %3153 = vmatprep.subr.mxu0 %v2247
    %3154 = vmatpush1.msra.mxu0 %v2246
    %3155 = vmatprep.subr.mxu0 %v2231
    %3156 = vmatpush1.msra.mxu0 %v2230
    %3157 = vmatprep.subr.mxu0 %v2215
    %3158 = vmatpush1.msra.mxu0 %v2214
    %3159 = vmatprep.subr.mxu0 %v2199
    %3160 = vmatpush1.msra.mxu0 %v2198
    %3161 = vmatprep.subr.mxu0 %v2183
    %3162 = vmatpush1.msra.mxu0 %v2182
    %3163 = vmatprep.subr.mxu0 %v2167
    %3164 = vmatpush1.msra.mxu0 %v2166
    %3165 = vmatprep.subr.mxu0 0.0
    %3166 = vmatpush2.msra.mxu0 0.0
    %3167 = vmatprep.subr.mxu0 0.0
    %3168 = vmatpush2.msra.mxu0 0.0
    %3169 = vmatprep.subr.mxu0 0.0
    %3170 = vmatpush2.msra.mxu0 0.0
    %3171 = vmatprep.subr.mxu0 0.0
    %3172 = vmatpush2.msra.mxu0 0.0
    %3173 = vmatprep.subr.mxu0 0.0
    %3174 = vmatpush2.msra.mxu0 0.0
    %3175 = vmatprep.subr.mxu0 0.0
    %3176 = vmatpush2.msra.mxu0 0.0
    %3177 = vmatprep.subr.mxu0 0.0
    %3178 = vmatpush2.msra.mxu0 0.0
    %3179 = vmatprep.subr.mxu0 0.0
    %3180 = vmatpush2.msra.mxu0 0.0
    %3181 = vmatprep.subr.mxu0 0.0
    %3182 = vmatpush2.msra.mxu0 0.0
    %3183 = vmatprep.subr.mxu0 0.0
    %3184 = vmatpush2.msra.mxu0 0.0
    %3185 = vmatprep.subr.mxu0 0.0
    %3186 = vmatpush2.msra.mxu0 0.0
    %3187 = vmatprep.subr.mxu0 0.0
    %3188 = vmatpush2.msra.mxu0 0.0
    %3189 = vmatprep.subr.mxu0 0.0
    %3190 = vmatpush2.msra.mxu0 0.0
    %3191 = vmatprep.subr.mxu0 0.0
    %3192 = vmatpush2.msra.mxu0 0.0
    %3193 = vmatprep.subr.mxu0 0.0
    %3194 = vmatpush2.msra.mxu0 0.0
    %3195 = vmatprep.subr.mxu0 0.0
    %3196 = vmatpush2.msra.mxu0 0.0
    %3197 = vmatprep.mubr.f32.mxu0 0.0
    %3198 = vmatmul.mubr.f32.gmra.mxu0 %v2316
    %v3199 = vpop.f32.mrf.mxu0
    %v3200 = vadd.f32 %v2283, %v3199
    %v3201 = vpop.f32.mrf.mxu0
    %v3202 = vadd.f32 %v2283, %v3201
    %3203 = vmatprep.mubr.f32.mxu0 0.0
    %3204 = vmatmul.mubr.f32.gmra.mxu0 %v2319
    %v3205 = vpop.f32.mrf.mxu0
    %v3206 = vadd.f32 %v2288, %v3205
    %v3207 = vpop.f32.mrf.mxu0
    %v3208 = vadd.f32 %v2288, %v3207
    %3209 = vmatprep.mubr.f32.mxu0 0.0
    %3210 = vmatmul.mubr.f32.gmra.mxu0 %v2322
    %v3211 = vpop.f32.mrf.mxu0
    %v3212 = vadd.f32 %v2293, %v3211
    %v3213 = vpop.f32.mrf.mxu0
    %v3214 = vadd.f32 %v2293, %v3213
    %3215 = vmatprep.mubr.f32.mxu0 0.0
    %3216 = vmatmul.mubr.f32.gmra.mxu0 %v2325
    %v3217 = vpop.f32.mrf.mxu0
    %v3218 = vadd.f32 %v2298, %v3217
    %v3219 = vpop.f32.mrf.mxu0
    %v3220 = vadd.f32 %v2298, %v3219
    %3221 = vmatprep.mubr.f32.mxu0 0.0
    %3222 = vmatmul.mubr.f32.gmra.mxu0 %v2328
    %v3223 = vpop.f32.mrf.mxu0
    %v3224 = vadd.f32 %v2303, %v3223
    %v3225 = vpop.f32.mrf.mxu0
    %v3226 = vadd.f32 %v2303, %v3225
    %3227 = vmatprep.mubr.f32.mxu0 0.0
    %3228 = vmatmul.mubr.f32.gmra.mxu0 %v2331
    %v3229 = vpop.f32.mrf.mxu0
    %v3230 = vadd.f32 %v2308, %v3229
    %v3231 = vpop.f32.mrf.mxu0
    %v3232 = vadd.f32 %v2308, %v3231
    %3233 = vmatprep.mubr.f32.mxu0 0.0
    %3234 = vmatmul.mubr.f32.gmra.mxu0 %v2334
    %v3235 = vpop.f32.mrf.mxu0
    %v3236 = vadd.f32 %v2313, %v3235
    %v3237 = vpop.f32.mrf.mxu0
    %v3238 = vadd.f32 %v2313, %v3237
    %3239 = vdwg.mxu0
    %v3240 = vtanh.pop %v2451
    %v3241 = vtanh.pop %v2453
    %v3242 = vtanh.pop %v2558
    %v3243 = vtanh.pop %v2560
    %v3244 = vtanh.pop %v2665
    %v3245 = vtanh.pop %v2667
    %v3246 = vtanh.pop %v2772
    %v3247 = vtanh.pop %v2774
    %v3248 = vtanh.pop %v2879
    %v3249 = vtanh.pop %v2881
    %v3250 = vtanh.pop %v2986
    %v3251 = vtanh.pop %v2988
    %v3252 = vtanh.pop %v3093
    %v3253 = vtanh.pop %v3095
    %v3254 = vtanh.pop %v3200
    %v3255 = vtanh.pop %v3202
    %v3256 = vtanh.pop %v2457
    %v3257 = vtanh.pop %v2459
    %v3258 = vtanh.pop %v2564
    %v3259 = vtanh.pop %v2566
    %v3260 = vtanh.pop %v2671
    %v3261 = vtanh.pop %v2673
    %v3262 = vtanh.pop %v2778
    %v3263 = vtanh.pop %v2780
    %v3264 = vtanh.pop %v2885
    %v3265 = vtanh.pop %v2887
    %v3266 = vtanh.pop %v2992
    %v3267 = vtanh.pop %v2994
    %v3268 = vtanh.pop %v3099
    %v3269 = vtanh.pop %v3101
    %v3270 = vtanh.pop %v3206
    %v3271 = vtanh.pop %v3208
    %v3272 = vtanh.pop %v2463
    %v3273 = vtanh.pop %v2465
    %v3274 = vtanh.pop %v2570
    %v3275 = vtanh.pop %v2572
    %v3276 = vtanh.pop %v2677
    %v3277 = vtanh.pop %v2679
    %v3278 = vtanh.pop %v2784
    %v3279 = vtanh.pop %v2786
    %v3280 = vtanh.pop %v2891
    %v3281 = vtanh.pop %v2893
    %v3282 = vtanh.pop %v2998
    %v3283 = vtanh.pop %v3000
    %v3284 = vtanh.pop %v3105
    %v3285 = vtanh.pop %v3107
    %v3286 = vtanh.pop %v3212
    %v3287 = vtanh.pop %v3214
    %v3288 = vtanh.pop %v2469
    %v3289 = vtanh.pop %v2471
    %v3290 = vtanh.pop %v2576
    %v3291 = vtanh.pop %v2578
    %v3292 = vtanh.pop %v2683
    %v3293 = vtanh.pop %v2685
    %v3294 = vtanh.pop %v2790
    %v3295 = vtanh.pop %v2792
    %v3296 = vtanh.pop %v2897
    %v3297 = vtanh.pop %v2899
    %v3298 = vtanh.pop %v3004
    %v3299 = vtanh.pop %v3006
    %v3300 = vtanh.pop %v3111
    %v3301 = vtanh.pop %v3113
    %v3302 = vtanh.pop %v3218
    %v3303 = vtanh.pop %v3220
    %v3304 = vtanh.pop %v2475
    %v3305 = vtanh.pop %v2477
    %v3306 = vtanh.pop %v2582
    %v3307 = vtanh.pop %v2584
    %v3308 = vtanh.pop %v2689
    %v3309 = vtanh.pop %v2691
    %v3310 = vtanh.pop %v2796
    %v3311 = vtanh.pop %v2798
    %v3312 = vtanh.pop %v2903
    %v3313 = vtanh.pop %v2905
    %v3314 = vtanh.pop %v3010
    %v3315 = vtanh.pop %v3012
    %v3316 = vtanh.pop %v3117
    %v3317 = vtanh.pop %v3119
    %v3318 = vtanh.pop %v3224
    %v3319 = vtanh.pop %v3226
    %v3320 = vtanh.pop %v2481
    %v3321 = vtanh.pop %v2483
    %v3322 = vtanh.pop %v2588
    %v3323 = vtanh.pop %v2590
    %v3324 = vtanh.pop %v2695
    %v3325 = vtanh.pop %v2697
    %v3326 = vtanh.pop %v2802
    %v3327 = vtanh.pop %v2804
    %v3328 = vtanh.pop %v2909
    %v3329 = vtanh.pop %v2911
    %v3330 = vtanh.pop %v3016
    %v3331 = vtanh.pop %v3018
    %v3332 = vtanh.pop %v3123
    %v3333 = vtanh.pop %v3125
    %v3334 = vtanh.pop %v3230
    %v3335 = vtanh.pop %v3232
    %v3336 = vtanh.pop %v2487
    %v3337 = vtanh.pop %v2489
    %v3338 = vtanh.pop %v2594
    %v3339 = vtanh.pop %v2596
    %v3340 = vtanh.pop %v2701
    %v3341 = vtanh.pop %v2703
    %v3342 = vtanh.pop %v2808
    %v3343 = vtanh.pop %v2810
    %v3344 = vtanh.pop %v2915
    %v3345 = vtanh.pop %v2917
    %v3346 = vtanh.pop %v3022
    %v3347 = vtanh.pop %v3024
    %v3348 = vtanh.pop %v3129
    %v3349 = vtanh.pop %v3131
    %v3350 = vtanh.pop %v3236
    %v3351 = vtanh.pop %v3238
    %s3352 = scalar_lea.vmem %s3, 112
    %v3353 = vld [vmem:[%s3352] sm:$0xff]
    %v3354 = vld [vmem:[%s3352 + $0x8] sm:$0xff]
    %v3355 = vld [vmem:[%s3352 + $0x10] sm:$0xff]
    %v3356 = vld [vmem:[%s3352 + $0x18] sm:$0xff]
    %v3357 = vld [vmem:[%s3352 + $0x20] sm:$0xff]
    %v3358 = vld [vmem:[%s3352 + $0x28] sm:$0xff]
    %v3359 = vld [vmem:[%s3352 + $0x30] sm:$0x3]
    %s3360 = scalar_lea.vmem %s4, 112
    %v3361 = vld [vmem:[%s3360] sm:$0xff]
    %v3362 = vld [vmem:[%s3360 + $0x8] sm:$0xff]
    %v3363 = vld [vmem:[%s3360 + $0x10] sm:$0xff]
    %v3364 = vld [vmem:[%s3360 + $0x18] sm:$0xff]
    %v3365 = vld [vmem:[%s3360 + $0x20] sm:$0xff]
    %v3366 = vld [vmem:[%s3360 + $0x28] sm:$0xff]
    %v3367 = vld [vmem:[%s3360 + $0x30] sm:$0x3]
    %3369 = vset.pattern.permute.xlu0 0
    %3370 = vperm.xlu0 %3369, %v3361
    %v3371 = vpop.permute.xlu0 %3370
    %3374 = vset.pattern.permute.xlu0 0
    %3375 = vperm.xlu0 %3374, %v3362
    %v3376 = vpop.permute.xlu0 %3375
    %3379 = vset.pattern.permute.xlu0 0
    %3380 = vperm.xlu0 %3379, %v3363
    %v3381 = vpop.permute.xlu0 %3380
    %3384 = vset.pattern.permute.xlu0 0
    %3385 = vperm.xlu0 %3384, %v3364
    %v3386 = vpop.permute.xlu0 %3385
    %3389 = vset.pattern.permute.xlu0 0
    %3390 = vperm.xlu0 %3389, %v3365
    %v3391 = vpop.permute.xlu0 %3390
    %3394 = vset.pattern.permute.xlu0 0
    %3395 = vperm.xlu0 %3394, %v3366
    %v3396 = vpop.permute.xlu0 %3395
    %3399 = vset.pattern.permute.xlu0 0
    %3400 = vperm.xlu0 %3399, %v3367
    %v3401 = vpop.permute.xlu0 %3400
    %v3404 = vsel %vm1226, %v3353, 0
    %v3407 = vsel %vm1226, %v3354, 0
    %v3410 = vsel %vm1226, %v3355, 0
    %v3413 = vsel %vm1226, %v3356, 0
    %v3416 = vsel %vm1226, %v3357, 0
    %v3419 = vsel %vm1226, %v3358, 0
    %v3422 = vsel %vm1226, %v3359, 0
    %v3425 = vsel %vm176, %v3336, 0
    %v3428 = vsel %vm176, %v3337, 0
    %v3431 = vsel %vm176, %v3338, 0
    %v3434 = vsel %vm176, %v3339, 0
    %v3437 = vsel %vm176, %v3340, 0
    %v3440 = vsel %vm176, %v3341, 0
    %v3443 = vsel %vm176, %v3342, 0
    %v3446 = vsel %vm176, %v3343, 0
    %v3449 = vsel %vm176, %v3344, 0
    %v3452 = vsel %vm176, %v3345, 0
    %v3455 = vsel %vm176, %v3346, 0
    %v3458 = vsel %vm176, %v3347, 0
    %v3461 = vsel %vm176, %v3348, 0
    %v3464 = vsel %vm176, %v3349, 0
    %v3467 = vsel %vm176, %v3350, 0
    %v3470 = vsel %vm176, %v3351, 0
    %3472 = vmatprep.subr.mxu0 0.0
    %3473 = vmatpush1.msra.mxu0 0.0
    %3474 = vmatprep.subr.mxu0 0.0
    %3475 = vmatpush1.msra.mxu0 0.0
    %3476 = vmatprep.subr.mxu0 0.0
    %3477 = vmatpush1.msra.mxu0 0.0
    %3478 = vmatprep.subr.mxu0 0.0
    %3479 = vmatpush1.msra.mxu0 0.0
    %3480 = vmatprep.subr.mxu0 0.0
    %3481 = vmatpush1.msra.mxu0 0.0
    %3482 = vmatprep.subr.mxu0 0.0
    %3483 = vmatpush1.msra.mxu0 0.0
    %3484 = vmatprep.subr.mxu0 0.0
    %3485 = vmatpush1.msra.mxu0 0.0
    %3486 = vmatprep.subr.mxu0 0.0
    %3487 = vmatpush1.msra.mxu0 0.0
    %3488 = vmatprep.subr.mxu0 0.0
    %3489 = vmatpush1.msra.mxu0 0.0
    %3490 = vmatprep.subr.mxu0 %v3428
    %3491 = vmatpush1.msra.mxu0 %v3425
    %3492 = vmatprep.subr.mxu0 %v3321
    %3493 = vmatpush1.msra.mxu0 %v3320
    %3494 = vmatprep.subr.mxu0 %v3305
    %3495 = vmatpush1.msra.mxu0 %v3304
    %3496 = vmatprep.subr.mxu0 %v3289
    %3497 = vmatpush1.msra.mxu0 %v3288
    %3498 = vmatprep.subr.mxu0 %v3273
    %3499 = vmatpush1.msra.mxu0 %v3272
    %3500 = vmatprep.subr.mxu0 %v3257
    %3501 = vmatpush1.msra.mxu0 %v3256
    %3502 = vmatprep.subr.mxu0 %v3241
    %3503 = vmatpush1.msra.mxu0 %v3240
    %3504 = vmatprep.subr.mxu0 0.0
    %3505 = vmatpush2.msra.mxu0 0.0
    %3506 = vmatprep.subr.mxu0 0.0
    %3507 = vmatpush2.msra.mxu0 0.0
    %3508 = vmatprep.subr.mxu0 0.0
    %3509 = vmatpush2.msra.mxu0 0.0
    %3510 = vmatprep.subr.mxu0 0.0
    %3511 = vmatpush2.msra.mxu0 0.0
    %3512 = vmatprep.subr.mxu0 0.0
    %3513 = vmatpush2.msra.mxu0 0.0
    %3514 = vmatprep.subr.mxu0 0.0
    %3515 = vmatpush2.msra.mxu0 0.0
    %3516 = vmatprep.subr.mxu0 0.0
    %3517 = vmatpush2.msra.mxu0 0.0
    %3518 = vmatprep.subr.mxu0 0.0
    %3519 = vmatpush2.msra.mxu0 0.0
    %3520 = vmatprep.subr.mxu0 0.0
    %3521 = vmatpush2.msra.mxu0 0.0
    %3522 = vmatprep.subr.mxu0 0.0
    %3523 = vmatpush2.msra.mxu0 0.0
    %3524 = vmatprep.subr.mxu0 0.0
    %3525 = vmatpush2.msra.mxu0 0.0
    %3526 = vmatprep.subr.mxu0 0.0
    %3527 = vmatpush2.msra.mxu0 0.0
    %3528 = vmatprep.subr.mxu0 0.0
    %3529 = vmatpush2.msra.mxu0 0.0
    %3530 = vmatprep.subr.mxu0 0.0
    %3531 = vmatpush2.msra.mxu0 0.0
    %3532 = vmatprep.subr.mxu0 0.0
    %3533 = vmatpush2.msra.mxu0 0.0
    %3534 = vmatprep.subr.mxu0 0.0
    %3535 = vmatpush2.msra.mxu0 0.0
    %3536 = vmatprep.mubr.f32.mxu0 0.0
    %3537 = vmatmul.mubr.f32.gmra.mxu0 %v3404
    %v3538 = vpop.f32.mrf.mxu0
    %v3539 = vadd.f32 %v3371, %v3538
    %v3540 = vpop.f32.mrf.mxu0
    %v3541 = vadd.f32 %v3371, %v3540
    %3542 = vmatprep.mubr.f32.mxu0 0.0
    %3543 = vmatmul.mubr.f32.gmra.mxu0 %v3407
    %v3544 = vpop.f32.mrf.mxu0
    %v3545 = vadd.f32 %v3376, %v3544
    %v3546 = vpop.f32.mrf.mxu0
    %v3547 = vadd.f32 %v3376, %v3546
    %3548 = vmatprep.mubr.f32.mxu0 0.0
    %3549 = vmatmul.mubr.f32.gmra.mxu0 %v3410
    %v3550 = vpop.f32.mrf.mxu0
    %v3551 = vadd.f32 %v3381, %v3550
    %v3552 = vpop.f32.mrf.mxu0
    %v3553 = vadd.f32 %v3381, %v3552
    %3554 = vmatprep.mubr.f32.mxu0 0.0
    %3555 = vmatmul.mubr.f32.gmra.mxu0 %v3413
    %v3556 = vpop.f32.mrf.mxu0
    %v3557 = vadd.f32 %v3386, %v3556
    %v3558 = vpop.f32.mrf.mxu0
    %v3559 = vadd.f32 %v3386, %v3558
    %3560 = vmatprep.mubr.f32.mxu0 0.0
    %3561 = vmatmul.mubr.f32.gmra.mxu0 %v3416
    %v3562 = vpop.f32.mrf.mxu0
    %v3563 = vadd.f32 %v3391, %v3562
    %v3564 = vpop.f32.mrf.mxu0
    %v3565 = vadd.f32 %v3391, %v3564
    %3566 = vmatprep.mubr.f32.mxu0 0.0
    %3567 = vmatmul.mubr.f32.gmra.mxu0 %v3419
    %v3568 = vpop.f32.mrf.mxu0
    %v3569 = vadd.f32 %v3396, %v3568
    %v3570 = vpop.f32.mrf.mxu0
    %v3571 = vadd.f32 %v3396, %v3570
    %3572 = vmatprep.mubr.f32.mxu0 0.0
    %3573 = vmatmul.mubr.f32.gmra.mxu0 %v3422
    %v3574 = vpop.f32.mrf.mxu0
    %v3575 = vadd.f32 %v3401, %v3574
    %v3576 = vpop.f32.mrf.mxu0
    %v3577 = vadd.f32 %v3401, %v3576
    %3578 = vdwg.mxu0
    %3579 = vmatprep.subr.mxu0 0.0
    %3580 = vmatpush1.msra.mxu0 0.0
    %3581 = vmatprep.subr.mxu0 0.0
    %3582 = vmatpush1.msra.mxu0 0.0
    %3583 = vmatprep.subr.mxu0 0.0
    %3584 = vmatpush1.msra.mxu0 0.0
    %3585 = vmatprep.subr.mxu0 0.0
    %3586 = vmatpush1.msra.mxu0 0.0
    %3587 = vmatprep.subr.mxu0 0.0
    %3588 = vmatpush1.msra.mxu0 0.0
    %3589 = vmatprep.subr.mxu0 0.0
    %3590 = vmatpush1.msra.mxu0 0.0
    %3591 = vmatprep.subr.mxu0 0.0
    %3592 = vmatpush1.msra.mxu0 0.0
    %3593 = vmatprep.subr.mxu0 0.0
    %3594 = vmatpush1.msra.mxu0 0.0
    %3595 = vmatprep.subr.mxu0 0.0
    %3596 = vmatpush1.msra.mxu0 0.0
    %3597 = vmatprep.subr.mxu0 %v3434
    %3598 = vmatpush1.msra.mxu0 %v3431
    %3599 = vmatprep.subr.mxu0 %v3323
    %3600 = vmatpush1.msra.mxu0 %v3322
    %3601 = vmatprep.subr.mxu0 %v3307
    %3602 = vmatpush1.msra.mxu0 %v3306
    %3603 = vmatprep.subr.mxu0 %v3291
    %3604 = vmatpush1.msra.mxu0 %v3290
    %3605 = vmatprep.subr.mxu0 %v3275
    %3606 = vmatpush1.msra.mxu0 %v3274
    %3607 = vmatprep.subr.mxu0 %v3259
    %3608 = vmatpush1.msra.mxu0 %v3258
    %3609 = vmatprep.subr.mxu0 %v3243
    %3610 = vmatpush1.msra.mxu0 %v3242
    %3611 = vmatprep.subr.mxu0 0.0
    %3612 = vmatpush2.msra.mxu0 0.0
    %3613 = vmatprep.subr.mxu0 0.0
    %3614 = vmatpush2.msra.mxu0 0.0
    %3615 = vmatprep.subr.mxu0 0.0
    %3616 = vmatpush2.msra.mxu0 0.0
    %3617 = vmatprep.subr.mxu0 0.0
    %3618 = vmatpush2.msra.mxu0 0.0
    %3619 = vmatprep.subr.mxu0 0.0
    %3620 = vmatpush2.msra.mxu0 0.0
    %3621 = vmatprep.subr.mxu0 0.0
    %3622 = vmatpush2.msra.mxu0 0.0
    %3623 = vmatprep.subr.mxu0 0.0
    %3624 = vmatpush2.msra.mxu0 0.0
    %3625 = vmatprep.subr.mxu0 0.0
    %3626 = vmatpush2.msra.mxu0 0.0
    %3627 = vmatprep.subr.mxu0 0.0
    %3628 = vmatpush2.msra.mxu0 0.0
    %3629 = vmatprep.subr.mxu0 0.0
    %3630 = vmatpush2.msra.mxu0 0.0
    %3631 = vmatprep.subr.mxu0 0.0
    %3632 = vmatpush2.msra.mxu0 0.0
    %3633 = vmatprep.subr.mxu0 0.0
    %3634 = vmatpush2.msra.mxu0 0.0
    %3635 = vmatprep.subr.mxu0 0.0
    %3636 = vmatpush2.msra.mxu0 0.0
    %3637 = vmatprep.subr.mxu0 0.0
    %3638 = vmatpush2.msra.mxu0 0.0
    %3639 = vmatprep.subr.mxu0 0.0
    %3640 = vmatpush2.msra.mxu0 0.0
    %3641 = vmatprep.subr.mxu0 0.0
    %3642 = vmatpush2.msra.mxu0 0.0
    %3643 = vmatprep.mubr.f32.mxu0 0.0
    %3644 = vmatmul.mubr.f32.gmra.mxu0 %v3404
    %v3645 = vpop.f32.mrf.mxu0
    %v3646 = vadd.f32 %v3371, %v3645
    %v3647 = vpop.f32.mrf.mxu0
    %v3648 = vadd.f32 %v3371, %v3647
    %3649 = vmatprep.mubr.f32.mxu0 0.0
    %3650 = vmatmul.mubr.f32.gmra.mxu0 %v3407
    %v3651 = vpop.f32.mrf.mxu0
    %v3652 = vadd.f32 %v3376, %v3651
    %v3653 = vpop.f32.mrf.mxu0
    %v3654 = vadd.f32 %v3376, %v3653
    %3655 = vmatprep.mubr.f32.mxu0 0.0
    %3656 = vmatmul.mubr.f32.gmra.mxu0 %v3410
    %v3657 = vpop.f32.mrf.mxu0
    %v3658 = vadd.f32 %v3381, %v3657
    %v3659 = vpop.f32.mrf.mxu0
    %v3660 = vadd.f32 %v3381, %v3659
    %3661 = vmatprep.mubr.f32.mxu0 0.0
    %3662 = vmatmul.mubr.f32.gmra.mxu0 %v3413
    %v3663 = vpop.f32.mrf.mxu0
    %v3664 = vadd.f32 %v3386, %v3663
    %v3665 = vpop.f32.mrf.mxu0
    %v3666 = vadd.f32 %v3386, %v3665
    %3667 = vmatprep.mubr.f32.mxu0 0.0
    %3668 = vmatmul.mubr.f32.gmra.mxu0 %v3416
    %v3669 = vpop.f32.mrf.mxu0
    %v3670 = vadd.f32 %v3391, %v3669
    %v3671 = vpop.f32.mrf.mxu0
    %v3672 = vadd.f32 %v3391, %v3671
    %3673 = vmatprep.mubr.f32.mxu0 0.0
    %3674 = vmatmul.mubr.f32.gmra.mxu0 %v3419
    %v3675 = vpop.f32.mrf.mxu0
    %v3676 = vadd.f32 %v3396, %v3675
    %v3677 = vpop.f32.mrf.mxu0
    %v3678 = vadd.f32 %v3396, %v3677
    %3679 = vmatprep.mubr.f32.mxu0 0.0
    %3680 = vmatmul.mubr.f32.gmra.mxu0 %v3422
    %v3681 = vpop.f32.mrf.mxu0
    %v3682 = vadd.f32 %v3401, %v3681
    %v3683 = vpop.f32.mrf.mxu0
    %v3684 = vadd.f32 %v3401, %v3683
    %3685 = vdwg.mxu0
    %3686 = vmatprep.subr.mxu0 0.0
    %3687 = vmatpush1.msra.mxu0 0.0
    %3688 = vmatprep.subr.mxu0 0.0
    %3689 = vmatpush1.msra.mxu0 0.0
    %3690 = vmatprep.subr.mxu0 0.0
    %3691 = vmatpush1.msra.mxu0 0.0
    %3692 = vmatprep.subr.mxu0 0.0
    %3693 = vmatpush1.msra.mxu0 0.0
    %3694 = vmatprep.subr.mxu0 0.0
    %3695 = vmatpush1.msra.mxu0 0.0
    %3696 = vmatprep.subr.mxu0 0.0
    %3697 = vmatpush1.msra.mxu0 0.0
    %3698 = vmatprep.subr.mxu0 0.0
    %3699 = vmatpush1.msra.mxu0 0.0
    %3700 = vmatprep.subr.mxu0 0.0
    %3701 = vmatpush1.msra.mxu0 0.0
    %3702 = vmatprep.subr.mxu0 0.0
    %3703 = vmatpush1.msra.mxu0 0.0
    %3704 = vmatprep.subr.mxu0 %v3440
    %3705 = vmatpush1.msra.mxu0 %v3437
    %3706 = vmatprep.subr.mxu0 %v3325
    %3707 = vmatpush1.msra.mxu0 %v3324
    %3708 = vmatprep.subr.mxu0 %v3309
    %3709 = vmatpush1.msra.mxu0 %v3308
    %3710 = vmatprep.subr.mxu0 %v3293
    %3711 = vmatpush1.msra.mxu0 %v3292
    %3712 = vmatprep.subr.mxu0 %v3277
    %3713 = vmatpush1.msra.mxu0 %v3276
    %3714 = vmatprep.subr.mxu0 %v3261
    %3715 = vmatpush1.msra.mxu0 %v3260
    %3716 = vmatprep.subr.mxu0 %v3245
    %3717 = vmatpush1.msra.mxu0 %v3244
    %3718 = vmatprep.subr.mxu0 0.0
    %3719 = vmatpush2.msra.mxu0 0.0
    %3720 = vmatprep.subr.mxu0 0.0
    %3721 = vmatpush2.msra.mxu0 0.0
    %3722 = vmatprep.subr.mxu0 0.0
    %3723 = vmatpush2.msra.mxu0 0.0
    %3724 = vmatprep.subr.mxu0 0.0
    %3725 = vmatpush2.msra.mxu0 0.0
    %3726 = vmatprep.subr.mxu0 0.0
    %3727 = vmatpush2.msra.mxu0 0.0
    %3728 = vmatprep.subr.mxu0 0.0
    %3729 = vmatpush2.msra.mxu0 0.0
    %3730 = vmatprep.subr.mxu0 0.0
    %3731 = vmatpush2.msra.mxu0 0.0
    %3732 = vmatprep.subr.mxu0 0.0
    %3733 = vmatpush2.msra.mxu0 0.0
    %3734 = vmatprep.subr.mxu0 0.0
    %3735 = vmatpush2.msra.mxu0 0.0
    %3736 = vmatprep.subr.mxu0 0.0
    %3737 = vmatpush2.msra.mxu0 0.0
    %3738 = vmatprep.subr.mxu0 0.0
    %3739 = vmatpush2.msra.mxu0 0.0
    %3740 = vmatprep.subr.mxu0 0.0
    %3741 = vmatpush2.msra.mxu0 0.0
    %3742 = vmatprep.subr.mxu0 0.0
    %3743 = vmatpush2.msra.mxu0 0.0
    %3744 = vmatprep.subr.mxu0 0.0
    %3745 = vmatpush2.msra.mxu0 0.0
    %3746 = vmatprep.subr.mxu0 0.0
    %3747 = vmatpush2.msra.mxu0 0.0
    %3748 = vmatprep.subr.mxu0 0.0
    %3749 = vmatpush2.msra.mxu0 0.0
    %3750 = vmatprep.mubr.f32.mxu0 0.0
    %3751 = vmatmul.mubr.f32.gmra.mxu0 %v3404
    %v3752 = vpop.f32.mrf.mxu0
    %v3753 = vadd.f32 %v3371, %v3752
    %v3754 = vpop.f32.mrf.mxu0
    %v3755 = vadd.f32 %v3371, %v3754
    %3756 = vmatprep.mubr.f32.mxu0 0.0
    %3757 = vmatmul.mubr.f32.gmra.mxu0 %v3407
    %v3758 = vpop.f32.mrf.mxu0
    %v3759 = vadd.f32 %v3376, %v3758
    %v3760 = vpop.f32.mrf.mxu0
    %v3761 = vadd.f32 %v3376, %v3760
    %3762 = vmatprep.mubr.f32.mxu0 0.0
    %3763 = vmatmul.mubr.f32.gmra.mxu0 %v3410
    %v3764 = vpop.f32.mrf.mxu0
    %v3765 = vadd.f32 %v3381, %v3764
    %v3766 = vpop.f32.mrf.mxu0
    %v3767 = vadd.f32 %v3381, %v3766
    %3768 = vmatprep.mubr.f32.mxu0 0.0
    %3769 = vmatmul.mubr.f32.gmra.mxu0 %v3413
    %v3770 = vpop.f32.mrf.mxu0
    %v3771 = vadd.f32 %v3386, %v3770
    %v3772 = vpop.f32.mrf.mxu0
    %v3773 = vadd.f32 %v3386, %v3772
    %3774 = vmatprep.mubr.f32.mxu0 0.0
    %3775 = vmatmul.mubr.f32.gmra.mxu0 %v3416
    %v3776 = vpop.f32.mrf.mxu0
    %v3777 = vadd.f32 %v3391, %v3776
    %v3778 = vpop.f32.mrf.mxu0
    %v3779 = vadd.f32 %v3391, %v3778
    %3780 = vmatprep.mubr.f32.mxu0 0.0
    %3781 = vmatmul.mubr.f32.gmra.mxu0 %v3419
    %v3782 = vpop.f32.mrf.mxu0
    %v3783 = vadd.f32 %v3396, %v3782
    %v3784 = vpop.f32.mrf.mxu0
    %v3785 = vadd.f32 %v3396, %v3784
    %3786 = vmatprep.mubr.f32.mxu0 0.0
    %3787 = vmatmul.mubr.f32.gmra.mxu0 %v3422
    %v3788 = vpop.f32.mrf.mxu0
    %v3789 = vadd.f32 %v3401, %v3788
    %v3790 = vpop.f32.mrf.mxu0
    %v3791 = vadd.f32 %v3401, %v3790
    %3792 = vdwg.mxu0
    %3793 = vmatprep.subr.mxu0 0.0
    %3794 = vmatpush1.msra.mxu0 0.0
    %3795 = vmatprep.subr.mxu0 0.0
    %3796 = vmatpush1.msra.mxu0 0.0
    %3797 = vmatprep.subr.mxu0 0.0
    %3798 = vmatpush1.msra.mxu0 0.0
    %3799 = vmatprep.subr.mxu0 0.0
    %3800 = vmatpush1.msra.mxu0 0.0
    %3801 = vmatprep.subr.mxu0 0.0
    %3802 = vmatpush1.msra.mxu0 0.0
    %3803 = vmatprep.subr.mxu0 0.0
    %3804 = vmatpush1.msra.mxu0 0.0
    %3805 = vmatprep.subr.mxu0 0.0
    %3806 = vmatpush1.msra.mxu0 0.0
    %3807 = vmatprep.subr.mxu0 0.0
    %3808 = vmatpush1.msra.mxu0 0.0
    %3809 = vmatprep.subr.mxu0 0.0
    %3810 = vmatpush1.msra.mxu0 0.0
    %3811 = vmatprep.subr.mxu0 %v3446
    %3812 = vmatpush1.msra.mxu0 %v3443
    %3813 = vmatprep.subr.mxu0 %v3327
    %3814 = vmatpush1.msra.mxu0 %v3326
    %3815 = vmatprep.subr.mxu0 %v3311
    %3816 = vmatpush1.msra.mxu0 %v3310
    %3817 = vmatprep.subr.mxu0 %v3295
    %3818 = vmatpush1.msra.mxu0 %v3294
    %3819 = vmatprep.subr.mxu0 %v3279
    %3820 = vmatpush1.msra.mxu0 %v3278
    %3821 = vmatprep.subr.mxu0 %v3263
    %3822 = vmatpush1.msra.mxu0 %v3262
    %3823 = vmatprep.subr.mxu0 %v3247
    %3824 = vmatpush1.msra.mxu0 %v3246
    %3825 = vmatprep.subr.mxu0 0.0
    %3826 = vmatpush2.msra.mxu0 0.0
    %3827 = vmatprep.subr.mxu0 0.0
    %3828 = vmatpush2.msra.mxu0 0.0
    %3829 = vmatprep.subr.mxu0 0.0
    %3830 = vmatpush2.msra.mxu0 0.0
    %3831 = vmatprep.subr.mxu0 0.0
    %3832 = vmatpush2.msra.mxu0 0.0
    %3833 = vmatprep.subr.mxu0 0.0
    %3834 = vmatpush2.msra.mxu0 0.0
    %3835 = vmatprep.subr.mxu0 0.0
    %3836 = vmatpush2.msra.mxu0 0.0
    %3837 = vmatprep.subr.mxu0 0.0
    %3838 = vmatpush2.msra.mxu0 0.0
    %3839 = vmatprep.subr.mxu0 0.0
    %3840 = vmatpush2.msra.mxu0 0.0
    %3841 = vmatprep.subr.mxu0 0.0
    %3842 = vmatpush2.msra.mxu0 0.0
    %3843 = vmatprep.subr.mxu0 0.0
    %3844 = vmatpush2.msra.mxu0 0.0
    %3845 = vmatprep.subr.mxu0 0.0
    %3846 = vmatpush2.msra.mxu0 0.0
    %3847 = vmatprep.subr.mxu0 0.0
    %3848 = vmatpush2.msra.mxu0 0.0
    %3849 = vmatprep.subr.mxu0 0.0
    %3850 = vmatpush2.msra.mxu0 0.0
    %3851 = vmatprep.subr.mxu0 0.0
    %3852 = vmatpush2.msra.mxu0 0.0
    %3853 = vmatprep.subr.mxu0 0.0
    %3854 = vmatpush2.msra.mxu0 0.0
    %3855 = vmatprep.subr.mxu0 0.0
    %3856 = vmatpush2.msra.mxu0 0.0
    %3857 = vmatprep.mubr.f32.mxu0 0.0
    %3858 = vmatmul.mubr.f32.gmra.mxu0 %v3404
    %v3859 = vpop.f32.mrf.mxu0
    %v3860 = vadd.f32 %v3371, %v3859
    %v3861 = vpop.f32.mrf.mxu0
    %v3862 = vadd.f32 %v3371, %v3861
    %3863 = vmatprep.mubr.f32.mxu0 0.0
    %3864 = vmatmul.mubr.f32.gmra.mxu0 %v3407
    %v3865 = vpop.f32.mrf.mxu0
    %v3866 = vadd.f32 %v3376, %v3865
    %v3867 = vpop.f32.mrf.mxu0
    %v3868 = vadd.f32 %v3376, %v3867
    %3869 = vmatprep.mubr.f32.mxu0 0.0
    %3870 = vmatmul.mubr.f32.gmra.mxu0 %v3410
    %v3871 = vpop.f32.mrf.mxu0
    %v3872 = vadd.f32 %v3381, %v3871
    %v3873 = vpop.f32.mrf.mxu0
    %v3874 = vadd.f32 %v3381, %v3873
    %3875 = vmatprep.mubr.f32.mxu0 0.0
    %3876 = vmatmul.mubr.f32.gmra.mxu0 %v3413
    %v3877 = vpop.f32.mrf.mxu0
    %v3878 = vadd.f32 %v3386, %v3877
    %v3879 = vpop.f32.mrf.mxu0
    %v3880 = vadd.f32 %v3386, %v3879
    %3881 = vmatprep.mubr.f32.mxu0 0.0
    %3882 = vmatmul.mubr.f32.gmra.mxu0 %v3416
    %v3883 = vpop.f32.mrf.mxu0
    %v3884 = vadd.f32 %v3391, %v3883
    %v3885 = vpop.f32.mrf.mxu0
    %v3886 = vadd.f32 %v3391, %v3885
    %3887 = vmatprep.mubr.f32.mxu0 0.0
    %3888 = vmatmul.mubr.f32.gmra.mxu0 %v3419
    %v3889 = vpop.f32.mrf.mxu0
    %v3890 = vadd.f32 %v3396, %v3889
    %v3891 = vpop.f32.mrf.mxu0
    %v3892 = vadd.f32 %v3396, %v3891
    %3893 = vmatprep.mubr.f32.mxu0 0.0
    %3894 = vmatmul.mubr.f32.gmra.mxu0 %v3422
    %v3895 = vpop.f32.mrf.mxu0
    %v3896 = vadd.f32 %v3401, %v3895
    %v3897 = vpop.f32.mrf.mxu0
    %v3898 = vadd.f32 %v3401, %v3897
    %3899 = vdwg.mxu0
    %3900 = vmatprep.subr.mxu0 0.0
    %3901 = vmatpush1.msra.mxu0 0.0
    %3902 = vmatprep.subr.mxu0 0.0
    %3903 = vmatpush1.msra.mxu0 0.0
    %3904 = vmatprep.subr.mxu0 0.0
    %3905 = vmatpush1.msra.mxu0 0.0
    %3906 = vmatprep.subr.mxu0 0.0
    %3907 = vmatpush1.msra.mxu0 0.0
    %3908 = vmatprep.subr.mxu0 0.0
    %3909 = vmatpush1.msra.mxu0 0.0
    %3910 = vmatprep.subr.mxu0 0.0
    %3911 = vmatpush1.msra.mxu0 0.0
    %3912 = vmatprep.subr.mxu0 0.0
    %3913 = vmatpush1.msra.mxu0 0.0
    %3914 = vmatprep.subr.mxu0 0.0
    %3915 = vmatpush1.msra.mxu0 0.0
    %3916 = vmatprep.subr.mxu0 0.0
    %3917 = vmatpush1.msra.mxu0 0.0
    %3918 = vmatprep.subr.mxu0 %v3452
    %3919 = vmatpush1.msra.mxu0 %v3449
    %3920 = vmatprep.subr.mxu0 %v3329
    %3921 = vmatpush1.msra.mxu0 %v3328
    %3922 = vmatprep.subr.mxu0 %v3313
    %3923 = vmatpush1.msra.mxu0 %v3312
    %3924 = vmatprep.subr.mxu0 %v3297
    %3925 = vmatpush1.msra.mxu0 %v3296
    %3926 = vmatprep.subr.mxu0 %v3281
    %3927 = vmatpush1.msra.mxu0 %v3280
    %3928 = vmatprep.subr.mxu0 %v3265
    %3929 = vmatpush1.msra.mxu0 %v3264
    %3930 = vmatprep.subr.mxu0 %v3249
    %3931 = vmatpush1.msra.mxu0 %v3248
    %3932 = vmatprep.subr.mxu0 0.0
    %3933 = vmatpush2.msra.mxu0 0.0
    %3934 = vmatprep.subr.mxu0 0.0
    %3935 = vmatpush2.msra.mxu0 0.0
    %3936 = vmatprep.subr.mxu0 0.0
    %3937 = vmatpush2.msra.mxu0 0.0
    %3938 = vmatprep.subr.mxu0 0.0
    %3939 = vmatpush2.msra.mxu0 0.0
    %3940 = vmatprep.subr.mxu0 0.0
    %3941 = vmatpush2.msra.mxu0 0.0
    %3942 = vmatprep.subr.mxu0 0.0
    %3943 = vmatpush2.msra.mxu0 0.0
    %3944 = vmatprep.subr.mxu0 0.0
    %3945 = vmatpush2.msra.mxu0 0.0
    %3946 = vmatprep.subr.mxu0 0.0
    %3947 = vmatpush2.msra.mxu0 0.0
    %3948 = vmatprep.subr.mxu0 0.0
    %3949 = vmatpush2.msra.mxu0 0.0
    %3950 = vmatprep.subr.mxu0 0.0
    %3951 = vmatpush2.msra.mxu0 0.0
    %3952 = vmatprep.subr.mxu0 0.0
    %3953 = vmatpush2.msra.mxu0 0.0
    %3954 = vmatprep.subr.mxu0 0.0
    %3955 = vmatpush2.msra.mxu0 0.0
    %3956 = vmatprep.subr.mxu0 0.0
    %3957 = vmatpush2.msra.mxu0 0.0
    %3958 = vmatprep.subr.mxu0 0.0
    %3959 = vmatpush2.msra.mxu0 0.0
    %3960 = vmatprep.subr.mxu0 0.0
    %3961 = vmatpush2.msra.mxu0 0.0
    %3962 = vmatprep.subr.mxu0 0.0
    %3963 = vmatpush2.msra.mxu0 0.0
    %3964 = vmatprep.mubr.f32.mxu0 0.0
    %3965 = vmatmul.mubr.f32.gmra.mxu0 %v3404
    %v3966 = vpop.f32.mrf.mxu0
    %v3967 = vadd.f32 %v3371, %v3966
    %v3968 = vpop.f32.mrf.mxu0
    %v3969 = vadd.f32 %v3371, %v3968
    %3970 = vmatprep.mubr.f32.mxu0 0.0
    %3971 = vmatmul.mubr.f32.gmra.mxu0 %v3407
    %v3972 = vpop.f32.mrf.mxu0
    %v3973 = vadd.f32 %v3376, %v3972
    %v3974 = vpop.f32.mrf.mxu0
    %v3975 = vadd.f32 %v3376, %v3974
    %3976 = vmatprep.mubr.f32.mxu0 0.0
    %3977 = vmatmul.mubr.f32.gmra.mxu0 %v3410
    %v3978 = vpop.f32.mrf.mxu0
    %v3979 = vadd.f32 %v3381, %v3978
    %v3980 = vpop.f32.mrf.mxu0
    %v3981 = vadd.f32 %v3381, %v3980
    %3982 = vmatprep.mubr.f32.mxu0 0.0
    %3983 = vmatmul.mubr.f32.gmra.mxu0 %v3413
    %v3984 = vpop.f32.mrf.mxu0
    %v3985 = vadd.f32 %v3386, %v3984
    %v3986 = vpop.f32.mrf.mxu0
    %v3987 = vadd.f32 %v3386, %v3986
    %3988 = vmatprep.mubr.f32.mxu0 0.0
    %3989 = vmatmul.mubr.f32.gmra.mxu0 %v3416
    %v3990 = vpop.f32.mrf.mxu0
    %v3991 = vadd.f32 %v3391, %v3990
    %v3992 = vpop.f32.mrf.mxu0
    %v3993 = vadd.f32 %v3391, %v3992
    %3994 = vmatprep.mubr.f32.mxu0 0.0
    %3995 = vmatmul.mubr.f32.gmra.mxu0 %v3419
    %v3996 = vpop.f32.mrf.mxu0
    %v3997 = vadd.f32 %v3396, %v3996
    %v3998 = vpop.f32.mrf.mxu0
    %v3999 = vadd.f32 %v3396, %v3998
    %4000 = vmatprep.mubr.f32.mxu0 0.0
    %4001 = vmatmul.mubr.f32.gmra.mxu0 %v3422
    %v4002 = vpop.f32.mrf.mxu0
    %v4003 = vadd.f32 %v3401, %v4002
    %v4004 = vpop.f32.mrf.mxu0
    %v4005 = vadd.f32 %v3401, %v4004
    %4006 = vdwg.mxu0
    %4007 = vmatprep.subr.mxu0 0.0
    %4008 = vmatpush1.msra.mxu0 0.0
    %4009 = vmatprep.subr.mxu0 0.0
    %4010 = vmatpush1.msra.mxu0 0.0
    %4011 = vmatprep.subr.mxu0 0.0
    %4012 = vmatpush1.msra.mxu0 0.0
    %4013 = vmatprep.subr.mxu0 0.0
    %4014 = vmatpush1.msra.mxu0 0.0
    %4015 = vmatprep.subr.mxu0 0.0
    %4016 = vmatpush1.msra.mxu0 0.0
    %4017 = vmatprep.subr.mxu0 0.0
    %4018 = vmatpush1.msra.mxu0 0.0
    %4019 = vmatprep.subr.mxu0 0.0
    %4020 = vmatpush1.msra.mxu0 0.0
    %4021 = vmatprep.subr.mxu0 0.0
    %4022 = vmatpush1.msra.mxu0 0.0
    %4023 = vmatprep.subr.mxu0 0.0
    %4024 = vmatpush1.msra.mxu0 0.0
    %4025 = vmatprep.subr.mxu0 %v3458
    %4026 = vmatpush1.msra.mxu0 %v3455
    %4027 = vmatprep.subr.mxu0 %v3331
    %4028 = vmatpush1.msra.mxu0 %v3330
    %4029 = vmatprep.subr.mxu0 %v3315
    %4030 = vmatpush1.msra.mxu0 %v3314
    %4031 = vmatprep.subr.mxu0 %v3299
    %4032 = vmatpush1.msra.mxu0 %v3298
    %4033 = vmatprep.subr.mxu0 %v3283
    %4034 = vmatpush1.msra.mxu0 %v3282
    %4035 = vmatprep.subr.mxu0 %v3267
    %4036 = vmatpush1.msra.mxu0 %v3266
    %4037 = vmatprep.subr.mxu0 %v3251
    %4038 = vmatpush1.msra.mxu0 %v3250
    %4039 = vmatprep.subr.mxu0 0.0
    %4040 = vmatpush2.msra.mxu0 0.0
    %4041 = vmatprep.subr.mxu0 0.0
    %4042 = vmatpush2.msra.mxu0 0.0
    %4043 = vmatprep.subr.mxu0 0.0
    %4044 = vmatpush2.msra.mxu0 0.0
    %4045 = vmatprep.subr.mxu0 0.0
    %4046 = vmatpush2.msra.mxu0 0.0
    %4047 = vmatprep.subr.mxu0 0.0
    %4048 = vmatpush2.msra.mxu0 0.0
    %4049 = vmatprep.subr.mxu0 0.0
    %4050 = vmatpush2.msra.mxu0 0.0
    %4051 = vmatprep.subr.mxu0 0.0
    %4052 = vmatpush2.msra.mxu0 0.0
    %4053 = vmatprep.subr.mxu0 0.0
    %4054 = vmatpush2.msra.mxu0 0.0
    %4055 = vmatprep.subr.mxu0 0.0
    %4056 = vmatpush2.msra.mxu0 0.0
    %4057 = vmatprep.subr.mxu0 0.0
    %4058 = vmatpush2.msra.mxu0 0.0
    %4059 = vmatprep.subr.mxu0 0.0
    %4060 = vmatpush2.msra.mxu0 0.0
    %4061 = vmatprep.subr.mxu0 0.0
    %4062 = vmatpush2.msra.mxu0 0.0
    %4063 = vmatprep.subr.mxu0 0.0
    %4064 = vmatpush2.msra.mxu0 0.0
    %4065 = vmatprep.subr.mxu0 0.0
    %4066 = vmatpush2.msra.mxu0 0.0
    %4067 = vmatprep.subr.mxu0 0.0
    %4068 = vmatpush2.msra.mxu0 0.0
    %4069 = vmatprep.subr.mxu0 0.0
    %4070 = vmatpush2.msra.mxu0 0.0
    %4071 = vmatprep.mubr.f32.mxu0 0.0
    %4072 = vmatmul.mubr.f32.gmra.mxu0 %v3404
    %v4073 = vpop.f32.mrf.mxu0
    %v4074 = vadd.f32 %v3371, %v4073
    %v4075 = vpop.f32.mrf.mxu0
    %v4076 = vadd.f32 %v3371, %v4075
    %4077 = vmatprep.mubr.f32.mxu0 0.0
    %4078 = vmatmul.mubr.f32.gmra.mxu0 %v3407
    %v4079 = vpop.f32.mrf.mxu0
    %v4080 = vadd.f32 %v3376, %v4079
    %v4081 = vpop.f32.mrf.mxu0
    %v4082 = vadd.f32 %v3376, %v4081
    %4083 = vmatprep.mubr.f32.mxu0 0.0
    %4084 = vmatmul.mubr.f32.gmra.mxu0 %v3410
    %v4085 = vpop.f32.mrf.mxu0
    %v4086 = vadd.f32 %v3381, %v4085
    %v4087 = vpop.f32.mrf.mxu0
    %v4088 = vadd.f32 %v3381, %v4087
    %4089 = vmatprep.mubr.f32.mxu0 0.0
    %4090 = vmatmul.mubr.f32.gmra.mxu0 %v3413
    %v4091 = vpop.f32.mrf.mxu0
    %v4092 = vadd.f32 %v3386, %v4091
    %v4093 = vpop.f32.mrf.mxu0
    %v4094 = vadd.f32 %v3386, %v4093
    %4095 = vmatprep.mubr.f32.mxu0 0.0
    %4096 = vmatmul.mubr.f32.gmra.mxu0 %v3416
    %v4097 = vpop.f32.mrf.mxu0
    %v4098 = vadd.f32 %v3391, %v4097
    %v4099 = vpop.f32.mrf.mxu0
    %v4100 = vadd.f32 %v3391, %v4099
    %4101 = vmatprep.mubr.f32.mxu0 0.0
    %4102 = vmatmul.mubr.f32.gmra.mxu0 %v3419
    %v4103 = vpop.f32.mrf.mxu0
    %v4104 = vadd.f32 %v3396, %v4103
    %v4105 = vpop.f32.mrf.mxu0
    %v4106 = vadd.f32 %v3396, %v4105
    %4107 = vmatprep.mubr.f32.mxu0 0.0
    %4108 = vmatmul.mubr.f32.gmra.mxu0 %v3422
    %v4109 = vpop.f32.mrf.mxu0
    %v4110 = vadd.f32 %v3401, %v4109
    %v4111 = vpop.f32.mrf.mxu0
    %v4112 = vadd.f32 %v3401, %v4111
    %4113 = vdwg.mxu0
    %4114 = vmatprep.subr.mxu0 0.0
    %4115 = vmatpush1.msra.mxu0 0.0
    %4116 = vmatprep.subr.mxu0 0.0
    %4117 = vmatpush1.msra.mxu0 0.0
    %4118 = vmatprep.subr.mxu0 0.0
    %4119 = vmatpush1.msra.mxu0 0.0
    %4120 = vmatprep.subr.mxu0 0.0
    %4121 = vmatpush1.msra.mxu0 0.0
    %4122 = vmatprep.subr.mxu0 0.0
    %4123 = vmatpush1.msra.mxu0 0.0
    %4124 = vmatprep.subr.mxu0 0.0
    %4125 = vmatpush1.msra.mxu0 0.0
    %4126 = vmatprep.subr.mxu0 0.0
    %4127 = vmatpush1.msra.mxu0 0.0
    %4128 = vmatprep.subr.mxu0 0.0
    %4129 = vmatpush1.msra.mxu0 0.0
    %4130 = vmatprep.subr.mxu0 0.0
    %4131 = vmatpush1.msra.mxu0 0.0
    %4132 = vmatprep.subr.mxu0 %v3464
    %4133 = vmatpush1.msra.mxu0 %v3461
    %4134 = vmatprep.subr.mxu0 %v3333
    %4135 = vmatpush1.msra.mxu0 %v3332
    %4136 = vmatprep.subr.mxu0 %v3317
    %4137 = vmatpush1.msra.mxu0 %v3316
    %4138 = vmatprep.subr.mxu0 %v3301
    %4139 = vmatpush1.msra.mxu0 %v3300
    %4140 = vmatprep.subr.mxu0 %v3285
    %4141 = vmatpush1.msra.mxu0 %v3284
    %4142 = vmatprep.subr.mxu0 %v3269
    %4143 = vmatpush1.msra.mxu0 %v3268
    %4144 = vmatprep.subr.mxu0 %v3253
    %4145 = vmatpush1.msra.mxu0 %v3252
    %4146 = vmatprep.subr.mxu0 0.0
    %4147 = vmatpush2.msra.mxu0 0.0
    %4148 = vmatprep.subr.mxu0 0.0
    %4149 = vmatpush2.msra.mxu0 0.0
    %4150 = vmatprep.subr.mxu0 0.0
    %4151 = vmatpush2.msra.mxu0 0.0
    %4152 = vmatprep.subr.mxu0 0.0
    %4153 = vmatpush2.msra.mxu0 0.0
    %4154 = vmatprep.subr.mxu0 0.0
    %4155 = vmatpush2.msra.mxu0 0.0
    %4156 = vmatprep.subr.mxu0 0.0
    %4157 = vmatpush2.msra.mxu0 0.0
    %4158 = vmatprep.subr.mxu0 0.0
    %4159 = vmatpush2.msra.mxu0 0.0
    %4160 = vmatprep.subr.mxu0 0.0
    %4161 = vmatpush2.msra.mxu0 0.0
    %4162 = vmatprep.subr.mxu0 0.0
    %4163 = vmatpush2.msra.mxu0 0.0
    %4164 = vmatprep.subr.mxu0 0.0
    %4165 = vmatpush2.msra.mxu0 0.0
    %4166 = vmatprep.subr.mxu0 0.0
    %4167 = vmatpush2.msra.mxu0 0.0
    %4168 = vmatprep.subr.mxu0 0.0
    %4169 = vmatpush2.msra.mxu0 0.0
    %4170 = vmatprep.subr.mxu0 0.0
    %4171 = vmatpush2.msra.mxu0 0.0
    %4172 = vmatprep.subr.mxu0 0.0
    %4173 = vmatpush2.msra.mxu0 0.0
    %4174 = vmatprep.subr.mxu0 0.0
    %4175 = vmatpush2.msra.mxu0 0.0
    %4176 = vmatprep.subr.mxu0 0.0
    %4177 = vmatpush2.msra.mxu0 0.0
    %4178 = vmatprep.mubr.f32.mxu0 0.0
    %4179 = vmatmul.mubr.f32.gmra.mxu0 %v3404
    %v4180 = vpop.f32.mrf.mxu0
    %v4181 = vadd.f32 %v3371, %v4180
    %v4182 = vpop.f32.mrf.mxu0
    %v4183 = vadd.f32 %v3371, %v4182
    %4184 = vmatprep.mubr.f32.mxu0 0.0
    %4185 = vmatmul.mubr.f32.gmra.mxu0 %v3407
    %v4186 = vpop.f32.mrf.mxu0
    %v4187 = vadd.f32 %v3376, %v4186
    %v4188 = vpop.f32.mrf.mxu0
    %v4189 = vadd.f32 %v3376, %v4188
    %4190 = vmatprep.mubr.f32.mxu0 0.0
    %4191 = vmatmul.mubr.f32.gmra.mxu0 %v3410
    %v4192 = vpop.f32.mrf.mxu0
    %v4193 = vadd.f32 %v3381, %v4192
    %v4194 = vpop.f32.mrf.mxu0
    %v4195 = vadd.f32 %v3381, %v4194
    %4196 = vmatprep.mubr.f32.mxu0 0.0
    %4197 = vmatmul.mubr.f32.gmra.mxu0 %v3413
    %v4198 = vpop.f32.mrf.mxu0
    %v4199 = vadd.f32 %v3386, %v4198
    %v4200 = vpop.f32.mrf.mxu0
    %v4201 = vadd.f32 %v3386, %v4200
    %4202 = vmatprep.mubr.f32.mxu0 0.0
    %4203 = vmatmul.mubr.f32.gmra.mxu0 %v3416
    %v4204 = vpop.f32.mrf.mxu0
    %v4205 = vadd.f32 %v3391, %v4204
    %v4206 = vpop.f32.mrf.mxu0
    %v4207 = vadd.f32 %v3391, %v4206
    %4208 = vmatprep.mubr.f32.mxu0 0.0
    %4209 = vmatmul.mubr.f32.gmra.mxu0 %v3419
    %v4210 = vpop.f32.mrf.mxu0
    %v4211 = vadd.f32 %v3396, %v4210
    %v4212 = vpop.f32.mrf.mxu0
    %v4213 = vadd.f32 %v3396, %v4212
    %4214 = vmatprep.mubr.f32.mxu0 0.0
    %4215 = vmatmul.mubr.f32.gmra.mxu0 %v3422
    %v4216 = vpop.f32.mrf.mxu0
    %v4217 = vadd.f32 %v3401, %v4216
    %v4218 = vpop.f32.mrf.mxu0
    %v4219 = vadd.f32 %v3401, %v4218
    %4220 = vdwg.mxu0
    %4221 = vmatprep.subr.mxu0 0.0
    %4222 = vmatpush1.msra.mxu0 0.0
    %4223 = vmatprep.subr.mxu0 0.0
    %4224 = vmatpush1.msra.mxu0 0.0
    %4225 = vmatprep.subr.mxu0 0.0
    %4226 = vmatpush1.msra.mxu0 0.0
    %4227 = vmatprep.subr.mxu0 0.0
    %4228 = vmatpush1.msra.mxu0 0.0
    %4229 = vmatprep.subr.mxu0 0.0
    %4230 = vmatpush1.msra.mxu0 0.0
    %4231 = vmatprep.subr.mxu0 0.0
    %4232 = vmatpush1.msra.mxu0 0.0
    %4233 = vmatprep.subr.mxu0 0.0
    %4234 = vmatpush1.msra.mxu0 0.0
    %4235 = vmatprep.subr.mxu0 0.0
    %4236 = vmatpush1.msra.mxu0 0.0
    %4237 = vmatprep.subr.mxu0 0.0
    %4238 = vmatpush1.msra.mxu0 0.0
    %4239 = vmatprep.subr.mxu0 %v3470
    %4240 = vmatpush1.msra.mxu0 %v3467
    %4241 = vmatprep.subr.mxu0 %v3335
    %4242 = vmatpush1.msra.mxu0 %v3334
    %4243 = vmatprep.subr.mxu0 %v3319
    %4244 = vmatpush1.msra.mxu0 %v3318
    %4245 = vmatprep.subr.mxu0 %v3303
    %4246 = vmatpush1.msra.mxu0 %v3302
    %4247 = vmatprep.subr.mxu0 %v3287
    %4248 = vmatpush1.msra.mxu0 %v3286
    %4249 = vmatprep.subr.mxu0 %v3271
    %4250 = vmatpush1.msra.mxu0 %v3270
    %4251 = vmatprep.subr.mxu0 %v3255
    %4252 = vmatpush1.msra.mxu0 %v3254
    %4253 = vmatprep.subr.mxu0 0.0
    %4254 = vmatpush2.msra.mxu0 0.0
    %4255 = vmatprep.subr.mxu0 0.0
    %4256 = vmatpush2.msra.mxu0 0.0
    %4257 = vmatprep.subr.mxu0 0.0
    %4258 = vmatpush2.msra.mxu0 0.0
    %4259 = vmatprep.subr.mxu0 0.0
    %4260 = vmatpush2.msra.mxu0 0.0
    %4261 = vmatprep.subr.mxu0 0.0
    %4262 = vmatpush2.msra.mxu0 0.0
    %4263 = vmatprep.subr.mxu0 0.0
    %4264 = vmatpush2.msra.mxu0 0.0
    %4265 = vmatprep.subr.mxu0 0.0
    %4266 = vmatpush2.msra.mxu0 0.0
    %4267 = vmatprep.subr.mxu0 0.0
    %4268 = vmatpush2.msra.mxu0 0.0
    %4269 = vmatprep.subr.mxu0 0.0
    %4270 = vmatpush2.msra.mxu0 0.0
    %4271 = vmatprep.subr.mxu0 0.0
    %4272 = vmatpush2.msra.mxu0 0.0
    %4273 = vmatprep.subr.mxu0 0.0
    %4274 = vmatpush2.msra.mxu0 0.0
    %4275 = vmatprep.subr.mxu0 0.0
    %4276 = vmatpush2.msra.mxu0 0.0
    %4277 = vmatprep.subr.mxu0 0.0
    %4278 = vmatpush2.msra.mxu0 0.0
    %4279 = vmatprep.subr.mxu0 0.0
    %4280 = vmatpush2.msra.mxu0 0.0
    %4281 = vmatprep.subr.mxu0 0.0
    %4282 = vmatpush2.msra.mxu0 0.0
    %4283 = vmatprep.subr.mxu0 0.0
    %4284 = vmatpush2.msra.mxu0 0.0
    %4285 = vmatprep.mubr.f32.mxu0 0.0
    %4286 = vmatmul.mubr.f32.gmra.mxu0 %v3404
    %v4287 = vpop.f32.mrf.mxu0
    %v4288 = vadd.f32 %v3371, %v4287
    %v4289 = vpop.f32.mrf.mxu0
    %v4290 = vadd.f32 %v3371, %v4289
    %4291 = vmatprep.mubr.f32.mxu0 0.0
    %4292 = vmatmul.mubr.f32.gmra.mxu0 %v3407
    %v4293 = vpop.f32.mrf.mxu0
    %v4294 = vadd.f32 %v3376, %v4293
    %v4295 = vpop.f32.mrf.mxu0
    %v4296 = vadd.f32 %v3376, %v4295
    %4297 = vmatprep.mubr.f32.mxu0 0.0
    %4298 = vmatmul.mubr.f32.gmra.mxu0 %v3410
    %v4299 = vpop.f32.mrf.mxu0
    %v4300 = vadd.f32 %v3381, %v4299
    %v4301 = vpop.f32.mrf.mxu0
    %v4302 = vadd.f32 %v3381, %v4301
    %4303 = vmatprep.mubr.f32.mxu0 0.0
    %4304 = vmatmul.mubr.f32.gmra.mxu0 %v3413
    %v4305 = vpop.f32.mrf.mxu0
    %v4306 = vadd.f32 %v3386, %v4305
    %v4307 = vpop.f32.mrf.mxu0
    %v4308 = vadd.f32 %v3386, %v4307
    %4309 = vmatprep.mubr.f32.mxu0 0.0
    %4310 = vmatmul.mubr.f32.gmra.mxu0 %v3416
    %v4311 = vpop.f32.mrf.mxu0
    %v4312 = vadd.f32 %v3391, %v4311
    %v4313 = vpop.f32.mrf.mxu0
    %v4314 = vadd.f32 %v3391, %v4313
    %4315 = vmatprep.mubr.f32.mxu0 0.0
    %4316 = vmatmul.mubr.f32.gmra.mxu0 %v3419
    %v4317 = vpop.f32.mrf.mxu0
    %v4318 = vadd.f32 %v3396, %v4317
    %v4319 = vpop.f32.mrf.mxu0
    %v4320 = vadd.f32 %v3396, %v4319
    %4321 = vmatprep.mubr.f32.mxu0 0.0
    %4322 = vmatmul.mubr.f32.gmra.mxu0 %v3422
    %v4323 = vpop.f32.mrf.mxu0
    %v4324 = vadd.f32 %v3401, %v4323
    %v4325 = vpop.f32.mrf.mxu0
    %v4326 = vadd.f32 %v3401, %v4325
    %4327 = vdwg.mxu0
    %v4328 = vtanh.pop %v3539
    %v4329 = vtanh.pop %v3541
    %v4330 = vtanh.pop %v3646
    %v4331 = vtanh.pop %v3648
    %v4332 = vtanh.pop %v3753
    %v4333 = vtanh.pop %v3755
    %v4334 = vtanh.pop %v3860
    %v4335 = vtanh.pop %v3862
    %v4336 = vtanh.pop %v3967
    %v4337 = vtanh.pop %v3969
    %v4338 = vtanh.pop %v4074
    %v4339 = vtanh.pop %v4076
    %v4340 = vtanh.pop %v4181
    %v4341 = vtanh.pop %v4183
    %v4342 = vtanh.pop %v4288
    %v4343 = vtanh.pop %v4290
    %v4344 = vtanh.pop %v3545
    %v4345 = vtanh.pop %v3547
    %v4346 = vtanh.pop %v3652
    %v4347 = vtanh.pop %v3654
    %v4348 = vtanh.pop %v3759
    %v4349 = vtanh.pop %v3761
    %v4350 = vtanh.pop %v3866
    %v4351 = vtanh.pop %v3868
    %v4352 = vtanh.pop %v3973
    %v4353 = vtanh.pop %v3975
    %v4354 = vtanh.pop %v4080
    %v4355 = vtanh.pop %v4082
    %v4356 = vtanh.pop %v4187
    %v4357 = vtanh.pop %v4189
    %v4358 = vtanh.pop %v4294
    %v4359 = vtanh.pop %v4296
    %v4360 = vtanh.pop %v3551
    %v4361 = vtanh.pop %v3553
    %v4362 = vtanh.pop %v3658
    %v4363 = vtanh.pop %v3660
    %v4364 = vtanh.pop %v3765
    %v4365 = vtanh.pop %v3767
    %v4366 = vtanh.pop %v3872
    %v4367 = vtanh.pop %v3874
    %v4368 = vtanh.pop %v3979
    %v4369 = vtanh.pop %v3981
    %v4370 = vtanh.pop %v4086
    %v4371 = vtanh.pop %v4088
    %v4372 = vtanh.pop %v4193
    %v4373 = vtanh.pop %v4195
    %v4374 = vtanh.pop %v4300
    %v4375 = vtanh.pop %v4302
    %v4376 = vtanh.pop %v3557
    %v4377 = vtanh.pop %v3559
    %v4378 = vtanh.pop %v3664
    %v4379 = vtanh.pop %v3666
    %v4380 = vtanh.pop %v3771
    %v4381 = vtanh.pop %v3773
    %v4382 = vtanh.pop %v3878
    %v4383 = vtanh.pop %v3880
    %v4384 = vtanh.pop %v3985
    %v4385 = vtanh.pop %v3987
    %v4386 = vtanh.pop %v4092
    %v4387 = vtanh.pop %v4094
    %v4388 = vtanh.pop %v4199
    %v4389 = vtanh.pop %v4201
    %v4390 = vtanh.pop %v4306
    %v4391 = vtanh.pop %v4308
    %v4392 = vtanh.pop %v3563
    %v4393 = vtanh.pop %v3565
    %v4394 = vtanh.pop %v3670
    %v4395 = vtanh.pop %v3672
    %v4396 = vtanh.pop %v3777
    %v4397 = vtanh.pop %v3779
    %v4398 = vtanh.pop %v3884
    %v4399 = vtanh.pop %v3886
    %v4400 = vtanh.pop %v3991
    %v4401 = vtanh.pop %v3993
    %v4402 = vtanh.pop %v4098
    %v4403 = vtanh.pop %v4100
    %v4404 = vtanh.pop %v4205
    %v4405 = vtanh.pop %v4207
    %v4406 = vtanh.pop %v4312
    %v4407 = vtanh.pop %v4314
    %v4408 = vtanh.pop %v3569
    %v4409 = vtanh.pop %v3571
    %v4410 = vtanh.pop %v3676
    %v4411 = vtanh.pop %v3678
    %v4412 = vtanh.pop %v3783
    %v4413 = vtanh.pop %v3785
    %v4414 = vtanh.pop %v3890
    %v4415 = vtanh.pop %v3892
    %v4416 = vtanh.pop %v3997
    %v4417 = vtanh.pop %v3999
    %v4418 = vtanh.pop %v4104
    %v4419 = vtanh.pop %v4106
    %v4420 = vtanh.pop %v4211
    %v4421 = vtanh.pop %v4213
    %v4422 = vtanh.pop %v4318
    %v4423 = vtanh.pop %v4320
    %v4424 = vtanh.pop %v3575
    %v4425 = vtanh.pop %v3577
    %v4426 = vtanh.pop %v3682
    %v4427 = vtanh.pop %v3684
    %v4428 = vtanh.pop %v3789
    %v4429 = vtanh.pop %v3791
    %v4430 = vtanh.pop %v3896
    %v4431 = vtanh.pop %v3898
    %v4432 = vtanh.pop %v4003
    %v4433 = vtanh.pop %v4005
    %v4434 = vtanh.pop %v4110
    %v4435 = vtanh.pop %v4112
    %v4436 = vtanh.pop %v4217
    %v4437 = vtanh.pop %v4219
    %v4438 = vtanh.pop %v4324
    %v4439 = vtanh.pop %v4326
    %s4440 = scalar_lea.vmem %s3, 168
    %v4441 = vld [vmem:[%s4440] sm:$0xff]
    %v4442 = vld [vmem:[%s4440 + $0x8] sm:$0xff]
    %v4443 = vld [vmem:[%s4440 + $0x10] sm:$0xff]
    %v4444 = vld [vmem:[%s4440 + $0x18] sm:$0xff]
    %v4445 = vld [vmem:[%s4440 + $0x20] sm:$0xff]
    %v4446 = vld [vmem:[%s4440 + $0x28] sm:$0xff]
    %v4447 = vld [vmem:[%s4440 + $0x30] sm:$0x3]
    %s4448 = scalar_lea.vmem %s4, 168
    %v4449 = vld [vmem:[%s4448] sm:$0xff]
    %v4450 = vld [vmem:[%s4448 + $0x8] sm:$0xff]
    %v4451 = vld [vmem:[%s4448 + $0x10] sm:$0xff]
    %v4452 = vld [vmem:[%s4448 + $0x18] sm:$0xff]
    %v4453 = vld [vmem:[%s4448 + $0x20] sm:$0xff]
    %v4454 = vld [vmem:[%s4448 + $0x28] sm:$0xff]
    %v4455 = vld [vmem:[%s4448 + $0x30] sm:$0x3]
    %4457 = vset.pattern.permute.xlu0 0
    %4458 = vperm.xlu0 %4457, %v4449
    %v4459 = vpop.permute.xlu0 %4458
    %4462 = vset.pattern.permute.xlu0 0
    %4463 = vperm.xlu0 %4462, %v4450
    %v4464 = vpop.permute.xlu0 %4463
    %4467 = vset.pattern.permute.xlu0 0
    %4468 = vperm.xlu0 %4467, %v4451
    %v4469 = vpop.permute.xlu0 %4468
    %4472 = vset.pattern.permute.xlu0 0
    %4473 = vperm.xlu0 %4472, %v4452
    %v4474 = vpop.permute.xlu0 %4473
    %4477 = vset.pattern.permute.xlu0 0
    %4478 = vperm.xlu0 %4477, %v4453
    %v4479 = vpop.permute.xlu0 %4478
    %4482 = vset.pattern.permute.xlu0 0
    %4483 = vperm.xlu0 %4482, %v4454
    %v4484 = vpop.permute.xlu0 %4483
    %4487 = vset.pattern.permute.xlu0 0
    %4488 = vperm.xlu0 %4487, %v4455
    %v4489 = vpop.permute.xlu0 %4488
    %v4492 = vsel %vm1226, %v4441, 0
    %v4495 = vsel %vm1226, %v4442, 0
    %v4498 = vsel %vm1226, %v4443, 0
    %v4501 = vsel %vm1226, %v4444, 0
    %v4504 = vsel %vm1226, %v4445, 0
    %v4507 = vsel %vm1226, %v4446, 0
    %v4510 = vsel %vm1226, %v4447, 0
    %v4513 = vsel %vm176, %v4424, 0
    %v4516 = vsel %vm176, %v4425, 0
    %v4519 = vsel %vm176, %v4426, 0
    %v4522 = vsel %vm176, %v4427, 0
    %v4525 = vsel %vm176, %v4428, 0
    %v4528 = vsel %vm176, %v4429, 0
    %v4531 = vsel %vm176, %v4430, 0
    %v4534 = vsel %vm176, %v4431, 0
    %v4537 = vsel %vm176, %v4432, 0
    %v4540 = vsel %vm176, %v4433, 0
    %v4543 = vsel %vm176, %v4434, 0
    %v4546 = vsel %vm176, %v4435, 0
    %v4549 = vsel %vm176, %v4436, 0
    %v4552 = vsel %vm176, %v4437, 0
    %v4555 = vsel %vm176, %v4438, 0
    %v4558 = vsel %vm176, %v4439, 0
    %4560 = vmatprep.subr.mxu0 0.0
    %4561 = vmatpush1.msra.mxu0 0.0
    %4562 = vmatprep.subr.mxu0 0.0
    %4563 = vmatpush1.msra.mxu0 0.0
    %4564 = vmatprep.subr.mxu0 0.0
    %4565 = vmatpush1.msra.mxu0 0.0
    %4566 = vmatprep.subr.mxu0 0.0
    %4567 = vmatpush1.msra.mxu0 0.0
    %4568 = vmatprep.subr.mxu0 0.0
    %4569 = vmatpush1.msra.mxu0 0.0
    %4570 = vmatprep.subr.mxu0 0.0
    %4571 = vmatpush1.msra.mxu0 0.0
    %4572 = vmatprep.subr.mxu0 0.0
    %4573 = vmatpush1.msra.mxu0 0.0
    %4574 = vmatprep.subr.mxu0 0.0
    %4575 = vmatpush1.msra.mxu0 0.0
    %4576 = vmatprep.subr.mxu0 0.0
    %4577 = vmatpush1.msra.mxu0 0.0
    %4578 = vmatprep.subr.mxu0 %v4516
    %4579 = vmatpush1.msra.mxu0 %v4513
    %4580 = vmatprep.subr.mxu0 %v4409
    %4581 = vmatpush1.msra.mxu0 %v4408
    %4582 = vmatprep.subr.mxu0 %v4393
    %4583 = vmatpush1.msra.mxu0 %v4392
    %4584 = vmatprep.subr.mxu0 %v4377
    %4585 = vmatpush1.msra.mxu0 %v4376
    %4586 = vmatprep.subr.mxu0 %v4361
    %4587 = vmatpush1.msra.mxu0 %v4360
    %4588 = vmatprep.subr.mxu0 %v4345
    %4589 = vmatpush1.msra.mxu0 %v4344
    %4590 = vmatprep.subr.mxu0 %v4329
    %4591 = vmatpush1.msra.mxu0 %v4328
    %4592 = vmatprep.subr.mxu0 0.0
    %4593 = vmatpush2.msra.mxu0 0.0
    %4594 = vmatprep.subr.mxu0 0.0
    %4595 = vmatpush2.msra.mxu0 0.0
    %4596 = vmatprep.subr.mxu0 0.0
    %4597 = vmatpush2.msra.mxu0 0.0
    %4598 = vmatprep.subr.mxu0 0.0
    %4599 = vmatpush2.msra.mxu0 0.0
    %4600 = vmatprep.subr.mxu0 0.0
    %4601 = vmatpush2.msra.mxu0 0.0
    %4602 = vmatprep.subr.mxu0 0.0
    %4603 = vmatpush2.msra.mxu0 0.0
    %4604 = vmatprep.subr.mxu0 0.0
    %4605 = vmatpush2.msra.mxu0 0.0
    %4606 = vmatprep.subr.mxu0 0.0
    %4607 = vmatpush2.msra.mxu0 0.0
    %4608 = vmatprep.subr.mxu0 0.0
    %4609 = vmatpush2.msra.mxu0 0.0
    %4610 = vmatprep.subr.mxu0 0.0
    %4611 = vmatpush2.msra.mxu0 0.0
    %4612 = vmatprep.subr.mxu0 0.0
    %4613 = vmatpush2.msra.mxu0 0.0
    %4614 = vmatprep.subr.mxu0 0.0
    %4615 = vmatpush2.msra.mxu0 0.0
    %4616 = vmatprep.subr.mxu0 0.0
    %4617 = vmatpush2.msra.mxu0 0.0
    %4618 = vmatprep.subr.mxu0 0.0
    %4619 = vmatpush2.msra.mxu0 0.0
    %4620 = vmatprep.subr.mxu0 0.0
    %4621 = vmatpush2.msra.mxu0 0.0
    %4622 = vmatprep.subr.mxu0 0.0
    %4623 = vmatpush2.msra.mxu0 0.0
    %4624 = vmatprep.mubr.f32.mxu0 0.0
    %4625 = vmatmul.mubr.f32.gmra.mxu0 %v4492
    %v4626 = vpop.f32.mrf.mxu0
    %v4627 = vadd.f32 %v4459, %v4626
    %v4628 = vpop.f32.mrf.mxu0
    %v4629 = vadd.f32 %v4459, %v4628
    %4630 = vmatprep.mubr.f32.mxu0 0.0
    %4631 = vmatmul.mubr.f32.gmra.mxu0 %v4495
    %v4632 = vpop.f32.mrf.mxu0
    %v4633 = vadd.f32 %v4464, %v4632
    %v4634 = vpop.f32.mrf.mxu0
    %v4635 = vadd.f32 %v4464, %v4634
    %4636 = vmatprep.mubr.f32.mxu0 0.0
    %4637 = vmatmul.mubr.f32.gmra.mxu0 %v4498
    %v4638 = vpop.f32.mrf.mxu0
    %v4639 = vadd.f32 %v4469, %v4638
    %v4640 = vpop.f32.mrf.mxu0
    %v4641 = vadd.f32 %v4469, %v4640
    %4642 = vmatprep.mubr.f32.mxu0 0.0
    %4643 = vmatmul.mubr.f32.gmra.mxu0 %v4501
    %v4644 = vpop.f32.mrf.mxu0
    %v4645 = vadd.f32 %v4474, %v4644
    %v4646 = vpop.f32.mrf.mxu0
    %v4647 = vadd.f32 %v4474, %v4646
    %4648 = vmatprep.mubr.f32.mxu0 0.0
    %4649 = vmatmul.mubr.f32.gmra.mxu0 %v4504
    %v4650 = vpop.f32.mrf.mxu0
    %v4651 = vadd.f32 %v4479, %v4650
    %v4652 = vpop.f32.mrf.mxu0
    %v4653 = vadd.f32 %v4479, %v4652
    %4654 = vmatprep.mubr.f32.mxu0 0.0
    %4655 = vmatmul.mubr.f32.gmra.mxu0 %v4507
    %v4656 = vpop.f32.mrf.mxu0
    %v4657 = vadd.f32 %v4484, %v4656
    %v4658 = vpop.f32.mrf.mxu0
    %v4659 = vadd.f32 %v4484, %v4658
    %4660 = vmatprep.mubr.f32.mxu0 0.0
    %4661 = vmatmul.mubr.f32.gmra.mxu0 %v4510
    %v4662 = vpop.f32.mrf.mxu0
    %v4663 = vadd.f32 %v4489, %v4662
    %v4664 = vpop.f32.mrf.mxu0
    %v4665 = vadd.f32 %v4489, %v4664
    %4666 = vdwg.mxu0
    %4667 = vmatprep.subr.mxu0 0.0
    %4668 = vmatpush1.msra.mxu0 0.0
    %4669 = vmatprep.subr.mxu0 0.0
    %4670 = vmatpush1.msra.mxu0 0.0
    %4671 = vmatprep.subr.mxu0 0.0
    %4672 = vmatpush1.msra.mxu0 0.0
    %4673 = vmatprep.subr.mxu0 0.0
    %4674 = vmatpush1.msra.mxu0 0.0
    %4675 = vmatprep.subr.mxu0 0.0
    %4676 = vmatpush1.msra.mxu0 0.0
    %4677 = vmatprep.subr.mxu0 0.0
    %4678 = vmatpush1.msra.mxu0 0.0
    %4679 = vmatprep.subr.mxu0 0.0
    %4680 = vmatpush1.msra.mxu0 0.0
    %4681 = vmatprep.subr.mxu0 0.0
    %4682 = vmatpush1.msra.mxu0 0.0
    %4683 = vmatprep.subr.mxu0 0.0
    %4684 = vmatpush1.msra.mxu0 0.0
    %4685 = vmatprep.subr.mxu0 %v4522
    %4686 = vmatpush1.msra.mxu0 %v4519
    %4687 = vmatprep.subr.mxu0 %v4411
    %4688 = vmatpush1.msra.mxu0 %v4410
    %4689 = vmatprep.subr.mxu0 %v4395
    %4690 = vmatpush1.msra.mxu0 %v4394
    %4691 = vmatprep.subr.mxu0 %v4379
    %4692 = vmatpush1.msra.mxu0 %v4378
    %4693 = vmatprep.subr.mxu0 %v4363
    %4694 = vmatpush1.msra.mxu0 %v4362
    %4695 = vmatprep.subr.mxu0 %v4347
    %4696 = vmatpush1.msra.mxu0 %v4346
    %4697 = vmatprep.subr.mxu0 %v4331
    %4698 = vmatpush1.msra.mxu0 %v4330
    %4699 = vmatprep.subr.mxu0 0.0
    %4700 = vmatpush2.msra.mxu0 0.0
    %4701 = vmatprep.subr.mxu0 0.0
    %4702 = vmatpush2.msra.mxu0 0.0
    %4703 = vmatprep.subr.mxu0 0.0
    %4704 = vmatpush2.msra.mxu0 0.0
    %4705 = vmatprep.subr.mxu0 0.0
    %4706 = vmatpush2.msra.mxu0 0.0
    %4707 = vmatprep.subr.mxu0 0.0
    %4708 = vmatpush2.msra.mxu0 0.0
    %4709 = vmatprep.subr.mxu0 0.0
    %4710 = vmatpush2.msra.mxu0 0.0
    %4711 = vmatprep.subr.mxu0 0.0
    %4712 = vmatpush2.msra.mxu0 0.0
    %4713 = vmatprep.subr.mxu0 0.0
    %4714 = vmatpush2.msra.mxu0 0.0
    %4715 = vmatprep.subr.mxu0 0.0
    %4716 = vmatpush2.msra.mxu0 0.0
    %4717 = vmatprep.subr.mxu0 0.0
    %4718 = vmatpush2.msra.mxu0 0.0
    %4719 = vmatprep.subr.mxu0 0.0
    %4720 = vmatpush2.msra.mxu0 0.0
    %4721 = vmatprep.subr.mxu0 0.0
    %4722 = vmatpush2.msra.mxu0 0.0
    %4723 = vmatprep.subr.mxu0 0.0
    %4724 = vmatpush2.msra.mxu0 0.0
    %4725 = vmatprep.subr.mxu0 0.0
    %4726 = vmatpush2.msra.mxu0 0.0
    %4727 = vmatprep.subr.mxu0 0.0
    %4728 = vmatpush2.msra.mxu0 0.0
    %4729 = vmatprep.subr.mxu0 0.0
    %4730 = vmatpush2.msra.mxu0 0.0
    %4731 = vmatprep.mubr.f32.mxu0 0.0
    %4732 = vmatmul.mubr.f32.gmra.mxu0 %v4492
    %v4733 = vpop.f32.mrf.mxu0
    %v4734 = vadd.f32 %v4459, %v4733
    %v4735 = vpop.f32.mrf.mxu0
    %v4736 = vadd.f32 %v4459, %v4735
    %4737 = vmatprep.mubr.f32.mxu0 0.0
    %4738 = vmatmul.mubr.f32.gmra.mxu0 %v4495
    %v4739 = vpop.f32.mrf.mxu0
    %v4740 = vadd.f32 %v4464, %v4739
    %v4741 = vpop.f32.mrf.mxu0
    %v4742 = vadd.f32 %v4464, %v4741
    %4743 = vmatprep.mubr.f32.mxu0 0.0
    %4744 = vmatmul.mubr.f32.gmra.mxu0 %v4498
    %v4745 = vpop.f32.mrf.mxu0
    %v4746 = vadd.f32 %v4469, %v4745
    %v4747 = vpop.f32.mrf.mxu0
    %v4748 = vadd.f32 %v4469, %v4747
    %4749 = vmatprep.mubr.f32.mxu0 0.0
    %4750 = vmatmul.mubr.f32.gmra.mxu0 %v4501
    %v4751 = vpop.f32.mrf.mxu0
    %v4752 = vadd.f32 %v4474, %v4751
    %v4753 = vpop.f32.mrf.mxu0
    %v4754 = vadd.f32 %v4474, %v4753
    %4755 = vmatprep.mubr.f32.mxu0 0.0
    %4756 = vmatmul.mubr.f32.gmra.mxu0 %v4504
    %v4757 = vpop.f32.mrf.mxu0
    %v4758 = vadd.f32 %v4479, %v4757
    %v4759 = vpop.f32.mrf.mxu0
    %v4760 = vadd.f32 %v4479, %v4759
    %4761 = vmatprep.mubr.f32.mxu0 0.0
    %4762 = vmatmul.mubr.f32.gmra.mxu0 %v4507
    %v4763 = vpop.f32.mrf.mxu0
    %v4764 = vadd.f32 %v4484, %v4763
    %v4765 = vpop.f32.mrf.mxu0
    %v4766 = vadd.f32 %v4484, %v4765
    %4767 = vmatprep.mubr.f32.mxu0 0.0
    %4768 = vmatmul.mubr.f32.gmra.mxu0 %v4510
    %v4769 = vpop.f32.mrf.mxu0
    %v4770 = vadd.f32 %v4489, %v4769
    %v4771 = vpop.f32.mrf.mxu0
    %v4772 = vadd.f32 %v4489, %v4771
    %4773 = vdwg.mxu0
    %4774 = vmatprep.subr.mxu0 0.0
    %4775 = vmatpush1.msra.mxu0 0.0
    %4776 = vmatprep.subr.mxu0 0.0
    %4777 = vmatpush1.msra.mxu0 0.0
    %4778 = vmatprep.subr.mxu0 0.0
    %4779 = vmatpush1.msra.mxu0 0.0
    %4780 = vmatprep.subr.mxu0 0.0
    %4781 = vmatpush1.msra.mxu0 0.0
    %4782 = vmatprep.subr.mxu0 0.0
    %4783 = vmatpush1.msra.mxu0 0.0
    %4784 = vmatprep.subr.mxu0 0.0
    %4785 = vmatpush1.msra.mxu0 0.0
    %4786 = vmatprep.subr.mxu0 0.0
    %4787 = vmatpush1.msra.mxu0 0.0
    %4788 = vmatprep.subr.mxu0 0.0
    %4789 = vmatpush1.msra.mxu0 0.0
    %4790 = vmatprep.subr.mxu0 0.0
    %4791 = vmatpush1.msra.mxu0 0.0
    %4792 = vmatprep.subr.mxu0 %v4528
    %4793 = vmatpush1.msra.mxu0 %v4525
    %4794 = vmatprep.subr.mxu0 %v4413
    %4795 = vmatpush1.msra.mxu0 %v4412
    %4796 = vmatprep.subr.mxu0 %v4397
    %4797 = vmatpush1.msra.mxu0 %v4396
    %4798 = vmatprep.subr.mxu0 %v4381
    %4799 = vmatpush1.msra.mxu0 %v4380
    %4800 = vmatprep.subr.mxu0 %v4365
    %4801 = vmatpush1.msra.mxu0 %v4364
    %4802 = vmatprep.subr.mxu0 %v4349
    %4803 = vmatpush1.msra.mxu0 %v4348
    %4804 = vmatprep.subr.mxu0 %v4333
    %4805 = vmatpush1.msra.mxu0 %v4332
    %4806 = vmatprep.subr.mxu0 0.0
    %4807 = vmatpush2.msra.mxu0 0.0
    %4808 = vmatprep.subr.mxu0 0.0
    %4809 = vmatpush2.msra.mxu0 0.0
    %4810 = vmatprep.subr.mxu0 0.0
    %4811 = vmatpush2.msra.mxu0 0.0
    %4812 = vmatprep.subr.mxu0 0.0
    %4813 = vmatpush2.msra.mxu0 0.0
    %4814 = vmatprep.subr.mxu0 0.0
    %4815 = vmatpush2.msra.mxu0 0.0
    %4816 = vmatprep.subr.mxu0 0.0
    %4817 = vmatpush2.msra.mxu0 0.0
    %4818 = vmatprep.subr.mxu0 0.0
    %4819 = vmatpush2.msra.mxu0 0.0
    %4820 = vmatprep.subr.mxu0 0.0
    %4821 = vmatpush2.msra.mxu0 0.0
    %4822 = vmatprep.subr.mxu0 0.0
    %4823 = vmatpush2.msra.mxu0 0.0
    %4824 = vmatprep.subr.mxu0 0.0
    %4825 = vmatpush2.msra.mxu0 0.0
    %4826 = vmatprep.subr.mxu0 0.0
    %4827 = vmatpush2.msra.mxu0 0.0
    %4828 = vmatprep.subr.mxu0 0.0
    %4829 = vmatpush2.msra.mxu0 0.0
    %4830 = vmatprep.subr.mxu0 0.0
    %4831 = vmatpush2.msra.mxu0 0.0
    %4832 = vmatprep.subr.mxu0 0.0
    %4833 = vmatpush2.msra.mxu0 0.0
    %4834 = vmatprep.subr.mxu0 0.0
    %4835 = vmatpush2.msra.mxu0 0.0
    %4836 = vmatprep.subr.mxu0 0.0
    %4837 = vmatpush2.msra.mxu0 0.0
    %4838 = vmatprep.mubr.f32.mxu0 0.0
    %4839 = vmatmul.mubr.f32.gmra.mxu0 %v4492
    %v4840 = vpop.f32.mrf.mxu0
    %v4841 = vadd.f32 %v4459, %v4840
    %v4842 = vpop.f32.mrf.mxu0
    %v4843 = vadd.f32 %v4459, %v4842
    %4844 = vmatprep.mubr.f32.mxu0 0.0
    %4845 = vmatmul.mubr.f32.gmra.mxu0 %v4495
    %v4846 = vpop.f32.mrf.mxu0
    %v4847 = vadd.f32 %v4464, %v4846
    %v4848 = vpop.f32.mrf.mxu0
    %v4849 = vadd.f32 %v4464, %v4848
    %4850 = vmatprep.mubr.f32.mxu0 0.0
    %4851 = vmatmul.mubr.f32.gmra.mxu0 %v4498
    %v4852 = vpop.f32.mrf.mxu0
    %v4853 = vadd.f32 %v4469, %v4852
    %v4854 = vpop.f32.mrf.mxu0
    %v4855 = vadd.f32 %v4469, %v4854
    %4856 = vmatprep.mubr.f32.mxu0 0.0
    %4857 = vmatmul.mubr.f32.gmra.mxu0 %v4501
    %v4858 = vpop.f32.mrf.mxu0
    %v4859 = vadd.f32 %v4474, %v4858
    %v4860 = vpop.f32.mrf.mxu0
    %v4861 = vadd.f32 %v4474, %v4860
    %4862 = vmatprep.mubr.f32.mxu0 0.0
    %4863 = vmatmul.mubr.f32.gmra.mxu0 %v4504
    %v4864 = vpop.f32.mrf.mxu0
    %v4865 = vadd.f32 %v4479, %v4864
    %v4866 = vpop.f32.mrf.mxu0
    %v4867 = vadd.f32 %v4479, %v4866
    %4868 = vmatprep.mubr.f32.mxu0 0.0
    %4869 = vmatmul.mubr.f32.gmra.mxu0 %v4507
    %v4870 = vpop.f32.mrf.mxu0
    %v4871 = vadd.f32 %v4484, %v4870
    %v4872 = vpop.f32.mrf.mxu0
    %v4873 = vadd.f32 %v4484, %v4872
    %4874 = vmatprep.mubr.f32.mxu0 0.0
    %4875 = vmatmul.mubr.f32.gmra.mxu0 %v4510
    %v4876 = vpop.f32.mrf.mxu0
    %v4877 = vadd.f32 %v4489, %v4876
    %v4878 = vpop.f32.mrf.mxu0
    %v4879 = vadd.f32 %v4489, %v4878
    %4880 = vdwg.mxu0
    %4881 = vmatprep.subr.mxu0 0.0
    %4882 = vmatpush1.msra.mxu0 0.0
    %4883 = vmatprep.subr.mxu0 0.0
    %4884 = vmatpush1.msra.mxu0 0.0
    %4885 = vmatprep.subr.mxu0 0.0
    %4886 = vmatpush1.msra.mxu0 0.0
    %4887 = vmatprep.subr.mxu0 0.0
    %4888 = vmatpush1.msra.mxu0 0.0
    %4889 = vmatprep.subr.mxu0 0.0
    %4890 = vmatpush1.msra.mxu0 0.0
    %4891 = vmatprep.subr.mxu0 0.0
    %4892 = vmatpush1.msra.mxu0 0.0
    %4893 = vmatprep.subr.mxu0 0.0
    %4894 = vmatpush1.msra.mxu0 0.0
    %4895 = vmatprep.subr.mxu0 0.0
    %4896 = vmatpush1.msra.mxu0 0.0
    %4897 = vmatprep.subr.mxu0 0.0
    %4898 = vmatpush1.msra.mxu0 0.0
    %4899 = vmatprep.subr.mxu0 %v4534
    %4900 = vmatpush1.msra.mxu0 %v4531
    %4901 = vmatprep.subr.mxu0 %v4415
    %4902 = vmatpush1.msra.mxu0 %v4414
    %4903 = vmatprep.subr.mxu0 %v4399
    %4904 = vmatpush1.msra.mxu0 %v4398
    %4905 = vmatprep.subr.mxu0 %v4383
    %4906 = vmatpush1.msra.mxu0 %v4382
    %4907 = vmatprep.subr.mxu0 %v4367
    %4908 = vmatpush1.msra.mxu0 %v4366
    %4909 = vmatprep.subr.mxu0 %v4351
    %4910 = vmatpush1.msra.mxu0 %v4350
    %4911 = vmatprep.subr.mxu0 %v4335
    %4912 = vmatpush1.msra.mxu0 %v4334
    %4913 = vmatprep.subr.mxu0 0.0
    %4914 = vmatpush2.msra.mxu0 0.0
    %4915 = vmatprep.subr.mxu0 0.0
    %4916 = vmatpush2.msra.mxu0 0.0
    %4917 = vmatprep.subr.mxu0 0.0
    %4918 = vmatpush2.msra.mxu0 0.0
    %4919 = vmatprep.subr.mxu0 0.0
    %4920 = vmatpush2.msra.mxu0 0.0
    %4921 = vmatprep.subr.mxu0 0.0
    %4922 = vmatpush2.msra.mxu0 0.0
    %4923 = vmatprep.subr.mxu0 0.0
    %4924 = vmatpush2.msra.mxu0 0.0
    %4925 = vmatprep.subr.mxu0 0.0
    %4926 = vmatpush2.msra.mxu0 0.0
    %4927 = vmatprep.subr.mxu0 0.0
    %4928 = vmatpush2.msra.mxu0 0.0
    %4929 = vmatprep.subr.mxu0 0.0
    %4930 = vmatpush2.msra.mxu0 0.0
    %4931 = vmatprep.subr.mxu0 0.0
    %4932 = vmatpush2.msra.mxu0 0.0
    %4933 = vmatprep.subr.mxu0 0.0
    %4934 = vmatpush2.msra.mxu0 0.0
    %4935 = vmatprep.subr.mxu0 0.0
    %4936 = vmatpush2.msra.mxu0 0.0
    %4937 = vmatprep.subr.mxu0 0.0
    %4938 = vmatpush2.msra.mxu0 0.0
    %4939 = vmatprep.subr.mxu0 0.0
    %4940 = vmatpush2.msra.mxu0 0.0
    %4941 = vmatprep.subr.mxu0 0.0
    %4942 = vmatpush2.msra.mxu0 0.0
    %4943 = vmatprep.subr.mxu0 0.0
    %4944 = vmatpush2.msra.mxu0 0.0
    %4945 = vmatprep.mubr.f32.mxu0 0.0
    %4946 = vmatmul.mubr.f32.gmra.mxu0 %v4492
    %v4947 = vpop.f32.mrf.mxu0
    %v4948 = vadd.f32 %v4459, %v4947
    %v4949 = vpop.f32.mrf.mxu0
    %v4950 = vadd.f32 %v4459, %v4949
    %4951 = vmatprep.mubr.f32.mxu0 0.0
    %4952 = vmatmul.mubr.f32.gmra.mxu0 %v4495
    %v4953 = vpop.f32.mrf.mxu0
    %v4954 = vadd.f32 %v4464, %v4953
    %v4955 = vpop.f32.mrf.mxu0
    %v4956 = vadd.f32 %v4464, %v4955
    %4957 = vmatprep.mubr.f32.mxu0 0.0
    %4958 = vmatmul.mubr.f32.gmra.mxu0 %v4498
    %v4959 = vpop.f32.mrf.mxu0
    %v4960 = vadd.f32 %v4469, %v4959
    %v4961 = vpop.f32.mrf.mxu0
    %v4962 = vadd.f32 %v4469, %v4961
    %4963 = vmatprep.mubr.f32.mxu0 0.0
    %4964 = vmatmul.mubr.f32.gmra.mxu0 %v4501
    %v4965 = vpop.f32.mrf.mxu0
    %v4966 = vadd.f32 %v4474, %v4965
    %v4967 = vpop.f32.mrf.mxu0
    %v4968 = vadd.f32 %v4474, %v4967
    %4969 = vmatprep.mubr.f32.mxu0 0.0
    %4970 = vmatmul.mubr.f32.gmra.mxu0 %v4504
    %v4971 = vpop.f32.mrf.mxu0
    %v4972 = vadd.f32 %v4479, %v4971
    %v4973 = vpop.f32.mrf.mxu0
    %v4974 = vadd.f32 %v4479, %v4973
    %4975 = vmatprep.mubr.f32.mxu0 0.0
    %4976 = vmatmul.mubr.f32.gmra.mxu0 %v4507
    %v4977 = vpop.f32.mrf.mxu0
    %v4978 = vadd.f32 %v4484, %v4977
    %v4979 = vpop.f32.mrf.mxu0
    %v4980 = vadd.f32 %v4484, %v4979
    %4981 = vmatprep.mubr.f32.mxu0 0.0
    %4982 = vmatmul.mubr.f32.gmra.mxu0 %v4510
    %v4983 = vpop.f32.mrf.mxu0
    %v4984 = vadd.f32 %v4489, %v4983
    %v4985 = vpop.f32.mrf.mxu0
    %v4986 = vadd.f32 %v4489, %v4985
    %4987 = vdwg.mxu0
    %4988 = vmatprep.subr.mxu0 0.0
    %4989 = vmatpush1.msra.mxu0 0.0
    %4990 = vmatprep.subr.mxu0 0.0
    %4991 = vmatpush1.msra.mxu0 0.0
    %4992 = vmatprep.subr.mxu0 0.0
    %4993 = vmatpush1.msra.mxu0 0.0
    %4994 = vmatprep.subr.mxu0 0.0
    %4995 = vmatpush1.msra.mxu0 0.0
    %4996 = vmatprep.subr.mxu0 0.0
    %4997 = vmatpush1.msra.mxu0 0.0
    %4998 = vmatprep.subr.mxu0 0.0
    %4999 = vmatpush1.msra.mxu0 0.0
    %5000 = vmatprep.subr.mxu0 0.0
    %5001 = vmatpush1.msra.mxu0 0.0
    %5002 = vmatprep.subr.mxu0 0.0
    %5003 = vmatpush1.msra.mxu0 0.0
    %5004 = vmatprep.subr.mxu0 0.0
    %5005 = vmatpush1.msra.mxu0 0.0
    %5006 = vmatprep.subr.mxu0 %v4540
    %5007 = vmatpush1.msra.mxu0 %v4537
    %5008 = vmatprep.subr.mxu0 %v4417
    %5009 = vmatpush1.msra.mxu0 %v4416
    %5010 = vmatprep.subr.mxu0 %v4401
    %5011 = vmatpush1.msra.mxu0 %v4400
    %5012 = vmatprep.subr.mxu0 %v4385
    %5013 = vmatpush1.msra.mxu0 %v4384
    %5014 = vmatprep.subr.mxu0 %v4369
    %5015 = vmatpush1.msra.mxu0 %v4368
    %5016 = vmatprep.subr.mxu0 %v4353
    %5017 = vmatpush1.msra.mxu0 %v4352
    %5018 = vmatprep.subr.mxu0 %v4337
    %5019 = vmatpush1.msra.mxu0 %v4336
    %5020 = vmatprep.subr.mxu0 0.0
    %5021 = vmatpush2.msra.mxu0 0.0
    %5022 = vmatprep.subr.mxu0 0.0
    %5023 = vmatpush2.msra.mxu0 0.0
    %5024 = vmatprep.subr.mxu0 0.0
    %5025 = vmatpush2.msra.mxu0 0.0
    %5026 = vmatprep.subr.mxu0 0.0
    %5027 = vmatpush2.msra.mxu0 0.0
    %5028 = vmatprep.subr.mxu0 0.0
    %5029 = vmatpush2.msra.mxu0 0.0
    %5030 = vmatprep.subr.mxu0 0.0
    %5031 = vmatpush2.msra.mxu0 0.0
    %5032 = vmatprep.subr.mxu0 0.0
    %5033 = vmatpush2.msra.mxu0 0.0
    %5034 = vmatprep.subr.mxu0 0.0
    %5035 = vmatpush2.msra.mxu0 0.0
    %5036 = vmatprep.subr.mxu0 0.0
    %5037 = vmatpush2.msra.mxu0 0.0
    %5038 = vmatprep.subr.mxu0 0.0
    %5039 = vmatpush2.msra.mxu0 0.0
    %5040 = vmatprep.subr.mxu0 0.0
    %5041 = vmatpush2.msra.mxu0 0.0
    %5042 = vmatprep.subr.mxu0 0.0
    %5043 = vmatpush2.msra.mxu0 0.0
    %5044 = vmatprep.subr.mxu0 0.0
    %5045 = vmatpush2.msra.mxu0 0.0
    %5046 = vmatprep.subr.mxu0 0.0
    %5047 = vmatpush2.msra.mxu0 0.0
    %5048 = vmatprep.subr.mxu0 0.0
    %5049 = vmatpush2.msra.mxu0 0.0
    %5050 = vmatprep.subr.mxu0 0.0
    %5051 = vmatpush2.msra.mxu0 0.0
    %5052 = vmatprep.mubr.f32.mxu0 0.0
    %5053 = vmatmul.mubr.f32.gmra.mxu0 %v4492
    %v5054 = vpop.f32.mrf.mxu0
    %v5055 = vadd.f32 %v4459, %v5054
    %v5056 = vpop.f32.mrf.mxu0
    %v5057 = vadd.f32 %v4459, %v5056
    %5058 = vmatprep.mubr.f32.mxu0 0.0
    %5059 = vmatmul.mubr.f32.gmra.mxu0 %v4495
    %v5060 = vpop.f32.mrf.mxu0
    %v5061 = vadd.f32 %v4464, %v5060
    %v5062 = vpop.f32.mrf.mxu0
    %v5063 = vadd.f32 %v4464, %v5062
    %5064 = vmatprep.mubr.f32.mxu0 0.0
    %5065 = vmatmul.mubr.f32.gmra.mxu0 %v4498
    %v5066 = vpop.f32.mrf.mxu0
    %v5067 = vadd.f32 %v4469, %v5066
    %v5068 = vpop.f32.mrf.mxu0
    %v5069 = vadd.f32 %v4469, %v5068
    %5070 = vmatprep.mubr.f32.mxu0 0.0
    %5071 = vmatmul.mubr.f32.gmra.mxu0 %v4501
    %v5072 = vpop.f32.mrf.mxu0
    %v5073 = vadd.f32 %v4474, %v5072
    %v5074 = vpop.f32.mrf.mxu0
    %v5075 = vadd.f32 %v4474, %v5074
    %5076 = vmatprep.mubr.f32.mxu0 0.0
    %5077 = vmatmul.mubr.f32.gmra.mxu0 %v4504
    %v5078 = vpop.f32.mrf.mxu0
    %v5079 = vadd.f32 %v4479, %v5078
    %v5080 = vpop.f32.mrf.mxu0
    %v5081 = vadd.f32 %v4479, %v5080
    %5082 = vmatprep.mubr.f32.mxu0 0.0
    %5083 = vmatmul.mubr.f32.gmra.mxu0 %v4507
    %v5084 = vpop.f32.mrf.mxu0
    %v5085 = vadd.f32 %v4484, %v5084
    %v5086 = vpop.f32.mrf.mxu0
    %v5087 = vadd.f32 %v4484, %v5086
    %5088 = vmatprep.mubr.f32.mxu0 0.0
    %5089 = vmatmul.mubr.f32.gmra.mxu0 %v4510
    %v5090 = vpop.f32.mrf.mxu0
    %v5091 = vadd.f32 %v4489, %v5090
    %v5092 = vpop.f32.mrf.mxu0
    %v5093 = vadd.f32 %v4489, %v5092
    %5094 = vdwg.mxu0
    %5095 = vmatprep.subr.mxu0 0.0
    %5096 = vmatpush1.msra.mxu0 0.0
    %5097 = vmatprep.subr.mxu0 0.0
    %5098 = vmatpush1.msra.mxu0 0.0
    %5099 = vmatprep.subr.mxu0 0.0
    %5100 = vmatpush1.msra.mxu0 0.0
    %5101 = vmatprep.subr.mxu0 0.0
    %5102 = vmatpush1.msra.mxu0 0.0
    %5103 = vmatprep.subr.mxu0 0.0
    %5104 = vmatpush1.msra.mxu0 0.0
    %5105 = vmatprep.subr.mxu0 0.0
    %5106 = vmatpush1.msra.mxu0 0.0
    %5107 = vmatprep.subr.mxu0 0.0
    %5108 = vmatpush1.msra.mxu0 0.0
    %5109 = vmatprep.subr.mxu0 0.0
    %5110 = vmatpush1.msra.mxu0 0.0
    %5111 = vmatprep.subr.mxu0 0.0
    %5112 = vmatpush1.msra.mxu0 0.0
    %5113 = vmatprep.subr.mxu0 %v4546
    %5114 = vmatpush1.msra.mxu0 %v4543
    %5115 = vmatprep.subr.mxu0 %v4419
    %5116 = vmatpush1.msra.mxu0 %v4418
    %5117 = vmatprep.subr.mxu0 %v4403
    %5118 = vmatpush1.msra.mxu0 %v4402
    %5119 = vmatprep.subr.mxu0 %v4387
    %5120 = vmatpush1.msra.mxu0 %v4386
    %5121 = vmatprep.subr.mxu0 %v4371
    %5122 = vmatpush1.msra.mxu0 %v4370
    %5123 = vmatprep.subr.mxu0 %v4355
    %5124 = vmatpush1.msra.mxu0 %v4354
    %5125 = vmatprep.subr.mxu0 %v4339
    %5126 = vmatpush1.msra.mxu0 %v4338
    %5127 = vmatprep.subr.mxu0 0.0
    %5128 = vmatpush2.msra.mxu0 0.0
    %5129 = vmatprep.subr.mxu0 0.0
    %5130 = vmatpush2.msra.mxu0 0.0
    %5131 = vmatprep.subr.mxu0 0.0
    %5132 = vmatpush2.msra.mxu0 0.0
    %5133 = vmatprep.subr.mxu0 0.0
    %5134 = vmatpush2.msra.mxu0 0.0
    %5135 = vmatprep.subr.mxu0 0.0
    %5136 = vmatpush2.msra.mxu0 0.0
    %5137 = vmatprep.subr.mxu0 0.0
    %5138 = vmatpush2.msra.mxu0 0.0
    %5139 = vmatprep.subr.mxu0 0.0
    %5140 = vmatpush2.msra.mxu0 0.0
    %5141 = vmatprep.subr.mxu0 0.0
    %5142 = vmatpush2.msra.mxu0 0.0
    %5143 = vmatprep.subr.mxu0 0.0
    %5144 = vmatpush2.msra.mxu0 0.0
    %5145 = vmatprep.subr.mxu0 0.0
    %5146 = vmatpush2.msra.mxu0 0.0
    %5147 = vmatprep.subr.mxu0 0.0
    %5148 = vmatpush2.msra.mxu0 0.0
    %5149 = vmatprep.subr.mxu0 0.0
    %5150 = vmatpush2.msra.mxu0 0.0
    %5151 = vmatprep.subr.mxu0 0.0
    %5152 = vmatpush2.msra.mxu0 0.0
    %5153 = vmatprep.subr.mxu0 0.0
    %5154 = vmatpush2.msra.mxu0 0.0
    %5155 = vmatprep.subr.mxu0 0.0
    %5156 = vmatpush2.msra.mxu0 0.0
    %5157 = vmatprep.subr.mxu0 0.0
    %5158 = vmatpush2.msra.mxu0 0.0
    %5159 = vmatprep.mubr.f32.mxu0 0.0
    %5160 = vmatmul.mubr.f32.gmra.mxu0 %v4492
    %v5161 = vpop.f32.mrf.mxu0
    %v5162 = vadd.f32 %v4459, %v5161
    %v5163 = vpop.f32.mrf.mxu0
    %v5164 = vadd.f32 %v4459, %v5163
    %5165 = vmatprep.mubr.f32.mxu0 0.0
    %5166 = vmatmul.mubr.f32.gmra.mxu0 %v4495
    %v5167 = vpop.f32.mrf.mxu0
    %v5168 = vadd.f32 %v4464, %v5167
    %v5169 = vpop.f32.mrf.mxu0
    %v5170 = vadd.f32 %v4464, %v5169
    %5171 = vmatprep.mubr.f32.mxu0 0.0
    %5172 = vmatmul.mubr.f32.gmra.mxu0 %v4498
    %v5173 = vpop.f32.mrf.mxu0
    %v5174 = vadd.f32 %v4469, %v5173
    %v5175 = vpop.f32.mrf.mxu0
    %v5176 = vadd.f32 %v4469, %v5175
    %5177 = vmatprep.mubr.f32.mxu0 0.0
    %5178 = vmatmul.mubr.f32.gmra.mxu0 %v4501
    %v5179 = vpop.f32.mrf.mxu0
    %v5180 = vadd.f32 %v4474, %v5179
    %v5181 = vpop.f32.mrf.mxu0
    %v5182 = vadd.f32 %v4474, %v5181
    %5183 = vmatprep.mubr.f32.mxu0 0.0
    %5184 = vmatmul.mubr.f32.gmra.mxu0 %v4504
    %v5185 = vpop.f32.mrf.mxu0
    %v5186 = vadd.f32 %v4479, %v5185
    %v5187 = vpop.f32.mrf.mxu0
    %v5188 = vadd.f32 %v4479, %v5187
    %5189 = vmatprep.mubr.f32.mxu0 0.0
    %5190 = vmatmul.mubr.f32.gmra.mxu0 %v4507
    %v5191 = vpop.f32.mrf.mxu0
    %v5192 = vadd.f32 %v4484, %v5191
    %v5193 = vpop.f32.mrf.mxu0
    %v5194 = vadd.f32 %v4484, %v5193
    %5195 = vmatprep.mubr.f32.mxu0 0.0
    %5196 = vmatmul.mubr.f32.gmra.mxu0 %v4510
    %v5197 = vpop.f32.mrf.mxu0
    %v5198 = vadd.f32 %v4489, %v5197
    %v5199 = vpop.f32.mrf.mxu0
    %v5200 = vadd.f32 %v4489, %v5199
    %5201 = vdwg.mxu0
    %5202 = vmatprep.subr.mxu0 0.0
    %5203 = vmatpush1.msra.mxu0 0.0
    %5204 = vmatprep.subr.mxu0 0.0
    %5205 = vmatpush1.msra.mxu0 0.0
    %5206 = vmatprep.subr.mxu0 0.0
    %5207 = vmatpush1.msra.mxu0 0.0
    %5208 = vmatprep.subr.mxu0 0.0
    %5209 = vmatpush1.msra.mxu0 0.0
    %5210 = vmatprep.subr.mxu0 0.0
    %5211 = vmatpush1.msra.mxu0 0.0
    %5212 = vmatprep.subr.mxu0 0.0
    %5213 = vmatpush1.msra.mxu0 0.0
    %5214 = vmatprep.subr.mxu0 0.0
    %5215 = vmatpush1.msra.mxu0 0.0
    %5216 = vmatprep.subr.mxu0 0.0
    %5217 = vmatpush1.msra.mxu0 0.0
    %5218 = vmatprep.subr.mxu0 0.0
    %5219 = vmatpush1.msra.mxu0 0.0
    %5220 = vmatprep.subr.mxu0 %v4552
    %5221 = vmatpush1.msra.mxu0 %v4549
    %5222 = vmatprep.subr.mxu0 %v4421
    %5223 = vmatpush1.msra.mxu0 %v4420
    %5224 = vmatprep.subr.mxu0 %v4405
    %5225 = vmatpush1.msra.mxu0 %v4404
    %5226 = vmatprep.subr.mxu0 %v4389
    %5227 = vmatpush1.msra.mxu0 %v4388
    %5228 = vmatprep.subr.mxu0 %v4373
    %5229 = vmatpush1.msra.mxu0 %v4372
    %5230 = vmatprep.subr.mxu0 %v4357
    %5231 = vmatpush1.msra.mxu0 %v4356
    %5232 = vmatprep.subr.mxu0 %v4341
    %5233 = vmatpush1.msra.mxu0 %v4340
    %5234 = vmatprep.subr.mxu0 0.0
    %5235 = vmatpush2.msra.mxu0 0.0
    %5236 = vmatprep.subr.mxu0 0.0
    %5237 = vmatpush2.msra.mxu0 0.0
    %5238 = vmatprep.subr.mxu0 0.0
    %5239 = vmatpush2.msra.mxu0 0.0
    %5240 = vmatprep.subr.mxu0 0.0
    %5241 = vmatpush2.msra.mxu0 0.0
    %5242 = vmatprep.subr.mxu0 0.0
    %5243 = vmatpush2.msra.mxu0 0.0
    %5244 = vmatprep.subr.mxu0 0.0
    %5245 = vmatpush2.msra.mxu0 0.0
    %5246 = vmatprep.subr.mxu0 0.0
    %5247 = vmatpush2.msra.mxu0 0.0
    %5248 = vmatprep.subr.mxu0 0.0
    %5249 = vmatpush2.msra.mxu0 0.0
    %5250 = vmatprep.subr.mxu0 0.0
    %5251 = vmatpush2.msra.mxu0 0.0
    %5252 = vmatprep.subr.mxu0 0.0
    %5253 = vmatpush2.msra.mxu0 0.0
    %5254 = vmatprep.subr.mxu0 0.0
    %5255 = vmatpush2.msra.mxu0 0.0
    %5256 = vmatprep.subr.mxu0 0.0
    %5257 = vmatpush2.msra.mxu0 0.0
    %5258 = vmatprep.subr.mxu0 0.0
    %5259 = vmatpush2.msra.mxu0 0.0
    %5260 = vmatprep.subr.mxu0 0.0
    %5261 = vmatpush2.msra.mxu0 0.0
    %5262 = vmatprep.subr.mxu0 0.0
    %5263 = vmatpush2.msra.mxu0 0.0
    %5264 = vmatprep.subr.mxu0 0.0
    %5265 = vmatpush2.msra.mxu0 0.0
    %5266 = vmatprep.mubr.f32.mxu0 0.0
    %5267 = vmatmul.mubr.f32.gmra.mxu0 %v4492
    %v5268 = vpop.f32.mrf.mxu0
    %v5269 = vadd.f32 %v4459, %v5268
    %v5270 = vpop.f32.mrf.mxu0
    %v5271 = vadd.f32 %v4459, %v5270
    %5272 = vmatprep.mubr.f32.mxu0 0.0
    %5273 = vmatmul.mubr.f32.gmra.mxu0 %v4495
    %v5274 = vpop.f32.mrf.mxu0
    %v5275 = vadd.f32 %v4464, %v5274
    %v5276 = vpop.f32.mrf.mxu0
    %v5277 = vadd.f32 %v4464, %v5276
    %5278 = vmatprep.mubr.f32.mxu0 0.0
    %5279 = vmatmul.mubr.f32.gmra.mxu0 %v4498
    %v5280 = vpop.f32.mrf.mxu0
    %v5281 = vadd.f32 %v4469, %v5280
    %v5282 = vpop.f32.mrf.mxu0
    %v5283 = vadd.f32 %v4469, %v5282
    %5284 = vmatprep.mubr.f32.mxu0 0.0
    %5285 = vmatmul.mubr.f32.gmra.mxu0 %v4501
    %v5286 = vpop.f32.mrf.mxu0
    %v5287 = vadd.f32 %v4474, %v5286
    %v5288 = vpop.f32.mrf.mxu0
    %v5289 = vadd.f32 %v4474, %v5288
    %5290 = vmatprep.mubr.f32.mxu0 0.0
    %5291 = vmatmul.mubr.f32.gmra.mxu0 %v4504
    %v5292 = vpop.f32.mrf.mxu0
    %v5293 = vadd.f32 %v4479, %v5292
    %v5294 = vpop.f32.mrf.mxu0
    %v5295 = vadd.f32 %v4479, %v5294
    %5296 = vmatprep.mubr.f32.mxu0 0.0
    %5297 = vmatmul.mubr.f32.gmra.mxu0 %v4507
    %v5298 = vpop.f32.mrf.mxu0
    %v5299 = vadd.f32 %v4484, %v5298
    %v5300 = vpop.f32.mrf.mxu0
    %v5301 = vadd.f32 %v4484, %v5300
    %5302 = vmatprep.mubr.f32.mxu0 0.0
    %5303 = vmatmul.mubr.f32.gmra.mxu0 %v4510
    %v5304 = vpop.f32.mrf.mxu0
    %v5305 = vadd.f32 %v4489, %v5304
    %v5306 = vpop.f32.mrf.mxu0
    %v5307 = vadd.f32 %v4489, %v5306
    %5308 = vdwg.mxu0
    %5309 = vmatprep.subr.mxu0 0.0
    %5310 = vmatpush1.msra.mxu0 0.0
    %5311 = vmatprep.subr.mxu0 0.0
    %5312 = vmatpush1.msra.mxu0 0.0
    %5313 = vmatprep.subr.mxu0 0.0
    %5314 = vmatpush1.msra.mxu0 0.0
    %5315 = vmatprep.subr.mxu0 0.0
    %5316 = vmatpush1.msra.mxu0 0.0
    %5317 = vmatprep.subr.mxu0 0.0
    %5318 = vmatpush1.msra.mxu0 0.0
    %5319 = vmatprep.subr.mxu0 0.0
    %5320 = vmatpush1.msra.mxu0 0.0
    %5321 = vmatprep.subr.mxu0 0.0
    %5322 = vmatpush1.msra.mxu0 0.0
    %5323 = vmatprep.subr.mxu0 0.0
    %5324 = vmatpush1.msra.mxu0 0.0
    %5325 = vmatprep.subr.mxu0 0.0
    %5326 = vmatpush1.msra.mxu0 0.0
    %5327 = vmatprep.subr.mxu0 %v4558
    %5328 = vmatpush1.msra.mxu0 %v4555
    %5329 = vmatprep.subr.mxu0 %v4423
    %5330 = vmatpush1.msra.mxu0 %v4422
    %5331 = vmatprep.subr.mxu0 %v4407
    %5332 = vmatpush1.msra.mxu0 %v4406
    %5333 = vmatprep.subr.mxu0 %v4391
    %5334 = vmatpush1.msra.mxu0 %v4390
    %5335 = vmatprep.subr.mxu0 %v4375
    %5336 = vmatpush1.msra.mxu0 %v4374
    %5337 = vmatprep.subr.mxu0 %v4359
    %5338 = vmatpush1.msra.mxu0 %v4358
    %5339 = vmatprep.subr.mxu0 %v4343
    %5340 = vmatpush1.msra.mxu0 %v4342
    %5341 = vmatprep.subr.mxu0 0.0
    %5342 = vmatpush2.msra.mxu0 0.0
    %5343 = vmatprep.subr.mxu0 0.0
    %5344 = vmatpush2.msra.mxu0 0.0
    %5345 = vmatprep.subr.mxu0 0.0
    %5346 = vmatpush2.msra.mxu0 0.0
    %5347 = vmatprep.subr.mxu0 0.0
    %5348 = vmatpush2.msra.mxu0 0.0
    %5349 = vmatprep.subr.mxu0 0.0
    %5350 = vmatpush2.msra.mxu0 0.0
    %5351 = vmatprep.subr.mxu0 0.0
    %5352 = vmatpush2.msra.mxu0 0.0
    %5353 = vmatprep.subr.mxu0 0.0
    %5354 = vmatpush2.msra.mxu0 0.0
    %5355 = vmatprep.subr.mxu0 0.0
    %5356 = vmatpush2.msra.mxu0 0.0
    %5357 = vmatprep.subr.mxu0 0.0
    %5358 = vmatpush2.msra.mxu0 0.0
    %5359 = vmatprep.subr.mxu0 0.0
    %5360 = vmatpush2.msra.mxu0 0.0
    %5361 = vmatprep.subr.mxu0 0.0
    %5362 = vmatpush2.msra.mxu0 0.0
    %5363 = vmatprep.subr.mxu0 0.0
    %5364 = vmatpush2.msra.mxu0 0.0
    %5365 = vmatprep.subr.mxu0 0.0
    %5366 = vmatpush2.msra.mxu0 0.0
    %5367 = vmatprep.subr.mxu0 0.0
    %5368 = vmatpush2.msra.mxu0 0.0
    %5369 = vmatprep.subr.mxu0 0.0
    %5370 = vmatpush2.msra.mxu0 0.0
    %5371 = vmatprep.subr.mxu0 0.0
    %5372 = vmatpush2.msra.mxu0 0.0
    %5373 = vmatprep.mubr.f32.mxu0 0.0
    %5374 = vmatmul.mubr.f32.gmra.mxu0 %v4492
    %v5375 = vpop.f32.mrf.mxu0
    %v5376 = vadd.f32 %v4459, %v5375
    %v5377 = vpop.f32.mrf.mxu0
    %v5378 = vadd.f32 %v4459, %v5377
    %5379 = vmatprep.mubr.f32.mxu0 0.0
    %5380 = vmatmul.mubr.f32.gmra.mxu0 %v4495
    %v5381 = vpop.f32.mrf.mxu0
    %v5382 = vadd.f32 %v4464, %v5381
    %v5383 = vpop.f32.mrf.mxu0
    %v5384 = vadd.f32 %v4464, %v5383
    %5385 = vmatprep.mubr.f32.mxu0 0.0
    %5386 = vmatmul.mubr.f32.gmra.mxu0 %v4498
    %v5387 = vpop.f32.mrf.mxu0
    %v5388 = vadd.f32 %v4469, %v5387
    %v5389 = vpop.f32.mrf.mxu0
    %v5390 = vadd.f32 %v4469, %v5389
    %5391 = vmatprep.mubr.f32.mxu0 0.0
    %5392 = vmatmul.mubr.f32.gmra.mxu0 %v4501
    %v5393 = vpop.f32.mrf.mxu0
    %v5394 = vadd.f32 %v4474, %v5393
    %v5395 = vpop.f32.mrf.mxu0
    %v5396 = vadd.f32 %v4474, %v5395
    %5397 = vmatprep.mubr.f32.mxu0 0.0
    %5398 = vmatmul.mubr.f32.gmra.mxu0 %v4504
    %v5399 = vpop.f32.mrf.mxu0
    %v5400 = vadd.f32 %v4479, %v5399
    %v5401 = vpop.f32.mrf.mxu0
    %v5402 = vadd.f32 %v4479, %v5401
    %5403 = vmatprep.mubr.f32.mxu0 0.0
    %5404 = vmatmul.mubr.f32.gmra.mxu0 %v4507
    %v5405 = vpop.f32.mrf.mxu0
    %v5406 = vadd.f32 %v4484, %v5405
    %v5407 = vpop.f32.mrf.mxu0
    %v5408 = vadd.f32 %v4484, %v5407
    %5409 = vmatprep.mubr.f32.mxu0 0.0
    %5410 = vmatmul.mubr.f32.gmra.mxu0 %v4510
    %v5411 = vpop.f32.mrf.mxu0
    %v5412 = vadd.f32 %v4489, %v5411
    %v5413 = vpop.f32.mrf.mxu0
    %v5414 = vadd.f32 %v4489, %v5413
    %5415 = vdwg.mxu0
    %v5416 = vtanh.pop %v4627
    %v5417 = vtanh.pop %v4629
    %v5418 = vtanh.pop %v4734
    %v5419 = vtanh.pop %v4736
    %v5420 = vtanh.pop %v4841
    %v5421 = vtanh.pop %v4843
    %v5422 = vtanh.pop %v4948
    %v5423 = vtanh.pop %v4950
    %v5424 = vtanh.pop %v5055
    %v5425 = vtanh.pop %v5057
    %v5426 = vtanh.pop %v5162
    %v5427 = vtanh.pop %v5164
    %v5428 = vtanh.pop %v5269
    %v5429 = vtanh.pop %v5271
    %v5430 = vtanh.pop %v5376
    %v5431 = vtanh.pop %v5378
    %v5432 = vtanh.pop %v4633
    %v5433 = vtanh.pop %v4635
    %v5434 = vtanh.pop %v4740
    %v5435 = vtanh.pop %v4742
    %v5436 = vtanh.pop %v4847
    %v5437 = vtanh.pop %v4849
    %v5438 = vtanh.pop %v4954
    %v5439 = vtanh.pop %v4956
    %v5440 = vtanh.pop %v5061
    %v5441 = vtanh.pop %v5063
    %v5442 = vtanh.pop %v5168
    %v5443 = vtanh.pop %v5170
    %v5444 = vtanh.pop %v5275
    %v5445 = vtanh.pop %v5277
    %v5446 = vtanh.pop %v5382
    %v5447 = vtanh.pop %v5384
    %v5448 = vtanh.pop %v4639
    %v5449 = vtanh.pop %v4641
    %v5450 = vtanh.pop %v4746
    %v5451 = vtanh.pop %v4748
    %v5452 = vtanh.pop %v4853
    %v5453 = vtanh.pop %v4855
    %v5454 = vtanh.pop %v4960
    %v5455 = vtanh.pop %v4962
    %v5456 = vtanh.pop %v5067
    %v5457 = vtanh.pop %v5069
    %v5458 = vtanh.pop %v5174
    %v5459 = vtanh.pop %v5176
    %v5460 = vtanh.pop %v5281
    %v5461 = vtanh.pop %v5283
    %v5462 = vtanh.pop %v5388
    %v5463 = vtanh.pop %v5390
    %v5464 = vtanh.pop %v4645
    %v5465 = vtanh.pop %v4647
    %v5466 = vtanh.pop %v4752
    %v5467 = vtanh.pop %v4754
    %v5468 = vtanh.pop %v4859
    %v5469 = vtanh.pop %v4861
    %v5470 = vtanh.pop %v4966
    %v5471 = vtanh.pop %v4968
    %v5472 = vtanh.pop %v5073
    %v5473 = vtanh.pop %v5075
    %v5474 = vtanh.pop %v5180
    %v5475 = vtanh.pop %v5182
    %v5476 = vtanh.pop %v5287
    %v5477 = vtanh.pop %v5289
    %v5478 = vtanh.pop %v5394
    %v5479 = vtanh.pop %v5396
    %v5480 = vtanh.pop %v4651
    %v5481 = vtanh.pop %v4653
    %v5482 = vtanh.pop %v4758
    %v5483 = vtanh.pop %v4760
    %v5484 = vtanh.pop %v4865
    %v5485 = vtanh.pop %v4867
    %v5486 = vtanh.pop %v4972
    %v5487 = vtanh.pop %v4974
    %v5488 = vtanh.pop %v5079
    %v5489 = vtanh.pop %v5081
    %v5490 = vtanh.pop %v5186
    %v5491 = vtanh.pop %v5188
    %v5492 = vtanh.pop %v5293
    %v5493 = vtanh.pop %v5295
    %v5494 = vtanh.pop %v5400
    %v5495 = vtanh.pop %v5402
    %v5496 = vtanh.pop %v4657
    %v5497 = vtanh.pop %v4659
    %v5498 = vtanh.pop %v4764
    %v5499 = vtanh.pop %v4766
    %v5500 = vtanh.pop %v4871
    %v5501 = vtanh.pop %v4873
    %v5502 = vtanh.pop %v4978
    %v5503 = vtanh.pop %v4980
    %v5504 = vtanh.pop %v5085
    %v5505 = vtanh.pop %v5087
    %v5506 = vtanh.pop %v5192
    %v5507 = vtanh.pop %v5194
    %v5508 = vtanh.pop %v5299
    %v5509 = vtanh.pop %v5301
    %v5510 = vtanh.pop %v5406
    %v5511 = vtanh.pop %v5408
    %v5512 = vtanh.pop %v4663
    %v5513 = vtanh.pop %v4665
    %v5514 = vtanh.pop %v4770
    %v5515 = vtanh.pop %v4772
    %v5516 = vtanh.pop %v4877
    %v5517 = vtanh.pop %v4879
    %v5518 = vtanh.pop %v4984
    %v5519 = vtanh.pop %v4986
    %v5520 = vtanh.pop %v5091
    %v5521 = vtanh.pop %v5093
    %v5522 = vtanh.pop %v5198
    %v5523 = vtanh.pop %v5200
    %v5524 = vtanh.pop %v5305
    %v5525 = vtanh.pop %v5307
    %v5526 = vtanh.pop %v5412
    %v5527 = vtanh.pop %v5414
    %s5528 = scalar_lea.vmem %s3, 224
    %v5529 = vld [vmem:[%s5528] sm:$0xff]
    %v5530 = vld [vmem:[%s5528 + $0x8] sm:$0xff]
    %v5531 = vld [vmem:[%s5528 + $0x10] sm:$0xff]
    %v5532 = vld [vmem:[%s5528 + $0x18] sm:$0xff]
    %v5533 = vld [vmem:[%s5528 + $0x20] sm:$0xff]
    %v5534 = vld [vmem:[%s5528 + $0x28] sm:$0xff]
    %v5535 = vld [vmem:[%s5528 + $0x30] sm:$0x3]
    %s5536 = scalar_lea.vmem %s4, 224
    %v5537 = vld [vmem:[%s5536] sm:$0xff]
    %v5538 = vld [vmem:[%s5536 + $0x8] sm:$0xff]
    %v5539 = vld [vmem:[%s5536 + $0x10] sm:$0xff]
    %v5540 = vld [vmem:[%s5536 + $0x18] sm:$0xff]
    %v5541 = vld [vmem:[%s5536 + $0x20] sm:$0xff]
    %v5542 = vld [vmem:[%s5536 + $0x28] sm:$0xff]
    %v5543 = vld [vmem:[%s5536 + $0x30] sm:$0x3]
    %5545 = vset.pattern.permute.xlu0 0
    %5546 = vperm.xlu0 %5545, %v5537
    %v5547 = vpop.permute.xlu0 %5546
    %5550 = vset.pattern.permute.xlu0 0
    %5551 = vperm.xlu0 %5550, %v5538
    %v5552 = vpop.permute.xlu0 %5551
    %5555 = vset.pattern.permute.xlu0 0
    %5556 = vperm.xlu0 %5555, %v5539
    %v5557 = vpop.permute.xlu0 %5556
    %5560 = vset.pattern.permute.xlu0 0
    %5561 = vperm.xlu0 %5560, %v5540
    %v5562 = vpop.permute.xlu0 %5561
    %5565 = vset.pattern.permute.xlu0 0
    %5566 = vperm.xlu0 %5565, %v5541
    %v5567 = vpop.permute.xlu0 %5566
    %5570 = vset.pattern.permute.xlu0 0
    %5571 = vperm.xlu0 %5570, %v5542
    %v5572 = vpop.permute.xlu0 %5571
    %5575 = vset.pattern.permute.xlu0 0
    %5576 = vperm.xlu0 %5575, %v5543
    %v5577 = vpop.permute.xlu0 %5576
    %v5580 = vsel %vm1226, %v5529, 0
    %v5583 = vsel %vm1226, %v5530, 0
    %v5586 = vsel %vm1226, %v5531, 0
    %v5589 = vsel %vm1226, %v5532, 0
    %v5592 = vsel %vm1226, %v5533, 0
    %v5595 = vsel %vm1226, %v5534, 0
    %v5598 = vsel %vm1226, %v5535, 0
    %v5601 = vsel %vm176, %v5512, 0
    %v5604 = vsel %vm176, %v5513, 0
    %v5607 = vsel %vm176, %v5514, 0
    %v5610 = vsel %vm176, %v5515, 0
    %v5613 = vsel %vm176, %v5516, 0
    %v5616 = vsel %vm176, %v5517, 0
    %v5619 = vsel %vm176, %v5518, 0
    %v5622 = vsel %vm176, %v5519, 0
    %v5625 = vsel %vm176, %v5520, 0
    %v5628 = vsel %vm176, %v5521, 0
    %v5631 = vsel %vm176, %v5522, 0
    %v5634 = vsel %vm176, %v5523, 0
    %v5637 = vsel %vm176, %v5524, 0
    %v5640 = vsel %vm176, %v5525, 0
    %v5643 = vsel %vm176, %v5526, 0
    %v5646 = vsel %vm176, %v5527, 0
    %5648 = vmatprep.subr.mxu0 0.0
    %5649 = vmatpush1.msra.mxu0 0.0
    %5650 = vmatprep.subr.mxu0 0.0
    %5651 = vmatpush1.msra.mxu0 0.0
    %5652 = vmatprep.subr.mxu0 0.0
    %5653 = vmatpush1.msra.mxu0 0.0
    %5654 = vmatprep.subr.mxu0 0.0
    %5655 = vmatpush1.msra.mxu0 0.0
    %5656 = vmatprep.subr.mxu0 0.0
    %5657 = vmatpush1.msra.mxu0 0.0
    %5658 = vmatprep.subr.mxu0 0.0
    %5659 = vmatpush1.msra.mxu0 0.0
    %5660 = vmatprep.subr.mxu0 0.0
    %5661 = vmatpush1.msra.mxu0 0.0
    %5662 = vmatprep.subr.mxu0 0.0
    %5663 = vmatpush1.msra.mxu0 0.0
    %5664 = vmatprep.subr.mxu0 0.0
    %5665 = vmatpush1.msra.mxu0 0.0
    %5666 = vmatprep.subr.mxu0 %v5604
    %5667 = vmatpush1.msra.mxu0 %v5601
    %5668 = vmatprep.subr.mxu0 %v5497
    %5669 = vmatpush1.msra.mxu0 %v5496
    %5670 = vmatprep.subr.mxu0 %v5481
    %5671 = vmatpush1.msra.mxu0 %v5480
    %5672 = vmatprep.subr.mxu0 %v5465
    %5673 = vmatpush1.msra.mxu0 %v5464
    %5674 = vmatprep.subr.mxu0 %v5449
    %5675 = vmatpush1.msra.mxu0 %v5448
    %5676 = vmatprep.subr.mxu0 %v5433
    %5677 = vmatpush1.msra.mxu0 %v5432
    %5678 = vmatprep.subr.mxu0 %v5417
    %5679 = vmatpush1.msra.mxu0 %v5416
    %5680 = vmatprep.subr.mxu0 0.0
    %5681 = vmatpush2.msra.mxu0 0.0
    %5682 = vmatprep.subr.mxu0 0.0
    %5683 = vmatpush2.msra.mxu0 0.0
    %5684 = vmatprep.subr.mxu0 0.0
    %5685 = vmatpush2.msra.mxu0 0.0
    %5686 = vmatprep.subr.mxu0 0.0
    %5687 = vmatpush2.msra.mxu0 0.0
    %5688 = vmatprep.subr.mxu0 0.0
    %5689 = vmatpush2.msra.mxu0 0.0
    %5690 = vmatprep.subr.mxu0 0.0
    %5691 = vmatpush2.msra.mxu0 0.0
    %5692 = vmatprep.subr.mxu0 0.0
    %5693 = vmatpush2.msra.mxu0 0.0
    %5694 = vmatprep.subr.mxu0 0.0
    %5695 = vmatpush2.msra.mxu0 0.0
    %5696 = vmatprep.subr.mxu0 0.0
    %5697 = vmatpush2.msra.mxu0 0.0
    %5698 = vmatprep.subr.mxu0 0.0
    %5699 = vmatpush2.msra.mxu0 0.0
    %5700 = vmatprep.subr.mxu0 0.0
    %5701 = vmatpush2.msra.mxu0 0.0
    %5702 = vmatprep.subr.mxu0 0.0
    %5703 = vmatpush2.msra.mxu0 0.0
    %5704 = vmatprep.subr.mxu0 0.0
    %5705 = vmatpush2.msra.mxu0 0.0
    %5706 = vmatprep.subr.mxu0 0.0
    %5707 = vmatpush2.msra.mxu0 0.0
    %5708 = vmatprep.subr.mxu0 0.0
    %5709 = vmatpush2.msra.mxu0 0.0
    %5710 = vmatprep.subr.mxu0 0.0
    %5711 = vmatpush2.msra.mxu0 0.0
    %5712 = vmatprep.mubr.f32.mxu0 0.0
    %5713 = vmatmul.mubr.f32.gmra.mxu0 %v5580
    %v5714 = vpop.f32.mrf.mxu0
    %v5715 = vadd.f32 %v5547, %v5714
    %v5716 = vpop.f32.mrf.mxu0
    %v5717 = vadd.f32 %v5547, %v5716
    %5718 = vmatprep.mubr.f32.mxu0 0.0
    %5719 = vmatmul.mubr.f32.gmra.mxu0 %v5583
    %v5720 = vpop.f32.mrf.mxu0
    %v5721 = vadd.f32 %v5552, %v5720
    %v5722 = vpop.f32.mrf.mxu0
    %v5723 = vadd.f32 %v5552, %v5722
    %5724 = vmatprep.mubr.f32.mxu0 0.0
    %5725 = vmatmul.mubr.f32.gmra.mxu0 %v5586
    %v5726 = vpop.f32.mrf.mxu0
    %v5727 = vadd.f32 %v5557, %v5726
    %v5728 = vpop.f32.mrf.mxu0
    %v5729 = vadd.f32 %v5557, %v5728
    %5730 = vmatprep.mubr.f32.mxu0 0.0
    %5731 = vmatmul.mubr.f32.gmra.mxu0 %v5589
    %v5732 = vpop.f32.mrf.mxu0
    %v5733 = vadd.f32 %v5562, %v5732
    %v5734 = vpop.f32.mrf.mxu0
    %v5735 = vadd.f32 %v5562, %v5734
    %5736 = vmatprep.mubr.f32.mxu0 0.0
    %5737 = vmatmul.mubr.f32.gmra.mxu0 %v5592
    %v5738 = vpop.f32.mrf.mxu0
    %v5739 = vadd.f32 %v5567, %v5738
    %v5740 = vpop.f32.mrf.mxu0
    %v5741 = vadd.f32 %v5567, %v5740
    %5742 = vmatprep.mubr.f32.mxu0 0.0
    %5743 = vmatmul.mubr.f32.gmra.mxu0 %v5595
    %v5744 = vpop.f32.mrf.mxu0
    %v5745 = vadd.f32 %v5572, %v5744
    %v5746 = vpop.f32.mrf.mxu0
    %v5747 = vadd.f32 %v5572, %v5746
    %5748 = vmatprep.mubr.f32.mxu0 0.0
    %5749 = vmatmul.mubr.f32.gmra.mxu0 %v5598
    %v5750 = vpop.f32.mrf.mxu0
    %v5751 = vadd.f32 %v5577, %v5750
    %v5752 = vpop.f32.mrf.mxu0
    %v5753 = vadd.f32 %v5577, %v5752
    %5754 = vdwg.mxu0
    %5755 = vmatprep.subr.mxu0 0.0
    %5756 = vmatpush1.msra.mxu0 0.0
    %5757 = vmatprep.subr.mxu0 0.0
    %5758 = vmatpush1.msra.mxu0 0.0
    %5759 = vmatprep.subr.mxu0 0.0
    %5760 = vmatpush1.msra.mxu0 0.0
    %5761 = vmatprep.subr.mxu0 0.0
    %5762 = vmatpush1.msra.mxu0 0.0
    %5763 = vmatprep.subr.mxu0 0.0
    %5764 = vmatpush1.msra.mxu0 0.0
    %5765 = vmatprep.subr.mxu0 0.0
    %5766 = vmatpush1.msra.mxu0 0.0
    %5767 = vmatprep.subr.mxu0 0.0
    %5768 = vmatpush1.msra.mxu0 0.0
    %5769 = vmatprep.subr.mxu0 0.0
    %5770 = vmatpush1.msra.mxu0 0.0
    %5771 = vmatprep.subr.mxu0 0.0
    %5772 = vmatpush1.msra.mxu0 0.0
    %5773 = vmatprep.subr.mxu0 %v5610
    %5774 = vmatpush1.msra.mxu0 %v5607
    %5775 = vmatprep.subr.mxu0 %v5499
    %5776 = vmatpush1.msra.mxu0 %v5498
    %5777 = vmatprep.subr.mxu0 %v5483
    %5778 = vmatpush1.msra.mxu0 %v5482
    %5779 = vmatprep.subr.mxu0 %v5467
    %5780 = vmatpush1.msra.mxu0 %v5466
    %5781 = vmatprep.subr.mxu0 %v5451
    %5782 = vmatpush1.msra.mxu0 %v5450
    %5783 = vmatprep.subr.mxu0 %v5435
    %5784 = vmatpush1.msra.mxu0 %v5434
    %5785 = vmatprep.subr.mxu0 %v5419
    %5786 = vmatpush1.msra.mxu0 %v5418
    %5787 = vmatprep.subr.mxu0 0.0
    %5788 = vmatpush2.msra.mxu0 0.0
    %5789 = vmatprep.subr.mxu0 0.0
    %5790 = vmatpush2.msra.mxu0 0.0
    %5791 = vmatprep.subr.mxu0 0.0
    %5792 = vmatpush2.msra.mxu0 0.0
    %5793 = vmatprep.subr.mxu0 0.0
    %5794 = vmatpush2.msra.mxu0 0.0
    %5795 = vmatprep.subr.mxu0 0.0
    %5796 = vmatpush2.msra.mxu0 0.0
    %5797 = vmatprep.subr.mxu0 0.0
    %5798 = vmatpush2.msra.mxu0 0.0
    %5799 = vmatprep.subr.mxu0 0.0
    %5800 = vmatpush2.msra.mxu0 0.0
    %5801 = vmatprep.subr.mxu0 0.0
    %5802 = vmatpush2.msra.mxu0 0.0
    %5803 = vmatprep.subr.mxu0 0.0
    %5804 = vmatpush2.msra.mxu0 0.0
    %5805 = vmatprep.subr.mxu0 0.0
    %5806 = vmatpush2.msra.mxu0 0.0
    %5807 = vmatprep.subr.mxu0 0.0
    %5808 = vmatpush2.msra.mxu0 0.0
    %5809 = vmatprep.subr.mxu0 0.0
    %5810 = vmatpush2.msra.mxu0 0.0
    %5811 = vmatprep.subr.mxu0 0.0
    %5812 = vmatpush2.msra.mxu0 0.0
    %5813 = vmatprep.subr.mxu0 0.0
    %5814 = vmatpush2.msra.mxu0 0.0
    %5815 = vmatprep.subr.mxu0 0.0
    %5816 = vmatpush2.msra.mxu0 0.0
    %5817 = vmatprep.subr.mxu0 0.0
    %5818 = vmatpush2.msra.mxu0 0.0
    %5819 = vmatprep.mubr.f32.mxu0 0.0
    %5820 = vmatmul.mubr.f32.gmra.mxu0 %v5580
    %v5821 = vpop.f32.mrf.mxu0
    %v5822 = vadd.f32 %v5547, %v5821
    %v5823 = vpop.f32.mrf.mxu0
    %v5824 = vadd.f32 %v5547, %v5823
    %5825 = vmatprep.mubr.f32.mxu0 0.0
    %5826 = vmatmul.mubr.f32.gmra.mxu0 %v5583
    %v5827 = vpop.f32.mrf.mxu0
    %v5828 = vadd.f32 %v5552, %v5827
    %v5829 = vpop.f32.mrf.mxu0
    %v5830 = vadd.f32 %v5552, %v5829
    %5831 = vmatprep.mubr.f32.mxu0 0.0
    %5832 = vmatmul.mubr.f32.gmra.mxu0 %v5586
    %v5833 = vpop.f32.mrf.mxu0
    %v5834 = vadd.f32 %v5557, %v5833
    %v5835 = vpop.f32.mrf.mxu0
    %v5836 = vadd.f32 %v5557, %v5835
    %5837 = vmatprep.mubr.f32.mxu0 0.0
    %5838 = vmatmul.mubr.f32.gmra.mxu0 %v5589
    %v5839 = vpop.f32.mrf.mxu0
    %v5840 = vadd.f32 %v5562, %v5839
    %v5841 = vpop.f32.mrf.mxu0
    %v5842 = vadd.f32 %v5562, %v5841
    %5843 = vmatprep.mubr.f32.mxu0 0.0
    %5844 = vmatmul.mubr.f32.gmra.mxu0 %v5592
    %v5845 = vpop.f32.mrf.mxu0
    %v5846 = vadd.f32 %v5567, %v5845
    %v5847 = vpop.f32.mrf.mxu0
    %v5848 = vadd.f32 %v5567, %v5847
    %5849 = vmatprep.mubr.f32.mxu0 0.0
    %5850 = vmatmul.mubr.f32.gmra.mxu0 %v5595
    %v5851 = vpop.f32.mrf.mxu0
    %v5852 = vadd.f32 %v5572, %v5851
    %v5853 = vpop.f32.mrf.mxu0
    %v5854 = vadd.f32 %v5572, %v5853
    %5855 = vmatprep.mubr.f32.mxu0 0.0
    %5856 = vmatmul.mubr.f32.gmra.mxu0 %v5598
    %v5857 = vpop.f32.mrf.mxu0
    %v5858 = vadd.f32 %v5577, %v5857
    %v5859 = vpop.f32.mrf.mxu0
    %v5860 = vadd.f32 %v5577, %v5859
    %5861 = vdwg.mxu0
    %5862 = vmatprep.subr.mxu0 0.0
    %5863 = vmatpush1.msra.mxu0 0.0
    %5864 = vmatprep.subr.mxu0 0.0
    %5865 = vmatpush1.msra.mxu0 0.0
    %5866 = vmatprep.subr.mxu0 0.0
    %5867 = vmatpush1.msra.mxu0 0.0
    %5868 = vmatprep.subr.mxu0 0.0
    %5869 = vmatpush1.msra.mxu0 0.0
    %5870 = vmatprep.subr.mxu0 0.0
    %5871 = vmatpush1.msra.mxu0 0.0
    %5872 = vmatprep.subr.mxu0 0.0
    %5873 = vmatpush1.msra.mxu0 0.0
    %5874 = vmatprep.subr.mxu0 0.0
    %5875 = vmatpush1.msra.mxu0 0.0
    %5876 = vmatprep.subr.mxu0 0.0
    %5877 = vmatpush1.msra.mxu0 0.0
    %5878 = vmatprep.subr.mxu0 0.0
    %5879 = vmatpush1.msra.mxu0 0.0
    %5880 = vmatprep.subr.mxu0 %v5616
    %5881 = vmatpush1.msra.mxu0 %v5613
    %5882 = vmatprep.subr.mxu0 %v5501
    %5883 = vmatpush1.msra.mxu0 %v5500
    %5884 = vmatprep.subr.mxu0 %v5485
    %5885 = vmatpush1.msra.mxu0 %v5484
    %5886 = vmatprep.subr.mxu0 %v5469
    %5887 = vmatpush1.msra.mxu0 %v5468
    %5888 = vmatprep.subr.mxu0 %v5453
    %5889 = vmatpush1.msra.mxu0 %v5452
    %5890 = vmatprep.subr.mxu0 %v5437
    %5891 = vmatpush1.msra.mxu0 %v5436
    %5892 = vmatprep.subr.mxu0 %v5421
    %5893 = vmatpush1.msra.mxu0 %v5420
    %5894 = vmatprep.subr.mxu0 0.0
    %5895 = vmatpush2.msra.mxu0 0.0
    %5896 = vmatprep.subr.mxu0 0.0
    %5897 = vmatpush2.msra.mxu0 0.0
    %5898 = vmatprep.subr.mxu0 0.0
    %5899 = vmatpush2.msra.mxu0 0.0
    %5900 = vmatprep.subr.mxu0 0.0
    %5901 = vmatpush2.msra.mxu0 0.0
    %5902 = vmatprep.subr.mxu0 0.0
    %5903 = vmatpush2.msra.mxu0 0.0
    %5904 = vmatprep.subr.mxu0 0.0
    %5905 = vmatpush2.msra.mxu0 0.0
    %5906 = vmatprep.subr.mxu0 0.0
    %5907 = vmatpush2.msra.mxu0 0.0
    %5908 = vmatprep.subr.mxu0 0.0
    %5909 = vmatpush2.msra.mxu0 0.0
    %5910 = vmatprep.subr.mxu0 0.0
    %5911 = vmatpush2.msra.mxu0 0.0
    %5912 = vmatprep.subr.mxu0 0.0
    %5913 = vmatpush2.msra.mxu0 0.0
    %5914 = vmatprep.subr.mxu0 0.0
    %5915 = vmatpush2.msra.mxu0 0.0
    %5916 = vmatprep.subr.mxu0 0.0
    %5917 = vmatpush2.msra.mxu0 0.0
    %5918 = vmatprep.subr.mxu0 0.0
    %5919 = vmatpush2.msra.mxu0 0.0
    %5920 = vmatprep.subr.mxu0 0.0
    %5921 = vmatpush2.msra.mxu0 0.0
    %5922 = vmatprep.subr.mxu0 0.0
    %5923 = vmatpush2.msra.mxu0 0.0
    %5924 = vmatprep.subr.mxu0 0.0
    %5925 = vmatpush2.msra.mxu0 0.0
    %5926 = vmatprep.mubr.f32.mxu0 0.0
    %5927 = vmatmul.mubr.f32.gmra.mxu0 %v5580
    %v5928 = vpop.f32.mrf.mxu0
    %v5929 = vadd.f32 %v5547, %v5928
    %v5930 = vpop.f32.mrf.mxu0
    %v5931 = vadd.f32 %v5547, %v5930
    %5932 = vmatprep.mubr.f32.mxu0 0.0
    %5933 = vmatmul.mubr.f32.gmra.mxu0 %v5583
    %v5934 = vpop.f32.mrf.mxu0
    %v5935 = vadd.f32 %v5552, %v5934
    %v5936 = vpop.f32.mrf.mxu0
    %v5937 = vadd.f32 %v5552, %v5936
    %5938 = vmatprep.mubr.f32.mxu0 0.0
    %5939 = vmatmul.mubr.f32.gmra.mxu0 %v5586
    %v5940 = vpop.f32.mrf.mxu0
    %v5941 = vadd.f32 %v5557, %v5940
    %v5942 = vpop.f32.mrf.mxu0
    %v5943 = vadd.f32 %v5557, %v5942
    %5944 = vmatprep.mubr.f32.mxu0 0.0
    %5945 = vmatmul.mubr.f32.gmra.mxu0 %v5589
    %v5946 = vpop.f32.mrf.mxu0
    %v5947 = vadd.f32 %v5562, %v5946
    %v5948 = vpop.f32.mrf.mxu0
    %v5949 = vadd.f32 %v5562, %v5948
    %5950 = vmatprep.mubr.f32.mxu0 0.0
    %5951 = vmatmul.mubr.f32.gmra.mxu0 %v5592
    %v5952 = vpop.f32.mrf.mxu0
    %v5953 = vadd.f32 %v5567, %v5952
    %v5954 = vpop.f32.mrf.mxu0
    %v5955 = vadd.f32 %v5567, %v5954
    %5956 = vmatprep.mubr.f32.mxu0 0.0
    %5957 = vmatmul.mubr.f32.gmra.mxu0 %v5595
    %v5958 = vpop.f32.mrf.mxu0
    %v5959 = vadd.f32 %v5572, %v5958
    %v5960 = vpop.f32.mrf.mxu0
    %v5961 = vadd.f32 %v5572, %v5960
    %5962 = vmatprep.mubr.f32.mxu0 0.0
    %5963 = vmatmul.mubr.f32.gmra.mxu0 %v5598
    %v5964 = vpop.f32.mrf.mxu0
    %v5965 = vadd.f32 %v5577, %v5964
    %v5966 = vpop.f32.mrf.mxu0
    %v5967 = vadd.f32 %v5577, %v5966
    %5968 = vdwg.mxu0
    %5969 = vmatprep.subr.mxu0 0.0
    %5970 = vmatpush1.msra.mxu0 0.0
    %5971 = vmatprep.subr.mxu0 0.0
    %5972 = vmatpush1.msra.mxu0 0.0
    %5973 = vmatprep.subr.mxu0 0.0
    %5974 = vmatpush1.msra.mxu0 0.0
    %5975 = vmatprep.subr.mxu0 0.0
    %5976 = vmatpush1.msra.mxu0 0.0
    %5977 = vmatprep.subr.mxu0 0.0
    %5978 = vmatpush1.msra.mxu0 0.0
    %5979 = vmatprep.subr.mxu0 0.0
    %5980 = vmatpush1.msra.mxu0 0.0
    %5981 = vmatprep.subr.mxu0 0.0
    %5982 = vmatpush1.msra.mxu0 0.0
    %5983 = vmatprep.subr.mxu0 0.0
    %5984 = vmatpush1.msra.mxu0 0.0
    %5985 = vmatprep.subr.mxu0 0.0
    %5986 = vmatpush1.msra.mxu0 0.0
    %5987 = vmatprep.subr.mxu0 %v5622
    %5988 = vmatpush1.msra.mxu0 %v5619
    %5989 = vmatprep.subr.mxu0 %v5503
    %5990 = vmatpush1.msra.mxu0 %v5502
    %5991 = vmatprep.subr.mxu0 %v5487
    %5992 = vmatpush1.msra.mxu0 %v5486
    %5993 = vmatprep.subr.mxu0 %v5471
    %5994 = vmatpush1.msra.mxu0 %v5470
    %5995 = vmatprep.subr.mxu0 %v5455
    %5996 = vmatpush1.msra.mxu0 %v5454
    %5997 = vmatprep.subr.mxu0 %v5439
    %5998 = vmatpush1.msra.mxu0 %v5438
    %5999 = vmatprep.subr.mxu0 %v5423
    %6000 = vmatpush1.msra.mxu0 %v5422
    %6001 = vmatprep.subr.mxu0 0.0
    %6002 = vmatpush2.msra.mxu0 0.0
    %6003 = vmatprep.subr.mxu0 0.0
    %6004 = vmatpush2.msra.mxu0 0.0
    %6005 = vmatprep.subr.mxu0 0.0
    %6006 = vmatpush2.msra.mxu0 0.0
    %6007 = vmatprep.subr.mxu0 0.0
    %6008 = vmatpush2.msra.mxu0 0.0
    %6009 = vmatprep.subr.mxu0 0.0
    %6010 = vmatpush2.msra.mxu0 0.0
    %6011 = vmatprep.subr.mxu0 0.0
    %6012 = vmatpush2.msra.mxu0 0.0
    %6013 = vmatprep.subr.mxu0 0.0
    %6014 = vmatpush2.msra.mxu0 0.0
    %6015 = vmatprep.subr.mxu0 0.0
    %6016 = vmatpush2.msra.mxu0 0.0
    %6017 = vmatprep.subr.mxu0 0.0
    %6018 = vmatpush2.msra.mxu0 0.0
    %6019 = vmatprep.subr.mxu0 0.0
    %6020 = vmatpush2.msra.mxu0 0.0
    %6021 = vmatprep.subr.mxu0 0.0
    %6022 = vmatpush2.msra.mxu0 0.0
    %6023 = vmatprep.subr.mxu0 0.0
    %6024 = vmatpush2.msra.mxu0 0.0
    %6025 = vmatprep.subr.mxu0 0.0
    %6026 = vmatpush2.msra.mxu0 0.0
    %6027 = vmatprep.subr.mxu0 0.0
    %6028 = vmatpush2.msra.mxu0 0.0
    %6029 = vmatprep.subr.mxu0 0.0
    %6030 = vmatpush2.msra.mxu0 0.0
    %6031 = vmatprep.subr.mxu0 0.0
    %6032 = vmatpush2.msra.mxu0 0.0
    %6033 = vmatprep.mubr.f32.mxu0 0.0
    %6034 = vmatmul.mubr.f32.gmra.mxu0 %v5580
    %v6035 = vpop.f32.mrf.mxu0
    %v6036 = vadd.f32 %v5547, %v6035
    %v6037 = vpop.f32.mrf.mxu0
    %v6038 = vadd.f32 %v5547, %v6037
    %6039 = vmatprep.mubr.f32.mxu0 0.0
    %6040 = vmatmul.mubr.f32.gmra.mxu0 %v5583
    %v6041 = vpop.f32.mrf.mxu0
    %v6042 = vadd.f32 %v5552, %v6041
    %v6043 = vpop.f32.mrf.mxu0
    %v6044 = vadd.f32 %v5552, %v6043
    %6045 = vmatprep.mubr.f32.mxu0 0.0
    %6046 = vmatmul.mubr.f32.gmra.mxu0 %v5586
    %v6047 = vpop.f32.mrf.mxu0
    %v6048 = vadd.f32 %v5557, %v6047
    %v6049 = vpop.f32.mrf.mxu0
    %v6050 = vadd.f32 %v5557, %v6049
    %6051 = vmatprep.mubr.f32.mxu0 0.0
    %6052 = vmatmul.mubr.f32.gmra.mxu0 %v5589
    %v6053 = vpop.f32.mrf.mxu0
    %v6054 = vadd.f32 %v5562, %v6053
    %v6055 = vpop.f32.mrf.mxu0
    %v6056 = vadd.f32 %v5562, %v6055
    %6057 = vmatprep.mubr.f32.mxu0 0.0
    %6058 = vmatmul.mubr.f32.gmra.mxu0 %v5592
    %v6059 = vpop.f32.mrf.mxu0
    %v6060 = vadd.f32 %v5567, %v6059
    %v6061 = vpop.f32.mrf.mxu0
    %v6062 = vadd.f32 %v5567, %v6061
    %6063 = vmatprep.mubr.f32.mxu0 0.0
    %6064 = vmatmul.mubr.f32.gmra.mxu0 %v5595
    %v6065 = vpop.f32.mrf.mxu0
    %v6066 = vadd.f32 %v5572, %v6065
    %v6067 = vpop.f32.mrf.mxu0
    %v6068 = vadd.f32 %v5572, %v6067
    %6069 = vmatprep.mubr.f32.mxu0 0.0
    %6070 = vmatmul.mubr.f32.gmra.mxu0 %v5598
    %v6071 = vpop.f32.mrf.mxu0
    %v6072 = vadd.f32 %v5577, %v6071
    %v6073 = vpop.f32.mrf.mxu0
    %v6074 = vadd.f32 %v5577, %v6073
    %6075 = vdwg.mxu0
    %6076 = vmatprep.subr.mxu0 0.0
    %6077 = vmatpush1.msra.mxu0 0.0
    %6078 = vmatprep.subr.mxu0 0.0
    %6079 = vmatpush1.msra.mxu0 0.0
    %6080 = vmatprep.subr.mxu0 0.0
    %6081 = vmatpush1.msra.mxu0 0.0
    %6082 = vmatprep.subr.mxu0 0.0
    %6083 = vmatpush1.msra.mxu0 0.0
    %6084 = vmatprep.subr.mxu0 0.0
    %6085 = vmatpush1.msra.mxu0 0.0
    %6086 = vmatprep.subr.mxu0 0.0
    %6087 = vmatpush1.msra.mxu0 0.0
    %6088 = vmatprep.subr.mxu0 0.0
    %6089 = vmatpush1.msra.mxu0 0.0
    %6090 = vmatprep.subr.mxu0 0.0
    %6091 = vmatpush1.msra.mxu0 0.0
    %6092 = vmatprep.subr.mxu0 0.0
    %6093 = vmatpush1.msra.mxu0 0.0
    %6094 = vmatprep.subr.mxu0 %v5628
    %6095 = vmatpush1.msra.mxu0 %v5625
    %6096 = vmatprep.subr.mxu0 %v5505
    %6097 = vmatpush1.msra.mxu0 %v5504
    %6098 = vmatprep.subr.mxu0 %v5489
    %6099 = vmatpush1.msra.mxu0 %v5488
    %6100 = vmatprep.subr.mxu0 %v5473
    %6101 = vmatpush1.msra.mxu0 %v5472
    %6102 = vmatprep.subr.mxu0 %v5457
    %6103 = vmatpush1.msra.mxu0 %v5456
    %6104 = vmatprep.subr.mxu0 %v5441
    %6105 = vmatpush1.msra.mxu0 %v5440
    %6106 = vmatprep.subr.mxu0 %v5425
    %6107 = vmatpush1.msra.mxu0 %v5424
    %6108 = vmatprep.subr.mxu0 0.0
    %6109 = vmatpush2.msra.mxu0 0.0
    %6110 = vmatprep.subr.mxu0 0.0
    %6111 = vmatpush2.msra.mxu0 0.0
    %6112 = vmatprep.subr.mxu0 0.0
    %6113 = vmatpush2.msra.mxu0 0.0
    %6114 = vmatprep.subr.mxu0 0.0
    %6115 = vmatpush2.msra.mxu0 0.0
    %6116 = vmatprep.subr.mxu0 0.0
    %6117 = vmatpush2.msra.mxu0 0.0
    %6118 = vmatprep.subr.mxu0 0.0
    %6119 = vmatpush2.msra.mxu0 0.0
    %6120 = vmatprep.subr.mxu0 0.0
    %6121 = vmatpush2.msra.mxu0 0.0
    %6122 = vmatprep.subr.mxu0 0.0
    %6123 = vmatpush2.msra.mxu0 0.0
    %6124 = vmatprep.subr.mxu0 0.0
    %6125 = vmatpush2.msra.mxu0 0.0
    %6126 = vmatprep.subr.mxu0 0.0
    %6127 = vmatpush2.msra.mxu0 0.0
    %6128 = vmatprep.subr.mxu0 0.0
    %6129 = vmatpush2.msra.mxu0 0.0
    %6130 = vmatprep.subr.mxu0 0.0
    %6131 = vmatpush2.msra.mxu0 0.0
    %6132 = vmatprep.subr.mxu0 0.0
    %6133 = vmatpush2.msra.mxu0 0.0
    %6134 = vmatprep.subr.mxu0 0.0
    %6135 = vmatpush2.msra.mxu0 0.0
    %6136 = vmatprep.subr.mxu0 0.0
    %6137 = vmatpush2.msra.mxu0 0.0
    %6138 = vmatprep.subr.mxu0 0.0
    %6139 = vmatpush2.msra.mxu0 0.0
    %6140 = vmatprep.mubr.f32.mxu0 0.0
    %6141 = vmatmul.mubr.f32.gmra.mxu0 %v5580
    %v6142 = vpop.f32.mrf.mxu0
    %v6143 = vadd.f32 %v5547, %v6142
    %v6144 = vpop.f32.mrf.mxu0
    %v6145 = vadd.f32 %v5547, %v6144
    %6146 = vmatprep.mubr.f32.mxu0 0.0
    %6147 = vmatmul.mubr.f32.gmra.mxu0 %v5583
    %v6148 = vpop.f32.mrf.mxu0
    %v6149 = vadd.f32 %v5552, %v6148
    %v6150 = vpop.f32.mrf.mxu0
    %v6151 = vadd.f32 %v5552, %v6150
    %6152 = vmatprep.mubr.f32.mxu0 0.0
    %6153 = vmatmul.mubr.f32.gmra.mxu0 %v5586
    %v6154 = vpop.f32.mrf.mxu0
    %v6155 = vadd.f32 %v5557, %v6154
    %v6156 = vpop.f32.mrf.mxu0
    %v6157 = vadd.f32 %v5557, %v6156
    %6158 = vmatprep.mubr.f32.mxu0 0.0
    %6159 = vmatmul.mubr.f32.gmra.mxu0 %v5589
    %v6160 = vpop.f32.mrf.mxu0
    %v6161 = vadd.f32 %v5562, %v6160
    %v6162 = vpop.f32.mrf.mxu0
    %v6163 = vadd.f32 %v5562, %v6162
    %6164 = vmatprep.mubr.f32.mxu0 0.0
    %6165 = vmatmul.mubr.f32.gmra.mxu0 %v5592
    %v6166 = vpop.f32.mrf.mxu0
    %v6167 = vadd.f32 %v5567, %v6166
    %v6168 = vpop.f32.mrf.mxu0
    %v6169 = vadd.f32 %v5567, %v6168
    %6170 = vmatprep.mubr.f32.mxu0 0.0
    %6171 = vmatmul.mubr.f32.gmra.mxu0 %v5595
    %v6172 = vpop.f32.mrf.mxu0
    %v6173 = vadd.f32 %v5572, %v6172
    %v6174 = vpop.f32.mrf.mxu0
    %v6175 = vadd.f32 %v5572, %v6174
    %6176 = vmatprep.mubr.f32.mxu0 0.0
    %6177 = vmatmul.mubr.f32.gmra.mxu0 %v5598
    %v6178 = vpop.f32.mrf.mxu0
    %v6179 = vadd.f32 %v5577, %v6178
    %v6180 = vpop.f32.mrf.mxu0
    %v6181 = vadd.f32 %v5577, %v6180
    %6182 = vdwg.mxu0
    %6183 = vmatprep.subr.mxu0 0.0
    %6184 = vmatpush1.msra.mxu0 0.0
    %6185 = vmatprep.subr.mxu0 0.0
    %6186 = vmatpush1.msra.mxu0 0.0
    %6187 = vmatprep.subr.mxu0 0.0
    %6188 = vmatpush1.msra.mxu0 0.0
    %6189 = vmatprep.subr.mxu0 0.0
    %6190 = vmatpush1.msra.mxu0 0.0
    %6191 = vmatprep.subr.mxu0 0.0
    %6192 = vmatpush1.msra.mxu0 0.0
    %6193 = vmatprep.subr.mxu0 0.0
    %6194 = vmatpush1.msra.mxu0 0.0
    %6195 = vmatprep.subr.mxu0 0.0
    %6196 = vmatpush1.msra.mxu0 0.0
    %6197 = vmatprep.subr.mxu0 0.0
    %6198 = vmatpush1.msra.mxu0 0.0
    %6199 = vmatprep.subr.mxu0 0.0
    %6200 = vmatpush1.msra.mxu0 0.0
    %6201 = vmatprep.subr.mxu0 %v5634
    %6202 = vmatpush1.msra.mxu0 %v5631
    %6203 = vmatprep.subr.mxu0 %v5507
    %6204 = vmatpush1.msra.mxu0 %v5506
    %6205 = vmatprep.subr.mxu0 %v5491
    %6206 = vmatpush1.msra.mxu0 %v5490
    %6207 = vmatprep.subr.mxu0 %v5475
    %6208 = vmatpush1.msra.mxu0 %v5474
    %6209 = vmatprep.subr.mxu0 %v5459
    %6210 = vmatpush1.msra.mxu0 %v5458
    %6211 = vmatprep.subr.mxu0 %v5443
    %6212 = vmatpush1.msra.mxu0 %v5442
    %6213 = vmatprep.subr.mxu0 %v5427
    %6214 = vmatpush1.msra.mxu0 %v5426
    %6215 = vmatprep.subr.mxu0 0.0
    %6216 = vmatpush2.msra.mxu0 0.0
    %6217 = vmatprep.subr.mxu0 0.0
    %6218 = vmatpush2.msra.mxu0 0.0
    %6219 = vmatprep.subr.mxu0 0.0
    %6220 = vmatpush2.msra.mxu0 0.0
    %6221 = vmatprep.subr.mxu0 0.0
    %6222 = vmatpush2.msra.mxu0 0.0
    %6223 = vmatprep.subr.mxu0 0.0
    %6224 = vmatpush2.msra.mxu0 0.0
    %6225 = vmatprep.subr.mxu0 0.0
    %6226 = vmatpush2.msra.mxu0 0.0
    %6227 = vmatprep.subr.mxu0 0.0
    %6228 = vmatpush2.msra.mxu0 0.0
    %6229 = vmatprep.subr.mxu0 0.0
    %6230 = vmatpush2.msra.mxu0 0.0
    %6231 = vmatprep.subr.mxu0 0.0
    %6232 = vmatpush2.msra.mxu0 0.0
    %6233 = vmatprep.subr.mxu0 0.0
    %6234 = vmatpush2.msra.mxu0 0.0
    %6235 = vmatprep.subr.mxu0 0.0
    %6236 = vmatpush2.msra.mxu0 0.0
    %6237 = vmatprep.subr.mxu0 0.0
    %6238 = vmatpush2.msra.mxu0 0.0
    %6239 = vmatprep.subr.mxu0 0.0
    %6240 = vmatpush2.msra.mxu0 0.0
    %6241 = vmatprep.subr.mxu0 0.0
    %6242 = vmatpush2.msra.mxu0 0.0
    %6243 = vmatprep.subr.mxu0 0.0
    %6244 = vmatpush2.msra.mxu0 0.0
    %6245 = vmatprep.subr.mxu0 0.0
    %6246 = vmatpush2.msra.mxu0 0.0
    %6247 = vmatprep.mubr.f32.mxu0 0.0
    %6248 = vmatmul.mubr.f32.gmra.mxu0 %v5580
    %v6249 = vpop.f32.mrf.mxu0
    %v6250 = vadd.f32 %v5547, %v6249
    %v6251 = vpop.f32.mrf.mxu0
    %v6252 = vadd.f32 %v5547, %v6251
    %6253 = vmatprep.mubr.f32.mxu0 0.0
    %6254 = vmatmul.mubr.f32.gmra.mxu0 %v5583
    %v6255 = vpop.f32.mrf.mxu0
    %v6256 = vadd.f32 %v5552, %v6255
    %v6257 = vpop.f32.mrf.mxu0
    %v6258 = vadd.f32 %v5552, %v6257
    %6259 = vmatprep.mubr.f32.mxu0 0.0
    %6260 = vmatmul.mubr.f32.gmra.mxu0 %v5586
    %v6261 = vpop.f32.mrf.mxu0
    %v6262 = vadd.f32 %v5557, %v6261
    %v6263 = vpop.f32.mrf.mxu0
    %v6264 = vadd.f32 %v5557, %v6263
    %6265 = vmatprep.mubr.f32.mxu0 0.0
    %6266 = vmatmul.mubr.f32.gmra.mxu0 %v5589
    %v6267 = vpop.f32.mrf.mxu0
    %v6268 = vadd.f32 %v5562, %v6267
    %v6269 = vpop.f32.mrf.mxu0
    %v6270 = vadd.f32 %v5562, %v6269
    %6271 = vmatprep.mubr.f32.mxu0 0.0
    %6272 = vmatmul.mubr.f32.gmra.mxu0 %v5592
    %v6273 = vpop.f32.mrf.mxu0
    %v6274 = vadd.f32 %v5567, %v6273
    %v6275 = vpop.f32.mrf.mxu0
    %v6276 = vadd.f32 %v5567, %v6275
    %6277 = vmatprep.mubr.f32.mxu0 0.0
    %6278 = vmatmul.mubr.f32.gmra.mxu0 %v5595
    %v6279 = vpop.f32.mrf.mxu0
    %v6280 = vadd.f32 %v5572, %v6279
    %v6281 = vpop.f32.mrf.mxu0
    %v6282 = vadd.f32 %v5572, %v6281
    %6283 = vmatprep.mubr.f32.mxu0 0.0
    %6284 = vmatmul.mubr.f32.gmra.mxu0 %v5598
    %v6285 = vpop.f32.mrf.mxu0
    %v6286 = vadd.f32 %v5577, %v6285
    %v6287 = vpop.f32.mrf.mxu0
    %v6288 = vadd.f32 %v5577, %v6287
    %6289 = vdwg.mxu0
    %6290 = vmatprep.subr.mxu0 0.0
    %6291 = vmatpush1.msra.mxu0 0.0
    %6292 = vmatprep.subr.mxu0 0.0
    %6293 = vmatpush1.msra.mxu0 0.0
    %6294 = vmatprep.subr.mxu0 0.0
    %6295 = vmatpush1.msra.mxu0 0.0
    %6296 = vmatprep.subr.mxu0 0.0
    %6297 = vmatpush1.msra.mxu0 0.0
    %6298 = vmatprep.subr.mxu0 0.0
    %6299 = vmatpush1.msra.mxu0 0.0
    %6300 = vmatprep.subr.mxu0 0.0
    %6301 = vmatpush1.msra.mxu0 0.0
    %6302 = vmatprep.subr.mxu0 0.0
    %6303 = vmatpush1.msra.mxu0 0.0
    %6304 = vmatprep.subr.mxu0 0.0
    %6305 = vmatpush1.msra.mxu0 0.0
    %6306 = vmatprep.subr.mxu0 0.0
    %6307 = vmatpush1.msra.mxu0 0.0
    %6308 = vmatprep.subr.mxu0 %v5640
    %6309 = vmatpush1.msra.mxu0 %v5637
    %6310 = vmatprep.subr.mxu0 %v5509
    %6311 = vmatpush1.msra.mxu0 %v5508
    %6312 = vmatprep.subr.mxu0 %v5493
    %6313 = vmatpush1.msra.mxu0 %v5492
    %6314 = vmatprep.subr.mxu0 %v5477
    %6315 = vmatpush1.msra.mxu0 %v5476
    %6316 = vmatprep.subr.mxu0 %v5461
    %6317 = vmatpush1.msra.mxu0 %v5460
    %6318 = vmatprep.subr.mxu0 %v5445
    %6319 = vmatpush1.msra.mxu0 %v5444
    %6320 = vmatprep.subr.mxu0 %v5429
    %6321 = vmatpush1.msra.mxu0 %v5428
    %6322 = vmatprep.subr.mxu0 0.0
    %6323 = vmatpush2.msra.mxu0 0.0
    %6324 = vmatprep.subr.mxu0 0.0
    %6325 = vmatpush2.msra.mxu0 0.0
    %6326 = vmatprep.subr.mxu0 0.0
    %6327 = vmatpush2.msra.mxu0 0.0
    %6328 = vmatprep.subr.mxu0 0.0
    %6329 = vmatpush2.msra.mxu0 0.0
    %6330 = vmatprep.subr.mxu0 0.0
    %6331 = vmatpush2.msra.mxu0 0.0
    %6332 = vmatprep.subr.mxu0 0.0
    %6333 = vmatpush2.msra.mxu0 0.0
    %6334 = vmatprep.subr.mxu0 0.0
    %6335 = vmatpush2.msra.mxu0 0.0
    %6336 = vmatprep.subr.mxu0 0.0
    %6337 = vmatpush2.msra.mxu0 0.0
    %6338 = vmatprep.subr.mxu0 0.0
    %6339 = vmatpush2.msra.mxu0 0.0
    %6340 = vmatprep.subr.mxu0 0.0
    %6341 = vmatpush2.msra.mxu0 0.0
    %6342 = vmatprep.subr.mxu0 0.0
    %6343 = vmatpush2.msra.mxu0 0.0
    %6344 = vmatprep.subr.mxu0 0.0
    %6345 = vmatpush2.msra.mxu0 0.0
    %6346 = vmatprep.subr.mxu0 0.0
    %6347 = vmatpush2.msra.mxu0 0.0
    %6348 = vmatprep.subr.mxu0 0.0
    %6349 = vmatpush2.msra.mxu0 0.0
    %6350 = vmatprep.subr.mxu0 0.0
    %6351 = vmatpush2.msra.mxu0 0.0
    %6352 = vmatprep.subr.mxu0 0.0
    %6353 = vmatpush2.msra.mxu0 0.0
    %6354 = vmatprep.mubr.f32.mxu0 0.0
    %6355 = vmatmul.mubr.f32.gmra.mxu0 %v5580
    %v6356 = vpop.f32.mrf.mxu0
    %v6357 = vadd.f32 %v5547, %v6356
    %v6358 = vpop.f32.mrf.mxu0
    %v6359 = vadd.f32 %v5547, %v6358
    %6360 = vmatprep.mubr.f32.mxu0 0.0
    %6361 = vmatmul.mubr.f32.gmra.mxu0 %v5583
    %v6362 = vpop.f32.mrf.mxu0
    %v6363 = vadd.f32 %v5552, %v6362
    %v6364 = vpop.f32.mrf.mxu0
    %v6365 = vadd.f32 %v5552, %v6364
    %6366 = vmatprep.mubr.f32.mxu0 0.0
    %6367 = vmatmul.mubr.f32.gmra.mxu0 %v5586
    %v6368 = vpop.f32.mrf.mxu0
    %v6369 = vadd.f32 %v5557, %v6368
    %v6370 = vpop.f32.mrf.mxu0
    %v6371 = vadd.f32 %v5557, %v6370
    %6372 = vmatprep.mubr.f32.mxu0 0.0
    %6373 = vmatmul.mubr.f32.gmra.mxu0 %v5589
    %v6374 = vpop.f32.mrf.mxu0
    %v6375 = vadd.f32 %v5562, %v6374
    %v6376 = vpop.f32.mrf.mxu0
    %v6377 = vadd.f32 %v5562, %v6376
    %6378 = vmatprep.mubr.f32.mxu0 0.0
    %6379 = vmatmul.mubr.f32.gmra.mxu0 %v5592
    %v6380 = vpop.f32.mrf.mxu0
    %v6381 = vadd.f32 %v5567, %v6380
    %v6382 = vpop.f32.mrf.mxu0
    %v6383 = vadd.f32 %v5567, %v6382
    %6384 = vmatprep.mubr.f32.mxu0 0.0
    %6385 = vmatmul.mubr.f32.gmra.mxu0 %v5595
    %v6386 = vpop.f32.mrf.mxu0
    %v6387 = vadd.f32 %v5572, %v6386
    %v6388 = vpop.f32.mrf.mxu0
    %v6389 = vadd.f32 %v5572, %v6388
    %6390 = vmatprep.mubr.f32.mxu0 0.0
    %6391 = vmatmul.mubr.f32.gmra.mxu0 %v5598
    %v6392 = vpop.f32.mrf.mxu0
    %v6393 = vadd.f32 %v5577, %v6392
    %v6394 = vpop.f32.mrf.mxu0
    %v6395 = vadd.f32 %v5577, %v6394
    %6396 = vdwg.mxu0
    %6397 = vmatprep.subr.mxu0 0.0
    %6398 = vmatpush1.msra.mxu0 0.0
    %6399 = vmatprep.subr.mxu0 0.0
    %6400 = vmatpush1.msra.mxu0 0.0
    %6401 = vmatprep.subr.mxu0 0.0
    %6402 = vmatpush1.msra.mxu0 0.0
    %6403 = vmatprep.subr.mxu0 0.0
    %6404 = vmatpush1.msra.mxu0 0.0
    %6405 = vmatprep.subr.mxu0 0.0
    %6406 = vmatpush1.msra.mxu0 0.0
    %6407 = vmatprep.subr.mxu0 0.0
    %6408 = vmatpush1.msra.mxu0 0.0
    %6409 = vmatprep.subr.mxu0 0.0
    %6410 = vmatpush1.msra.mxu0 0.0
    %6411 = vmatprep.subr.mxu0 0.0
    %6412 = vmatpush1.msra.mxu0 0.0
    %6413 = vmatprep.subr.mxu0 0.0
    %6414 = vmatpush1.msra.mxu0 0.0
    %6415 = vmatprep.subr.mxu0 %v5646
    %6416 = vmatpush1.msra.mxu0 %v5643
    %6417 = vmatprep.subr.mxu0 %v5511
    %6418 = vmatpush1.msra.mxu0 %v5510
    %6419 = vmatprep.subr.mxu0 %v5495
    %6420 = vmatpush1.msra.mxu0 %v5494
    %6421 = vmatprep.subr.mxu0 %v5479
    %6422 = vmatpush1.msra.mxu0 %v5478
    %6423 = vmatprep.subr.mxu0 %v5463
    %6424 = vmatpush1.msra.mxu0 %v5462
    %6425 = vmatprep.subr.mxu0 %v5447
    %6426 = vmatpush1.msra.mxu0 %v5446
    %6427 = vmatprep.subr.mxu0 %v5431
    %6428 = vmatpush1.msra.mxu0 %v5430
    %6429 = vmatprep.subr.mxu0 0.0
    %6430 = vmatpush2.msra.mxu0 0.0
    %6431 = vmatprep.subr.mxu0 0.0
    %6432 = vmatpush2.msra.mxu0 0.0
    %6433 = vmatprep.subr.mxu0 0.0
    %6434 = vmatpush2.msra.mxu0 0.0
    %6435 = vmatprep.subr.mxu0 0.0
    %6436 = vmatpush2.msra.mxu0 0.0
    %6437 = vmatprep.subr.mxu0 0.0
    %6438 = vmatpush2.msra.mxu0 0.0
    %6439 = vmatprep.subr.mxu0 0.0
    %6440 = vmatpush2.msra.mxu0 0.0
    %6441 = vmatprep.subr.mxu0 0.0
    %6442 = vmatpush2.msra.mxu0 0.0
    %6443 = vmatprep.subr.mxu0 0.0
    %6444 = vmatpush2.msra.mxu0 0.0
    %6445 = vmatprep.subr.mxu0 0.0
    %6446 = vmatpush2.msra.mxu0 0.0
    %6447 = vmatprep.subr.mxu0 0.0
    %6448 = vmatpush2.msra.mxu0 0.0
    %6449 = vmatprep.subr.mxu0 0.0
    %6450 = vmatpush2.msra.mxu0 0.0
    %6451 = vmatprep.subr.mxu0 0.0
    %6452 = vmatpush2.msra.mxu0 0.0
    %6453 = vmatprep.subr.mxu0 0.0
    %6454 = vmatpush2.msra.mxu0 0.0
    %6455 = vmatprep.subr.mxu0 0.0
    %6456 = vmatpush2.msra.mxu0 0.0
    %6457 = vmatprep.subr.mxu0 0.0
    %6458 = vmatpush2.msra.mxu0 0.0
    %6459 = vmatprep.subr.mxu0 0.0
    %6460 = vmatpush2.msra.mxu0 0.0
    %6461 = vmatprep.mubr.f32.mxu0 0.0
    %6462 = vmatmul.mubr.f32.gmra.mxu0 %v5580
    %v6463 = vpop.f32.mrf.mxu0
    %v6464 = vadd.f32 %v5547, %v6463
    %v6465 = vpop.f32.mrf.mxu0
    %v6466 = vadd.f32 %v5547, %v6465
    %6467 = vmatprep.mubr.f32.mxu0 0.0
    %6468 = vmatmul.mubr.f32.gmra.mxu0 %v5583
    %v6469 = vpop.f32.mrf.mxu0
    %v6470 = vadd.f32 %v5552, %v6469
    %v6471 = vpop.f32.mrf.mxu0
    %v6472 = vadd.f32 %v5552, %v6471
    %6473 = vmatprep.mubr.f32.mxu0 0.0
    %6474 = vmatmul.mubr.f32.gmra.mxu0 %v5586
    %v6475 = vpop.f32.mrf.mxu0
    %v6476 = vadd.f32 %v5557, %v6475
    %v6477 = vpop.f32.mrf.mxu0
    %v6478 = vadd.f32 %v5557, %v6477
    %6479 = vmatprep.mubr.f32.mxu0 0.0
    %6480 = vmatmul.mubr.f32.gmra.mxu0 %v5589
    %v6481 = vpop.f32.mrf.mxu0
    %v6482 = vadd.f32 %v5562, %v6481
    %v6483 = vpop.f32.mrf.mxu0
    %v6484 = vadd.f32 %v5562, %v6483
    %6485 = vmatprep.mubr.f32.mxu0 0.0
    %6486 = vmatmul.mubr.f32.gmra.mxu0 %v5592
    %v6487 = vpop.f32.mrf.mxu0
    %v6488 = vadd.f32 %v5567, %v6487
    %v6489 = vpop.f32.mrf.mxu0
    %v6490 = vadd.f32 %v5567, %v6489
    %6491 = vmatprep.mubr.f32.mxu0 0.0
    %6492 = vmatmul.mubr.f32.gmra.mxu0 %v5595
    %v6493 = vpop.f32.mrf.mxu0
    %v6494 = vadd.f32 %v5572, %v6493
    %v6495 = vpop.f32.mrf.mxu0
    %v6496 = vadd.f32 %v5572, %v6495
    %6497 = vmatprep.mubr.f32.mxu0 0.0
    %6498 = vmatmul.mubr.f32.gmra.mxu0 %v5598
    %v6499 = vpop.f32.mrf.mxu0
    %v6500 = vadd.f32 %v5577, %v6499
    %v6501 = vpop.f32.mrf.mxu0
    %v6502 = vadd.f32 %v5577, %v6501
    %6503 = vdwg.mxu0
    %v6504 = vtanh.pop %v5715
    %v6505 = vtanh.pop %v5717
    %v6506 = vtanh.pop %v5822
    %v6507 = vtanh.pop %v5824
    %v6508 = vtanh.pop %v5929
    %v6509 = vtanh.pop %v5931
    %v6510 = vtanh.pop %v6036
    %v6511 = vtanh.pop %v6038
    %v6512 = vtanh.pop %v6143
    %v6513 = vtanh.pop %v6145
    %v6514 = vtanh.pop %v6250
    %v6515 = vtanh.pop %v6252
    %v6516 = vtanh.pop %v6357
    %v6517 = vtanh.pop %v6359
    %v6518 = vtanh.pop %v6464
    %v6519 = vtanh.pop %v6466
    %v6520 = vtanh.pop %v5721
    %v6521 = vtanh.pop %v5723
    %v6522 = vtanh.pop %v5828
    %v6523 = vtanh.pop %v5830
    %v6524 = vtanh.pop %v5935
    %v6525 = vtanh.pop %v5937
    %v6526 = vtanh.pop %v6042
    %v6527 = vtanh.pop %v6044
    %v6528 = vtanh.pop %v6149
    %v6529 = vtanh.pop %v6151
    %v6530 = vtanh.pop %v6256
    %v6531 = vtanh.pop %v6258
    %v6532 = vtanh.pop %v6363
    %v6533 = vtanh.pop %v6365
    %v6534 = vtanh.pop %v6470
    %v6535 = vtanh.pop %v6472
    %v6536 = vtanh.pop %v5727
    %v6537 = vtanh.pop %v5729
    %v6538 = vtanh.pop %v5834
    %v6539 = vtanh.pop %v5836
    %v6540 = vtanh.pop %v5941
    %v6541 = vtanh.pop %v5943
    %v6542 = vtanh.pop %v6048
    %v6543 = vtanh.pop %v6050
    %v6544 = vtanh.pop %v6155
    %v6545 = vtanh.pop %v6157
    %v6546 = vtanh.pop %v6262
    %v6547 = vtanh.pop %v6264
    %v6548 = vtanh.pop %v6369
    %v6549 = vtanh.pop %v6371
    %v6550 = vtanh.pop %v6476
    %v6551 = vtanh.pop %v6478
    %v6552 = vtanh.pop %v5733
    %v6553 = vtanh.pop %v5735
    %v6554 = vtanh.pop %v5840
    %v6555 = vtanh.pop %v5842
    %v6556 = vtanh.pop %v5947
    %v6557 = vtanh.pop %v5949
    %v6558 = vtanh.pop %v6054
    %v6559 = vtanh.pop %v6056
    %v6560 = vtanh.pop %v6161
    %v6561 = vtanh.pop %v6163
    %v6562 = vtanh.pop %v6268
    %v6563 = vtanh.pop %v6270
    %v6564 = vtanh.pop %v6375
    %v6565 = vtanh.pop %v6377
    %v6566 = vtanh.pop %v6482
    %v6567 = vtanh.pop %v6484
    %v6568 = vtanh.pop %v5739
    %v6569 = vtanh.pop %v5741
    %v6570 = vtanh.pop %v5846
    %v6571 = vtanh.pop %v5848
    %v6572 = vtanh.pop %v5953
    %v6573 = vtanh.pop %v5955
    %v6574 = vtanh.pop %v6060
    %v6575 = vtanh.pop %v6062
    %v6576 = vtanh.pop %v6167
    %v6577 = vtanh.pop %v6169
    %v6578 = vtanh.pop %v6274
    %v6579 = vtanh.pop %v6276
    %v6580 = vtanh.pop %v6381
    %v6581 = vtanh.pop %v6383
    %v6582 = vtanh.pop %v6488
    %v6583 = vtanh.pop %v6490
    %v6584 = vtanh.pop %v5745
    %v6585 = vtanh.pop %v5747
    %v6586 = vtanh.pop %v5852
    %v6587 = vtanh.pop %v5854
    %v6588 = vtanh.pop %v5959
    %v6589 = vtanh.pop %v5961
    %v6590 = vtanh.pop %v6066
    %v6591 = vtanh.pop %v6068
    %v6592 = vtanh.pop %v6173
    %v6593 = vtanh.pop %v6175
    %v6594 = vtanh.pop %v6280
    %v6595 = vtanh.pop %v6282
    %v6596 = vtanh.pop %v6387
    %v6597 = vtanh.pop %v6389
    %v6598 = vtanh.pop %v6494
    %v6599 = vtanh.pop %v6496
    %v6600 = vtanh.pop %v5751
    %v6601 = vtanh.pop %v5753
    %v6602 = vtanh.pop %v5858
    %v6603 = vtanh.pop %v5860
    %v6604 = vtanh.pop %v5965
    %v6605 = vtanh.pop %v5967
    %v6606 = vtanh.pop %v6072
    %v6607 = vtanh.pop %v6074
    %v6608 = vtanh.pop %v6179
    %v6609 = vtanh.pop %v6181
    %v6610 = vtanh.pop %v6286
    %v6611 = vtanh.pop %v6288
    %v6612 = vtanh.pop %v6393
    %v6613 = vtanh.pop %v6395
    %v6614 = vtanh.pop %v6500
    %v6615 = vtanh.pop %v6502
    %s6616 = scalar_lea.vmem %s3, 280
    %v6617 = vld [vmem:[%s6616] sm:$0xff]
    %v6618 = vld [vmem:[%s6616 + $0x8] sm:$0xff]
    %v6619 = vld [vmem:[%s6616 + $0x10] sm:$0xff]
    %v6620 = vld [vmem:[%s6616 + $0x18] sm:$0xff]
    %v6621 = vld [vmem:[%s6616 + $0x20] sm:$0xff]
    %v6622 = vld [vmem:[%s6616 + $0x28] sm:$0xff]
    %v6623 = vld [vmem:[%s6616 + $0x30] sm:$0x3]
    %s6624 = scalar_lea.vmem %s4, 280
    %v6625 = vld [vmem:[%s6624] sm:$0xff]
    %v6626 = vld [vmem:[%s6624 + $0x8] sm:$0xff]
    %v6627 = vld [vmem:[%s6624 + $0x10] sm:$0xff]
    %v6628 = vld [vmem:[%s6624 + $0x18] sm:$0xff]
    %v6629 = vld [vmem:[%s6624 + $0x20] sm:$0xff]
    %v6630 = vld [vmem:[%s6624 + $0x28] sm:$0xff]
    %v6631 = vld [vmem:[%s6624 + $0x30] sm:$0x3]
    %6633 = vset.pattern.permute.xlu0 0
    %6634 = vperm.xlu0 %6633, %v6625
    %v6635 = vpop.permute.xlu0 %6634
    %6638 = vset.pattern.permute.xlu0 0
    %6639 = vperm.xlu0 %6638, %v6626
    %v6640 = vpop.permute.xlu0 %6639
    %6643 = vset.pattern.permute.xlu0 0
    %6644 = vperm.xlu0 %6643, %v6627
    %v6645 = vpop.permute.xlu0 %6644
    %6648 = vset.pattern.permute.xlu0 0
    %6649 = vperm.xlu0 %6648, %v6628
    %v6650 = vpop.permute.xlu0 %6649
    %6653 = vset.pattern.permute.xlu0 0
    %6654 = vperm.xlu0 %6653, %v6629
    %v6655 = vpop.permute.xlu0 %6654
    %6658 = vset.pattern.permute.xlu0 0
    %6659 = vperm.xlu0 %6658, %v6630
    %v6660 = vpop.permute.xlu0 %6659
    %6663 = vset.pattern.permute.xlu0 0
    %6664 = vperm.xlu0 %6663, %v6631
    %v6665 = vpop.permute.xlu0 %6664
    %v6668 = vsel %vm1226, %v6617, 0
    %v6671 = vsel %vm1226, %v6618, 0
    %v6674 = vsel %vm1226, %v6619, 0
    %v6677 = vsel %vm1226, %v6620, 0
    %v6680 = vsel %vm1226, %v6621, 0
    %v6683 = vsel %vm1226, %v6622, 0
    %v6686 = vsel %vm1226, %v6623, 0
    %v6689 = vsel %vm176, %v6600, 0
    %v6692 = vsel %vm176, %v6601, 0
    %v6695 = vsel %vm176, %v6602, 0
    %v6698 = vsel %vm176, %v6603, 0
    %v6701 = vsel %vm176, %v6604, 0
    %v6704 = vsel %vm176, %v6605, 0
    %v6707 = vsel %vm176, %v6606, 0
    %v6710 = vsel %vm176, %v6607, 0
    %v6713 = vsel %vm176, %v6608, 0
    %v6716 = vsel %vm176, %v6609, 0
    %v6719 = vsel %vm176, %v6610, 0
    %v6722 = vsel %vm176, %v6611, 0
    %v6725 = vsel %vm176, %v6612, 0
    %v6728 = vsel %vm176, %v6613, 0
    %v6731 = vsel %vm176, %v6614, 0
    %v6734 = vsel %vm176, %v6615, 0
    %6736 = vmatprep.subr.mxu0 0.0
    %6737 = vmatpush1.msra.mxu0 0.0
    %6738 = vmatprep.subr.mxu0 0.0
    %6739 = vmatpush1.msra.mxu0 0.0
    %6740 = vmatprep.subr.mxu0 0.0
    %6741 = vmatpush1.msra.mxu0 0.0
    %6742 = vmatprep.subr.mxu0 0.0
    %6743 = vmatpush1.msra.mxu0 0.0
    %6744 = vmatprep.subr.mxu0 0.0
    %6745 = vmatpush1.msra.mxu0 0.0
    %6746 = vmatprep.subr.mxu0 0.0
    %6747 = vmatpush1.msra.mxu0 0.0
    %6748 = vmatprep.subr.mxu0 0.0
    %6749 = vmatpush1.msra.mxu0 0.0
    %6750 = vmatprep.subr.mxu0 0.0
    %6751 = vmatpush1.msra.mxu0 0.0
    %6752 = vmatprep.subr.mxu0 0.0
    %6753 = vmatpush1.msra.mxu0 0.0
    %6754 = vmatprep.subr.mxu0 %v6692
    %6755 = vmatpush1.msra.mxu0 %v6689
    %6756 = vmatprep.subr.mxu0 %v6585
    %6757 = vmatpush1.msra.mxu0 %v6584
    %6758 = vmatprep.subr.mxu0 %v6569
    %6759 = vmatpush1.msra.mxu0 %v6568
    %6760 = vmatprep.subr.mxu0 %v6553
    %6761 = vmatpush1.msra.mxu0 %v6552
    %6762 = vmatprep.subr.mxu0 %v6537
    %6763 = vmatpush1.msra.mxu0 %v6536
    %6764 = vmatprep.subr.mxu0 %v6521
    %6765 = vmatpush1.msra.mxu0 %v6520
    %6766 = vmatprep.subr.mxu0 %v6505
    %6767 = vmatpush1.msra.mxu0 %v6504
    %6768 = vmatprep.subr.mxu0 0.0
    %6769 = vmatpush2.msra.mxu0 0.0
    %6770 = vmatprep.subr.mxu0 0.0
    %6771 = vmatpush2.msra.mxu0 0.0
    %6772 = vmatprep.subr.mxu0 0.0
    %6773 = vmatpush2.msra.mxu0 0.0
    %6774 = vmatprep.subr.mxu0 0.0
    %6775 = vmatpush2.msra.mxu0 0.0
    %6776 = vmatprep.subr.mxu0 0.0
    %6777 = vmatpush2.msra.mxu0 0.0
    %6778 = vmatprep.subr.mxu0 0.0
    %6779 = vmatpush2.msra.mxu0 0.0
    %6780 = vmatprep.subr.mxu0 0.0
    %6781 = vmatpush2.msra.mxu0 0.0
    %6782 = vmatprep.subr.mxu0 0.0
    %6783 = vmatpush2.msra.mxu0 0.0
    %6784 = vmatprep.subr.mxu0 0.0
    %6785 = vmatpush2.msra.mxu0 0.0
    %6786 = vmatprep.subr.mxu0 0.0
    %6787 = vmatpush2.msra.mxu0 0.0
    %6788 = vmatprep.subr.mxu0 0.0
    %6789 = vmatpush2.msra.mxu0 0.0
    %6790 = vmatprep.subr.mxu0 0.0
    %6791 = vmatpush2.msra.mxu0 0.0
    %6792 = vmatprep.subr.mxu0 0.0
    %6793 = vmatpush2.msra.mxu0 0.0
    %6794 = vmatprep.subr.mxu0 0.0
    %6795 = vmatpush2.msra.mxu0 0.0
    %6796 = vmatprep.subr.mxu0 0.0
    %6797 = vmatpush2.msra.mxu0 0.0
    %6798 = vmatprep.subr.mxu0 0.0
    %6799 = vmatpush2.msra.mxu0 0.0
    %6800 = vmatprep.mubr.f32.mxu0 0.0
    %6801 = vmatmul.mubr.f32.gmra.mxu0 %v6668
    %v6802 = vpop.f32.mrf.mxu0
    %v6803 = vadd.f32 %v6635, %v6802
    %v6804 = vpop.f32.mrf.mxu0
    %v6805 = vadd.f32 %v6635, %v6804
    %6806 = vmatprep.mubr.f32.mxu0 0.0
    %6807 = vmatmul.mubr.f32.gmra.mxu0 %v6671
    %v6808 = vpop.f32.mrf.mxu0
    %v6809 = vadd.f32 %v6640, %v6808
    %v6810 = vpop.f32.mrf.mxu0
    %v6811 = vadd.f32 %v6640, %v6810
    %6812 = vmatprep.mubr.f32.mxu0 0.0
    %6813 = vmatmul.mubr.f32.gmra.mxu0 %v6674
    %v6814 = vpop.f32.mrf.mxu0
    %v6815 = vadd.f32 %v6645, %v6814
    %v6816 = vpop.f32.mrf.mxu0
    %v6817 = vadd.f32 %v6645, %v6816
    %6818 = vmatprep.mubr.f32.mxu0 0.0
    %6819 = vmatmul.mubr.f32.gmra.mxu0 %v6677
    %v6820 = vpop.f32.mrf.mxu0
    %v6821 = vadd.f32 %v6650, %v6820
    %v6822 = vpop.f32.mrf.mxu0
    %v6823 = vadd.f32 %v6650, %v6822
    %6824 = vmatprep.mubr.f32.mxu0 0.0
    %6825 = vmatmul.mubr.f32.gmra.mxu0 %v6680
    %v6826 = vpop.f32.mrf.mxu0
    %v6827 = vadd.f32 %v6655, %v6826
    %v6828 = vpop.f32.mrf.mxu0
    %v6829 = vadd.f32 %v6655, %v6828
    %6830 = vmatprep.mubr.f32.mxu0 0.0
    %6831 = vmatmul.mubr.f32.gmra.mxu0 %v6683
    %v6832 = vpop.f32.mrf.mxu0
    %v6833 = vadd.f32 %v6660, %v6832
    %v6834 = vpop.f32.mrf.mxu0
    %v6835 = vadd.f32 %v6660, %v6834
    %6836 = vmatprep.mubr.f32.mxu0 0.0
    %6837 = vmatmul.mubr.f32.gmra.mxu0 %v6686
    %v6838 = vpop.f32.mrf.mxu0
    %v6839 = vadd.f32 %v6665, %v6838
    %v6840 = vpop.f32.mrf.mxu0
    %v6841 = vadd.f32 %v6665, %v6840
    %6842 = vdwg.mxu0
    %6843 = vmatprep.subr.mxu0 0.0
    %6844 = vmatpush1.msra.mxu0 0.0
    %6845 = vmatprep.subr.mxu0 0.0
    %6846 = vmatpush1.msra.mxu0 0.0
    %6847 = vmatprep.subr.mxu0 0.0
    %6848 = vmatpush1.msra.mxu0 0.0
    %6849 = vmatprep.subr.mxu0 0.0
    %6850 = vmatpush1.msra.mxu0 0.0
    %6851 = vmatprep.subr.mxu0 0.0
    %6852 = vmatpush1.msra.mxu0 0.0
    %6853 = vmatprep.subr.mxu0 0.0
    %6854 = vmatpush1.msra.mxu0 0.0
    %6855 = vmatprep.subr.mxu0 0.0
    %6856 = vmatpush1.msra.mxu0 0.0
    %6857 = vmatprep.subr.mxu0 0.0
    %6858 = vmatpush1.msra.mxu0 0.0
    %6859 = vmatprep.subr.mxu0 0.0
    %6860 = vmatpush1.msra.mxu0 0.0
    %6861 = vmatprep.subr.mxu0 %v6698
    %6862 = vmatpush1.msra.mxu0 %v6695
    %6863 = vmatprep.subr.mxu0 %v6587
    %6864 = vmatpush1.msra.mxu0 %v6586
    %6865 = vmatprep.subr.mxu0 %v6571
    %6866 = vmatpush1.msra.mxu0 %v6570
    %6867 = vmatprep.subr.mxu0 %v6555
    %6868 = vmatpush1.msra.mxu0 %v6554
    %6869 = vmatprep.subr.mxu0 %v6539
    %6870 = vmatpush1.msra.mxu0 %v6538
    %6871 = vmatprep.subr.mxu0 %v6523
    %6872 = vmatpush1.msra.mxu0 %v6522
    %6873 = vmatprep.subr.mxu0 %v6507
    %6874 = vmatpush1.msra.mxu0 %v6506
    %6875 = vmatprep.subr.mxu0 0.0
    %6876 = vmatpush2.msra.mxu0 0.0
    %6877 = vmatprep.subr.mxu0 0.0
    %6878 = vmatpush2.msra.mxu0 0.0
    %6879 = vmatprep.subr.mxu0 0.0
    %6880 = vmatpush2.msra.mxu0 0.0
    %6881 = vmatprep.subr.mxu0 0.0
    %6882 = vmatpush2.msra.mxu0 0.0
    %6883 = vmatprep.subr.mxu0 0.0
    %6884 = vmatpush2.msra.mxu0 0.0
    %6885 = vmatprep.subr.mxu0 0.0
    %6886 = vmatpush2.msra.mxu0 0.0
    %6887 = vmatprep.subr.mxu0 0.0
    %6888 = vmatpush2.msra.mxu0 0.0
    %6889 = vmatprep.subr.mxu0 0.0
    %6890 = vmatpush2.msra.mxu0 0.0
    %6891 = vmatprep.subr.mxu0 0.0
    %6892 = vmatpush2.msra.mxu0 0.0
    %6893 = vmatprep.subr.mxu0 0.0
    %6894 = vmatpush2.msra.mxu0 0.0
    %6895 = vmatprep.subr.mxu0 0.0
    %6896 = vmatpush2.msra.mxu0 0.0
    %6897 = vmatprep.subr.mxu0 0.0
    %6898 = vmatpush2.msra.mxu0 0.0
    %6899 = vmatprep.subr.mxu0 0.0
    %6900 = vmatpush2.msra.mxu0 0.0
    %6901 = vmatprep.subr.mxu0 0.0
    %6902 = vmatpush2.msra.mxu0 0.0
    %6903 = vmatprep.subr.mxu0 0.0
    %6904 = vmatpush2.msra.mxu0 0.0
    %6905 = vmatprep.subr.mxu0 0.0
    %6906 = vmatpush2.msra.mxu0 0.0
    %6907 = vmatprep.mubr.f32.mxu0 0.0
    %6908 = vmatmul.mubr.f32.gmra.mxu0 %v6668
    %v6909 = vpop.f32.mrf.mxu0
    %v6910 = vadd.f32 %v6635, %v6909
    %v6911 = vpop.f32.mrf.mxu0
    %v6912 = vadd.f32 %v6635, %v6911
    %6913 = vmatprep.mubr.f32.mxu0 0.0
    %6914 = vmatmul.mubr.f32.gmra.mxu0 %v6671
    %v6915 = vpop.f32.mrf.mxu0
    %v6916 = vadd.f32 %v6640, %v6915
    %v6917 = vpop.f32.mrf.mxu0
    %v6918 = vadd.f32 %v6640, %v6917
    %6919 = vmatprep.mubr.f32.mxu0 0.0
    %6920 = vmatmul.mubr.f32.gmra.mxu0 %v6674
    %v6921 = vpop.f32.mrf.mxu0
    %v6922 = vadd.f32 %v6645, %v6921
    %v6923 = vpop.f32.mrf.mxu0
    %v6924 = vadd.f32 %v6645, %v6923
    %6925 = vmatprep.mubr.f32.mxu0 0.0
    %6926 = vmatmul.mubr.f32.gmra.mxu0 %v6677
    %v6927 = vpop.f32.mrf.mxu0
    %v6928 = vadd.f32 %v6650, %v6927
    %v6929 = vpop.f32.mrf.mxu0
    %v6930 = vadd.f32 %v6650, %v6929
    %6931 = vmatprep.mubr.f32.mxu0 0.0
    %6932 = vmatmul.mubr.f32.gmra.mxu0 %v6680
    %v6933 = vpop.f32.mrf.mxu0
    %v6934 = vadd.f32 %v6655, %v6933
    %v6935 = vpop.f32.mrf.mxu0
    %v6936 = vadd.f32 %v6655, %v6935
    %6937 = vmatprep.mubr.f32.mxu0 0.0
    %6938 = vmatmul.mubr.f32.gmra.mxu0 %v6683
    %v6939 = vpop.f32.mrf.mxu0
    %v6940 = vadd.f32 %v6660, %v6939
    %v6941 = vpop.f32.mrf.mxu0
    %v6942 = vadd.f32 %v6660, %v6941
    %6943 = vmatprep.mubr.f32.mxu0 0.0
    %6944 = vmatmul.mubr.f32.gmra.mxu0 %v6686
    %v6945 = vpop.f32.mrf.mxu0
    %v6946 = vadd.f32 %v6665, %v6945
    %v6947 = vpop.f32.mrf.mxu0
    %v6948 = vadd.f32 %v6665, %v6947
    %6949 = vdwg.mxu0
    %6950 = vmatprep.subr.mxu0 0.0
    %6951 = vmatpush1.msra.mxu0 0.0
    %6952 = vmatprep.subr.mxu0 0.0
    %6953 = vmatpush1.msra.mxu0 0.0
    %6954 = vmatprep.subr.mxu0 0.0
    %6955 = vmatpush1.msra.mxu0 0.0
    %6956 = vmatprep.subr.mxu0 0.0
    %6957 = vmatpush1.msra.mxu0 0.0
    %6958 = vmatprep.subr.mxu0 0.0
    %6959 = vmatpush1.msra.mxu0 0.0
    %6960 = vmatprep.subr.mxu0 0.0
    %6961 = vmatpush1.msra.mxu0 0.0
    %6962 = vmatprep.subr.mxu0 0.0
    %6963 = vmatpush1.msra.mxu0 0.0
    %6964 = vmatprep.subr.mxu0 0.0
    %6965 = vmatpush1.msra.mxu0 0.0
    %6966 = vmatprep.subr.mxu0 0.0
    %6967 = vmatpush1.msra.mxu0 0.0
    %6968 = vmatprep.subr.mxu0 %v6704
    %6969 = vmatpush1.msra.mxu0 %v6701
    %6970 = vmatprep.subr.mxu0 %v6589
    %6971 = vmatpush1.msra.mxu0 %v6588
    %6972 = vmatprep.subr.mxu0 %v6573
    %6973 = vmatpush1.msra.mxu0 %v6572
    %6974 = vmatprep.subr.mxu0 %v6557
    %6975 = vmatpush1.msra.mxu0 %v6556
    %6976 = vmatprep.subr.mxu0 %v6541
    %6977 = vmatpush1.msra.mxu0 %v6540
    %6978 = vmatprep.subr.mxu0 %v6525
    %6979 = vmatpush1.msra.mxu0 %v6524
    %6980 = vmatprep.subr.mxu0 %v6509
    %6981 = vmatpush1.msra.mxu0 %v6508
    %6982 = vmatprep.subr.mxu0 0.0
    %6983 = vmatpush2.msra.mxu0 0.0
    %6984 = vmatprep.subr.mxu0 0.0
    %6985 = vmatpush2.msra.mxu0 0.0
    %6986 = vmatprep.subr.mxu0 0.0
    %6987 = vmatpush2.msra.mxu0 0.0
    %6988 = vmatprep.subr.mxu0 0.0
    %6989 = vmatpush2.msra.mxu0 0.0
    %6990 = vmatprep.subr.mxu0 0.0
    %6991 = vmatpush2.msra.mxu0 0.0
    %6992 = vmatprep.subr.mxu0 0.0
    %6993 = vmatpush2.msra.mxu0 0.0
    %6994 = vmatprep.subr.mxu0 0.0
    %6995 = vmatpush2.msra.mxu0 0.0
    %6996 = vmatprep.subr.mxu0 0.0
    %6997 = vmatpush2.msra.mxu0 0.0
    %6998 = vmatprep.subr.mxu0 0.0
    %6999 = vmatpush2.msra.mxu0 0.0
    %7000 = vmatprep.subr.mxu0 0.0
    %7001 = vmatpush2.msra.mxu0 0.0
    %7002 = vmatprep.subr.mxu0 0.0
    %7003 = vmatpush2.msra.mxu0 0.0
    %7004 = vmatprep.subr.mxu0 0.0
    %7005 = vmatpush2.msra.mxu0 0.0
    %7006 = vmatprep.subr.mxu0 0.0
    %7007 = vmatpush2.msra.mxu0 0.0
    %7008 = vmatprep.subr.mxu0 0.0
    %7009 = vmatpush2.msra.mxu0 0.0
    %7010 = vmatprep.subr.mxu0 0.0
    %7011 = vmatpush2.msra.mxu0 0.0
    %7012 = vmatprep.subr.mxu0 0.0
    %7013 = vmatpush2.msra.mxu0 0.0
    %7014 = vmatprep.mubr.f32.mxu0 0.0
    %7015 = vmatmul.mubr.f32.gmra.mxu0 %v6668
    %v7016 = vpop.f32.mrf.mxu0
    %v7017 = vadd.f32 %v6635, %v7016
    %v7018 = vpop.f32.mrf.mxu0
    %v7019 = vadd.f32 %v6635, %v7018
    %7020 = vmatprep.mubr.f32.mxu0 0.0
    %7021 = vmatmul.mubr.f32.gmra.mxu0 %v6671
    %v7022 = vpop.f32.mrf.mxu0
    %v7023 = vadd.f32 %v6640, %v7022
    %v7024 = vpop.f32.mrf.mxu0
    %v7025 = vadd.f32 %v6640, %v7024
    %7026 = vmatprep.mubr.f32.mxu0 0.0
    %7027 = vmatmul.mubr.f32.gmra.mxu0 %v6674
    %v7028 = vpop.f32.mrf.mxu0
    %v7029 = vadd.f32 %v6645, %v7028
    %v7030 = vpop.f32.mrf.mxu0
    %v7031 = vadd.f32 %v6645, %v7030
    %7032 = vmatprep.mubr.f32.mxu0 0.0
    %7033 = vmatmul.mubr.f32.gmra.mxu0 %v6677
    %v7034 = vpop.f32.mrf.mxu0
    %v7035 = vadd.f32 %v6650, %v7034
    %v7036 = vpop.f32.mrf.mxu0
    %v7037 = vadd.f32 %v6650, %v7036
    %7038 = vmatprep.mubr.f32.mxu0 0.0
    %7039 = vmatmul.mubr.f32.gmra.mxu0 %v6680
    %v7040 = vpop.f32.mrf.mxu0
    %v7041 = vadd.f32 %v6655, %v7040
    %v7042 = vpop.f32.mrf.mxu0
    %v7043 = vadd.f32 %v6655, %v7042
    %7044 = vmatprep.mubr.f32.mxu0 0.0
    %7045 = vmatmul.mubr.f32.gmra.mxu0 %v6683
    %v7046 = vpop.f32.mrf.mxu0
    %v7047 = vadd.f32 %v6660, %v7046
    %v7048 = vpop.f32.mrf.mxu0
    %v7049 = vadd.f32 %v6660, %v7048
    %7050 = vmatprep.mubr.f32.mxu0 0.0
    %7051 = vmatmul.mubr.f32.gmra.mxu0 %v6686
    %v7052 = vpop.f32.mrf.mxu0
    %v7053 = vadd.f32 %v6665, %v7052
    %v7054 = vpop.f32.mrf.mxu0
    %v7055 = vadd.f32 %v6665, %v7054
    %7056 = vdwg.mxu0
    %7057 = vmatprep.subr.mxu0 0.0
    %7058 = vmatpush1.msra.mxu0 0.0
    %7059 = vmatprep.subr.mxu0 0.0
    %7060 = vmatpush1.msra.mxu0 0.0
    %7061 = vmatprep.subr.mxu0 0.0
    %7062 = vmatpush1.msra.mxu0 0.0
    %7063 = vmatprep.subr.mxu0 0.0
    %7064 = vmatpush1.msra.mxu0 0.0
    %7065 = vmatprep.subr.mxu0 0.0
    %7066 = vmatpush1.msra.mxu0 0.0
    %7067 = vmatprep.subr.mxu0 0.0
    %7068 = vmatpush1.msra.mxu0 0.0
    %7069 = vmatprep.subr.mxu0 0.0
    %7070 = vmatpush1.msra.mxu0 0.0
    %7071 = vmatprep.subr.mxu0 0.0
    %7072 = vmatpush1.msra.mxu0 0.0
    %7073 = vmatprep.subr.mxu0 0.0
    %7074 = vmatpush1.msra.mxu0 0.0
    %7075 = vmatprep.subr.mxu0 %v6710
    %7076 = vmatpush1.msra.mxu0 %v6707
    %7077 = vmatprep.subr.mxu0 %v6591
    %7078 = vmatpush1.msra.mxu0 %v6590
    %7079 = vmatprep.subr.mxu0 %v6575
    %7080 = vmatpush1.msra.mxu0 %v6574
    %7081 = vmatprep.subr.mxu0 %v6559
    %7082 = vmatpush1.msra.mxu0 %v6558
    %7083 = vmatprep.subr.mxu0 %v6543
    %7084 = vmatpush1.msra.mxu0 %v6542
    %7085 = vmatprep.subr.mxu0 %v6527
    %7086 = vmatpush1.msra.mxu0 %v6526
    %7087 = vmatprep.subr.mxu0 %v6511
    %7088 = vmatpush1.msra.mxu0 %v6510
    %7089 = vmatprep.subr.mxu0 0.0
    %7090 = vmatpush2.msra.mxu0 0.0
    %7091 = vmatprep.subr.mxu0 0.0
    %7092 = vmatpush2.msra.mxu0 0.0
    %7093 = vmatprep.subr.mxu0 0.0
    %7094 = vmatpush2.msra.mxu0 0.0
    %7095 = vmatprep.subr.mxu0 0.0
    %7096 = vmatpush2.msra.mxu0 0.0
    %7097 = vmatprep.subr.mxu0 0.0
    %7098 = vmatpush2.msra.mxu0 0.0
    %7099 = vmatprep.subr.mxu0 0.0
    %7100 = vmatpush2.msra.mxu0 0.0
    %7101 = vmatprep.subr.mxu0 0.0
    %7102 = vmatpush2.msra.mxu0 0.0
    %7103 = vmatprep.subr.mxu0 0.0
    %7104 = vmatpush2.msra.mxu0 0.0
    %7105 = vmatprep.subr.mxu0 0.0
    %7106 = vmatpush2.msra.mxu0 0.0
    %7107 = vmatprep.subr.mxu0 0.0
    %7108 = vmatpush2.msra.mxu0 0.0
    %7109 = vmatprep.subr.mxu0 0.0
    %7110 = vmatpush2.msra.mxu0 0.0
    %7111 = vmatprep.subr.mxu0 0.0
    %7112 = vmatpush2.msra.mxu0 0.0
    %7113 = vmatprep.subr.mxu0 0.0
    %7114 = vmatpush2.msra.mxu0 0.0
    %7115 = vmatprep.subr.mxu0 0.0
    %7116 = vmatpush2.msra.mxu0 0.0
    %7117 = vmatprep.subr.mxu0 0.0
    %7118 = vmatpush2.msra.mxu0 0.0
    %7119 = vmatprep.subr.mxu0 0.0
    %7120 = vmatpush2.msra.mxu0 0.0
    %7121 = vmatprep.mubr.f32.mxu0 0.0
    %7122 = vmatmul.mubr.f32.gmra.mxu0 %v6668
    %v7123 = vpop.f32.mrf.mxu0
    %v7124 = vadd.f32 %v6635, %v7123
    %v7125 = vpop.f32.mrf.mxu0
    %v7126 = vadd.f32 %v6635, %v7125
    %7127 = vmatprep.mubr.f32.mxu0 0.0
    %7128 = vmatmul.mubr.f32.gmra.mxu0 %v6671
    %v7129 = vpop.f32.mrf.mxu0
    %v7130 = vadd.f32 %v6640, %v7129
    %v7131 = vpop.f32.mrf.mxu0
    %v7132 = vadd.f32 %v6640, %v7131
    %7133 = vmatprep.mubr.f32.mxu0 0.0
    %7134 = vmatmul.mubr.f32.gmra.mxu0 %v6674
    %v7135 = vpop.f32.mrf.mxu0
    %v7136 = vadd.f32 %v6645, %v7135
    %v7137 = vpop.f32.mrf.mxu0
    %v7138 = vadd.f32 %v6645, %v7137
    %7139 = vmatprep.mubr.f32.mxu0 0.0
    %7140 = vmatmul.mubr.f32.gmra.mxu0 %v6677
    %v7141 = vpop.f32.mrf.mxu0
    %v7142 = vadd.f32 %v6650, %v7141
    %v7143 = vpop.f32.mrf.mxu0
    %v7144 = vadd.f32 %v6650, %v7143
    %7145 = vmatprep.mubr.f32.mxu0 0.0
    %7146 = vmatmul.mubr.f32.gmra.mxu0 %v6680
    %v7147 = vpop.f32.mrf.mxu0
    %v7148 = vadd.f32 %v6655, %v7147
    %v7149 = vpop.f32.mrf.mxu0
    %v7150 = vadd.f32 %v6655, %v7149
    %7151 = vmatprep.mubr.f32.mxu0 0.0
    %7152 = vmatmul.mubr.f32.gmra.mxu0 %v6683
    %v7153 = vpop.f32.mrf.mxu0
    %v7154 = vadd.f32 %v6660, %v7153
    %v7155 = vpop.f32.mrf.mxu0
    %v7156 = vadd.f32 %v6660, %v7155
    %7157 = vmatprep.mubr.f32.mxu0 0.0
    %7158 = vmatmul.mubr.f32.gmra.mxu0 %v6686
    %v7159 = vpop.f32.mrf.mxu0
    %v7160 = vadd.f32 %v6665, %v7159
    %v7161 = vpop.f32.mrf.mxu0
    %v7162 = vadd.f32 %v6665, %v7161
    %7163 = vdwg.mxu0
    %7164 = vmatprep.subr.mxu0 0.0
    %7165 = vmatpush1.msra.mxu0 0.0
    %7166 = vmatprep.subr.mxu0 0.0
    %7167 = vmatpush1.msra.mxu0 0.0
    %7168 = vmatprep.subr.mxu0 0.0
    %7169 = vmatpush1.msra.mxu0 0.0
    %7170 = vmatprep.subr.mxu0 0.0
    %7171 = vmatpush1.msra.mxu0 0.0
    %7172 = vmatprep.subr.mxu0 0.0
    %7173 = vmatpush1.msra.mxu0 0.0
    %7174 = vmatprep.subr.mxu0 0.0
    %7175 = vmatpush1.msra.mxu0 0.0
    %7176 = vmatprep.subr.mxu0 0.0
    %7177 = vmatpush1.msra.mxu0 0.0
    %7178 = vmatprep.subr.mxu0 0.0
    %7179 = vmatpush1.msra.mxu0 0.0
    %7180 = vmatprep.subr.mxu0 0.0
    %7181 = vmatpush1.msra.mxu0 0.0
    %7182 = vmatprep.subr.mxu0 %v6716
    %7183 = vmatpush1.msra.mxu0 %v6713
    %7184 = vmatprep.subr.mxu0 %v6593
    %7185 = vmatpush1.msra.mxu0 %v6592
    %7186 = vmatprep.subr.mxu0 %v6577
    %7187 = vmatpush1.msra.mxu0 %v6576
    %7188 = vmatprep.subr.mxu0 %v6561
    %7189 = vmatpush1.msra.mxu0 %v6560
    %7190 = vmatprep.subr.mxu0 %v6545
    %7191 = vmatpush1.msra.mxu0 %v6544
    %7192 = vmatprep.subr.mxu0 %v6529
    %7193 = vmatpush1.msra.mxu0 %v6528
    %7194 = vmatprep.subr.mxu0 %v6513
    %7195 = vmatpush1.msra.mxu0 %v6512
    %7196 = vmatprep.subr.mxu0 0.0
    %7197 = vmatpush2.msra.mxu0 0.0
    %7198 = vmatprep.subr.mxu0 0.0
    %7199 = vmatpush2.msra.mxu0 0.0
    %7200 = vmatprep.subr.mxu0 0.0
    %7201 = vmatpush2.msra.mxu0 0.0
    %7202 = vmatprep.subr.mxu0 0.0
    %7203 = vmatpush2.msra.mxu0 0.0
    %7204 = vmatprep.subr.mxu0 0.0
    %7205 = vmatpush2.msra.mxu0 0.0
    %7206 = vmatprep.subr.mxu0 0.0
    %7207 = vmatpush2.msra.mxu0 0.0
    %7208 = vmatprep.subr.mxu0 0.0
    %7209 = vmatpush2.msra.mxu0 0.0
    %7210 = vmatprep.subr.mxu0 0.0
    %7211 = vmatpush2.msra.mxu0 0.0
    %7212 = vmatprep.subr.mxu0 0.0
    %7213 = vmatpush2.msra.mxu0 0.0
    %7214 = vmatprep.subr.mxu0 0.0
    %7215 = vmatpush2.msra.mxu0 0.0
    %7216 = vmatprep.subr.mxu0 0.0
    %7217 = vmatpush2.msra.mxu0 0.0
    %7218 = vmatprep.subr.mxu0 0.0
    %7219 = vmatpush2.msra.mxu0 0.0
    %7220 = vmatprep.subr.mxu0 0.0
    %7221 = vmatpush2.msra.mxu0 0.0
    %7222 = vmatprep.subr.mxu0 0.0
    %7223 = vmatpush2.msra.mxu0 0.0
    %7224 = vmatprep.subr.mxu0 0.0
    %7225 = vmatpush2.msra.mxu0 0.0
    %7226 = vmatprep.subr.mxu0 0.0
    %7227 = vmatpush2.msra.mxu0 0.0
    %7228 = vmatprep.mubr.f32.mxu0 0.0
    %7229 = vmatmul.mubr.f32.gmra.mxu0 %v6668
    %v7230 = vpop.f32.mrf.mxu0
    %v7231 = vadd.f32 %v6635, %v7230
    %v7232 = vpop.f32.mrf.mxu0
    %v7233 = vadd.f32 %v6635, %v7232
    %7234 = vmatprep.mubr.f32.mxu0 0.0
    %7235 = vmatmul.mubr.f32.gmra.mxu0 %v6671
    %v7236 = vpop.f32.mrf.mxu0
    %v7237 = vadd.f32 %v6640, %v7236
    %v7238 = vpop.f32.mrf.mxu0
    %v7239 = vadd.f32 %v6640, %v7238
    %7240 = vmatprep.mubr.f32.mxu0 0.0
    %7241 = vmatmul.mubr.f32.gmra.mxu0 %v6674
    %v7242 = vpop.f32.mrf.mxu0
    %v7243 = vadd.f32 %v6645, %v7242
    %v7244 = vpop.f32.mrf.mxu0
    %v7245 = vadd.f32 %v6645, %v7244
    %7246 = vmatprep.mubr.f32.mxu0 0.0
    %7247 = vmatmul.mubr.f32.gmra.mxu0 %v6677
    %v7248 = vpop.f32.mrf.mxu0
    %v7249 = vadd.f32 %v6650, %v7248
    %v7250 = vpop.f32.mrf.mxu0
    %v7251 = vadd.f32 %v6650, %v7250
    %7252 = vmatprep.mubr.f32.mxu0 0.0
    %7253 = vmatmul.mubr.f32.gmra.mxu0 %v6680
    %v7254 = vpop.f32.mrf.mxu0
    %v7255 = vadd.f32 %v6655, %v7254
    %v7256 = vpop.f32.mrf.mxu0
    %v7257 = vadd.f32 %v6655, %v7256
    %7258 = vmatprep.mubr.f32.mxu0 0.0
    %7259 = vmatmul.mubr.f32.gmra.mxu0 %v6683
    %v7260 = vpop.f32.mrf.mxu0
    %v7261 = vadd.f32 %v6660, %v7260
    %v7262 = vpop.f32.mrf.mxu0
    %v7263 = vadd.f32 %v6660, %v7262
    %7264 = vmatprep.mubr.f32.mxu0 0.0
    %7265 = vmatmul.mubr.f32.gmra.mxu0 %v6686
    %v7266 = vpop.f32.mrf.mxu0
    %v7267 = vadd.f32 %v6665, %v7266
    %v7268 = vpop.f32.mrf.mxu0
    %v7269 = vadd.f32 %v6665, %v7268
    %7270 = vdwg.mxu0
    %7271 = vmatprep.subr.mxu0 0.0
    %7272 = vmatpush1.msra.mxu0 0.0
    %7273 = vmatprep.subr.mxu0 0.0
    %7274 = vmatpush1.msra.mxu0 0.0
    %7275 = vmatprep.subr.mxu0 0.0
    %7276 = vmatpush1.msra.mxu0 0.0
    %7277 = vmatprep.subr.mxu0 0.0
    %7278 = vmatpush1.msra.mxu0 0.0
    %7279 = vmatprep.subr.mxu0 0.0
    %7280 = vmatpush1.msra.mxu0 0.0
    %7281 = vmatprep.subr.mxu0 0.0
    %7282 = vmatpush1.msra.mxu0 0.0
    %7283 = vmatprep.subr.mxu0 0.0
    %7284 = vmatpush1.msra.mxu0 0.0
    %7285 = vmatprep.subr.mxu0 0.0
    %7286 = vmatpush1.msra.mxu0 0.0
    %7287 = vmatprep.subr.mxu0 0.0
    %7288 = vmatpush1.msra.mxu0 0.0
    %7289 = vmatprep.subr.mxu0 %v6722
    %7290 = vmatpush1.msra.mxu0 %v6719
    %7291 = vmatprep.subr.mxu0 %v6595
    %7292 = vmatpush1.msra.mxu0 %v6594
    %7293 = vmatprep.subr.mxu0 %v6579
    %7294 = vmatpush1.msra.mxu0 %v6578
    %7295 = vmatprep.subr.mxu0 %v6563
    %7296 = vmatpush1.msra.mxu0 %v6562
    %7297 = vmatprep.subr.mxu0 %v6547
    %7298 = vmatpush1.msra.mxu0 %v6546
    %7299 = vmatprep.subr.mxu0 %v6531
    %7300 = vmatpush1.msra.mxu0 %v6530
    %7301 = vmatprep.subr.mxu0 %v6515
    %7302 = vmatpush1.msra.mxu0 %v6514
    %7303 = vmatprep.subr.mxu0 0.0
    %7304 = vmatpush2.msra.mxu0 0.0
    %7305 = vmatprep.subr.mxu0 0.0
    %7306 = vmatpush2.msra.mxu0 0.0
    %7307 = vmatprep.subr.mxu0 0.0
    %7308 = vmatpush2.msra.mxu0 0.0
    %7309 = vmatprep.subr.mxu0 0.0
    %7310 = vmatpush2.msra.mxu0 0.0
    %7311 = vmatprep.subr.mxu0 0.0
    %7312 = vmatpush2.msra.mxu0 0.0
    %7313 = vmatprep.subr.mxu0 0.0
    %7314 = vmatpush2.msra.mxu0 0.0
    %7315 = vmatprep.subr.mxu0 0.0
    %7316 = vmatpush2.msra.mxu0 0.0
    %7317 = vmatprep.subr.mxu0 0.0
    %7318 = vmatpush2.msra.mxu0 0.0
    %7319 = vmatprep.subr.mxu0 0.0
    %7320 = vmatpush2.msra.mxu0 0.0
    %7321 = vmatprep.subr.mxu0 0.0
    %7322 = vmatpush2.msra.mxu0 0.0
    %7323 = vmatprep.subr.mxu0 0.0
    %7324 = vmatpush2.msra.mxu0 0.0
    %7325 = vmatprep.subr.mxu0 0.0
    %7326 = vmatpush2.msra.mxu0 0.0
    %7327 = vmatprep.subr.mxu0 0.0
    %7328 = vmatpush2.msra.mxu0 0.0
    %7329 = vmatprep.subr.mxu0 0.0
    %7330 = vmatpush2.msra.mxu0 0.0
    %7331 = vmatprep.subr.mxu0 0.0
    %7332 = vmatpush2.msra.mxu0 0.0
    %7333 = vmatprep.subr.mxu0 0.0
    %7334 = vmatpush2.msra.mxu0 0.0
    %7335 = vmatprep.mubr.f32.mxu0 0.0
    %7336 = vmatmul.mubr.f32.gmra.mxu0 %v6668
    %v7337 = vpop.f32.mrf.mxu0
    %v7338 = vadd.f32 %v6635, %v7337
    %v7339 = vpop.f32.mrf.mxu0
    %v7340 = vadd.f32 %v6635, %v7339
    %7341 = vmatprep.mubr.f32.mxu0 0.0
    %7342 = vmatmul.mubr.f32.gmra.mxu0 %v6671
    %v7343 = vpop.f32.mrf.mxu0
    %v7344 = vadd.f32 %v6640, %v7343
    %v7345 = vpop.f32.mrf.mxu0
    %v7346 = vadd.f32 %v6640, %v7345
    %7347 = vmatprep.mubr.f32.mxu0 0.0
    %7348 = vmatmul.mubr.f32.gmra.mxu0 %v6674
    %v7349 = vpop.f32.mrf.mxu0
    %v7350 = vadd.f32 %v6645, %v7349
    %v7351 = vpop.f32.mrf.mxu0
    %v7352 = vadd.f32 %v6645, %v7351
    %7353 = vmatprep.mubr.f32.mxu0 0.0
    %7354 = vmatmul.mubr.f32.gmra.mxu0 %v6677
    %v7355 = vpop.f32.mrf.mxu0
    %v7356 = vadd.f32 %v6650, %v7355
    %v7357 = vpop.f32.mrf.mxu0
    %v7358 = vadd.f32 %v6650, %v7357
    %7359 = vmatprep.mubr.f32.mxu0 0.0
    %7360 = vmatmul.mubr.f32.gmra.mxu0 %v6680
    %v7361 = vpop.f32.mrf.mxu0
    %v7362 = vadd.f32 %v6655, %v7361
    %v7363 = vpop.f32.mrf.mxu0
    %v7364 = vadd.f32 %v6655, %v7363
    %7365 = vmatprep.mubr.f32.mxu0 0.0
    %7366 = vmatmul.mubr.f32.gmra.mxu0 %v6683
    %v7367 = vpop.f32.mrf.mxu0
    %v7368 = vadd.f32 %v6660, %v7367
    %v7369 = vpop.f32.mrf.mxu0
    %v7370 = vadd.f32 %v6660, %v7369
    %7371 = vmatprep.mubr.f32.mxu0 0.0
    %7372 = vmatmul.mubr.f32.gmra.mxu0 %v6686
    %v7373 = vpop.f32.mrf.mxu0
    %v7374 = vadd.f32 %v6665, %v7373
    %v7375 = vpop.f32.mrf.mxu0
    %v7376 = vadd.f32 %v6665, %v7375
    %7377 = vdwg.mxu0
    %7378 = vmatprep.subr.mxu0 0.0
    %7379 = vmatpush1.msra.mxu0 0.0
    %7380 = vmatprep.subr.mxu0 0.0
    %7381 = vmatpush1.msra.mxu0 0.0
    %7382 = vmatprep.subr.mxu0 0.0
    %7383 = vmatpush1.msra.mxu0 0.0
    %7384 = vmatprep.subr.mxu0 0.0
    %7385 = vmatpush1.msra.mxu0 0.0
    %7386 = vmatprep.subr.mxu0 0.0
    %7387 = vmatpush1.msra.mxu0 0.0
    %7388 = vmatprep.subr.mxu0 0.0
    %7389 = vmatpush1.msra.mxu0 0.0
    %7390 = vmatprep.subr.mxu0 0.0
    %7391 = vmatpush1.msra.mxu0 0.0
    %7392 = vmatprep.subr.mxu0 0.0
    %7393 = vmatpush1.msra.mxu0 0.0
    %7394 = vmatprep.subr.mxu0 0.0
    %7395 = vmatpush1.msra.mxu0 0.0
    %7396 = vmatprep.subr.mxu0 %v6728
    %7397 = vmatpush1.msra.mxu0 %v6725
    %7398 = vmatprep.subr.mxu0 %v6597
    %7399 = vmatpush1.msra.mxu0 %v6596
    %7400 = vmatprep.subr.mxu0 %v6581
    %7401 = vmatpush1.msra.mxu0 %v6580
    %7402 = vmatprep.subr.mxu0 %v6565
    %7403 = vmatpush1.msra.mxu0 %v6564
    %7404 = vmatprep.subr.mxu0 %v6549
    %7405 = vmatpush1.msra.mxu0 %v6548
    %7406 = vmatprep.subr.mxu0 %v6533
    %7407 = vmatpush1.msra.mxu0 %v6532
    %7408 = vmatprep.subr.mxu0 %v6517
    %7409 = vmatpush1.msra.mxu0 %v6516
    %7410 = vmatprep.subr.mxu0 0.0
    %7411 = vmatpush2.msra.mxu0 0.0
    %7412 = vmatprep.subr.mxu0 0.0
    %7413 = vmatpush2.msra.mxu0 0.0
    %7414 = vmatprep.subr.mxu0 0.0
    %7415 = vmatpush2.msra.mxu0 0.0
    %7416 = vmatprep.subr.mxu0 0.0
    %7417 = vmatpush2.msra.mxu0 0.0
    %7418 = vmatprep.subr.mxu0 0.0
    %7419 = vmatpush2.msra.mxu0 0.0
    %7420 = vmatprep.subr.mxu0 0.0
    %7421 = vmatpush2.msra.mxu0 0.0
    %7422 = vmatprep.subr.mxu0 0.0
    %7423 = vmatpush2.msra.mxu0 0.0
    %7424 = vmatprep.subr.mxu0 0.0
    %7425 = vmatpush2.msra.mxu0 0.0
    %7426 = vmatprep.subr.mxu0 0.0
    %7427 = vmatpush2.msra.mxu0 0.0
    %7428 = vmatprep.subr.mxu0 0.0
    %7429 = vmatpush2.msra.mxu0 0.0
    %7430 = vmatprep.subr.mxu0 0.0
    %7431 = vmatpush2.msra.mxu0 0.0
    %7432 = vmatprep.subr.mxu0 0.0
    %7433 = vmatpush2.msra.mxu0 0.0
    %7434 = vmatprep.subr.mxu0 0.0
    %7435 = vmatpush2.msra.mxu0 0.0
    %7436 = vmatprep.subr.mxu0 0.0
    %7437 = vmatpush2.msra.mxu0 0.0
    %7438 = vmatprep.subr.mxu0 0.0
    %7439 = vmatpush2.msra.mxu0 0.0
    %7440 = vmatprep.subr.mxu0 0.0
    %7441 = vmatpush2.msra.mxu0 0.0
    %7442 = vmatprep.mubr.f32.mxu0 0.0
    %7443 = vmatmul.mubr.f32.gmra.mxu0 %v6668
    %v7444 = vpop.f32.mrf.mxu0
    %v7445 = vadd.f32 %v6635, %v7444
    %v7446 = vpop.f32.mrf.mxu0
    %v7447 = vadd.f32 %v6635, %v7446
    %7448 = vmatprep.mubr.f32.mxu0 0.0
    %7449 = vmatmul.mubr.f32.gmra.mxu0 %v6671
    %v7450 = vpop.f32.mrf.mxu0
    %v7451 = vadd.f32 %v6640, %v7450
    %v7452 = vpop.f32.mrf.mxu0
    %v7453 = vadd.f32 %v6640, %v7452
    %7454 = vmatprep.mubr.f32.mxu0 0.0
    %7455 = vmatmul.mubr.f32.gmra.mxu0 %v6674
    %v7456 = vpop.f32.mrf.mxu0
    %v7457 = vadd.f32 %v6645, %v7456
    %v7458 = vpop.f32.mrf.mxu0
    %v7459 = vadd.f32 %v6645, %v7458
    %7460 = vmatprep.mubr.f32.mxu0 0.0
    %7461 = vmatmul.mubr.f32.gmra.mxu0 %v6677
    %v7462 = vpop.f32.mrf.mxu0
    %v7463 = vadd.f32 %v6650, %v7462
    %v7464 = vpop.f32.mrf.mxu0
    %v7465 = vadd.f32 %v6650, %v7464
    %7466 = vmatprep.mubr.f32.mxu0 0.0
    %7467 = vmatmul.mubr.f32.gmra.mxu0 %v6680
    %v7468 = vpop.f32.mrf.mxu0
    %v7469 = vadd.f32 %v6655, %v7468
    %v7470 = vpop.f32.mrf.mxu0
    %v7471 = vadd.f32 %v6655, %v7470
    %7472 = vmatprep.mubr.f32.mxu0 0.0
    %7473 = vmatmul.mubr.f32.gmra.mxu0 %v6683
    %v7474 = vpop.f32.mrf.mxu0
    %v7475 = vadd.f32 %v6660, %v7474
    %v7476 = vpop.f32.mrf.mxu0
    %v7477 = vadd.f32 %v6660, %v7476
    %7478 = vmatprep.mubr.f32.mxu0 0.0
    %7479 = vmatmul.mubr.f32.gmra.mxu0 %v6686
    %v7480 = vpop.f32.mrf.mxu0
    %v7481 = vadd.f32 %v6665, %v7480
    %v7482 = vpop.f32.mrf.mxu0
    %v7483 = vadd.f32 %v6665, %v7482
    %7484 = vdwg.mxu0
    %7485 = vmatprep.subr.mxu0 0.0
    %7486 = vmatpush1.msra.mxu0 0.0
    %7487 = vmatprep.subr.mxu0 0.0
    %7488 = vmatpush1.msra.mxu0 0.0
    %7489 = vmatprep.subr.mxu0 0.0
    %7490 = vmatpush1.msra.mxu0 0.0
    %7491 = vmatprep.subr.mxu0 0.0
    %7492 = vmatpush1.msra.mxu0 0.0
    %7493 = vmatprep.subr.mxu0 0.0
    %7494 = vmatpush1.msra.mxu0 0.0
    %7495 = vmatprep.subr.mxu0 0.0
    %7496 = vmatpush1.msra.mxu0 0.0
    %7497 = vmatprep.subr.mxu0 0.0
    %7498 = vmatpush1.msra.mxu0 0.0
    %7499 = vmatprep.subr.mxu0 0.0
    %7500 = vmatpush1.msra.mxu0 0.0
    %7501 = vmatprep.subr.mxu0 0.0
    %7502 = vmatpush1.msra.mxu0 0.0
    %7503 = vmatprep.subr.mxu0 %v6734
    %7504 = vmatpush1.msra.mxu0 %v6731
    %7505 = vmatprep.subr.mxu0 %v6599
    %7506 = vmatpush1.msra.mxu0 %v6598
    %7507 = vmatprep.subr.mxu0 %v6583
    %7508 = vmatpush1.msra.mxu0 %v6582
    %7509 = vmatprep.subr.mxu0 %v6567
    %7510 = vmatpush1.msra.mxu0 %v6566
    %7511 = vmatprep.subr.mxu0 %v6551
    %7512 = vmatpush1.msra.mxu0 %v6550
    %7513 = vmatprep.subr.mxu0 %v6535
    %7514 = vmatpush1.msra.mxu0 %v6534
    %7515 = vmatprep.subr.mxu0 %v6519
    %7516 = vmatpush1.msra.mxu0 %v6518
    %7517 = vmatprep.subr.mxu0 0.0
    %7518 = vmatpush2.msra.mxu0 0.0
    %7519 = vmatprep.subr.mxu0 0.0
    %7520 = vmatpush2.msra.mxu0 0.0
    %7521 = vmatprep.subr.mxu0 0.0
    %7522 = vmatpush2.msra.mxu0 0.0
    %7523 = vmatprep.subr.mxu0 0.0
    %7524 = vmatpush2.msra.mxu0 0.0
    %7525 = vmatprep.subr.mxu0 0.0
    %7526 = vmatpush2.msra.mxu0 0.0
    %7527 = vmatprep.subr.mxu0 0.0
    %7528 = vmatpush2.msra.mxu0 0.0
    %7529 = vmatprep.subr.mxu0 0.0
    %7530 = vmatpush2.msra.mxu0 0.0
    %7531 = vmatprep.subr.mxu0 0.0
    %7532 = vmatpush2.msra.mxu0 0.0
    %7533 = vmatprep.subr.mxu0 0.0
    %7534 = vmatpush2.msra.mxu0 0.0
    %7535 = vmatprep.subr.mxu0 0.0
    %7536 = vmatpush2.msra.mxu0 0.0
    %7537 = vmatprep.subr.mxu0 0.0
    %7538 = vmatpush2.msra.mxu0 0.0
    %7539 = vmatprep.subr.mxu0 0.0
    %7540 = vmatpush2.msra.mxu0 0.0
    %7541 = vmatprep.subr.mxu0 0.0
    %7542 = vmatpush2.msra.mxu0 0.0
    %7543 = vmatprep.subr.mxu0 0.0
    %7544 = vmatpush2.msra.mxu0 0.0
    %7545 = vmatprep.subr.mxu0 0.0
    %7546 = vmatpush2.msra.mxu0 0.0
    %7547 = vmatprep.subr.mxu0 0.0
    %7548 = vmatpush2.msra.mxu0 0.0
    %7549 = vmatprep.mubr.f32.mxu0 0.0
    %7550 = vmatmul.mubr.f32.gmra.mxu0 %v6668
    %v7551 = vpop.f32.mrf.mxu0
    %v7552 = vadd.f32 %v6635, %v7551
    %v7553 = vpop.f32.mrf.mxu0
    %v7554 = vadd.f32 %v6635, %v7553
    %7555 = vmatprep.mubr.f32.mxu0 0.0
    %7556 = vmatmul.mubr.f32.gmra.mxu0 %v6671
    %v7557 = vpop.f32.mrf.mxu0
    %v7558 = vadd.f32 %v6640, %v7557
    %v7559 = vpop.f32.mrf.mxu0
    %v7560 = vadd.f32 %v6640, %v7559
    %7561 = vmatprep.mubr.f32.mxu0 0.0
    %7562 = vmatmul.mubr.f32.gmra.mxu0 %v6674
    %v7563 = vpop.f32.mrf.mxu0
    %v7564 = vadd.f32 %v6645, %v7563
    %v7565 = vpop.f32.mrf.mxu0
    %v7566 = vadd.f32 %v6645, %v7565
    %7567 = vmatprep.mubr.f32.mxu0 0.0
    %7568 = vmatmul.mubr.f32.gmra.mxu0 %v6677
    %v7569 = vpop.f32.mrf.mxu0
    %v7570 = vadd.f32 %v6650, %v7569
    %v7571 = vpop.f32.mrf.mxu0
    %v7572 = vadd.f32 %v6650, %v7571
    %7573 = vmatprep.mubr.f32.mxu0 0.0
    %7574 = vmatmul.mubr.f32.gmra.mxu0 %v6680
    %v7575 = vpop.f32.mrf.mxu0
    %v7576 = vadd.f32 %v6655, %v7575
    %v7577 = vpop.f32.mrf.mxu0
    %v7578 = vadd.f32 %v6655, %v7577
    %7579 = vmatprep.mubr.f32.mxu0 0.0
    %7580 = vmatmul.mubr.f32.gmra.mxu0 %v6683
    %v7581 = vpop.f32.mrf.mxu0
    %v7582 = vadd.f32 %v6660, %v7581
    %v7583 = vpop.f32.mrf.mxu0
    %v7584 = vadd.f32 %v6660, %v7583
    %7585 = vmatprep.mubr.f32.mxu0 0.0
    %7586 = vmatmul.mubr.f32.gmra.mxu0 %v6686
    %v7587 = vpop.f32.mrf.mxu0
    %v7588 = vadd.f32 %v6665, %v7587
    %v7589 = vpop.f32.mrf.mxu0
    %v7590 = vadd.f32 %v6665, %v7589
    %7591 = vdwg.mxu0
    %v7592 = vtanh.pop %v6803
    %v7593 = vtanh.pop %v6805
    %v7594 = vtanh.pop %v6910
    %v7595 = vtanh.pop %v6912
    %v7596 = vtanh.pop %v7017
    %v7597 = vtanh.pop %v7019
    %v7598 = vtanh.pop %v7124
    %v7599 = vtanh.pop %v7126
    %v7600 = vtanh.pop %v7231
    %v7601 = vtanh.pop %v7233
    %v7602 = vtanh.pop %v7338
    %v7603 = vtanh.pop %v7340
    %v7604 = vtanh.pop %v7445
    %v7605 = vtanh.pop %v7447
    %v7606 = vtanh.pop %v7552
    %v7607 = vtanh.pop %v7554
    %v7608 = vtanh.pop %v6809
    %v7609 = vtanh.pop %v6811
    %v7610 = vtanh.pop %v6916
    %v7611 = vtanh.pop %v6918
    %v7612 = vtanh.pop %v7023
    %v7613 = vtanh.pop %v7025
    %v7614 = vtanh.pop %v7130
    %v7615 = vtanh.pop %v7132
    %v7616 = vtanh.pop %v7237
    %v7617 = vtanh.pop %v7239
    %v7618 = vtanh.pop %v7344
    %v7619 = vtanh.pop %v7346
    %v7620 = vtanh.pop %v7451
    %v7621 = vtanh.pop %v7453
    %v7622 = vtanh.pop %v7558
    %v7623 = vtanh.pop %v7560
    %v7624 = vtanh.pop %v6815
    %v7625 = vtanh.pop %v6817
    %v7626 = vtanh.pop %v6922
    %v7627 = vtanh.pop %v6924
    %v7628 = vtanh.pop %v7029
    %v7629 = vtanh.pop %v7031
    %v7630 = vtanh.pop %v7136
    %v7631 = vtanh.pop %v7138
    %v7632 = vtanh.pop %v7243
    %v7633 = vtanh.pop %v7245
    %v7634 = vtanh.pop %v7350
    %v7635 = vtanh.pop %v7352
    %v7636 = vtanh.pop %v7457
    %v7637 = vtanh.pop %v7459
    %v7638 = vtanh.pop %v7564
    %v7639 = vtanh.pop %v7566
    %v7640 = vtanh.pop %v6821
    %v7641 = vtanh.pop %v6823
    %v7642 = vtanh.pop %v6928
    %v7643 = vtanh.pop %v6930
    %v7644 = vtanh.pop %v7035
    %v7645 = vtanh.pop %v7037
    %v7646 = vtanh.pop %v7142
    %v7647 = vtanh.pop %v7144
    %v7648 = vtanh.pop %v7249
    %v7649 = vtanh.pop %v7251
    %v7650 = vtanh.pop %v7356
    %v7651 = vtanh.pop %v7358
    %v7652 = vtanh.pop %v7463
    %v7653 = vtanh.pop %v7465
    %v7654 = vtanh.pop %v7570
    %v7655 = vtanh.pop %v7572
    %v7656 = vtanh.pop %v6827
    %v7657 = vtanh.pop %v6829
    %v7658 = vtanh.pop %v6934
    %v7659 = vtanh.pop %v6936
    %v7660 = vtanh.pop %v7041
    %v7661 = vtanh.pop %v7043
    %v7662 = vtanh.pop %v7148
    %v7663 = vtanh.pop %v7150
    %v7664 = vtanh.pop %v7255
    %v7665 = vtanh.pop %v7257
    %v7666 = vtanh.pop %v7362
    %v7667 = vtanh.pop %v7364
    %v7668 = vtanh.pop %v7469
    %v7669 = vtanh.pop %v7471
    %v7670 = vtanh.pop %v7576
    %v7671 = vtanh.pop %v7578
    %v7672 = vtanh.pop %v6833
    %v7673 = vtanh.pop %v6835
    %v7674 = vtanh.pop %v6940
    %v7675 = vtanh.pop %v6942
    %v7676 = vtanh.pop %v7047
    %v7677 = vtanh.pop %v7049
    %v7678 = vtanh.pop %v7154
    %v7679 = vtanh.pop %v7156
    %v7680 = vtanh.pop %v7261
    %v7681 = vtanh.pop %v7263
    %v7682 = vtanh.pop %v7368
    %v7683 = vtanh.pop %v7370
    %v7684 = vtanh.pop %v7475
    %v7685 = vtanh.pop %v7477
    %v7686 = vtanh.pop %v7582
    %v7687 = vtanh.pop %v7584
    %v7688 = vtanh.pop %v6839
    %v7689 = vtanh.pop %v6841
    %v7690 = vtanh.pop %v6946
    %v7691 = vtanh.pop %v6948
    %v7692 = vtanh.pop %v7053
    %v7693 = vtanh.pop %v7055
    %v7694 = vtanh.pop %v7160
    %v7695 = vtanh.pop %v7162
    %v7696 = vtanh.pop %v7267
    %v7697 = vtanh.pop %v7269
    %v7698 = vtanh.pop %v7374
    %v7699 = vtanh.pop %v7376
    %v7700 = vtanh.pop %v7481
    %v7701 = vtanh.pop %v7483
    %v7702 = vtanh.pop %v7588
    %v7703 = vtanh.pop %v7590
    %s7704 = scalar_lea.vmem %s3, 336
    %v7705 = vld [vmem:[%s7704] sm:$0xff]
    %v7706 = vld [vmem:[%s7704 + $0x8] sm:$0xff]
    %v7707 = vld [vmem:[%s7704 + $0x10] sm:$0xff]
    %v7708 = vld [vmem:[%s7704 + $0x18] sm:$0xff]
    %v7709 = vld [vmem:[%s7704 + $0x20] sm:$0xff]
    %v7710 = vld [vmem:[%s7704 + $0x28] sm:$0xff]
    %v7711 = vld [vmem:[%s7704 + $0x30] sm:$0x3]
    %s7712 = scalar_lea.vmem %s4, 336
    %v7713 = vld [vmem:[%s7712] sm:$0xff]
    %v7714 = vld [vmem:[%s7712 + $0x8] sm:$0xff]
    %v7715 = vld [vmem:[%s7712 + $0x10] sm:$0xff]
    %v7716 = vld [vmem:[%s7712 + $0x18] sm:$0xff]
    %v7717 = vld [vmem:[%s7712 + $0x20] sm:$0xff]
    %v7718 = vld [vmem:[%s7712 + $0x28] sm:$0xff]
    %v7719 = vld [vmem:[%s7712 + $0x30] sm:$0x3]
    %7721 = vset.pattern.permute.xlu0 0
    %7722 = vperm.xlu0 %7721, %v7713
    %v7723 = vpop.permute.xlu0 %7722
    %7726 = vset.pattern.permute.xlu0 0
    %7727 = vperm.xlu0 %7726, %v7714
    %v7728 = vpop.permute.xlu0 %7727
    %7731 = vset.pattern.permute.xlu0 0
    %7732 = vperm.xlu0 %7731, %v7715
    %v7733 = vpop.permute.xlu0 %7732
    %7736 = vset.pattern.permute.xlu0 0
    %7737 = vperm.xlu0 %7736, %v7716
    %v7738 = vpop.permute.xlu0 %7737
    %7741 = vset.pattern.permute.xlu0 0
    %7742 = vperm.xlu0 %7741, %v7717
    %v7743 = vpop.permute.xlu0 %7742
    %7746 = vset.pattern.permute.xlu0 0
    %7747 = vperm.xlu0 %7746, %v7718
    %v7748 = vpop.permute.xlu0 %7747
    %7751 = vset.pattern.permute.xlu0 0
    %7752 = vperm.xlu0 %7751, %v7719
    %v7753 = vpop.permute.xlu0 %7752
    %v7756 = vsel %vm1226, %v7705, 0
    %v7759 = vsel %vm1226, %v7706, 0
    %v7762 = vsel %vm1226, %v7707, 0
    %v7765 = vsel %vm1226, %v7708, 0
    %v7768 = vsel %vm1226, %v7709, 0
    %v7771 = vsel %vm1226, %v7710, 0
    %v7774 = vsel %vm1226, %v7711, 0
    %v7777 = vsel %vm176, %v7688, 0
    %v7780 = vsel %vm176, %v7689, 0
    %v7783 = vsel %vm176, %v7690, 0
    %v7786 = vsel %vm176, %v7691, 0
    %v7789 = vsel %vm176, %v7692, 0
    %v7792 = vsel %vm176, %v7693, 0
    %v7795 = vsel %vm176, %v7694, 0
    %v7798 = vsel %vm176, %v7695, 0
    %v7801 = vsel %vm176, %v7696, 0
    %v7804 = vsel %vm176, %v7697, 0
    %v7807 = vsel %vm176, %v7698, 0
    %v7810 = vsel %vm176, %v7699, 0
    %v7813 = vsel %vm176, %v7700, 0
    %v7816 = vsel %vm176, %v7701, 0
    %v7819 = vsel %vm176, %v7702, 0
    %v7822 = vsel %vm176, %v7703, 0
    %7824 = vmatprep.subr.mxu0 0.0
    %7825 = vmatpush1.msra.mxu0 0.0
    %7826 = vmatprep.subr.mxu0 0.0
    %7827 = vmatpush1.msra.mxu0 0.0
    %7828 = vmatprep.subr.mxu0 0.0
    %7829 = vmatpush1.msra.mxu0 0.0
    %7830 = vmatprep.subr.mxu0 0.0
    %7831 = vmatpush1.msra.mxu0 0.0
    %7832 = vmatprep.subr.mxu0 0.0
    %7833 = vmatpush1.msra.mxu0 0.0
    %7834 = vmatprep.subr.mxu0 0.0
    %7835 = vmatpush1.msra.mxu0 0.0
    %7836 = vmatprep.subr.mxu0 0.0
    %7837 = vmatpush1.msra.mxu0 0.0
    %7838 = vmatprep.subr.mxu0 0.0
    %7839 = vmatpush1.msra.mxu0 0.0
    %7840 = vmatprep.subr.mxu0 0.0
    %7841 = vmatpush1.msra.mxu0 0.0
    %7842 = vmatprep.subr.mxu0 %v7780
    %7843 = vmatpush1.msra.mxu0 %v7777
    %7844 = vmatprep.subr.mxu0 %v7673
    %7845 = vmatpush1.msra.mxu0 %v7672
    %7846 = vmatprep.subr.mxu0 %v7657
    %7847 = vmatpush1.msra.mxu0 %v7656
    %7848 = vmatprep.subr.mxu0 %v7641
    %7849 = vmatpush1.msra.mxu0 %v7640
    %7850 = vmatprep.subr.mxu0 %v7625
    %7851 = vmatpush1.msra.mxu0 %v7624
    %7852 = vmatprep.subr.mxu0 %v7609
    %7853 = vmatpush1.msra.mxu0 %v7608
    %7854 = vmatprep.subr.mxu0 %v7593
    %7855 = vmatpush1.msra.mxu0 %v7592
    %7856 = vmatprep.subr.mxu0 0.0
    %7857 = vmatpush2.msra.mxu0 0.0
    %7858 = vmatprep.subr.mxu0 0.0
    %7859 = vmatpush2.msra.mxu0 0.0
    %7860 = vmatprep.subr.mxu0 0.0
    %7861 = vmatpush2.msra.mxu0 0.0
    %7862 = vmatprep.subr.mxu0 0.0
    %7863 = vmatpush2.msra.mxu0 0.0
    %7864 = vmatprep.subr.mxu0 0.0
    %7865 = vmatpush2.msra.mxu0 0.0
    %7866 = vmatprep.subr.mxu0 0.0
    %7867 = vmatpush2.msra.mxu0 0.0
    %7868 = vmatprep.subr.mxu0 0.0
    %7869 = vmatpush2.msra.mxu0 0.0
    %7870 = vmatprep.subr.mxu0 0.0
    %7871 = vmatpush2.msra.mxu0 0.0
    %7872 = vmatprep.subr.mxu0 0.0
    %7873 = vmatpush2.msra.mxu0 0.0
    %7874 = vmatprep.subr.mxu0 0.0
    %7875 = vmatpush2.msra.mxu0 0.0
    %7876 = vmatprep.subr.mxu0 0.0
    %7877 = vmatpush2.msra.mxu0 0.0
    %7878 = vmatprep.subr.mxu0 0.0
    %7879 = vmatpush2.msra.mxu0 0.0
    %7880 = vmatprep.subr.mxu0 0.0
    %7881 = vmatpush2.msra.mxu0 0.0
    %7882 = vmatprep.subr.mxu0 0.0
    %7883 = vmatpush2.msra.mxu0 0.0
    %7884 = vmatprep.subr.mxu0 0.0
    %7885 = vmatpush2.msra.mxu0 0.0
    %7886 = vmatprep.subr.mxu0 0.0
    %7887 = vmatpush2.msra.mxu0 0.0
    %7888 = vmatprep.mubr.f32.mxu0 0.0
    %7889 = vmatmul.mubr.f32.gmra.mxu0 %v7756
    %v7890 = vpop.f32.mrf.mxu0
    %v7891 = vadd.f32 %v7723, %v7890
    %v7892 = vpop.f32.mrf.mxu0
    %v7893 = vadd.f32 %v7723, %v7892
    %7894 = vmatprep.mubr.f32.mxu0 0.0
    %7895 = vmatmul.mubr.f32.gmra.mxu0 %v7759
    %v7896 = vpop.f32.mrf.mxu0
    %v7897 = vadd.f32 %v7728, %v7896
    %v7898 = vpop.f32.mrf.mxu0
    %v7899 = vadd.f32 %v7728, %v7898
    %7900 = vmatprep.mubr.f32.mxu0 0.0
    %7901 = vmatmul.mubr.f32.gmra.mxu0 %v7762
    %v7902 = vpop.f32.mrf.mxu0
    %v7903 = vadd.f32 %v7733, %v7902
    %v7904 = vpop.f32.mrf.mxu0
    %v7905 = vadd.f32 %v7733, %v7904
    %7906 = vmatprep.mubr.f32.mxu0 0.0
    %7907 = vmatmul.mubr.f32.gmra.mxu0 %v7765
    %v7908 = vpop.f32.mrf.mxu0
    %v7909 = vadd.f32 %v7738, %v7908
    %v7910 = vpop.f32.mrf.mxu0
    %v7911 = vadd.f32 %v7738, %v7910
    %7912 = vmatprep.mubr.f32.mxu0 0.0
    %7913 = vmatmul.mubr.f32.gmra.mxu0 %v7768
    %v7914 = vpop.f32.mrf.mxu0
    %v7915 = vadd.f32 %v7743, %v7914
    %v7916 = vpop.f32.mrf.mxu0
    %v7917 = vadd.f32 %v7743, %v7916
    %7918 = vmatprep.mubr.f32.mxu0 0.0
    %7919 = vmatmul.mubr.f32.gmra.mxu0 %v7771
    %v7920 = vpop.f32.mrf.mxu0
    %v7921 = vadd.f32 %v7748, %v7920
    %v7922 = vpop.f32.mrf.mxu0
    %v7923 = vadd.f32 %v7748, %v7922
    %7924 = vmatprep.mubr.f32.mxu0 0.0
    %7925 = vmatmul.mubr.f32.gmra.mxu0 %v7774
    %v7926 = vpop.f32.mrf.mxu0
    %v7927 = vadd.f32 %v7753, %v7926
    %v7928 = vpop.f32.mrf.mxu0
    %v7929 = vadd.f32 %v7753, %v7928
    %7930 = vdwg.mxu0
    %7931 = vmatprep.subr.mxu0 0.0
    %7932 = vmatpush1.msra.mxu0 0.0
    %7933 = vmatprep.subr.mxu0 0.0
    %7934 = vmatpush1.msra.mxu0 0.0
    %7935 = vmatprep.subr.mxu0 0.0
    %7936 = vmatpush1.msra.mxu0 0.0
    %7937 = vmatprep.subr.mxu0 0.0
    %7938 = vmatpush1.msra.mxu0 0.0
    %7939 = vmatprep.subr.mxu0 0.0
    %7940 = vmatpush1.msra.mxu0 0.0
    %7941 = vmatprep.subr.mxu0 0.0
    %7942 = vmatpush1.msra.mxu0 0.0
    %7943 = vmatprep.subr.mxu0 0.0
    %7944 = vmatpush1.msra.mxu0 0.0
    %7945 = vmatprep.subr.mxu0 0.0
    %7946 = vmatpush1.msra.mxu0 0.0
    %7947 = vmatprep.subr.mxu0 0.0
    %7948 = vmatpush1.msra.mxu0 0.0
    %7949 = vmatprep.subr.mxu0 %v7786
    %7950 = vmatpush1.msra.mxu0 %v7783
    %7951 = vmatprep.subr.mxu0 %v7675
    %7952 = vmatpush1.msra.mxu0 %v7674
    %7953 = vmatprep.subr.mxu0 %v7659
    %7954 = vmatpush1.msra.mxu0 %v7658
    %7955 = vmatprep.subr.mxu0 %v7643
    %7956 = vmatpush1.msra.mxu0 %v7642
    %7957 = vmatprep.subr.mxu0 %v7627
    %7958 = vmatpush1.msra.mxu0 %v7626
    %7959 = vmatprep.subr.mxu0 %v7611
    %7960 = vmatpush1.msra.mxu0 %v7610
    %7961 = vmatprep.subr.mxu0 %v7595
    %7962 = vmatpush1.msra.mxu0 %v7594
    %7963 = vmatprep.subr.mxu0 0.0
    %7964 = vmatpush2.msra.mxu0 0.0
    %7965 = vmatprep.subr.mxu0 0.0
    %7966 = vmatpush2.msra.mxu0 0.0
    %7967 = vmatprep.subr.mxu0 0.0
    %7968 = vmatpush2.msra.mxu0 0.0
    %7969 = vmatprep.subr.mxu0 0.0
    %7970 = vmatpush2.msra.mxu0 0.0
    %7971 = vmatprep.subr.mxu0 0.0
    %7972 = vmatpush2.msra.mxu0 0.0
    %7973 = vmatprep.subr.mxu0 0.0
    %7974 = vmatpush2.msra.mxu0 0.0
    %7975 = vmatprep.subr.mxu0 0.0
    %7976 = vmatpush2.msra.mxu0 0.0
    %7977 = vmatprep.subr.mxu0 0.0
    %7978 = vmatpush2.msra.mxu0 0.0
    %7979 = vmatprep.subr.mxu0 0.0
    %7980 = vmatpush2.msra.mxu0 0.0
    %7981 = vmatprep.subr.mxu0 0.0
    %7982 = vmatpush2.msra.mxu0 0.0
    %7983 = vmatprep.subr.mxu0 0.0
    %7984 = vmatpush2.msra.mxu0 0.0
    %7985 = vmatprep.subr.mxu0 0.0
    %7986 = vmatpush2.msra.mxu0 0.0
    %7987 = vmatprep.subr.mxu0 0.0
    %7988 = vmatpush2.msra.mxu0 0.0
    %7989 = vmatprep.subr.mxu0 0.0
    %7990 = vmatpush2.msra.mxu0 0.0
    %7991 = vmatprep.subr.mxu0 0.0
    %7992 = vmatpush2.msra.mxu0 0.0
    %7993 = vmatprep.subr.mxu0 0.0
    %7994 = vmatpush2.msra.mxu0 0.0
    %7995 = vmatprep.mubr.f32.mxu0 0.0
    %7996 = vmatmul.mubr.f32.gmra.mxu0 %v7756
    %v7997 = vpop.f32.mrf.mxu0
    %v7998 = vadd.f32 %v7723, %v7997
    %v7999 = vpop.f32.mrf.mxu0
    %v8000 = vadd.f32 %v7723, %v7999
    %8001 = vmatprep.mubr.f32.mxu0 0.0
    %8002 = vmatmul.mubr.f32.gmra.mxu0 %v7759
    %v8003 = vpop.f32.mrf.mxu0
    %v8004 = vadd.f32 %v7728, %v8003
    %v8005 = vpop.f32.mrf.mxu0
    %v8006 = vadd.f32 %v7728, %v8005
    %8007 = vmatprep.mubr.f32.mxu0 0.0
    %8008 = vmatmul.mubr.f32.gmra.mxu0 %v7762
    %v8009 = vpop.f32.mrf.mxu0
    %v8010 = vadd.f32 %v7733, %v8009
    %v8011 = vpop.f32.mrf.mxu0
    %v8012 = vadd.f32 %v7733, %v8011
    %8013 = vmatprep.mubr.f32.mxu0 0.0
    %8014 = vmatmul.mubr.f32.gmra.mxu0 %v7765
    %v8015 = vpop.f32.mrf.mxu0
    %v8016 = vadd.f32 %v7738, %v8015
    %v8017 = vpop.f32.mrf.mxu0
    %v8018 = vadd.f32 %v7738, %v8017
    %8019 = vmatprep.mubr.f32.mxu0 0.0
    %8020 = vmatmul.mubr.f32.gmra.mxu0 %v7768
    %v8021 = vpop.f32.mrf.mxu0
    %v8022 = vadd.f32 %v7743, %v8021
    %v8023 = vpop.f32.mrf.mxu0
    %v8024 = vadd.f32 %v7743, %v8023
    %8025 = vmatprep.mubr.f32.mxu0 0.0
    %8026 = vmatmul.mubr.f32.gmra.mxu0 %v7771
    %v8027 = vpop.f32.mrf.mxu0
    %v8028 = vadd.f32 %v7748, %v8027
    %v8029 = vpop.f32.mrf.mxu0
    %v8030 = vadd.f32 %v7748, %v8029
    %8031 = vmatprep.mubr.f32.mxu0 0.0
    %8032 = vmatmul.mubr.f32.gmra.mxu0 %v7774
    %v8033 = vpop.f32.mrf.mxu0
    %v8034 = vadd.f32 %v7753, %v8033
    %v8035 = vpop.f32.mrf.mxu0
    %v8036 = vadd.f32 %v7753, %v8035
    %8037 = vdwg.mxu0
    %8038 = vmatprep.subr.mxu0 0.0
    %8039 = vmatpush1.msra.mxu0 0.0
    %8040 = vmatprep.subr.mxu0 0.0
    %8041 = vmatpush1.msra.mxu0 0.0
    %8042 = vmatprep.subr.mxu0 0.0
    %8043 = vmatpush1.msra.mxu0 0.0
    %8044 = vmatprep.subr.mxu0 0.0
    %8045 = vmatpush1.msra.mxu0 0.0
    %8046 = vmatprep.subr.mxu0 0.0
    %8047 = vmatpush1.msra.mxu0 0.0
    %8048 = vmatprep.subr.mxu0 0.0
    %8049 = vmatpush1.msra.mxu0 0.0
    %8050 = vmatprep.subr.mxu0 0.0
    %8051 = vmatpush1.msra.mxu0 0.0
    %8052 = vmatprep.subr.mxu0 0.0
    %8053 = vmatpush1.msra.mxu0 0.0
    %8054 = vmatprep.subr.mxu0 0.0
    %8055 = vmatpush1.msra.mxu0 0.0
    %8056 = vmatprep.subr.mxu0 %v7792
    %8057 = vmatpush1.msra.mxu0 %v7789
    %8058 = vmatprep.subr.mxu0 %v7677
    %8059 = vmatpush1.msra.mxu0 %v7676
    %8060 = vmatprep.subr.mxu0 %v7661
    %8061 = vmatpush1.msra.mxu0 %v7660
    %8062 = vmatprep.subr.mxu0 %v7645
    %8063 = vmatpush1.msra.mxu0 %v7644
    %8064 = vmatprep.subr.mxu0 %v7629
    %8065 = vmatpush1.msra.mxu0 %v7628
    %8066 = vmatprep.subr.mxu0 %v7613
    %8067 = vmatpush1.msra.mxu0 %v7612
    %8068 = vmatprep.subr.mxu0 %v7597
    %8069 = vmatpush1.msra.mxu0 %v7596
    %8070 = vmatprep.subr.mxu0 0.0
    %8071 = vmatpush2.msra.mxu0 0.0
    %8072 = vmatprep.subr.mxu0 0.0
    %8073 = vmatpush2.msra.mxu0 0.0
    %8074 = vmatprep.subr.mxu0 0.0
    %8075 = vmatpush2.msra.mxu0 0.0
    %8076 = vmatprep.subr.mxu0 0.0
    %8077 = vmatpush2.msra.mxu0 0.0
    %8078 = vmatprep.subr.mxu0 0.0
    %8079 = vmatpush2.msra.mxu0 0.0
    %8080 = vmatprep.subr.mxu0 0.0
    %8081 = vmatpush2.msra.mxu0 0.0
    %8082 = vmatprep.subr.mxu0 0.0
    %8083 = vmatpush2.msra.mxu0 0.0
    %8084 = vmatprep.subr.mxu0 0.0
    %8085 = vmatpush2.msra.mxu0 0.0
    %8086 = vmatprep.subr.mxu0 0.0
    %8087 = vmatpush2.msra.mxu0 0.0
    %8088 = vmatprep.subr.mxu0 0.0
    %8089 = vmatpush2.msra.mxu0 0.0
    %8090 = vmatprep.subr.mxu0 0.0
    %8091 = vmatpush2.msra.mxu0 0.0
    %8092 = vmatprep.subr.mxu0 0.0
    %8093 = vmatpush2.msra.mxu0 0.0
    %8094 = vmatprep.subr.mxu0 0.0
    %8095 = vmatpush2.msra.mxu0 0.0
    %8096 = vmatprep.subr.mxu0 0.0
    %8097 = vmatpush2.msra.mxu0 0.0
    %8098 = vmatprep.subr.mxu0 0.0
    %8099 = vmatpush2.msra.mxu0 0.0
    %8100 = vmatprep.subr.mxu0 0.0
    %8101 = vmatpush2.msra.mxu0 0.0
    %8102 = vmatprep.mubr.f32.mxu0 0.0
    %8103 = vmatmul.mubr.f32.gmra.mxu0 %v7756
    %v8104 = vpop.f32.mrf.mxu0
    %v8105 = vadd.f32 %v7723, %v8104
    %v8106 = vpop.f32.mrf.mxu0
    %v8107 = vadd.f32 %v7723, %v8106
    %8108 = vmatprep.mubr.f32.mxu0 0.0
    %8109 = vmatmul.mubr.f32.gmra.mxu0 %v7759
    %v8110 = vpop.f32.mrf.mxu0
    %v8111 = vadd.f32 %v7728, %v8110
    %v8112 = vpop.f32.mrf.mxu0
    %v8113 = vadd.f32 %v7728, %v8112
    %8114 = vmatprep.mubr.f32.mxu0 0.0
    %8115 = vmatmul.mubr.f32.gmra.mxu0 %v7762
    %v8116 = vpop.f32.mrf.mxu0
    %v8117 = vadd.f32 %v7733, %v8116
    %v8118 = vpop.f32.mrf.mxu0
    %v8119 = vadd.f32 %v7733, %v8118
    %8120 = vmatprep.mubr.f32.mxu0 0.0
    %8121 = vmatmul.mubr.f32.gmra.mxu0 %v7765
    %v8122 = vpop.f32.mrf.mxu0
    %v8123 = vadd.f32 %v7738, %v8122
    %v8124 = vpop.f32.mrf.mxu0
    %v8125 = vadd.f32 %v7738, %v8124
    %8126 = vmatprep.mubr.f32.mxu0 0.0
    %8127 = vmatmul.mubr.f32.gmra.mxu0 %v7768
    %v8128 = vpop.f32.mrf.mxu0
    %v8129 = vadd.f32 %v7743, %v8128
    %v8130 = vpop.f32.mrf.mxu0
    %v8131 = vadd.f32 %v7743, %v8130
    %8132 = vmatprep.mubr.f32.mxu0 0.0
    %8133 = vmatmul.mubr.f32.gmra.mxu0 %v7771
    %v8134 = vpop.f32.mrf.mxu0
    %v8135 = vadd.f32 %v7748, %v8134
    %v8136 = vpop.f32.mrf.mxu0
    %v8137 = vadd.f32 %v7748, %v8136
    %8138 = vmatprep.mubr.f32.mxu0 0.0
    %8139 = vmatmul.mubr.f32.gmra.mxu0 %v7774
    %v8140 = vpop.f32.mrf.mxu0
    %v8141 = vadd.f32 %v7753, %v8140
    %v8142 = vpop.f32.mrf.mxu0
    %v8143 = vadd.f32 %v7753, %v8142
    %8144 = vdwg.mxu0
    %8145 = vmatprep.subr.mxu0 0.0
    %8146 = vmatpush1.msra.mxu0 0.0
    %8147 = vmatprep.subr.mxu0 0.0
    %8148 = vmatpush1.msra.mxu0 0.0
    %8149 = vmatprep.subr.mxu0 0.0
    %8150 = vmatpush1.msra.mxu0 0.0
    %8151 = vmatprep.subr.mxu0 0.0
    %8152 = vmatpush1.msra.mxu0 0.0
    %8153 = vmatprep.subr.mxu0 0.0
    %8154 = vmatpush1.msra.mxu0 0.0
    %8155 = vmatprep.subr.mxu0 0.0
    %8156 = vmatpush1.msra.mxu0 0.0
    %8157 = vmatprep.subr.mxu0 0.0
    %8158 = vmatpush1.msra.mxu0 0.0
    %8159 = vmatprep.subr.mxu0 0.0
    %8160 = vmatpush1.msra.mxu0 0.0
    %8161 = vmatprep.subr.mxu0 0.0
    %8162 = vmatpush1.msra.mxu0 0.0
    %8163 = vmatprep.subr.mxu0 %v7798
    %8164 = vmatpush1.msra.mxu0 %v7795
    %8165 = vmatprep.subr.mxu0 %v7679
    %8166 = vmatpush1.msra.mxu0 %v7678
    %8167 = vmatprep.subr.mxu0 %v7663
    %8168 = vmatpush1.msra.mxu0 %v7662
    %8169 = vmatprep.subr.mxu0 %v7647
    %8170 = vmatpush1.msra.mxu0 %v7646
    %8171 = vmatprep.subr.mxu0 %v7631
    %8172 = vmatpush1.msra.mxu0 %v7630
    %8173 = vmatprep.subr.mxu0 %v7615
    %8174 = vmatpush1.msra.mxu0 %v7614
    %8175 = vmatprep.subr.mxu0 %v7599
    %8176 = vmatpush1.msra.mxu0 %v7598
    %8177 = vmatprep.subr.mxu0 0.0
    %8178 = vmatpush2.msra.mxu0 0.0
    %8179 = vmatprep.subr.mxu0 0.0
    %8180 = vmatpush2.msra.mxu0 0.0
    %8181 = vmatprep.subr.mxu0 0.0
    %8182 = vmatpush2.msra.mxu0 0.0
    %8183 = vmatprep.subr.mxu0 0.0
    %8184 = vmatpush2.msra.mxu0 0.0
    %8185 = vmatprep.subr.mxu0 0.0
    %8186 = vmatpush2.msra.mxu0 0.0
    %8187 = vmatprep.subr.mxu0 0.0
    %8188 = vmatpush2.msra.mxu0 0.0
    %8189 = vmatprep.subr.mxu0 0.0
    %8190 = vmatpush2.msra.mxu0 0.0
    %8191 = vmatprep.subr.mxu0 0.0
    %8192 = vmatpush2.msra.mxu0 0.0
    %8193 = vmatprep.subr.mxu0 0.0
    %8194 = vmatpush2.msra.mxu0 0.0
    %8195 = vmatprep.subr.mxu0 0.0
    %8196 = vmatpush2.msra.mxu0 0.0
    %8197 = vmatprep.subr.mxu0 0.0
    %8198 = vmatpush2.msra.mxu0 0.0
    %8199 = vmatprep.subr.mxu0 0.0
    %8200 = vmatpush2.msra.mxu0 0.0
    %8201 = vmatprep.subr.mxu0 0.0
    %8202 = vmatpush2.msra.mxu0 0.0
    %8203 = vmatprep.subr.mxu0 0.0
    %8204 = vmatpush2.msra.mxu0 0.0
    %8205 = vmatprep.subr.mxu0 0.0
    %8206 = vmatpush2.msra.mxu0 0.0
    %8207 = vmatprep.subr.mxu0 0.0
    %8208 = vmatpush2.msra.mxu0 0.0
    %8209 = vmatprep.mubr.f32.mxu0 0.0
    %8210 = vmatmul.mubr.f32.gmra.mxu0 %v7756
    %v8211 = vpop.f32.mrf.mxu0
    %v8212 = vadd.f32 %v7723, %v8211
    %v8213 = vpop.f32.mrf.mxu0
    %v8214 = vadd.f32 %v7723, %v8213
    %8215 = vmatprep.mubr.f32.mxu0 0.0
    %8216 = vmatmul.mubr.f32.gmra.mxu0 %v7759
    %v8217 = vpop.f32.mrf.mxu0
    %v8218 = vadd.f32 %v7728, %v8217
    %v8219 = vpop.f32.mrf.mxu0
    %v8220 = vadd.f32 %v7728, %v8219
    %8221 = vmatprep.mubr.f32.mxu0 0.0
    %8222 = vmatmul.mubr.f32.gmra.mxu0 %v7762
    %v8223 = vpop.f32.mrf.mxu0
    %v8224 = vadd.f32 %v7733, %v8223
    %v8225 = vpop.f32.mrf.mxu0
    %v8226 = vadd.f32 %v7733, %v8225
    %8227 = vmatprep.mubr.f32.mxu0 0.0
    %8228 = vmatmul.mubr.f32.gmra.mxu0 %v7765
    %v8229 = vpop.f32.mrf.mxu0
    %v8230 = vadd.f32 %v7738, %v8229
    %v8231 = vpop.f32.mrf.mxu0
    %v8232 = vadd.f32 %v7738, %v8231
    %8233 = vmatprep.mubr.f32.mxu0 0.0
    %8234 = vmatmul.mubr.f32.gmra.mxu0 %v7768
    %v8235 = vpop.f32.mrf.mxu0
    %v8236 = vadd.f32 %v7743, %v8235
    %v8237 = vpop.f32.mrf.mxu0
    %v8238 = vadd.f32 %v7743, %v8237
    %8239 = vmatprep.mubr.f32.mxu0 0.0
    %8240 = vmatmul.mubr.f32.gmra.mxu0 %v7771
    %v8241 = vpop.f32.mrf.mxu0
    %v8242 = vadd.f32 %v7748, %v8241
    %v8243 = vpop.f32.mrf.mxu0
    %v8244 = vadd.f32 %v7748, %v8243
    %8245 = vmatprep.mubr.f32.mxu0 0.0
    %8246 = vmatmul.mubr.f32.gmra.mxu0 %v7774
    %v8247 = vpop.f32.mrf.mxu0
    %v8248 = vadd.f32 %v7753, %v8247
    %v8249 = vpop.f32.mrf.mxu0
    %v8250 = vadd.f32 %v7753, %v8249
    %8251 = vdwg.mxu0
    %8252 = vmatprep.subr.mxu0 0.0
    %8253 = vmatpush1.msra.mxu0 0.0
    %8254 = vmatprep.subr.mxu0 0.0
    %8255 = vmatpush1.msra.mxu0 0.0
    %8256 = vmatprep.subr.mxu0 0.0
    %8257 = vmatpush1.msra.mxu0 0.0
    %8258 = vmatprep.subr.mxu0 0.0
    %8259 = vmatpush1.msra.mxu0 0.0
    %8260 = vmatprep.subr.mxu0 0.0
    %8261 = vmatpush1.msra.mxu0 0.0
    %8262 = vmatprep.subr.mxu0 0.0
    %8263 = vmatpush1.msra.mxu0 0.0
    %8264 = vmatprep.subr.mxu0 0.0
    %8265 = vmatpush1.msra.mxu0 0.0
    %8266 = vmatprep.subr.mxu0 0.0
    %8267 = vmatpush1.msra.mxu0 0.0
    %8268 = vmatprep.subr.mxu0 0.0
    %8269 = vmatpush1.msra.mxu0 0.0
    %8270 = vmatprep.subr.mxu0 %v7804
    %8271 = vmatpush1.msra.mxu0 %v7801
    %8272 = vmatprep.subr.mxu0 %v7681
    %8273 = vmatpush1.msra.mxu0 %v7680
    %8274 = vmatprep.subr.mxu0 %v7665
    %8275 = vmatpush1.msra.mxu0 %v7664
    %8276 = vmatprep.subr.mxu0 %v7649
    %8277 = vmatpush1.msra.mxu0 %v7648
    %8278 = vmatprep.subr.mxu0 %v7633
    %8279 = vmatpush1.msra.mxu0 %v7632
    %8280 = vmatprep.subr.mxu0 %v7617
    %8281 = vmatpush1.msra.mxu0 %v7616
    %8282 = vmatprep.subr.mxu0 %v7601
    %8283 = vmatpush1.msra.mxu0 %v7600
    %8284 = vmatprep.subr.mxu0 0.0
    %8285 = vmatpush2.msra.mxu0 0.0
    %8286 = vmatprep.subr.mxu0 0.0
    %8287 = vmatpush2.msra.mxu0 0.0
    %8288 = vmatprep.subr.mxu0 0.0
    %8289 = vmatpush2.msra.mxu0 0.0
    %8290 = vmatprep.subr.mxu0 0.0
    %8291 = vmatpush2.msra.mxu0 0.0
    %8292 = vmatprep.subr.mxu0 0.0
    %8293 = vmatpush2.msra.mxu0 0.0
    %8294 = vmatprep.subr.mxu0 0.0
    %8295 = vmatpush2.msra.mxu0 0.0
    %8296 = vmatprep.subr.mxu0 0.0
    %8297 = vmatpush2.msra.mxu0 0.0
    %8298 = vmatprep.subr.mxu0 0.0
    %8299 = vmatpush2.msra.mxu0 0.0
    %8300 = vmatprep.subr.mxu0 0.0
    %8301 = vmatpush2.msra.mxu0 0.0
    %8302 = vmatprep.subr.mxu0 0.0
    %8303 = vmatpush2.msra.mxu0 0.0
    %8304 = vmatprep.subr.mxu0 0.0
    %8305 = vmatpush2.msra.mxu0 0.0
    %8306 = vmatprep.subr.mxu0 0.0
    %8307 = vmatpush2.msra.mxu0 0.0
    %8308 = vmatprep.subr.mxu0 0.0
    %8309 = vmatpush2.msra.mxu0 0.0
    %8310 = vmatprep.subr.mxu0 0.0
    %8311 = vmatpush2.msra.mxu0 0.0
    %8312 = vmatprep.subr.mxu0 0.0
    %8313 = vmatpush2.msra.mxu0 0.0
    %8314 = vmatprep.subr.mxu0 0.0
    %8315 = vmatpush2.msra.mxu0 0.0
    %8316 = vmatprep.mubr.f32.mxu0 0.0
    %8317 = vmatmul.mubr.f32.gmra.mxu0 %v7756
    %v8318 = vpop.f32.mrf.mxu0
    %v8319 = vadd.f32 %v7723, %v8318
    %v8320 = vpop.f32.mrf.mxu0
    %v8321 = vadd.f32 %v7723, %v8320
    %8322 = vmatprep.mubr.f32.mxu0 0.0
    %8323 = vmatmul.mubr.f32.gmra.mxu0 %v7759
    %v8324 = vpop.f32.mrf.mxu0
    %v8325 = vadd.f32 %v7728, %v8324
    %v8326 = vpop.f32.mrf.mxu0
    %v8327 = vadd.f32 %v7728, %v8326
    %8328 = vmatprep.mubr.f32.mxu0 0.0
    %8329 = vmatmul.mubr.f32.gmra.mxu0 %v7762
    %v8330 = vpop.f32.mrf.mxu0
    %v8331 = vadd.f32 %v7733, %v8330
    %v8332 = vpop.f32.mrf.mxu0
    %v8333 = vadd.f32 %v7733, %v8332
    %8334 = vmatprep.mubr.f32.mxu0 0.0
    %8335 = vmatmul.mubr.f32.gmra.mxu0 %v7765
    %v8336 = vpop.f32.mrf.mxu0
    %v8337 = vadd.f32 %v7738, %v8336
    %v8338 = vpop.f32.mrf.mxu0
    %v8339 = vadd.f32 %v7738, %v8338
    %8340 = vmatprep.mubr.f32.mxu0 0.0
    %8341 = vmatmul.mubr.f32.gmra.mxu0 %v7768
    %v8342 = vpop.f32.mrf.mxu0
    %v8343 = vadd.f32 %v7743, %v8342
    %v8344 = vpop.f32.mrf.mxu0
    %v8345 = vadd.f32 %v7743, %v8344
    %8346 = vmatprep.mubr.f32.mxu0 0.0
    %8347 = vmatmul.mubr.f32.gmra.mxu0 %v7771
    %v8348 = vpop.f32.mrf.mxu0
    %v8349 = vadd.f32 %v7748, %v8348
    %v8350 = vpop.f32.mrf.mxu0
    %v8351 = vadd.f32 %v7748, %v8350
    %8352 = vmatprep.mubr.f32.mxu0 0.0
    %8353 = vmatmul.mubr.f32.gmra.mxu0 %v7774
    %v8354 = vpop.f32.mrf.mxu0
    %v8355 = vadd.f32 %v7753, %v8354
    %v8356 = vpop.f32.mrf.mxu0
    %v8357 = vadd.f32 %v7753, %v8356
    %8358 = vdwg.mxu0
    %8359 = vmatprep.subr.mxu0 0.0
    %8360 = vmatpush1.msra.mxu0 0.0
    %8361 = vmatprep.subr.mxu0 0.0
    %8362 = vmatpush1.msra.mxu0 0.0
    %8363 = vmatprep.subr.mxu0 0.0
    %8364 = vmatpush1.msra.mxu0 0.0
    %8365 = vmatprep.subr.mxu0 0.0
    %8366 = vmatpush1.msra.mxu0 0.0
    %8367 = vmatprep.subr.mxu0 0.0
    %8368 = vmatpush1.msra.mxu0 0.0
    %8369 = vmatprep.subr.mxu0 0.0
    %8370 = vmatpush1.msra.mxu0 0.0
    %8371 = vmatprep.subr.mxu0 0.0
    %8372 = vmatpush1.msra.mxu0 0.0
    %8373 = vmatprep.subr.mxu0 0.0
    %8374 = vmatpush1.msra.mxu0 0.0
    %8375 = vmatprep.subr.mxu0 0.0
    %8376 = vmatpush1.msra.mxu0 0.0
    %8377 = vmatprep.subr.mxu0 %v7810
    %8378 = vmatpush1.msra.mxu0 %v7807
    %8379 = vmatprep.subr.mxu0 %v7683
    %8380 = vmatpush1.msra.mxu0 %v7682
    %8381 = vmatprep.subr.mxu0 %v7667
    %8382 = vmatpush1.msra.mxu0 %v7666
    %8383 = vmatprep.subr.mxu0 %v7651
    %8384 = vmatpush1.msra.mxu0 %v7650
    %8385 = vmatprep.subr.mxu0 %v7635
    %8386 = vmatpush1.msra.mxu0 %v7634
    %8387 = vmatprep.subr.mxu0 %v7619
    %8388 = vmatpush1.msra.mxu0 %v7618
    %8389 = vmatprep.subr.mxu0 %v7603
    %8390 = vmatpush1.msra.mxu0 %v7602
    %8391 = vmatprep.subr.mxu0 0.0
    %8392 = vmatpush2.msra.mxu0 0.0
    %8393 = vmatprep.subr.mxu0 0.0
    %8394 = vmatpush2.msra.mxu0 0.0
    %8395 = vmatprep.subr.mxu0 0.0
    %8396 = vmatpush2.msra.mxu0 0.0
    %8397 = vmatprep.subr.mxu0 0.0
    %8398 = vmatpush2.msra.mxu0 0.0
    %8399 = vmatprep.subr.mxu0 0.0
    %8400 = vmatpush2.msra.mxu0 0.0
    %8401 = vmatprep.subr.mxu0 0.0
    %8402 = vmatpush2.msra.mxu0 0.0
    %8403 = vmatprep.subr.mxu0 0.0
    %8404 = vmatpush2.msra.mxu0 0.0
    %8405 = vmatprep.subr.mxu0 0.0
    %8406 = vmatpush2.msra.mxu0 0.0
    %8407 = vmatprep.subr.mxu0 0.0
    %8408 = vmatpush2.msra.mxu0 0.0
    %8409 = vmatprep.subr.mxu0 0.0
    %8410 = vmatpush2.msra.mxu0 0.0
    %8411 = vmatprep.subr.mxu0 0.0
    %8412 = vmatpush2.msra.mxu0 0.0
    %8413 = vmatprep.subr.mxu0 0.0
    %8414 = vmatpush2.msra.mxu0 0.0
    %8415 = vmatprep.subr.mxu0 0.0
    %8416 = vmatpush2.msra.mxu0 0.0
    %8417 = vmatprep.subr.mxu0 0.0
    %8418 = vmatpush2.msra.mxu0 0.0
    %8419 = vmatprep.subr.mxu0 0.0
    %8420 = vmatpush2.msra.mxu0 0.0
    %8421 = vmatprep.subr.mxu0 0.0
    %8422 = vmatpush2.msra.mxu0 0.0
    %8423 = vmatprep.mubr.f32.mxu0 0.0
    %8424 = vmatmul.mubr.f32.gmra.mxu0 %v7756
    %v8425 = vpop.f32.mrf.mxu0
    %v8426 = vadd.f32 %v7723, %v8425
    %v8427 = vpop.f32.mrf.mxu0
    %v8428 = vadd.f32 %v7723, %v8427
    %8429 = vmatprep.mubr.f32.mxu0 0.0
    %8430 = vmatmul.mubr.f32.gmra.mxu0 %v7759
    %v8431 = vpop.f32.mrf.mxu0
    %v8432 = vadd.f32 %v7728, %v8431
    %v8433 = vpop.f32.mrf.mxu0
    %v8434 = vadd.f32 %v7728, %v8433
    %8435 = vmatprep.mubr.f32.mxu0 0.0
    %8436 = vmatmul.mubr.f32.gmra.mxu0 %v7762
    %v8437 = vpop.f32.mrf.mxu0
    %v8438 = vadd.f32 %v7733, %v8437
    %v8439 = vpop.f32.mrf.mxu0
    %v8440 = vadd.f32 %v7733, %v8439
    %8441 = vmatprep.mubr.f32.mxu0 0.0
    %8442 = vmatmul.mubr.f32.gmra.mxu0 %v7765
    %v8443 = vpop.f32.mrf.mxu0
    %v8444 = vadd.f32 %v7738, %v8443
    %v8445 = vpop.f32.mrf.mxu0
    %v8446 = vadd.f32 %v7738, %v8445
    %8447 = vmatprep.mubr.f32.mxu0 0.0
    %8448 = vmatmul.mubr.f32.gmra.mxu0 %v7768
    %v8449 = vpop.f32.mrf.mxu0
    %v8450 = vadd.f32 %v7743, %v8449
    %v8451 = vpop.f32.mrf.mxu0
    %v8452 = vadd.f32 %v7743, %v8451
    %8453 = vmatprep.mubr.f32.mxu0 0.0
    %8454 = vmatmul.mubr.f32.gmra.mxu0 %v7771
    %v8455 = vpop.f32.mrf.mxu0
    %v8456 = vadd.f32 %v7748, %v8455
    %v8457 = vpop.f32.mrf.mxu0
    %v8458 = vadd.f32 %v7748, %v8457
    %8459 = vmatprep.mubr.f32.mxu0 0.0
    %8460 = vmatmul.mubr.f32.gmra.mxu0 %v7774
    %v8461 = vpop.f32.mrf.mxu0
    %v8462 = vadd.f32 %v7753, %v8461
    %v8463 = vpop.f32.mrf.mxu0
    %v8464 = vadd.f32 %v7753, %v8463
    %8465 = vdwg.mxu0
    %8466 = vmatprep.subr.mxu0 0.0
    %8467 = vmatpush1.msra.mxu0 0.0
    %8468 = vmatprep.subr.mxu0 0.0
    %8469 = vmatpush1.msra.mxu0 0.0
    %8470 = vmatprep.subr.mxu0 0.0
    %8471 = vmatpush1.msra.mxu0 0.0
    %8472 = vmatprep.subr.mxu0 0.0
    %8473 = vmatpush1.msra.mxu0 0.0
    %8474 = vmatprep.subr.mxu0 0.0
    %8475 = vmatpush1.msra.mxu0 0.0
    %8476 = vmatprep.subr.mxu0 0.0
    %8477 = vmatpush1.msra.mxu0 0.0
    %8478 = vmatprep.subr.mxu0 0.0
    %8479 = vmatpush1.msra.mxu0 0.0
    %8480 = vmatprep.subr.mxu0 0.0
    %8481 = vmatpush1.msra.mxu0 0.0
    %8482 = vmatprep.subr.mxu0 0.0
    %8483 = vmatpush1.msra.mxu0 0.0
    %8484 = vmatprep.subr.mxu0 %v7816
    %8485 = vmatpush1.msra.mxu0 %v7813
    %8486 = vmatprep.subr.mxu0 %v7685
    %8487 = vmatpush1.msra.mxu0 %v7684
    %8488 = vmatprep.subr.mxu0 %v7669
    %8489 = vmatpush1.msra.mxu0 %v7668
    %8490 = vmatprep.subr.mxu0 %v7653
    %8491 = vmatpush1.msra.mxu0 %v7652
    %8492 = vmatprep.subr.mxu0 %v7637
    %8493 = vmatpush1.msra.mxu0 %v7636
    %8494 = vmatprep.subr.mxu0 %v7621
    %8495 = vmatpush1.msra.mxu0 %v7620
    %8496 = vmatprep.subr.mxu0 %v7605
    %8497 = vmatpush1.msra.mxu0 %v7604
    %8498 = vmatprep.subr.mxu0 0.0
    %8499 = vmatpush2.msra.mxu0 0.0
    %8500 = vmatprep.subr.mxu0 0.0
    %8501 = vmatpush2.msra.mxu0 0.0
    %8502 = vmatprep.subr.mxu0 0.0
    %8503 = vmatpush2.msra.mxu0 0.0
    %8504 = vmatprep.subr.mxu0 0.0
    %8505 = vmatpush2.msra.mxu0 0.0
    %8506 = vmatprep.subr.mxu0 0.0
    %8507 = vmatpush2.msra.mxu0 0.0
    %8508 = vmatprep.subr.mxu0 0.0
    %8509 = vmatpush2.msra.mxu0 0.0
    %8510 = vmatprep.subr.mxu0 0.0
    %8511 = vmatpush2.msra.mxu0 0.0
    %8512 = vmatprep.subr.mxu0 0.0
    %8513 = vmatpush2.msra.mxu0 0.0
    %8514 = vmatprep.subr.mxu0 0.0
    %8515 = vmatpush2.msra.mxu0 0.0
    %8516 = vmatprep.subr.mxu0 0.0
    %8517 = vmatpush2.msra.mxu0 0.0
    %8518 = vmatprep.subr.mxu0 0.0
    %8519 = vmatpush2.msra.mxu0 0.0
    %8520 = vmatprep.subr.mxu0 0.0
    %8521 = vmatpush2.msra.mxu0 0.0
    %8522 = vmatprep.subr.mxu0 0.0
    %8523 = vmatpush2.msra.mxu0 0.0
    %8524 = vmatprep.subr.mxu0 0.0
    %8525 = vmatpush2.msra.mxu0 0.0
    %8526 = vmatprep.subr.mxu0 0.0
    %8527 = vmatpush2.msra.mxu0 0.0
    %8528 = vmatprep.subr.mxu0 0.0
    %8529 = vmatpush2.msra.mxu0 0.0
    %8530 = vmatprep.mubr.f32.mxu0 0.0
    %8531 = vmatmul.mubr.f32.gmra.mxu0 %v7756
    %v8532 = vpop.f32.mrf.mxu0
    %v8533 = vadd.f32 %v7723, %v8532
    %v8534 = vpop.f32.mrf.mxu0
    %v8535 = vadd.f32 %v7723, %v8534
    %8536 = vmatprep.mubr.f32.mxu0 0.0
    %8537 = vmatmul.mubr.f32.gmra.mxu0 %v7759
    %v8538 = vpop.f32.mrf.mxu0
    %v8539 = vadd.f32 %v7728, %v8538
    %v8540 = vpop.f32.mrf.mxu0
    %v8541 = vadd.f32 %v7728, %v8540
    %8542 = vmatprep.mubr.f32.mxu0 0.0
    %8543 = vmatmul.mubr.f32.gmra.mxu0 %v7762
    %v8544 = vpop.f32.mrf.mxu0
    %v8545 = vadd.f32 %v7733, %v8544
    %v8546 = vpop.f32.mrf.mxu0
    %v8547 = vadd.f32 %v7733, %v8546
    %8548 = vmatprep.mubr.f32.mxu0 0.0
    %8549 = vmatmul.mubr.f32.gmra.mxu0 %v7765
    %v8550 = vpop.f32.mrf.mxu0
    %v8551 = vadd.f32 %v7738, %v8550
    %v8552 = vpop.f32.mrf.mxu0
    %v8553 = vadd.f32 %v7738, %v8552
    %8554 = vmatprep.mubr.f32.mxu0 0.0
    %8555 = vmatmul.mubr.f32.gmra.mxu0 %v7768
    %v8556 = vpop.f32.mrf.mxu0
    %v8557 = vadd.f32 %v7743, %v8556
    %v8558 = vpop.f32.mrf.mxu0
    %v8559 = vadd.f32 %v7743, %v8558
    %8560 = vmatprep.mubr.f32.mxu0 0.0
    %8561 = vmatmul.mubr.f32.gmra.mxu0 %v7771
    %v8562 = vpop.f32.mrf.mxu0
    %v8563 = vadd.f32 %v7748, %v8562
    %v8564 = vpop.f32.mrf.mxu0
    %v8565 = vadd.f32 %v7748, %v8564
    %8566 = vmatprep.mubr.f32.mxu0 0.0
    %8567 = vmatmul.mubr.f32.gmra.mxu0 %v7774
    %v8568 = vpop.f32.mrf.mxu0
    %v8569 = vadd.f32 %v7753, %v8568
    %v8570 = vpop.f32.mrf.mxu0
    %v8571 = vadd.f32 %v7753, %v8570
    %8572 = vdwg.mxu0
    %8573 = vmatprep.subr.mxu0 0.0
    %8574 = vmatpush1.msra.mxu0 0.0
    %8575 = vmatprep.subr.mxu0 0.0
    %8576 = vmatpush1.msra.mxu0 0.0
    %8577 = vmatprep.subr.mxu0 0.0
    %8578 = vmatpush1.msra.mxu0 0.0
    %8579 = vmatprep.subr.mxu0 0.0
    %8580 = vmatpush1.msra.mxu0 0.0
    %8581 = vmatprep.subr.mxu0 0.0
    %8582 = vmatpush1.msra.mxu0 0.0
    %8583 = vmatprep.subr.mxu0 0.0
    %8584 = vmatpush1.msra.mxu0 0.0
    %8585 = vmatprep.subr.mxu0 0.0
    %8586 = vmatpush1.msra.mxu0 0.0
    %8587 = vmatprep.subr.mxu0 0.0
    %8588 = vmatpush1.msra.mxu0 0.0
    %8589 = vmatprep.subr.mxu0 0.0
    %8590 = vmatpush1.msra.mxu0 0.0
    %8591 = vmatprep.subr.mxu0 %v7822
    %8592 = vmatpush1.msra.mxu0 %v7819
    %8593 = vmatprep.subr.mxu0 %v7687
    %8594 = vmatpush1.msra.mxu0 %v7686
    %8595 = vmatprep.subr.mxu0 %v7671
    %8596 = vmatpush1.msra.mxu0 %v7670
    %8597 = vmatprep.subr.mxu0 %v7655
    %8598 = vmatpush1.msra.mxu0 %v7654
    %8599 = vmatprep.subr.mxu0 %v7639
    %8600 = vmatpush1.msra.mxu0 %v7638
    %8601 = vmatprep.subr.mxu0 %v7623
    %8602 = vmatpush1.msra.mxu0 %v7622
    %8603 = vmatprep.subr.mxu0 %v7607
    %8604 = vmatpush1.msra.mxu0 %v7606
    %8605 = vmatprep.subr.mxu0 0.0
    %8606 = vmatpush2.msra.mxu0 0.0
    %8607 = vmatprep.subr.mxu0 0.0
    %8608 = vmatpush2.msra.mxu0 0.0
    %8609 = vmatprep.subr.mxu0 0.0
    %8610 = vmatpush2.msra.mxu0 0.0
    %8611 = vmatprep.subr.mxu0 0.0
    %8612 = vmatpush2.msra.mxu0 0.0
    %8613 = vmatprep.subr.mxu0 0.0
    %8614 = vmatpush2.msra.mxu0 0.0
    %8615 = vmatprep.subr.mxu0 0.0
    %8616 = vmatpush2.msra.mxu0 0.0
    %8617 = vmatprep.subr.mxu0 0.0
    %8618 = vmatpush2.msra.mxu0 0.0
    %8619 = vmatprep.subr.mxu0 0.0
    %8620 = vmatpush2.msra.mxu0 0.0
    %8621 = vmatprep.subr.mxu0 0.0
    %8622 = vmatpush2.msra.mxu0 0.0
    %8623 = vmatprep.subr.mxu0 0.0
    %8624 = vmatpush2.msra.mxu0 0.0
    %8625 = vmatprep.subr.mxu0 0.0
    %8626 = vmatpush2.msra.mxu0 0.0
    %8627 = vmatprep.subr.mxu0 0.0
    %8628 = vmatpush2.msra.mxu0 0.0
    %8629 = vmatprep.subr.mxu0 0.0
    %8630 = vmatpush2.msra.mxu0 0.0
    %8631 = vmatprep.subr.mxu0 0.0
    %8632 = vmatpush2.msra.mxu0 0.0
    %8633 = vmatprep.subr.mxu0 0.0
    %8634 = vmatpush2.msra.mxu0 0.0
    %8635 = vmatprep.subr.mxu0 0.0
    %8636 = vmatpush2.msra.mxu0 0.0
    %8637 = vmatprep.mubr.f32.mxu0 0.0
    %8638 = vmatmul.mubr.f32.gmra.mxu0 %v7756
    %v8639 = vpop.f32.mrf.mxu0
    %v8640 = vadd.f32 %v7723, %v8639
    %v8641 = vpop.f32.mrf.mxu0
    %v8642 = vadd.f32 %v7723, %v8641
    %8643 = vmatprep.mubr.f32.mxu0 0.0
    %8644 = vmatmul.mubr.f32.gmra.mxu0 %v7759
    %v8645 = vpop.f32.mrf.mxu0
    %v8646 = vadd.f32 %v7728, %v8645
    %v8647 = vpop.f32.mrf.mxu0
    %v8648 = vadd.f32 %v7728, %v8647
    %8649 = vmatprep.mubr.f32.mxu0 0.0
    %8650 = vmatmul.mubr.f32.gmra.mxu0 %v7762
    %v8651 = vpop.f32.mrf.mxu0
    %v8652 = vadd.f32 %v7733, %v8651
    %v8653 = vpop.f32.mrf.mxu0
    %v8654 = vadd.f32 %v7733, %v8653
    %8655 = vmatprep.mubr.f32.mxu0 0.0
    %8656 = vmatmul.mubr.f32.gmra.mxu0 %v7765
    %v8657 = vpop.f32.mrf.mxu0
    %v8658 = vadd.f32 %v7738, %v8657
    %v8659 = vpop.f32.mrf.mxu0
    %v8660 = vadd.f32 %v7738, %v8659
    %8661 = vmatprep.mubr.f32.mxu0 0.0
    %8662 = vmatmul.mubr.f32.gmra.mxu0 %v7768
    %v8663 = vpop.f32.mrf.mxu0
    %v8664 = vadd.f32 %v7743, %v8663
    %v8665 = vpop.f32.mrf.mxu0
    %v8666 = vadd.f32 %v7743, %v8665
    %8667 = vmatprep.mubr.f32.mxu0 0.0
    %8668 = vmatmul.mubr.f32.gmra.mxu0 %v7771
    %v8669 = vpop.f32.mrf.mxu0
    %v8670 = vadd.f32 %v7748, %v8669
    %v8671 = vpop.f32.mrf.mxu0
    %v8672 = vadd.f32 %v7748, %v8671
    %8673 = vmatprep.mubr.f32.mxu0 0.0
    %8674 = vmatmul.mubr.f32.gmra.mxu0 %v7774
    %v8675 = vpop.f32.mrf.mxu0
    %v8676 = vadd.f32 %v7753, %v8675
    %v8677 = vpop.f32.mrf.mxu0
    %v8678 = vadd.f32 %v7753, %v8677
    %8679 = vdwg.mxu0
    %v8680 = vtanh.pop %v7891
    %v8681 = vtanh.pop %v7893
    %v8682 = vtanh.pop %v7998
    %v8683 = vtanh.pop %v8000
    %v8684 = vtanh.pop %v8105
    %v8685 = vtanh.pop %v8107
    %v8686 = vtanh.pop %v8212
    %v8687 = vtanh.pop %v8214
    %v8688 = vtanh.pop %v8319
    %v8689 = vtanh.pop %v8321
    %v8690 = vtanh.pop %v8426
    %v8691 = vtanh.pop %v8428
    %v8692 = vtanh.pop %v8533
    %v8693 = vtanh.pop %v8535
    %v8694 = vtanh.pop %v8640
    %v8695 = vtanh.pop %v8642
    %v8696 = vtanh.pop %v7897
    %v8697 = vtanh.pop %v7899
    %v8698 = vtanh.pop %v8004
    %v8699 = vtanh.pop %v8006
    %v8700 = vtanh.pop %v8111
    %v8701 = vtanh.pop %v8113
    %v8702 = vtanh.pop %v8218
    %v8703 = vtanh.pop %v8220
    %v8704 = vtanh.pop %v8325
    %v8705 = vtanh.pop %v8327
    %v8706 = vtanh.pop %v8432
    %v8707 = vtanh.pop %v8434
    %v8708 = vtanh.pop %v8539
    %v8709 = vtanh.pop %v8541
    %v8710 = vtanh.pop %v8646
    %v8711 = vtanh.pop %v8648
    %v8712 = vtanh.pop %v7903
    %v8713 = vtanh.pop %v7905
    %v8714 = vtanh.pop %v8010
    %v8715 = vtanh.pop %v8012
    %v8716 = vtanh.pop %v8117
    %v8717 = vtanh.pop %v8119
    %v8718 = vtanh.pop %v8224
    %v8719 = vtanh.pop %v8226
    %v8720 = vtanh.pop %v8331
    %v8721 = vtanh.pop %v8333
    %v8722 = vtanh.pop %v8438
    %v8723 = vtanh.pop %v8440
    %v8724 = vtanh.pop %v8545
    %v8725 = vtanh.pop %v8547
    %v8726 = vtanh.pop %v8652
    %v8727 = vtanh.pop %v8654
    %v8728 = vtanh.pop %v7909
    %v8729 = vtanh.pop %v7911
    %v8730 = vtanh.pop %v8016
    %v8731 = vtanh.pop %v8018
    %v8732 = vtanh.pop %v8123
    %v8733 = vtanh.pop %v8125
    %v8734 = vtanh.pop %v8230
    %v8735 = vtanh.pop %v8232
    %v8736 = vtanh.pop %v8337
    %v8737 = vtanh.pop %v8339
    %v8738 = vtanh.pop %v8444
    %v8739 = vtanh.pop %v8446
    %v8740 = vtanh.pop %v8551
    %v8741 = vtanh.pop %v8553
    %v8742 = vtanh.pop %v8658
    %v8743 = vtanh.pop %v8660
    %v8744 = vtanh.pop %v7915
    %v8745 = vtanh.pop %v7917
    %v8746 = vtanh.pop %v8022
    %v8747 = vtanh.pop %v8024
    %v8748 = vtanh.pop %v8129
    %v8749 = vtanh.pop %v8131
    %v8750 = vtanh.pop %v8236
    %v8751 = vtanh.pop %v8238
    %v8752 = vtanh.pop %v8343
    %v8753 = vtanh.pop %v8345
    %v8754 = vtanh.pop %v8450
    %v8755 = vtanh.pop %v8452
    %v8756 = vtanh.pop %v8557
    %v8757 = vtanh.pop %v8559
    %v8758 = vtanh.pop %v8664
    %v8759 = vtanh.pop %v8666
    %v8760 = vtanh.pop %v7921
    %v8761 = vtanh.pop %v7923
    %v8762 = vtanh.pop %v8028
    %v8763 = vtanh.pop %v8030
    %v8764 = vtanh.pop %v8135
    %v8765 = vtanh.pop %v8137
    %v8766 = vtanh.pop %v8242
    %v8767 = vtanh.pop %v8244
    %v8768 = vtanh.pop %v8349
    %v8769 = vtanh.pop %v8351
    %v8770 = vtanh.pop %v8456
    %v8771 = vtanh.pop %v8458
    %v8772 = vtanh.pop %v8563
    %v8773 = vtanh.pop %v8565
    %v8774 = vtanh.pop %v8670
    %v8775 = vtanh.pop %v8672
    %v8776 = vtanh.pop %v7927
    %v8777 = vtanh.pop %v7929
    %v8778 = vtanh.pop %v8034
    %v8779 = vtanh.pop %v8036
    %v8780 = vtanh.pop %v8141
    %v8781 = vtanh.pop %v8143
    %v8782 = vtanh.pop %v8248
    %v8783 = vtanh.pop %v8250
    %v8784 = vtanh.pop %v8355
    %v8785 = vtanh.pop %v8357
    %v8786 = vtanh.pop %v8462
    %v8787 = vtanh.pop %v8464
    %v8788 = vtanh.pop %v8569
    %v8789 = vtanh.pop %v8571
    %v8790 = vtanh.pop %v8676
    %v8791 = vtanh.pop %v8678
    %s8792 = scalar_lea.vmem %s3, 392
    %v8793 = vld [vmem:[%s8792] sm:$0xff]
    %v8794 = vld [vmem:[%s8792 + $0x8] sm:$0xff]
    %v8795 = vld [vmem:[%s8792 + $0x10] sm:$0xff]
    %v8796 = vld [vmem:[%s8792 + $0x18] sm:$0xff]
    %v8797 = vld [vmem:[%s8792 + $0x20] sm:$0xff]
    %v8798 = vld [vmem:[%s8792 + $0x28] sm:$0xff]
    %v8799 = vld [vmem:[%s8792 + $0x30] sm:$0x3]
    %s8800 = scalar_lea.vmem %s4, 392
    %v8801 = vld [vmem:[%s8800] sm:$0xff]
    %v8802 = vld [vmem:[%s8800 + $0x8] sm:$0xff]
    %v8803 = vld [vmem:[%s8800 + $0x10] sm:$0xff]
    %v8804 = vld [vmem:[%s8800 + $0x18] sm:$0xff]
    %v8805 = vld [vmem:[%s8800 + $0x20] sm:$0xff]
    %v8806 = vld [vmem:[%s8800 + $0x28] sm:$0xff]
    %v8807 = vld [vmem:[%s8800 + $0x30] sm:$0x3]
    %8809 = vset.pattern.permute.xlu0 0
    %8810 = vperm.xlu0 %8809, %v8801
    %v8811 = vpop.permute.xlu0 %8810
    %8814 = vset.pattern.permute.xlu0 0
    %8815 = vperm.xlu0 %8814, %v8802
    %v8816 = vpop.permute.xlu0 %8815
    %8819 = vset.pattern.permute.xlu0 0
    %8820 = vperm.xlu0 %8819, %v8803
    %v8821 = vpop.permute.xlu0 %8820
    %8824 = vset.pattern.permute.xlu0 0
    %8825 = vperm.xlu0 %8824, %v8804
    %v8826 = vpop.permute.xlu0 %8825
    %8829 = vset.pattern.permute.xlu0 0
    %8830 = vperm.xlu0 %8829, %v8805
    %v8831 = vpop.permute.xlu0 %8830
    %8834 = vset.pattern.permute.xlu0 0
    %8835 = vperm.xlu0 %8834, %v8806
    %v8836 = vpop.permute.xlu0 %8835
    %8839 = vset.pattern.permute.xlu0 0
    %8840 = vperm.xlu0 %8839, %v8807
    %v8841 = vpop.permute.xlu0 %8840
    %v8844 = vsel %vm1226, %v8793, 0
    %v8847 = vsel %vm1226, %v8794, 0
    %v8850 = vsel %vm1226, %v8795, 0
    %v8853 = vsel %vm1226, %v8796, 0
    %v8856 = vsel %vm1226, %v8797, 0
    %v8859 = vsel %vm1226, %v8798, 0
    %v8862 = vsel %vm1226, %v8799, 0
    %v8865 = vsel %vm176, %v8776, 0
    %v8868 = vsel %vm176, %v8777, 0
    %v8871 = vsel %vm176, %v8778, 0
    %v8874 = vsel %vm176, %v8779, 0
    %v8877 = vsel %vm176, %v8780, 0
    %v8880 = vsel %vm176, %v8781, 0
    %v8883 = vsel %vm176, %v8782, 0
    %v8886 = vsel %vm176, %v8783, 0
    %v8889 = vsel %vm176, %v8784, 0
    %v8892 = vsel %vm176, %v8785, 0
    %v8895 = vsel %vm176, %v8786, 0
    %v8898 = vsel %vm176, %v8787, 0
    %v8901 = vsel %vm176, %v8788, 0
    %v8904 = vsel %vm176, %v8789, 0
    %v8907 = vsel %vm176, %v8790, 0
    %v8910 = vsel %vm176, %v8791, 0
    %8912 = vmatprep.subr.mxu0 0.0
    %8913 = vmatpush1.msra.mxu0 0.0
    %8914 = vmatprep.subr.mxu0 0.0
    %8915 = vmatpush1.msra.mxu0 0.0
    %8916 = vmatprep.subr.mxu0 0.0
    %8917 = vmatpush1.msra.mxu0 0.0
    %8918 = vmatprep.subr.mxu0 0.0
    %8919 = vmatpush1.msra.mxu0 0.0
    %8920 = vmatprep.subr.mxu0 0.0
    %8921 = vmatpush1.msra.mxu0 0.0
    %8922 = vmatprep.subr.mxu0 0.0
    %8923 = vmatpush1.msra.mxu0 0.0
    %8924 = vmatprep.subr.mxu0 0.0
    %8925 = vmatpush1.msra.mxu0 0.0
    %8926 = vmatprep.subr.mxu0 0.0
    %8927 = vmatpush1.msra.mxu0 0.0
    %8928 = vmatprep.subr.mxu0 0.0
    %8929 = vmatpush1.msra.mxu0 0.0
    %8930 = vmatprep.subr.mxu0 %v8868
    %8931 = vmatpush1.msra.mxu0 %v8865
    %8932 = vmatprep.subr.mxu0 %v8761
    %8933 = vmatpush1.msra.mxu0 %v8760
    %8934 = vmatprep.subr.mxu0 %v8745
    %8935 = vmatpush1.msra.mxu0 %v8744
    %8936 = vmatprep.subr.mxu0 %v8729
    %8937 = vmatpush1.msra.mxu0 %v8728
    %8938 = vmatprep.subr.mxu0 %v8713
    %8939 = vmatpush1.msra.mxu0 %v8712
    %8940 = vmatprep.subr.mxu0 %v8697
    %8941 = vmatpush1.msra.mxu0 %v8696
    %8942 = vmatprep.subr.mxu0 %v8681
    %8943 = vmatpush1.msra.mxu0 %v8680
    %8944 = vmatprep.subr.mxu0 0.0
    %8945 = vmatpush2.msra.mxu0 0.0
    %8946 = vmatprep.subr.mxu0 0.0
    %8947 = vmatpush2.msra.mxu0 0.0
    %8948 = vmatprep.subr.mxu0 0.0
    %8949 = vmatpush2.msra.mxu0 0.0
    %8950 = vmatprep.subr.mxu0 0.0
    %8951 = vmatpush2.msra.mxu0 0.0
    %8952 = vmatprep.subr.mxu0 0.0
    %8953 = vmatpush2.msra.mxu0 0.0
    %8954 = vmatprep.subr.mxu0 0.0
    %8955 = vmatpush2.msra.mxu0 0.0
    %8956 = vmatprep.subr.mxu0 0.0
    %8957 = vmatpush2.msra.mxu0 0.0
    %8958 = vmatprep.subr.mxu0 0.0
    %8959 = vmatpush2.msra.mxu0 0.0
    %8960 = vmatprep.subr.mxu0 0.0
    %8961 = vmatpush2.msra.mxu0 0.0
    %8962 = vmatprep.subr.mxu0 0.0
    %8963 = vmatpush2.msra.mxu0 0.0
    %8964 = vmatprep.subr.mxu0 0.0
    %8965 = vmatpush2.msra.mxu0 0.0
    %8966 = vmatprep.subr.mxu0 0.0
    %8967 = vmatpush2.msra.mxu0 0.0
    %8968 = vmatprep.subr.mxu0 0.0
    %8969 = vmatpush2.msra.mxu0 0.0
    %8970 = vmatprep.subr.mxu0 0.0
    %8971 = vmatpush2.msra.mxu0 0.0
    %8972 = vmatprep.subr.mxu0 0.0
    %8973 = vmatpush2.msra.mxu0 0.0
    %8974 = vmatprep.subr.mxu0 0.0
    %8975 = vmatpush2.msra.mxu0 0.0
    %8976 = vmatprep.mubr.f32.mxu0 0.0
    %8977 = vmatmul.mubr.f32.gmra.mxu0 %v8844
    %v8978 = vpop.f32.mrf.mxu0
    %v8979 = vadd.f32 %v8811, %v8978
    %v8980 = vpop.f32.mrf.mxu0
    %v8981 = vadd.f32 %v8811, %v8980
    %8982 = vmatprep.mubr.f32.mxu0 0.0
    %8983 = vmatmul.mubr.f32.gmra.mxu0 %v8847
    %v8984 = vpop.f32.mrf.mxu0
    %v8985 = vadd.f32 %v8816, %v8984
    %v8986 = vpop.f32.mrf.mxu0
    %v8987 = vadd.f32 %v8816, %v8986
    %8988 = vmatprep.mubr.f32.mxu0 0.0
    %8989 = vmatmul.mubr.f32.gmra.mxu0 %v8850
    %v8990 = vpop.f32.mrf.mxu0
    %v8991 = vadd.f32 %v8821, %v8990
    %v8992 = vpop.f32.mrf.mxu0
    %v8993 = vadd.f32 %v8821, %v8992
    %8994 = vmatprep.mubr.f32.mxu0 0.0
    %8995 = vmatmul.mubr.f32.gmra.mxu0 %v8853
    %v8996 = vpop.f32.mrf.mxu0
    %v8997 = vadd.f32 %v8826, %v8996
    %v8998 = vpop.f32.mrf.mxu0
    %v8999 = vadd.f32 %v8826, %v8998
    %9000 = vmatprep.mubr.f32.mxu0 0.0
    %9001 = vmatmul.mubr.f32.gmra.mxu0 %v8856
    %v9002 = vpop.f32.mrf.mxu0
    %v9003 = vadd.f32 %v8831, %v9002
    %v9004 = vpop.f32.mrf.mxu0
    %v9005 = vadd.f32 %v8831, %v9004
    %9006 = vmatprep.mubr.f32.mxu0 0.0
    %9007 = vmatmul.mubr.f32.gmra.mxu0 %v8859
    %v9008 = vpop.f32.mrf.mxu0
    %v9009 = vadd.f32 %v8836, %v9008
    %v9010 = vpop.f32.mrf.mxu0
    %v9011 = vadd.f32 %v8836, %v9010
    %9012 = vmatprep.mubr.f32.mxu0 0.0
    %9013 = vmatmul.mubr.f32.gmra.mxu0 %v8862
    %v9014 = vpop.f32.mrf.mxu0
    %v9015 = vadd.f32 %v8841, %v9014
    %v9016 = vpop.f32.mrf.mxu0
    %v9017 = vadd.f32 %v8841, %v9016
    %9018 = vdwg.mxu0
    %9019 = vmatprep.subr.mxu0 0.0
    %9020 = vmatpush1.msra.mxu0 0.0
    %9021 = vmatprep.subr.mxu0 0.0
    %9022 = vmatpush1.msra.mxu0 0.0
    %9023 = vmatprep.subr.mxu0 0.0
    %9024 = vmatpush1.msra.mxu0 0.0
    %9025 = vmatprep.subr.mxu0 0.0
    %9026 = vmatpush1.msra.mxu0 0.0
    %9027 = vmatprep.subr.mxu0 0.0
    %9028 = vmatpush1.msra.mxu0 0.0
    %9029 = vmatprep.subr.mxu0 0.0
    %9030 = vmatpush1.msra.mxu0 0.0
    %9031 = vmatprep.subr.mxu0 0.0
    %9032 = vmatpush1.msra.mxu0 0.0
    %9033 = vmatprep.subr.mxu0 0.0
    %9034 = vmatpush1.msra.mxu0 0.0
    %9035 = vmatprep.subr.mxu0 0.0
    %9036 = vmatpush1.msra.mxu0 0.0
    %9037 = vmatprep.subr.mxu0 %v8874
    %9038 = vmatpush1.msra.mxu0 %v8871
    %9039 = vmatprep.subr.mxu0 %v8763
    %9040 = vmatpush1.msra.mxu0 %v8762
    %9041 = vmatprep.subr.mxu0 %v8747
    %9042 = vmatpush1.msra.mxu0 %v8746
    %9043 = vmatprep.subr.mxu0 %v8731
    %9044 = vmatpush1.msra.mxu0 %v8730
    %9045 = vmatprep.subr.mxu0 %v8715
    %9046 = vmatpush1.msra.mxu0 %v8714
    %9047 = vmatprep.subr.mxu0 %v8699
    %9048 = vmatpush1.msra.mxu0 %v8698
    %9049 = vmatprep.subr.mxu0 %v8683
    %9050 = vmatpush1.msra.mxu0 %v8682
    %9051 = vmatprep.subr.mxu0 0.0
    %9052 = vmatpush2.msra.mxu0 0.0
    %9053 = vmatprep.subr.mxu0 0.0
    %9054 = vmatpush2.msra.mxu0 0.0
    %9055 = vmatprep.subr.mxu0 0.0
    %9056 = vmatpush2.msra.mxu0 0.0
    %9057 = vmatprep.subr.mxu0 0.0
    %9058 = vmatpush2.msra.mxu0 0.0
    %9059 = vmatprep.subr.mxu0 0.0
    %9060 = vmatpush2.msra.mxu0 0.0
    %9061 = vmatprep.subr.mxu0 0.0
    %9062 = vmatpush2.msra.mxu0 0.0
    %9063 = vmatprep.subr.mxu0 0.0
    %9064 = vmatpush2.msra.mxu0 0.0
    %9065 = vmatprep.subr.mxu0 0.0
    %9066 = vmatpush2.msra.mxu0 0.0
    %9067 = vmatprep.subr.mxu0 0.0
    %9068 = vmatpush2.msra.mxu0 0.0
    %9069 = vmatprep.subr.mxu0 0.0
    %9070 = vmatpush2.msra.mxu0 0.0
    %9071 = vmatprep.subr.mxu0 0.0
    %9072 = vmatpush2.msra.mxu0 0.0
    %9073 = vmatprep.subr.mxu0 0.0
    %9074 = vmatpush2.msra.mxu0 0.0
    %9075 = vmatprep.subr.mxu0 0.0
    %9076 = vmatpush2.msra.mxu0 0.0
    %9077 = vmatprep.subr.mxu0 0.0
    %9078 = vmatpush2.msra.mxu0 0.0
    %9079 = vmatprep.subr.mxu0 0.0
    %9080 = vmatpush2.msra.mxu0 0.0
    %9081 = vmatprep.subr.mxu0 0.0
    %9082 = vmatpush2.msra.mxu0 0.0
    %9083 = vmatprep.mubr.f32.mxu0 0.0
    %9084 = vmatmul.mubr.f32.gmra.mxu0 %v8844
    %v9085 = vpop.f32.mrf.mxu0
    %v9086 = vadd.f32 %v8811, %v9085
    %v9087 = vpop.f32.mrf.mxu0
    %v9088 = vadd.f32 %v8811, %v9087
    %9089 = vmatprep.mubr.f32.mxu0 0.0
    %9090 = vmatmul.mubr.f32.gmra.mxu0 %v8847
    %v9091 = vpop.f32.mrf.mxu0
    %v9092 = vadd.f32 %v8816, %v9091
    %v9093 = vpop.f32.mrf.mxu0
    %v9094 = vadd.f32 %v8816, %v9093
    %9095 = vmatprep.mubr.f32.mxu0 0.0
    %9096 = vmatmul.mubr.f32.gmra.mxu0 %v8850
    %v9097 = vpop.f32.mrf.mxu0
    %v9098 = vadd.f32 %v8821, %v9097
    %v9099 = vpop.f32.mrf.mxu0
    %v9100 = vadd.f32 %v8821, %v9099
    %9101 = vmatprep.mubr.f32.mxu0 0.0
    %9102 = vmatmul.mubr.f32.gmra.mxu0 %v8853
    %v9103 = vpop.f32.mrf.mxu0
    %v9104 = vadd.f32 %v8826, %v9103
    %v9105 = vpop.f32.mrf.mxu0
    %v9106 = vadd.f32 %v8826, %v9105
    %9107 = vmatprep.mubr.f32.mxu0 0.0
    %9108 = vmatmul.mubr.f32.gmra.mxu0 %v8856
    %v9109 = vpop.f32.mrf.mxu0
    %v9110 = vadd.f32 %v8831, %v9109
    %v9111 = vpop.f32.mrf.mxu0
    %v9112 = vadd.f32 %v8831, %v9111
    %9113 = vmatprep.mubr.f32.mxu0 0.0
    %9114 = vmatmul.mubr.f32.gmra.mxu0 %v8859
    %v9115 = vpop.f32.mrf.mxu0
    %v9116 = vadd.f32 %v8836, %v9115
    %v9117 = vpop.f32.mrf.mxu0
    %v9118 = vadd.f32 %v8836, %v9117
    %9119 = vmatprep.mubr.f32.mxu0 0.0
    %9120 = vmatmul.mubr.f32.gmra.mxu0 %v8862
    %v9121 = vpop.f32.mrf.mxu0
    %v9122 = vadd.f32 %v8841, %v9121
    %v9123 = vpop.f32.mrf.mxu0
    %v9124 = vadd.f32 %v8841, %v9123
    %9125 = vdwg.mxu0
    %9126 = vmatprep.subr.mxu0 0.0
    %9127 = vmatpush1.msra.mxu0 0.0
    %9128 = vmatprep.subr.mxu0 0.0
    %9129 = vmatpush1.msra.mxu0 0.0
    %9130 = vmatprep.subr.mxu0 0.0
    %9131 = vmatpush1.msra.mxu0 0.0
    %9132 = vmatprep.subr.mxu0 0.0
    %9133 = vmatpush1.msra.mxu0 0.0
    %9134 = vmatprep.subr.mxu0 0.0
    %9135 = vmatpush1.msra.mxu0 0.0
    %9136 = vmatprep.subr.mxu0 0.0
    %9137 = vmatpush1.msra.mxu0 0.0
    %9138 = vmatprep.subr.mxu0 0.0
    %9139 = vmatpush1.msra.mxu0 0.0
    %9140 = vmatprep.subr.mxu0 0.0
    %9141 = vmatpush1.msra.mxu0 0.0
    %9142 = vmatprep.subr.mxu0 0.0
    %9143 = vmatpush1.msra.mxu0 0.0
    %9144 = vmatprep.subr.mxu0 %v8880
    %9145 = vmatpush1.msra.mxu0 %v8877
    %9146 = vmatprep.subr.mxu0 %v8765
    %9147 = vmatpush1.msra.mxu0 %v8764
    %9148 = vmatprep.subr.mxu0 %v8749
    %9149 = vmatpush1.msra.mxu0 %v8748
    %9150 = vmatprep.subr.mxu0 %v8733
    %9151 = vmatpush1.msra.mxu0 %v8732
    %9152 = vmatprep.subr.mxu0 %v8717
    %9153 = vmatpush1.msra.mxu0 %v8716
    %9154 = vmatprep.subr.mxu0 %v8701
    %9155 = vmatpush1.msra.mxu0 %v8700
    %9156 = vmatprep.subr.mxu0 %v8685
    %9157 = vmatpush1.msra.mxu0 %v8684
    %9158 = vmatprep.subr.mxu0 0.0
    %9159 = vmatpush2.msra.mxu0 0.0
    %9160 = vmatprep.subr.mxu0 0.0
    %9161 = vmatpush2.msra.mxu0 0.0
    %9162 = vmatprep.subr.mxu0 0.0
    %9163 = vmatpush2.msra.mxu0 0.0
    %9164 = vmatprep.subr.mxu0 0.0
    %9165 = vmatpush2.msra.mxu0 0.0
    %9166 = vmatprep.subr.mxu0 0.0
    %9167 = vmatpush2.msra.mxu0 0.0
    %9168 = vmatprep.subr.mxu0 0.0
    %9169 = vmatpush2.msra.mxu0 0.0
    %9170 = vmatprep.subr.mxu0 0.0
    %9171 = vmatpush2.msra.mxu0 0.0
    %9172 = vmatprep.subr.mxu0 0.0
    %9173 = vmatpush2.msra.mxu0 0.0
    %9174 = vmatprep.subr.mxu0 0.0
    %9175 = vmatpush2.msra.mxu0 0.0
    %9176 = vmatprep.subr.mxu0 0.0
    %9177 = vmatpush2.msra.mxu0 0.0
    %9178 = vmatprep.subr.mxu0 0.0
    %9179 = vmatpush2.msra.mxu0 0.0
    %9180 = vmatprep.subr.mxu0 0.0
    %9181 = vmatpush2.msra.mxu0 0.0
    %9182 = vmatprep.subr.mxu0 0.0
    %9183 = vmatpush2.msra.mxu0 0.0
    %9184 = vmatprep.subr.mxu0 0.0
    %9185 = vmatpush2.msra.mxu0 0.0
    %9186 = vmatprep.subr.mxu0 0.0
    %9187 = vmatpush2.msra.mxu0 0.0
    %9188 = vmatprep.subr.mxu0 0.0
    %9189 = vmatpush2.msra.mxu0 0.0
    %9190 = vmatprep.mubr.f32.mxu0 0.0
    %9191 = vmatmul.mubr.f32.gmra.mxu0 %v8844
    %v9192 = vpop.f32.mrf.mxu0
    %v9193 = vadd.f32 %v8811, %v9192
    %v9194 = vpop.f32.mrf.mxu0
    %v9195 = vadd.f32 %v8811, %v9194
    %9196 = vmatprep.mubr.f32.mxu0 0.0
    %9197 = vmatmul.mubr.f32.gmra.mxu0 %v8847
    %v9198 = vpop.f32.mrf.mxu0
    %v9199 = vadd.f32 %v8816, %v9198
    %v9200 = vpop.f32.mrf.mxu0
    %v9201 = vadd.f32 %v8816, %v9200
    %9202 = vmatprep.mubr.f32.mxu0 0.0
    %9203 = vmatmul.mubr.f32.gmra.mxu0 %v8850
    %v9204 = vpop.f32.mrf.mxu0
    %v9205 = vadd.f32 %v8821, %v9204
    %v9206 = vpop.f32.mrf.mxu0
    %v9207 = vadd.f32 %v8821, %v9206
    %9208 = vmatprep.mubr.f32.mxu0 0.0
    %9209 = vmatmul.mubr.f32.gmra.mxu0 %v8853
    %v9210 = vpop.f32.mrf.mxu0
    %v9211 = vadd.f32 %v8826, %v9210
    %v9212 = vpop.f32.mrf.mxu0
    %v9213 = vadd.f32 %v8826, %v9212
    %9214 = vmatprep.mubr.f32.mxu0 0.0
    %9215 = vmatmul.mubr.f32.gmra.mxu0 %v8856
    %v9216 = vpop.f32.mrf.mxu0
    %v9217 = vadd.f32 %v8831, %v9216
    %v9218 = vpop.f32.mrf.mxu0
    %v9219 = vadd.f32 %v8831, %v9218
    %9220 = vmatprep.mubr.f32.mxu0 0.0
    %9221 = vmatmul.mubr.f32.gmra.mxu0 %v8859
    %v9222 = vpop.f32.mrf.mxu0
    %v9223 = vadd.f32 %v8836, %v9222
    %v9224 = vpop.f32.mrf.mxu0
    %v9225 = vadd.f32 %v8836, %v9224
    %9226 = vmatprep.mubr.f32.mxu0 0.0
    %9227 = vmatmul.mubr.f32.gmra.mxu0 %v8862
    %v9228 = vpop.f32.mrf.mxu0
    %v9229 = vadd.f32 %v8841, %v9228
    %v9230 = vpop.f32.mrf.mxu0
    %v9231 = vadd.f32 %v8841, %v9230
    %9232 = vdwg.mxu0
    %9233 = vmatprep.subr.mxu0 0.0
    %9234 = vmatpush1.msra.mxu0 0.0
    %9235 = vmatprep.subr.mxu0 0.0
    %9236 = vmatpush1.msra.mxu0 0.0
    %9237 = vmatprep.subr.mxu0 0.0
    %9238 = vmatpush1.msra.mxu0 0.0
    %9239 = vmatprep.subr.mxu0 0.0
    %9240 = vmatpush1.msra.mxu0 0.0
    %9241 = vmatprep.subr.mxu0 0.0
    %9242 = vmatpush1.msra.mxu0 0.0
    %9243 = vmatprep.subr.mxu0 0.0
    %9244 = vmatpush1.msra.mxu0 0.0
    %9245 = vmatprep.subr.mxu0 0.0
    %9246 = vmatpush1.msra.mxu0 0.0
    %9247 = vmatprep.subr.mxu0 0.0
    %9248 = vmatpush1.msra.mxu0 0.0
    %9249 = vmatprep.subr.mxu0 0.0
    %9250 = vmatpush1.msra.mxu0 0.0
    %9251 = vmatprep.subr.mxu0 %v8886
    %9252 = vmatpush1.msra.mxu0 %v8883
    %9253 = vmatprep.subr.mxu0 %v8767
    %9254 = vmatpush1.msra.mxu0 %v8766
    %9255 = vmatprep.subr.mxu0 %v8751
    %9256 = vmatpush1.msra.mxu0 %v8750
    %9257 = vmatprep.subr.mxu0 %v8735
    %9258 = vmatpush1.msra.mxu0 %v8734
    %9259 = vmatprep.subr.mxu0 %v8719
    %9260 = vmatpush1.msra.mxu0 %v8718
    %9261 = vmatprep.subr.mxu0 %v8703
    %9262 = vmatpush1.msra.mxu0 %v8702
    %9263 = vmatprep.subr.mxu0 %v8687
    %9264 = vmatpush1.msra.mxu0 %v8686
    %9265 = vmatprep.subr.mxu0 0.0
    %9266 = vmatpush2.msra.mxu0 0.0
    %9267 = vmatprep.subr.mxu0 0.0
    %9268 = vmatpush2.msra.mxu0 0.0
    %9269 = vmatprep.subr.mxu0 0.0
    %9270 = vmatpush2.msra.mxu0 0.0
    %9271 = vmatprep.subr.mxu0 0.0
    %9272 = vmatpush2.msra.mxu0 0.0
    %9273 = vmatprep.subr.mxu0 0.0
    %9274 = vmatpush2.msra.mxu0 0.0
    %9275 = vmatprep.subr.mxu0 0.0
    %9276 = vmatpush2.msra.mxu0 0.0
    %9277 = vmatprep.subr.mxu0 0.0
    %9278 = vmatpush2.msra.mxu0 0.0
    %9279 = vmatprep.subr.mxu0 0.0
    %9280 = vmatpush2.msra.mxu0 0.0
    %9281 = vmatprep.subr.mxu0 0.0
    %9282 = vmatpush2.msra.mxu0 0.0
    %9283 = vmatprep.subr.mxu0 0.0
    %9284 = vmatpush2.msra.mxu0 0.0
    %9285 = vmatprep.subr.mxu0 0.0
    %9286 = vmatpush2.msra.mxu0 0.0
    %9287 = vmatprep.subr.mxu0 0.0
    %9288 = vmatpush2.msra.mxu0 0.0
    %9289 = vmatprep.subr.mxu0 0.0
    %9290 = vmatpush2.msra.mxu0 0.0
    %9291 = vmatprep.subr.mxu0 0.0
    %9292 = vmatpush2.msra.mxu0 0.0
    %9293 = vmatprep.subr.mxu0 0.0
    %9294 = vmatpush2.msra.mxu0 0.0
    %9295 = vmatprep.subr.mxu0 0.0
    %9296 = vmatpush2.msra.mxu0 0.0
    %9297 = vmatprep.mubr.f32.mxu0 0.0
    %9298 = vmatmul.mubr.f32.gmra.mxu0 %v8844
    %v9299 = vpop.f32.mrf.mxu0
    %v9300 = vadd.f32 %v8811, %v9299
    %v9301 = vpop.f32.mrf.mxu0
    %v9302 = vadd.f32 %v8811, %v9301
    %9303 = vmatprep.mubr.f32.mxu0 0.0
    %9304 = vmatmul.mubr.f32.gmra.mxu0 %v8847
    %v9305 = vpop.f32.mrf.mxu0
    %v9306 = vadd.f32 %v8816, %v9305
    %v9307 = vpop.f32.mrf.mxu0
    %v9308 = vadd.f32 %v8816, %v9307
    %9309 = vmatprep.mubr.f32.mxu0 0.0
    %9310 = vmatmul.mubr.f32.gmra.mxu0 %v8850
    %v9311 = vpop.f32.mrf.mxu0
    %v9312 = vadd.f32 %v8821, %v9311
    %v9313 = vpop.f32.mrf.mxu0
    %v9314 = vadd.f32 %v8821, %v9313
    %9315 = vmatprep.mubr.f32.mxu0 0.0
    %9316 = vmatmul.mubr.f32.gmra.mxu0 %v8853
    %v9317 = vpop.f32.mrf.mxu0
    %v9318 = vadd.f32 %v8826, %v9317
    %v9319 = vpop.f32.mrf.mxu0
    %v9320 = vadd.f32 %v8826, %v9319
    %9321 = vmatprep.mubr.f32.mxu0 0.0
    %9322 = vmatmul.mubr.f32.gmra.mxu0 %v8856
    %v9323 = vpop.f32.mrf.mxu0
    %v9324 = vadd.f32 %v8831, %v9323
    %v9325 = vpop.f32.mrf.mxu0
    %v9326 = vadd.f32 %v8831, %v9325
    %9327 = vmatprep.mubr.f32.mxu0 0.0
    %9328 = vmatmul.mubr.f32.gmra.mxu0 %v8859
    %v9329 = vpop.f32.mrf.mxu0
    %v9330 = vadd.f32 %v8836, %v9329
    %v9331 = vpop.f32.mrf.mxu0
    %v9332 = vadd.f32 %v8836, %v9331
    %9333 = vmatprep.mubr.f32.mxu0 0.0
    %9334 = vmatmul.mubr.f32.gmra.mxu0 %v8862
    %v9335 = vpop.f32.mrf.mxu0
    %v9336 = vadd.f32 %v8841, %v9335
    %v9337 = vpop.f32.mrf.mxu0
    %v9338 = vadd.f32 %v8841, %v9337
    %9339 = vdwg.mxu0
    %9340 = vmatprep.subr.mxu0 0.0
    %9341 = vmatpush1.msra.mxu0 0.0
    %9342 = vmatprep.subr.mxu0 0.0
    %9343 = vmatpush1.msra.mxu0 0.0
    %9344 = vmatprep.subr.mxu0 0.0
    %9345 = vmatpush1.msra.mxu0 0.0
    %9346 = vmatprep.subr.mxu0 0.0
    %9347 = vmatpush1.msra.mxu0 0.0
    %9348 = vmatprep.subr.mxu0 0.0
    %9349 = vmatpush1.msra.mxu0 0.0
    %9350 = vmatprep.subr.mxu0 0.0
    %9351 = vmatpush1.msra.mxu0 0.0
    %9352 = vmatprep.subr.mxu0 0.0
    %9353 = vmatpush1.msra.mxu0 0.0
    %9354 = vmatprep.subr.mxu0 0.0
    %9355 = vmatpush1.msra.mxu0 0.0
    %9356 = vmatprep.subr.mxu0 0.0
    %9357 = vmatpush1.msra.mxu0 0.0
    %9358 = vmatprep.subr.mxu0 %v8892
    %9359 = vmatpush1.msra.mxu0 %v8889
    %9360 = vmatprep.subr.mxu0 %v8769
    %9361 = vmatpush1.msra.mxu0 %v8768
    %9362 = vmatprep.subr.mxu0 %v8753
    %9363 = vmatpush1.msra.mxu0 %v8752
    %9364 = vmatprep.subr.mxu0 %v8737
    %9365 = vmatpush1.msra.mxu0 %v8736
    %9366 = vmatprep.subr.mxu0 %v8721
    %9367 = vmatpush1.msra.mxu0 %v8720
    %9368 = vmatprep.subr.mxu0 %v8705
    %9369 = vmatpush1.msra.mxu0 %v8704
    %9370 = vmatprep.subr.mxu0 %v8689
    %9371 = vmatpush1.msra.mxu0 %v8688
    %9372 = vmatprep.subr.mxu0 0.0
    %9373 = vmatpush2.msra.mxu0 0.0
    %9374 = vmatprep.subr.mxu0 0.0
    %9375 = vmatpush2.msra.mxu0 0.0
    %9376 = vmatprep.subr.mxu0 0.0
    %9377 = vmatpush2.msra.mxu0 0.0
    %9378 = vmatprep.subr.mxu0 0.0
    %9379 = vmatpush2.msra.mxu0 0.0
    %9380 = vmatprep.subr.mxu0 0.0
    %9381 = vmatpush2.msra.mxu0 0.0
    %9382 = vmatprep.subr.mxu0 0.0
    %9383 = vmatpush2.msra.mxu0 0.0
    %9384 = vmatprep.subr.mxu0 0.0
    %9385 = vmatpush2.msra.mxu0 0.0
    %9386 = vmatprep.subr.mxu0 0.0
    %9387 = vmatpush2.msra.mxu0 0.0
    %9388 = vmatprep.subr.mxu0 0.0
    %9389 = vmatpush2.msra.mxu0 0.0
    %9390 = vmatprep.subr.mxu0 0.0
    %9391 = vmatpush2.msra.mxu0 0.0
    %9392 = vmatprep.subr.mxu0 0.0
    %9393 = vmatpush2.msra.mxu0 0.0
    %9394 = vmatprep.subr.mxu0 0.0
    %9395 = vmatpush2.msra.mxu0 0.0
    %9396 = vmatprep.subr.mxu0 0.0
    %9397 = vmatpush2.msra.mxu0 0.0
    %9398 = vmatprep.subr.mxu0 0.0
    %9399 = vmatpush2.msra.mxu0 0.0
    %9400 = vmatprep.subr.mxu0 0.0
    %9401 = vmatpush2.msra.mxu0 0.0
    %9402 = vmatprep.subr.mxu0 0.0
    %9403 = vmatpush2.msra.mxu0 0.0
    %9404 = vmatprep.mubr.f32.mxu0 0.0
    %9405 = vmatmul.mubr.f32.gmra.mxu0 %v8844
    %v9406 = vpop.f32.mrf.mxu0
    %v9407 = vadd.f32 %v8811, %v9406
    %v9408 = vpop.f32.mrf.mxu0
    %v9409 = vadd.f32 %v8811, %v9408
    %9410 = vmatprep.mubr.f32.mxu0 0.0
    %9411 = vmatmul.mubr.f32.gmra.mxu0 %v8847
    %v9412 = vpop.f32.mrf.mxu0
    %v9413 = vadd.f32 %v8816, %v9412
    %v9414 = vpop.f32.mrf.mxu0
    %v9415 = vadd.f32 %v8816, %v9414
    %9416 = vmatprep.mubr.f32.mxu0 0.0
    %9417 = vmatmul.mubr.f32.gmra.mxu0 %v8850
    %v9418 = vpop.f32.mrf.mxu0
    %v9419 = vadd.f32 %v8821, %v9418
    %v9420 = vpop.f32.mrf.mxu0
    %v9421 = vadd.f32 %v8821, %v9420
    %9422 = vmatprep.mubr.f32.mxu0 0.0
    %9423 = vmatmul.mubr.f32.gmra.mxu0 %v8853
    %v9424 = vpop.f32.mrf.mxu0
    %v9425 = vadd.f32 %v8826, %v9424
    %v9426 = vpop.f32.mrf.mxu0
    %v9427 = vadd.f32 %v8826, %v9426
    %9428 = vmatprep.mubr.f32.mxu0 0.0
    %9429 = vmatmul.mubr.f32.gmra.mxu0 %v8856
    %v9430 = vpop.f32.mrf.mxu0
    %v9431 = vadd.f32 %v8831, %v9430
    %v9432 = vpop.f32.mrf.mxu0
    %v9433 = vadd.f32 %v8831, %v9432
    %9434 = vmatprep.mubr.f32.mxu0 0.0
    %9435 = vmatmul.mubr.f32.gmra.mxu0 %v8859
    %v9436 = vpop.f32.mrf.mxu0
    %v9437 = vadd.f32 %v8836, %v9436
    %v9438 = vpop.f32.mrf.mxu0
    %v9439 = vadd.f32 %v8836, %v9438
    %9440 = vmatprep.mubr.f32.mxu0 0.0
    %9441 = vmatmul.mubr.f32.gmra.mxu0 %v8862
    %v9442 = vpop.f32.mrf.mxu0
    %v9443 = vadd.f32 %v8841, %v9442
    %v9444 = vpop.f32.mrf.mxu0
    %v9445 = vadd.f32 %v8841, %v9444
    %9446 = vdwg.mxu0
    %9447 = vmatprep.subr.mxu0 0.0
    %9448 = vmatpush1.msra.mxu0 0.0
    %9449 = vmatprep.subr.mxu0 0.0
    %9450 = vmatpush1.msra.mxu0 0.0
    %9451 = vmatprep.subr.mxu0 0.0
    %9452 = vmatpush1.msra.mxu0 0.0
    %9453 = vmatprep.subr.mxu0 0.0
    %9454 = vmatpush1.msra.mxu0 0.0
    %9455 = vmatprep.subr.mxu0 0.0
    %9456 = vmatpush1.msra.mxu0 0.0
    %9457 = vmatprep.subr.mxu0 0.0
    %9458 = vmatpush1.msra.mxu0 0.0
    %9459 = vmatprep.subr.mxu0 0.0
    %9460 = vmatpush1.msra.mxu0 0.0
    %9461 = vmatprep.subr.mxu0 0.0
    %9462 = vmatpush1.msra.mxu0 0.0
    %9463 = vmatprep.subr.mxu0 0.0
    %9464 = vmatpush1.msra.mxu0 0.0
    %9465 = vmatprep.subr.mxu0 %v8898
    %9466 = vmatpush1.msra.mxu0 %v8895
    %9467 = vmatprep.subr.mxu0 %v8771
    %9468 = vmatpush1.msra.mxu0 %v8770
    %9469 = vmatprep.subr.mxu0 %v8755
    %9470 = vmatpush1.msra.mxu0 %v8754
    %9471 = vmatprep.subr.mxu0 %v8739
    %9472 = vmatpush1.msra.mxu0 %v8738
    %9473 = vmatprep.subr.mxu0 %v8723
    %9474 = vmatpush1.msra.mxu0 %v8722
    %9475 = vmatprep.subr.mxu0 %v8707
    %9476 = vmatpush1.msra.mxu0 %v8706
    %9477 = vmatprep.subr.mxu0 %v8691
    %9478 = vmatpush1.msra.mxu0 %v8690
    %9479 = vmatprep.subr.mxu0 0.0
    %9480 = vmatpush2.msra.mxu0 0.0
    %9481 = vmatprep.subr.mxu0 0.0
    %9482 = vmatpush2.msra.mxu0 0.0
    %9483 = vmatprep.subr.mxu0 0.0
    %9484 = vmatpush2.msra.mxu0 0.0
    %9485 = vmatprep.subr.mxu0 0.0
    %9486 = vmatpush2.msra.mxu0 0.0
    %9487 = vmatprep.subr.mxu0 0.0
    %9488 = vmatpush2.msra.mxu0 0.0
    %9489 = vmatprep.subr.mxu0 0.0
    %9490 = vmatpush2.msra.mxu0 0.0
    %9491 = vmatprep.subr.mxu0 0.0
    %9492 = vmatpush2.msra.mxu0 0.0
    %9493 = vmatprep.subr.mxu0 0.0
    %9494 = vmatpush2.msra.mxu0 0.0
    %9495 = vmatprep.subr.mxu0 0.0
    %9496 = vmatpush2.msra.mxu0 0.0
    %9497 = vmatprep.subr.mxu0 0.0
    %9498 = vmatpush2.msra.mxu0 0.0
    %9499 = vmatprep.subr.mxu0 0.0
    %9500 = vmatpush2.msra.mxu0 0.0
    %9501 = vmatprep.subr.mxu0 0.0
    %9502 = vmatpush2.msra.mxu0 0.0
    %9503 = vmatprep.subr.mxu0 0.0
    %9504 = vmatpush2.msra.mxu0 0.0
    %9505 = vmatprep.subr.mxu0 0.0
    %9506 = vmatpush2.msra.mxu0 0.0
    %9507 = vmatprep.subr.mxu0 0.0
    %9508 = vmatpush2.msra.mxu0 0.0
    %9509 = vmatprep.subr.mxu0 0.0
    %9510 = vmatpush2.msra.mxu0 0.0
    %9511 = vmatprep.mubr.f32.mxu0 0.0
    %9512 = vmatmul.mubr.f32.gmra.mxu0 %v8844
    %v9513 = vpop.f32.mrf.mxu0
    %v9514 = vadd.f32 %v8811, %v9513
    %v9515 = vpop.f32.mrf.mxu0
    %v9516 = vadd.f32 %v8811, %v9515
    %9517 = vmatprep.mubr.f32.mxu0 0.0
    %9518 = vmatmul.mubr.f32.gmra.mxu0 %v8847
    %v9519 = vpop.f32.mrf.mxu0
    %v9520 = vadd.f32 %v8816, %v9519
    %v9521 = vpop.f32.mrf.mxu0
    %v9522 = vadd.f32 %v8816, %v9521
    %9523 = vmatprep.mubr.f32.mxu0 0.0
    %9524 = vmatmul.mubr.f32.gmra.mxu0 %v8850
    %v9525 = vpop.f32.mrf.mxu0
    %v9526 = vadd.f32 %v8821, %v9525
    %v9527 = vpop.f32.mrf.mxu0
    %v9528 = vadd.f32 %v8821, %v9527
    %9529 = vmatprep.mubr.f32.mxu0 0.0
    %9530 = vmatmul.mubr.f32.gmra.mxu0 %v8853
    %v9531 = vpop.f32.mrf.mxu0
    %v9532 = vadd.f32 %v8826, %v9531
    %v9533 = vpop.f32.mrf.mxu0
    %v9534 = vadd.f32 %v8826, %v9533
    %9535 = vmatprep.mubr.f32.mxu0 0.0
    %9536 = vmatmul.mubr.f32.gmra.mxu0 %v8856
    %v9537 = vpop.f32.mrf.mxu0
    %v9538 = vadd.f32 %v8831, %v9537
    %v9539 = vpop.f32.mrf.mxu0
    %v9540 = vadd.f32 %v8831, %v9539
    %9541 = vmatprep.mubr.f32.mxu0 0.0
    %9542 = vmatmul.mubr.f32.gmra.mxu0 %v8859
    %v9543 = vpop.f32.mrf.mxu0
    %v9544 = vadd.f32 %v8836, %v9543
    %v9545 = vpop.f32.mrf.mxu0
    %v9546 = vadd.f32 %v8836, %v9545
    %9547 = vmatprep.mubr.f32.mxu0 0.0
    %9548 = vmatmul.mubr.f32.gmra.mxu0 %v8862
    %v9549 = vpop.f32.mrf.mxu0
    %v9550 = vadd.f32 %v8841, %v9549
    %v9551 = vpop.f32.mrf.mxu0
    %v9552 = vadd.f32 %v8841, %v9551
    %9553 = vdwg.mxu0
    %9554 = vmatprep.subr.mxu0 0.0
    %9555 = vmatpush1.msra.mxu0 0.0
    %9556 = vmatprep.subr.mxu0 0.0
    %9557 = vmatpush1.msra.mxu0 0.0
    %9558 = vmatprep.subr.mxu0 0.0
    %9559 = vmatpush1.msra.mxu0 0.0
    %9560 = vmatprep.subr.mxu0 0.0
    %9561 = vmatpush1.msra.mxu0 0.0
    %9562 = vmatprep.subr.mxu0 0.0
    %9563 = vmatpush1.msra.mxu0 0.0
    %9564 = vmatprep.subr.mxu0 0.0
    %9565 = vmatpush1.msra.mxu0 0.0
    %9566 = vmatprep.subr.mxu0 0.0
    %9567 = vmatpush1.msra.mxu0 0.0
    %9568 = vmatprep.subr.mxu0 0.0
    %9569 = vmatpush1.msra.mxu0 0.0
    %9570 = vmatprep.subr.mxu0 0.0
    %9571 = vmatpush1.msra.mxu0 0.0
    %9572 = vmatprep.subr.mxu0 %v8904
    %9573 = vmatpush1.msra.mxu0 %v8901
    %9574 = vmatprep.subr.mxu0 %v8773
    %9575 = vmatpush1.msra.mxu0 %v8772
    %9576 = vmatprep.subr.mxu0 %v8757
    %9577 = vmatpush1.msra.mxu0 %v8756
    %9578 = vmatprep.subr.mxu0 %v8741
    %9579 = vmatpush1.msra.mxu0 %v8740
    %9580 = vmatprep.subr.mxu0 %v8725
    %9581 = vmatpush1.msra.mxu0 %v8724
    %9582 = vmatprep.subr.mxu0 %v8709
    %9583 = vmatpush1.msra.mxu0 %v8708
    %9584 = vmatprep.subr.mxu0 %v8693
    %9585 = vmatpush1.msra.mxu0 %v8692
    %9586 = vmatprep.subr.mxu0 0.0
    %9587 = vmatpush2.msra.mxu0 0.0
    %9588 = vmatprep.subr.mxu0 0.0
    %9589 = vmatpush2.msra.mxu0 0.0
    %9590 = vmatprep.subr.mxu0 0.0
    %9591 = vmatpush2.msra.mxu0 0.0
    %9592 = vmatprep.subr.mxu0 0.0
    %9593 = vmatpush2.msra.mxu0 0.0
    %9594 = vmatprep.subr.mxu0 0.0
    %9595 = vmatpush2.msra.mxu0 0.0
    %9596 = vmatprep.subr.mxu0 0.0
    %9597 = vmatpush2.msra.mxu0 0.0
    %9598 = vmatprep.subr.mxu0 0.0
    %9599 = vmatpush2.msra.mxu0 0.0
    %9600 = vmatprep.subr.mxu0 0.0
    %9601 = vmatpush2.msra.mxu0 0.0
    %9602 = vmatprep.subr.mxu0 0.0
    %9603 = vmatpush2.msra.mxu0 0.0
    %9604 = vmatprep.subr.mxu0 0.0
    %9605 = vmatpush2.msra.mxu0 0.0
    %9606 = vmatprep.subr.mxu0 0.0
    %9607 = vmatpush2.msra.mxu0 0.0
    %9608 = vmatprep.subr.mxu0 0.0
    %9609 = vmatpush2.msra.mxu0 0.0
    %9610 = vmatprep.subr.mxu0 0.0
    %9611 = vmatpush2.msra.mxu0 0.0
    %9612 = vmatprep.subr.mxu0 0.0
    %9613 = vmatpush2.msra.mxu0 0.0
    %9614 = vmatprep.subr.mxu0 0.0
    %9615 = vmatpush2.msra.mxu0 0.0
    %9616 = vmatprep.subr.mxu0 0.0
    %9617 = vmatpush2.msra.mxu0 0.0
    %9618 = vmatprep.mubr.f32.mxu0 0.0
    %9619 = vmatmul.mubr.f32.gmra.mxu0 %v8844
    %v9620 = vpop.f32.mrf.mxu0
    %v9621 = vadd.f32 %v8811, %v9620
    %v9622 = vpop.f32.mrf.mxu0
    %v9623 = vadd.f32 %v8811, %v9622
    %9624 = vmatprep.mubr.f32.mxu0 0.0
    %9625 = vmatmul.mubr.f32.gmra.mxu0 %v8847
    %v9626 = vpop.f32.mrf.mxu0
    %v9627 = vadd.f32 %v8816, %v9626
    %v9628 = vpop.f32.mrf.mxu0
    %v9629 = vadd.f32 %v8816, %v9628
    %9630 = vmatprep.mubr.f32.mxu0 0.0
    %9631 = vmatmul.mubr.f32.gmra.mxu0 %v8850
    %v9632 = vpop.f32.mrf.mxu0
    %v9633 = vadd.f32 %v8821, %v9632
    %v9634 = vpop.f32.mrf.mxu0
    %v9635 = vadd.f32 %v8821, %v9634
    %9636 = vmatprep.mubr.f32.mxu0 0.0
    %9637 = vmatmul.mubr.f32.gmra.mxu0 %v8853
    %v9638 = vpop.f32.mrf.mxu0
    %v9639 = vadd.f32 %v8826, %v9638
    %v9640 = vpop.f32.mrf.mxu0
    %v9641 = vadd.f32 %v8826, %v9640
    %9642 = vmatprep.mubr.f32.mxu0 0.0
    %9643 = vmatmul.mubr.f32.gmra.mxu0 %v8856
    %v9644 = vpop.f32.mrf.mxu0
    %v9645 = vadd.f32 %v8831, %v9644
    %v9646 = vpop.f32.mrf.mxu0
    %v9647 = vadd.f32 %v8831, %v9646
    %9648 = vmatprep.mubr.f32.mxu0 0.0
    %9649 = vmatmul.mubr.f32.gmra.mxu0 %v8859
    %v9650 = vpop.f32.mrf.mxu0
    %v9651 = vadd.f32 %v8836, %v9650
    %v9652 = vpop.f32.mrf.mxu0
    %v9653 = vadd.f32 %v8836, %v9652
    %9654 = vmatprep.mubr.f32.mxu0 0.0
    %9655 = vmatmul.mubr.f32.gmra.mxu0 %v8862
    %v9656 = vpop.f32.mrf.mxu0
    %v9657 = vadd.f32 %v8841, %v9656
    %v9658 = vpop.f32.mrf.mxu0
    %v9659 = vadd.f32 %v8841, %v9658
    %9660 = vdwg.mxu0
    %9661 = vmatprep.subr.mxu0 0.0
    %9662 = vmatpush1.msra.mxu0 0.0
    %9663 = vmatprep.subr.mxu0 0.0
    %9664 = vmatpush1.msra.mxu0 0.0
    %9665 = vmatprep.subr.mxu0 0.0
    %9666 = vmatpush1.msra.mxu0 0.0
    %9667 = vmatprep.subr.mxu0 0.0
    %9668 = vmatpush1.msra.mxu0 0.0
    %9669 = vmatprep.subr.mxu0 0.0
    %9670 = vmatpush1.msra.mxu0 0.0
    %9671 = vmatprep.subr.mxu0 0.0
    %9672 = vmatpush1.msra.mxu0 0.0
    %9673 = vmatprep.subr.mxu0 0.0
    %9674 = vmatpush1.msra.mxu0 0.0
    %9675 = vmatprep.subr.mxu0 0.0
    %9676 = vmatpush1.msra.mxu0 0.0
    %9677 = vmatprep.subr.mxu0 0.0
    %9678 = vmatpush1.msra.mxu0 0.0
    %9679 = vmatprep.subr.mxu0 %v8910
    %9680 = vmatpush1.msra.mxu0 %v8907
    %9681 = vmatprep.subr.mxu0 %v8775
    %9682 = vmatpush1.msra.mxu0 %v8774
    %9683 = vmatprep.subr.mxu0 %v8759
    %9684 = vmatpush1.msra.mxu0 %v8758
    %9685 = vmatprep.subr.mxu0 %v8743
    %9686 = vmatpush1.msra.mxu0 %v8742
    %9687 = vmatprep.subr.mxu0 %v8727
    %9688 = vmatpush1.msra.mxu0 %v8726
    %9689 = vmatprep.subr.mxu0 %v8711
    %9690 = vmatpush1.msra.mxu0 %v8710
    %9691 = vmatprep.subr.mxu0 %v8695
    %9692 = vmatpush1.msra.mxu0 %v8694
    %9693 = vmatprep.subr.mxu0 0.0
    %9694 = vmatpush2.msra.mxu0 0.0
    %9695 = vmatprep.subr.mxu0 0.0
    %9696 = vmatpush2.msra.mxu0 0.0
    %9697 = vmatprep.subr.mxu0 0.0
    %9698 = vmatpush2.msra.mxu0 0.0
    %9699 = vmatprep.subr.mxu0 0.0
    %9700 = vmatpush2.msra.mxu0 0.0
    %9701 = vmatprep.subr.mxu0 0.0
    %9702 = vmatpush2.msra.mxu0 0.0
    %9703 = vmatprep.subr.mxu0 0.0
    %9704 = vmatpush2.msra.mxu0 0.0
    %9705 = vmatprep.subr.mxu0 0.0
    %9706 = vmatpush2.msra.mxu0 0.0
    %9707 = vmatprep.subr.mxu0 0.0
    %9708 = vmatpush2.msra.mxu0 0.0
    %9709 = vmatprep.subr.mxu0 0.0
    %9710 = vmatpush2.msra.mxu0 0.0
    %9711 = vmatprep.subr.mxu0 0.0
    %9712 = vmatpush2.msra.mxu0 0.0
    %9713 = vmatprep.subr.mxu0 0.0
    %9714 = vmatpush2.msra.mxu0 0.0
    %9715 = vmatprep.subr.mxu0 0.0
    %9716 = vmatpush2.msra.mxu0 0.0
    %9717 = vmatprep.subr.mxu0 0.0
    %9718 = vmatpush2.msra.mxu0 0.0
    %9719 = vmatprep.subr.mxu0 0.0
    %9720 = vmatpush2.msra.mxu0 0.0
    %9721 = vmatprep.subr.mxu0 0.0
    %9722 = vmatpush2.msra.mxu0 0.0
    %9723 = vmatprep.subr.mxu0 0.0
    %9724 = vmatpush2.msra.mxu0 0.0
    %9725 = vmatprep.mubr.f32.mxu0 0.0
    %9726 = vmatmul.mubr.f32.gmra.mxu0 %v8844
    %v9727 = vpop.f32.mrf.mxu0
    %v9728 = vadd.f32 %v8811, %v9727
    %v9729 = vpop.f32.mrf.mxu0
    %v9730 = vadd.f32 %v8811, %v9729
    %9731 = vmatprep.mubr.f32.mxu0 0.0
    %9732 = vmatmul.mubr.f32.gmra.mxu0 %v8847
    %v9733 = vpop.f32.mrf.mxu0
    %v9734 = vadd.f32 %v8816, %v9733
    %v9735 = vpop.f32.mrf.mxu0
    %v9736 = vadd.f32 %v8816, %v9735
    %9737 = vmatprep.mubr.f32.mxu0 0.0
    %9738 = vmatmul.mubr.f32.gmra.mxu0 %v8850
    %v9739 = vpop.f32.mrf.mxu0
    %v9740 = vadd.f32 %v8821, %v9739
    %v9741 = vpop.f32.mrf.mxu0
    %v9742 = vadd.f32 %v8821, %v9741
    %9743 = vmatprep.mubr.f32.mxu0 0.0
    %9744 = vmatmul.mubr.f32.gmra.mxu0 %v8853
    %v9745 = vpop.f32.mrf.mxu0
    %v9746 = vadd.f32 %v8826, %v9745
    %v9747 = vpop.f32.mrf.mxu0
    %v9748 = vadd.f32 %v8826, %v9747
    %9749 = vmatprep.mubr.f32.mxu0 0.0
    %9750 = vmatmul.mubr.f32.gmra.mxu0 %v8856
    %v9751 = vpop.f32.mrf.mxu0
    %v9752 = vadd.f32 %v8831, %v9751
    %v9753 = vpop.f32.mrf.mxu0
    %v9754 = vadd.f32 %v8831, %v9753
    %9755 = vmatprep.mubr.f32.mxu0 0.0
    %9756 = vmatmul.mubr.f32.gmra.mxu0 %v8859
    %v9757 = vpop.f32.mrf.mxu0
    %v9758 = vadd.f32 %v8836, %v9757
    %v9759 = vpop.f32.mrf.mxu0
    %v9760 = vadd.f32 %v8836, %v9759
    %9761 = vmatprep.mubr.f32.mxu0 0.0
    %9762 = vmatmul.mubr.f32.gmra.mxu0 %v8862
    %v9763 = vpop.f32.mrf.mxu0
    %v9764 = vadd.f32 %v8841, %v9763
    %v9765 = vpop.f32.mrf.mxu0
    %v9766 = vadd.f32 %v8841, %v9765
    %9767 = vdwg.mxu0
    %v9768 = vtanh.pop %v8979
    %v9769 = vtanh.pop %v8981
    %v9770 = vtanh.pop %v9086
    %v9771 = vtanh.pop %v9088
    %v9772 = vtanh.pop %v9193
    %v9773 = vtanh.pop %v9195
    %v9774 = vtanh.pop %v9300
    %v9775 = vtanh.pop %v9302
    %v9776 = vtanh.pop %v9407
    %v9777 = vtanh.pop %v9409
    %v9778 = vtanh.pop %v9514
    %v9779 = vtanh.pop %v9516
    %v9780 = vtanh.pop %v9621
    %v9781 = vtanh.pop %v9623
    %v9782 = vtanh.pop %v9728
    %v9783 = vtanh.pop %v9730
    %v9784 = vtanh.pop %v8985
    %v9785 = vtanh.pop %v8987
    %v9786 = vtanh.pop %v9092
    %v9787 = vtanh.pop %v9094
    %v9788 = vtanh.pop %v9199
    %v9789 = vtanh.pop %v9201
    %v9790 = vtanh.pop %v9306
    %v9791 = vtanh.pop %v9308
    %v9792 = vtanh.pop %v9413
    %v9793 = vtanh.pop %v9415
    %v9794 = vtanh.pop %v9520
    %v9795 = vtanh.pop %v9522
    %v9796 = vtanh.pop %v9627
    %v9797 = vtanh.pop %v9629
    %v9798 = vtanh.pop %v9734
    %v9799 = vtanh.pop %v9736
    %v9800 = vtanh.pop %v8991
    %v9801 = vtanh.pop %v8993
    %v9802 = vtanh.pop %v9098
    %v9803 = vtanh.pop %v9100
    %v9804 = vtanh.pop %v9205
    %v9805 = vtanh.pop %v9207
    %v9806 = vtanh.pop %v9312
    %v9807 = vtanh.pop %v9314
    %v9808 = vtanh.pop %v9419
    %v9809 = vtanh.pop %v9421
    %v9810 = vtanh.pop %v9526
    %v9811 = vtanh.pop %v9528
    %v9812 = vtanh.pop %v9633
    %v9813 = vtanh.pop %v9635
    %v9814 = vtanh.pop %v9740
    %v9815 = vtanh.pop %v9742
    %v9816 = vtanh.pop %v8997
    %v9817 = vtanh.pop %v8999
    %v9818 = vtanh.pop %v9104
    %v9819 = vtanh.pop %v9106
    %v9820 = vtanh.pop %v9211
    %v9821 = vtanh.pop %v9213
    %v9822 = vtanh.pop %v9318
    %v9823 = vtanh.pop %v9320
    %v9824 = vtanh.pop %v9425
    %v9825 = vtanh.pop %v9427
    %v9826 = vtanh.pop %v9532
    %v9827 = vtanh.pop %v9534
    %v9828 = vtanh.pop %v9639
    %v9829 = vtanh.pop %v9641
    %v9830 = vtanh.pop %v9746
    %v9831 = vtanh.pop %v9748
    %v9832 = vtanh.pop %v9003
    %v9833 = vtanh.pop %v9005
    %v9834 = vtanh.pop %v9110
    %v9835 = vtanh.pop %v9112
    %v9836 = vtanh.pop %v9217
    %v9837 = vtanh.pop %v9219
    %v9838 = vtanh.pop %v9324
    %v9839 = vtanh.pop %v9326
    %v9840 = vtanh.pop %v9431
    %v9841 = vtanh.pop %v9433
    %v9842 = vtanh.pop %v9538
    %v9843 = vtanh.pop %v9540
    %v9844 = vtanh.pop %v9645
    %v9845 = vtanh.pop %v9647
    %v9846 = vtanh.pop %v9752
    %v9847 = vtanh.pop %v9754
    %v9848 = vtanh.pop %v9009
    %v9849 = vtanh.pop %v9011
    %v9850 = vtanh.pop %v9116
    %v9851 = vtanh.pop %v9118
    %v9852 = vtanh.pop %v9223
    %v9853 = vtanh.pop %v9225
    %v9854 = vtanh.pop %v9330
    %v9855 = vtanh.pop %v9332
    %v9856 = vtanh.pop %v9437
    %v9857 = vtanh.pop %v9439
    %v9858 = vtanh.pop %v9544
    %v9859 = vtanh.pop %v9546
    %v9860 = vtanh.pop %v9651
    %v9861 = vtanh.pop %v9653
    %v9862 = vtanh.pop %v9758
    %v9863 = vtanh.pop %v9760
    %v9864 = vtanh.pop %v9015
    %v9865 = vtanh.pop %v9017
    %v9866 = vtanh.pop %v9122
    %v9867 = vtanh.pop %v9124
    %v9868 = vtanh.pop %v9229
    %v9869 = vtanh.pop %v9231
    %v9870 = vtanh.pop %v9336
    %v9871 = vtanh.pop %v9338
    %v9872 = vtanh.pop %v9443
    %v9873 = vtanh.pop %v9445
    %v9874 = vtanh.pop %v9550
    %v9875 = vtanh.pop %v9552
    %v9876 = vtanh.pop %v9657
    %v9877 = vtanh.pop %v9659
    %v9878 = vtanh.pop %v9764
    %v9879 = vtanh.pop %v9766
    %v9880 = vld [vmem:[%s5] sm:$0x1]
    %v9881 = vld [vmem:[#allocation2] sm:$0x1]
    %9883 = vset.pattern.permute.xlu0 0
    %9884 = vperm.xlu0 %9883, %v9881
    %v9885 = vpop.permute.xlu0 %9884
    %v9887 = vlaneseq
    %v9888 = vshrl.u32 %v9887, 7
    %v9889 = vsub.s32 0, %v9888
    %v9890 = vrot.slane %v9885, %v9889
    %v9892 = vsel %vm1226, %v9880, 0
    %v9895 = vsel %vm176, %v9864, 0
    %v9898 = vsel %vm176, %v9865, 0
    %v9901 = vsel %vm176, %v9866, 0
    %v9904 = vsel %vm176, %v9867, 0
    %v9907 = vsel %vm176, %v9868, 0
    %v9910 = vsel %vm176, %v9869, 0
    %v9913 = vsel %vm176, %v9870, 0
    %v9916 = vsel %vm176, %v9871, 0
    %v9919 = vsel %vm176, %v9872, 0
    %v9922 = vsel %vm176, %v9873, 0
    %v9925 = vsel %vm176, %v9874, 0
    %v9928 = vsel %vm176, %v9875, 0
    %v9931 = vsel %vm176, %v9876, 0
    %v9934 = vsel %vm176, %v9877, 0
    %v9937 = vsel %vm176, %v9878, 0
    %v9940 = vsel %vm176, %v9879, 0
    %9942 = vmatprep.subr.mxu0 0.0
    %9943 = vmatpush1.msra.mxu0 0.0
    %9944 = vmatprep.subr.mxu0 0.0
    %9945 = vmatpush1.msra.mxu0 0.0
    %9946 = vmatprep.subr.mxu0 0.0
    %9947 = vmatpush1.msra.mxu0 0.0
    %9948 = vmatprep.subr.mxu0 0.0
    %9949 = vmatpush1.msra.mxu0 0.0
    %9950 = vmatprep.subr.mxu0 0.0
    %9951 = vmatpush1.msra.mxu0 0.0
    %9952 = vmatprep.subr.mxu0 0.0
    %9953 = vmatpush1.msra.mxu0 0.0
    %9954 = vmatprep.subr.mxu0 0.0
    %9955 = vmatpush1.msra.mxu0 0.0
    %9956 = vmatprep.subr.mxu0 0.0
    %9957 = vmatpush1.msra.mxu0 0.0
    %9958 = vmatprep.subr.mxu0 0.0
    %9959 = vmatpush1.msra.mxu0 0.0
    %9960 = vmatprep.subr.mxu0 %v9898
    %9961 = vmatpush1.msra.mxu0 %v9895
    %9962 = vmatprep.subr.mxu0 %v9849
    %9963 = vmatpush1.msra.mxu0 %v9848
    %9964 = vmatprep.subr.mxu0 %v9833
    %9965 = vmatpush1.msra.mxu0 %v9832
    %9966 = vmatprep.subr.mxu0 %v9817
    %9967 = vmatpush1.msra.mxu0 %v9816
    %9968 = vmatprep.subr.mxu0 %v9801
    %9969 = vmatpush1.msra.mxu0 %v9800
    %9970 = vmatprep.subr.mxu0 %v9785
    %9971 = vmatpush1.msra.mxu0 %v9784
    %9972 = vmatprep.subr.mxu0 %v9769
    %9973 = vmatpush1.msra.mxu0 %v9768
    %9974 = vmatprep.subr.mxu0 0.0
    %9975 = vmatpush2.msra.mxu0 0.0
    %9976 = vmatprep.subr.mxu0 0.0
    %9977 = vmatpush2.msra.mxu0 0.0
    %9978 = vmatprep.subr.mxu0 0.0
    %9979 = vmatpush2.msra.mxu0 0.0
    %9980 = vmatprep.subr.mxu0 0.0
    %9981 = vmatpush2.msra.mxu0 0.0
    %9982 = vmatprep.subr.mxu0 0.0
    %9983 = vmatpush2.msra.mxu0 0.0
    %9984 = vmatprep.subr.mxu0 0.0
    %9985 = vmatpush2.msra.mxu0 0.0
    %9986 = vmatprep.subr.mxu0 0.0
    %9987 = vmatpush2.msra.mxu0 0.0
    %9988 = vmatprep.subr.mxu0 0.0
    %9989 = vmatpush2.msra.mxu0 0.0
    %9990 = vmatprep.subr.mxu0 0.0
    %9991 = vmatpush2.msra.mxu0 0.0
    %9992 = vmatprep.subr.mxu0 0.0
    %9993 = vmatpush2.msra.mxu0 0.0
    %9994 = vmatprep.subr.mxu0 0.0
    %9995 = vmatpush2.msra.mxu0 0.0
    %9996 = vmatprep.subr.mxu0 0.0
    %9997 = vmatpush2.msra.mxu0 0.0
    %9998 = vmatprep.subr.mxu0 0.0
    %9999 = vmatpush2.msra.mxu0 0.0
    %10000 = vmatprep.subr.mxu0 0.0
    %10001 = vmatpush2.msra.mxu0 0.0
    %10002 = vmatprep.subr.mxu0 0.0
    %10003 = vmatpush2.msra.mxu0 0.0
    %10004 = vmatprep.subr.mxu0 0.0
    %10005 = vmatpush2.msra.mxu0 0.0
    %10006 = vmatprep.mubr.f32.mxu0 0.0
    %10007 = vmatmul.mubr.f32.gmra.mxu0 %v9892
    %v10008 = vpop.f32.mrf.mxu0
    %v10009 = vadd.f32 %v9890, %v10008
    %v10010 = vpop.f32.mrf.mxu0
    %v10011 = vadd.f32 %v9890, %v10010
    %10012 = vdwg.mxu0
    %10013 = vmatprep.subr.mxu0 0.0
    %10014 = vmatpush1.msra.mxu0 0.0
    %10015 = vmatprep.subr.mxu0 0.0
    %10016 = vmatpush1.msra.mxu0 0.0
    %10017 = vmatprep.subr.mxu0 0.0
    %10018 = vmatpush1.msra.mxu0 0.0
    %10019 = vmatprep.subr.mxu0 0.0
    %10020 = vmatpush1.msra.mxu0 0.0
    %10021 = vmatprep.subr.mxu0 0.0
    %10022 = vmatpush1.msra.mxu0 0.0
    %10023 = vmatprep.subr.mxu0 0.0
    %10024 = vmatpush1.msra.mxu0 0.0
    %10025 = vmatprep.subr.mxu0 0.0
    %10026 = vmatpush1.msra.mxu0 0.0
    %10027 = vmatprep.subr.mxu0 0.0
    %10028 = vmatpush1.msra.mxu0 0.0
    %10029 = vmatprep.subr.mxu0 0.0
    %10030 = vmatpush1.msra.mxu0 0.0
    %10031 = vmatprep.subr.mxu0 %v9904
    %10032 = vmatpush1.msra.mxu0 %v9901
    %10033 = vmatprep.subr.mxu0 %v9851
    %10034 = vmatpush1.msra.mxu0 %v9850
    %10035 = vmatprep.subr.mxu0 %v9835
    %10036 = vmatpush1.msra.mxu0 %v9834
    %10037 = vmatprep.subr.mxu0 %v9819
    %10038 = vmatpush1.msra.mxu0 %v9818
    %10039 = vmatprep.subr.mxu0 %v9803
    %10040 = vmatpush1.msra.mxu0 %v9802
    %10041 = vmatprep.subr.mxu0 %v9787
    %10042 = vmatpush1.msra.mxu0 %v9786
    %10043 = vmatprep.subr.mxu0 %v9771
    %10044 = vmatpush1.msra.mxu0 %v9770
    %10045 = vmatprep.subr.mxu0 0.0
    %10046 = vmatpush2.msra.mxu0 0.0
    %10047 = vmatprep.subr.mxu0 0.0
    %10048 = vmatpush2.msra.mxu0 0.0
    %10049 = vmatprep.subr.mxu0 0.0
    %10050 = vmatpush2.msra.mxu0 0.0
    %10051 = vmatprep.subr.mxu0 0.0
    %10052 = vmatpush2.msra.mxu0 0.0
    %10053 = vmatprep.subr.mxu0 0.0
    %10054 = vmatpush2.msra.mxu0 0.0
    %10055 = vmatprep.subr.mxu0 0.0
    %10056 = vmatpush2.msra.mxu0 0.0
    %10057 = vmatprep.subr.mxu0 0.0
    %10058 = vmatpush2.msra.mxu0 0.0
    %10059 = vmatprep.subr.mxu0 0.0
    %10060 = vmatpush2.msra.mxu0 0.0
    %10061 = vmatprep.subr.mxu0 0.0
    %10062 = vmatpush2.msra.mxu0 0.0
    %10063 = vmatprep.subr.mxu0 0.0
    %10064 = vmatpush2.msra.mxu0 0.0
    %10065 = vmatprep.subr.mxu0 0.0
    %10066 = vmatpush2.msra.mxu0 0.0
    %10067 = vmatprep.subr.mxu0 0.0
    %10068 = vmatpush2.msra.mxu0 0.0
    %10069 = vmatprep.subr.mxu0 0.0
    %10070 = vmatpush2.msra.mxu0 0.0
    %10071 = vmatprep.subr.mxu0 0.0
    %10072 = vmatpush2.msra.mxu0 0.0
    %10073 = vmatprep.subr.mxu0 0.0
    %10074 = vmatpush2.msra.mxu0 0.0
    %10075 = vmatprep.subr.mxu0 0.0
    %10076 = vmatpush2.msra.mxu0 0.0
    %10077 = vmatprep.mubr.f32.mxu0 0.0
    %10078 = vmatmul.mubr.f32.gmra.mxu0 %v9892
    %v10079 = vpop.f32.mrf.mxu0
    %v10080 = vadd.f32 %v9890, %v10079
    %v10081 = vpop.f32.mrf.mxu0
    %v10082 = vadd.f32 %v9890, %v10081
    %10083 = vdwg.mxu0
    %10084 = vmatprep.subr.mxu0 0.0
    %10085 = vmatpush1.msra.mxu0 0.0
    %10086 = vmatprep.subr.mxu0 0.0
    %10087 = vmatpush1.msra.mxu0 0.0
    %10088 = vmatprep.subr.mxu0 0.0
    %10089 = vmatpush1.msra.mxu0 0.0
    %10090 = vmatprep.subr.mxu0 0.0
    %10091 = vmatpush1.msra.mxu0 0.0
    %10092 = vmatprep.subr.mxu0 0.0
    %10093 = vmatpush1.msra.mxu0 0.0
    %10094 = vmatprep.subr.mxu0 0.0
    %10095 = vmatpush1.msra.mxu0 0.0
    %10096 = vmatprep.subr.mxu0 0.0
    %10097 = vmatpush1.msra.mxu0 0.0
    %10098 = vmatprep.subr.mxu0 0.0
    %10099 = vmatpush1.msra.mxu0 0.0
    %10100 = vmatprep.subr.mxu0 0.0
    %10101 = vmatpush1.msra.mxu0 0.0
    %10102 = vmatprep.subr.mxu0 %v9910
    %10103 = vmatpush1.msra.mxu0 %v9907
    %10104 = vmatprep.subr.mxu0 %v9853
    %10105 = vmatpush1.msra.mxu0 %v9852
    %10106 = vmatprep.subr.mxu0 %v9837
    %10107 = vmatpush1.msra.mxu0 %v9836
    %10108 = vmatprep.subr.mxu0 %v9821
    %10109 = vmatpush1.msra.mxu0 %v9820
    %10110 = vmatprep.subr.mxu0 %v9805
    %10111 = vmatpush1.msra.mxu0 %v9804
    %10112 = vmatprep.subr.mxu0 %v9789
    %10113 = vmatpush1.msra.mxu0 %v9788
    %10114 = vmatprep.subr.mxu0 %v9773
    %10115 = vmatpush1.msra.mxu0 %v9772
    %10116 = vmatprep.subr.mxu0 0.0
    %10117 = vmatpush2.msra.mxu0 0.0
    %10118 = vmatprep.subr.mxu0 0.0
    %10119 = vmatpush2.msra.mxu0 0.0
    %10120 = vmatprep.subr.mxu0 0.0
    %10121 = vmatpush2.msra.mxu0 0.0
    %10122 = vmatprep.subr.mxu0 0.0
    %10123 = vmatpush2.msra.mxu0 0.0
    %10124 = vmatprep.subr.mxu0 0.0
    %10125 = vmatpush2.msra.mxu0 0.0
    %10126 = vmatprep.subr.mxu0 0.0
    %10127 = vmatpush2.msra.mxu0 0.0
    %10128 = vmatprep.subr.mxu0 0.0
    %10129 = vmatpush2.msra.mxu0 0.0
    %10130 = vmatprep.subr.mxu0 0.0
    %10131 = vmatpush2.msra.mxu0 0.0
    %10132 = vmatprep.subr.mxu0 0.0
    %10133 = vmatpush2.msra.mxu0 0.0
    %10134 = vmatprep.subr.mxu0 0.0
    %10135 = vmatpush2.msra.mxu0 0.0
    %10136 = vmatprep.subr.mxu0 0.0
    %10137 = vmatpush2.msra.mxu0 0.0
    %10138 = vmatprep.subr.mxu0 0.0
    %10139 = vmatpush2.msra.mxu0 0.0
    %10140 = vmatprep.subr.mxu0 0.0
    %10141 = vmatpush2.msra.mxu0 0.0
    %10142 = vmatprep.subr.mxu0 0.0
    %10143 = vmatpush2.msra.mxu0 0.0
    %10144 = vmatprep.subr.mxu0 0.0
    %10145 = vmatpush2.msra.mxu0 0.0
    %10146 = vmatprep.subr.mxu0 0.0
    %10147 = vmatpush2.msra.mxu0 0.0
    %10148 = vmatprep.mubr.f32.mxu0 0.0
    %10149 = vmatmul.mubr.f32.gmra.mxu0 %v9892
    %v10150 = vpop.f32.mrf.mxu0
    %v10151 = vadd.f32 %v9890, %v10150
    %v10152 = vpop.f32.mrf.mxu0
    %v10153 = vadd.f32 %v9890, %v10152
    %10154 = vdwg.mxu0
    %10155 = vmatprep.subr.mxu0 0.0
    %10156 = vmatpush1.msra.mxu0 0.0
    %10157 = vmatprep.subr.mxu0 0.0
    %10158 = vmatpush1.msra.mxu0 0.0
    %10159 = vmatprep.subr.mxu0 0.0
    %10160 = vmatpush1.msra.mxu0 0.0
    %10161 = vmatprep.subr.mxu0 0.0
    %10162 = vmatpush1.msra.mxu0 0.0
    %10163 = vmatprep.subr.mxu0 0.0
    %10164 = vmatpush1.msra.mxu0 0.0
    %10165 = vmatprep.subr.mxu0 0.0
    %10166 = vmatpush1.msra.mxu0 0.0
    %10167 = vmatprep.subr.mxu0 0.0
    %10168 = vmatpush1.msra.mxu0 0.0
    %10169 = vmatprep.subr.mxu0 0.0
    %10170 = vmatpush1.msra.mxu0 0.0
    %10171 = vmatprep.subr.mxu0 0.0
    %10172 = vmatpush1.msra.mxu0 0.0
    %10173 = vmatprep.subr.mxu0 %v9916
    %10174 = vmatpush1.msra.mxu0 %v9913
    %10175 = vmatprep.subr.mxu0 %v9855
    %10176 = vmatpush1.msra.mxu0 %v9854
    %10177 = vmatprep.subr.mxu0 %v9839
    %10178 = vmatpush1.msra.mxu0 %v9838
    %10179 = vmatprep.subr.mxu0 %v9823
    %10180 = vmatpush1.msra.mxu0 %v9822
    %10181 = vmatprep.subr.mxu0 %v9807
    %10182 = vmatpush1.msra.mxu0 %v9806
    %10183 = vmatprep.subr.mxu0 %v9791
    %10184 = vmatpush1.msra.mxu0 %v9790
    %10185 = vmatprep.subr.mxu0 %v9775
    %10186 = vmatpush1.msra.mxu0 %v9774
    %10187 = vmatprep.subr.mxu0 0.0
    %10188 = vmatpush2.msra.mxu0 0.0
    %10189 = vmatprep.subr.mxu0 0.0
    %10190 = vmatpush2.msra.mxu0 0.0
    %10191 = vmatprep.subr.mxu0 0.0
    %10192 = vmatpush2.msra.mxu0 0.0
    %10193 = vmatprep.subr.mxu0 0.0
    %10194 = vmatpush2.msra.mxu0 0.0
    %10195 = vmatprep.subr.mxu0 0.0
    %10196 = vmatpush2.msra.mxu0 0.0
    %10197 = vmatprep.subr.mxu0 0.0
    %10198 = vmatpush2.msra.mxu0 0.0
    %10199 = vmatprep.subr.mxu0 0.0
    %10200 = vmatpush2.msra.mxu0 0.0
    %10201 = vmatprep.subr.mxu0 0.0
    %10202 = vmatpush2.msra.mxu0 0.0
    %10203 = vmatprep.subr.mxu0 0.0
    %10204 = vmatpush2.msra.mxu0 0.0
    %10205 = vmatprep.subr.mxu0 0.0
    %10206 = vmatpush2.msra.mxu0 0.0
    %10207 = vmatprep.subr.mxu0 0.0
    %10208 = vmatpush2.msra.mxu0 0.0
    %10209 = vmatprep.subr.mxu0 0.0
    %10210 = vmatpush2.msra.mxu0 0.0
    %10211 = vmatprep.subr.mxu0 0.0
    %10212 = vmatpush2.msra.mxu0 0.0
    %10213 = vmatprep.subr.mxu0 0.0
    %10214 = vmatpush2.msra.mxu0 0.0
    %10215 = vmatprep.subr.mxu0 0.0
    %10216 = vmatpush2.msra.mxu0 0.0
    %10217 = vmatprep.subr.mxu0 0.0
    %10218 = vmatpush2.msra.mxu0 0.0
    %10219 = vmatprep.mubr.f32.mxu0 0.0
    %10220 = vmatmul.mubr.f32.gmra.mxu0 %v9892
    %v10221 = vpop.f32.mrf.mxu0
    %v10222 = vadd.f32 %v9890, %v10221
    %v10223 = vpop.f32.mrf.mxu0
    %v10224 = vadd.f32 %v9890, %v10223
    %10225 = vdwg.mxu0
    %10226 = vmatprep.subr.mxu0 0.0
    %10227 = vmatpush1.msra.mxu0 0.0
    %10228 = vmatprep.subr.mxu0 0.0
    %10229 = vmatpush1.msra.mxu0 0.0
    %10230 = vmatprep.subr.mxu0 0.0
    %10231 = vmatpush1.msra.mxu0 0.0
    %10232 = vmatprep.subr.mxu0 0.0
    %10233 = vmatpush1.msra.mxu0 0.0
    %10234 = vmatprep.subr.mxu0 0.0
    %10235 = vmatpush1.msra.mxu0 0.0
    %10236 = vmatprep.subr.mxu0 0.0
    %10237 = vmatpush1.msra.mxu0 0.0
    %10238 = vmatprep.subr.mxu0 0.0
    %10239 = vmatpush1.msra.mxu0 0.0
    %10240 = vmatprep.subr.mxu0 0.0
    %10241 = vmatpush1.msra.mxu0 0.0
    %10242 = vmatprep.subr.mxu0 0.0
    %10243 = vmatpush1.msra.mxu0 0.0
    %10244 = vmatprep.subr.mxu0 %v9922
    %10245 = vmatpush1.msra.mxu0 %v9919
    %10246 = vmatprep.subr.mxu0 %v9857
    %10247 = vmatpush1.msra.mxu0 %v9856
    %10248 = vmatprep.subr.mxu0 %v9841
    %10249 = vmatpush1.msra.mxu0 %v9840
    %10250 = vmatprep.subr.mxu0 %v9825
    %10251 = vmatpush1.msra.mxu0 %v9824
    %10252 = vmatprep.subr.mxu0 %v9809
    %10253 = vmatpush1.msra.mxu0 %v9808
    %10254 = vmatprep.subr.mxu0 %v9793
    %10255 = vmatpush1.msra.mxu0 %v9792
    %10256 = vmatprep.subr.mxu0 %v9777
    %10257 = vmatpush1.msra.mxu0 %v9776
    %10258 = vmatprep.subr.mxu0 0.0
    %10259 = vmatpush2.msra.mxu0 0.0
    %10260 = vmatprep.subr.mxu0 0.0
    %10261 = vmatpush2.msra.mxu0 0.0
    %10262 = vmatprep.subr.mxu0 0.0
    %10263 = vmatpush2.msra.mxu0 0.0
    %10264 = vmatprep.subr.mxu0 0.0
    %10265 = vmatpush2.msra.mxu0 0.0
    %10266 = vmatprep.subr.mxu0 0.0
    %10267 = vmatpush2.msra.mxu0 0.0
    %10268 = vmatprep.subr.mxu0 0.0
    %10269 = vmatpush2.msra.mxu0 0.0
    %10270 = vmatprep.subr.mxu0 0.0
    %10271 = vmatpush2.msra.mxu0 0.0
    %10272 = vmatprep.subr.mxu0 0.0
    %10273 = vmatpush2.msra.mxu0 0.0
    %10274 = vmatprep.subr.mxu0 0.0
    %10275 = vmatpush2.msra.mxu0 0.0
    %10276 = vmatprep.subr.mxu0 0.0
    %10277 = vmatpush2.msra.mxu0 0.0
    %10278 = vmatprep.subr.mxu0 0.0
    %10279 = vmatpush2.msra.mxu0 0.0
    %10280 = vmatprep.subr.mxu0 0.0
    %10281 = vmatpush2.msra.mxu0 0.0
    %10282 = vmatprep.subr.mxu0 0.0
    %10283 = vmatpush2.msra.mxu0 0.0
    %10284 = vmatprep.subr.mxu0 0.0
    %10285 = vmatpush2.msra.mxu0 0.0
    %10286 = vmatprep.subr.mxu0 0.0
    %10287 = vmatpush2.msra.mxu0 0.0
    %10288 = vmatprep.subr.mxu0 0.0
    %10289 = vmatpush2.msra.mxu0 0.0
    %10290 = vmatprep.mubr.f32.mxu0 0.0
    %10291 = vmatmul.mubr.f32.gmra.mxu0 %v9892
    %v10292 = vpop.f32.mrf.mxu0
    %v10293 = vadd.f32 %v9890, %v10292
    %v10294 = vpop.f32.mrf.mxu0
    %v10295 = vadd.f32 %v9890, %v10294
    %10296 = vdwg.mxu0
    %10297 = vmatprep.subr.mxu0 0.0
    %10298 = vmatpush1.msra.mxu0 0.0
    %10299 = vmatprep.subr.mxu0 0.0
    %10300 = vmatpush1.msra.mxu0 0.0
    %10301 = vmatprep.subr.mxu0 0.0
    %10302 = vmatpush1.msra.mxu0 0.0
    %10303 = vmatprep.subr.mxu0 0.0
    %10304 = vmatpush1.msra.mxu0 0.0
    %10305 = vmatprep.subr.mxu0 0.0
    %10306 = vmatpush1.msra.mxu0 0.0
    %10307 = vmatprep.subr.mxu0 0.0
    %10308 = vmatpush1.msra.mxu0 0.0
    %10309 = vmatprep.subr.mxu0 0.0
    %10310 = vmatpush1.msra.mxu0 0.0
    %10311 = vmatprep.subr.mxu0 0.0
    %10312 = vmatpush1.msra.mxu0 0.0
    %10313 = vmatprep.subr.mxu0 0.0
    %10314 = vmatpush1.msra.mxu0 0.0
    %10315 = vmatprep.subr.mxu0 %v9928
    %10316 = vmatpush1.msra.mxu0 %v9925
    %10317 = vmatprep.subr.mxu0 %v9859
    %10318 = vmatpush1.msra.mxu0 %v9858
    %10319 = vmatprep.subr.mxu0 %v9843
    %10320 = vmatpush1.msra.mxu0 %v9842
    %10321 = vmatprep.subr.mxu0 %v9827
    %10322 = vmatpush1.msra.mxu0 %v9826
    %10323 = vmatprep.subr.mxu0 %v9811
    %10324 = vmatpush1.msra.mxu0 %v9810
    %10325 = vmatprep.subr.mxu0 %v9795
    %10326 = vmatpush1.msra.mxu0 %v9794
    %10327 = vmatprep.subr.mxu0 %v9779
    %10328 = vmatpush1.msra.mxu0 %v9778
    %10329 = vmatprep.subr.mxu0 0.0
    %10330 = vmatpush2.msra.mxu0 0.0
    %10331 = vmatprep.subr.mxu0 0.0
    %10332 = vmatpush2.msra.mxu0 0.0
    %10333 = vmatprep.subr.mxu0 0.0
    %10334 = vmatpush2.msra.mxu0 0.0
    %10335 = vmatprep.subr.mxu0 0.0
    %10336 = vmatpush2.msra.mxu0 0.0
    %10337 = vmatprep.subr.mxu0 0.0
    %10338 = vmatpush2.msra.mxu0 0.0
    %10339 = vmatprep.subr.mxu0 0.0
    %10340 = vmatpush2.msra.mxu0 0.0
    %10341 = vmatprep.subr.mxu0 0.0
    %10342 = vmatpush2.msra.mxu0 0.0
    %10343 = vmatprep.subr.mxu0 0.0
    %10344 = vmatpush2.msra.mxu0 0.0
    %10345 = vmatprep.subr.mxu0 0.0
    %10346 = vmatpush2.msra.mxu0 0.0
    %10347 = vmatprep.subr.mxu0 0.0
    %10348 = vmatpush2.msra.mxu0 0.0
    %10349 = vmatprep.subr.mxu0 0.0
    %10350 = vmatpush2.msra.mxu0 0.0
    %10351 = vmatprep.subr.mxu0 0.0
    %10352 = vmatpush2.msra.mxu0 0.0
    %10353 = vmatprep.subr.mxu0 0.0
    %10354 = vmatpush2.msra.mxu0 0.0
    %10355 = vmatprep.subr.mxu0 0.0
    %10356 = vmatpush2.msra.mxu0 0.0
    %10357 = vmatprep.subr.mxu0 0.0
    %10358 = vmatpush2.msra.mxu0 0.0
    %10359 = vmatprep.subr.mxu0 0.0
    %10360 = vmatpush2.msra.mxu0 0.0
    %10361 = vmatprep.mubr.f32.mxu0 0.0
    %10362 = vmatmul.mubr.f32.gmra.mxu0 %v9892
    %v10363 = vpop.f32.mrf.mxu0
    %v10364 = vadd.f32 %v9890, %v10363
    %v10365 = vpop.f32.mrf.mxu0
    %v10366 = vadd.f32 %v9890, %v10365
    %10367 = vdwg.mxu0
    %10368 = vmatprep.subr.mxu0 0.0
    %10369 = vmatpush1.msra.mxu0 0.0
    %10370 = vmatprep.subr.mxu0 0.0
    %10371 = vmatpush1.msra.mxu0 0.0
    %10372 = vmatprep.subr.mxu0 0.0
    %10373 = vmatpush1.msra.mxu0 0.0
    %10374 = vmatprep.subr.mxu0 0.0
    %10375 = vmatpush1.msra.mxu0 0.0
    %10376 = vmatprep.subr.mxu0 0.0
    %10377 = vmatpush1.msra.mxu0 0.0
    %10378 = vmatprep.subr.mxu0 0.0
    %10379 = vmatpush1.msra.mxu0 0.0
    %10380 = vmatprep.subr.mxu0 0.0
    %10381 = vmatpush1.msra.mxu0 0.0
    %10382 = vmatprep.subr.mxu0 0.0
    %10383 = vmatpush1.msra.mxu0 0.0
    %10384 = vmatprep.subr.mxu0 0.0
    %10385 = vmatpush1.msra.mxu0 0.0
    %10386 = vmatprep.subr.mxu0 %v9934
    %10387 = vmatpush1.msra.mxu0 %v9931
    %10388 = vmatprep.subr.mxu0 %v9861
    %10389 = vmatpush1.msra.mxu0 %v9860
    %10390 = vmatprep.subr.mxu0 %v9845
    %10391 = vmatpush1.msra.mxu0 %v9844
    %10392 = vmatprep.subr.mxu0 %v9829
    %10393 = vmatpush1.msra.mxu0 %v9828
    %10394 = vmatprep.subr.mxu0 %v9813
    %10395 = vmatpush1.msra.mxu0 %v9812
    %10396 = vmatprep.subr.mxu0 %v9797
    %10397 = vmatpush1.msra.mxu0 %v9796
    %10398 = vmatprep.subr.mxu0 %v9781
    %10399 = vmatpush1.msra.mxu0 %v9780
    %10400 = vmatprep.subr.mxu0 0.0
    %10401 = vmatpush2.msra.mxu0 0.0
    %10402 = vmatprep.subr.mxu0 0.0
    %10403 = vmatpush2.msra.mxu0 0.0
    %10404 = vmatprep.subr.mxu0 0.0
    %10405 = vmatpush2.msra.mxu0 0.0
    %10406 = vmatprep.subr.mxu0 0.0
    %10407 = vmatpush2.msra.mxu0 0.0
    %10408 = vmatprep.subr.mxu0 0.0
    %10409 = vmatpush2.msra.mxu0 0.0
    %10410 = vmatprep.subr.mxu0 0.0
    %10411 = vmatpush2.msra.mxu0 0.0
    %10412 = vmatprep.subr.mxu0 0.0
    %10413 = vmatpush2.msra.mxu0 0.0
    %10414 = vmatprep.subr.mxu0 0.0
    %10415 = vmatpush2.msra.mxu0 0.0
    %10416 = vmatprep.subr.mxu0 0.0
    %10417 = vmatpush2.msra.mxu0 0.0
    %10418 = vmatprep.subr.mxu0 0.0
    %10419 = vmatpush2.msra.mxu0 0.0
    %10420 = vmatprep.subr.mxu0 0.0
    %10421 = vmatpush2.msra.mxu0 0.0
    %10422 = vmatprep.subr.mxu0 0.0
    %10423 = vmatpush2.msra.mxu0 0.0
    %10424 = vmatprep.subr.mxu0 0.0
    %10425 = vmatpush2.msra.mxu0 0.0
    %10426 = vmatprep.subr.mxu0 0.0
    %10427 = vmatpush2.msra.mxu0 0.0
    %10428 = vmatprep.subr.mxu0 0.0
    %10429 = vmatpush2.msra.mxu0 0.0
    %10430 = vmatprep.subr.mxu0 0.0
    %10431 = vmatpush2.msra.mxu0 0.0
    %10432 = vmatprep.mubr.f32.mxu0 0.0
    %10433 = vmatmul.mubr.f32.gmra.mxu0 %v9892
    %v10434 = vpop.f32.mrf.mxu0
    %v10435 = vadd.f32 %v9890, %v10434
    %v10436 = vpop.f32.mrf.mxu0
    %v10437 = vadd.f32 %v9890, %v10436
    %10438 = vdwg.mxu0
    %10439 = vmatprep.subr.mxu0 0.0
    %10440 = vmatpush1.msra.mxu0 0.0
    %10441 = vmatprep.subr.mxu0 0.0
    %10442 = vmatpush1.msra.mxu0 0.0
    %10443 = vmatprep.subr.mxu0 0.0
    %10444 = vmatpush1.msra.mxu0 0.0
    %10445 = vmatprep.subr.mxu0 0.0
    %10446 = vmatpush1.msra.mxu0 0.0
    %10447 = vmatprep.subr.mxu0 0.0
    %10448 = vmatpush1.msra.mxu0 0.0
    %10449 = vmatprep.subr.mxu0 0.0
    %10450 = vmatpush1.msra.mxu0 0.0
    %10451 = vmatprep.subr.mxu0 0.0
    %10452 = vmatpush1.msra.mxu0 0.0
    %10453 = vmatprep.subr.mxu0 0.0
    %10454 = vmatpush1.msra.mxu0 0.0
    %10455 = vmatprep.subr.mxu0 0.0
    %10456 = vmatpush1.msra.mxu0 0.0
    %10457 = vmatprep.subr.mxu0 %v9940
    %10458 = vmatpush1.msra.mxu0 %v9937
    %10459 = vmatprep.subr.mxu0 %v9863
    %10460 = vmatpush1.msra.mxu0 %v9862
    %10461 = vmatprep.subr.mxu0 %v9847
    %10462 = vmatpush1.msra.mxu0 %v9846
    %10463 = vmatprep.subr.mxu0 %v9831
    %10464 = vmatpush1.msra.mxu0 %v9830
    %10465 = vmatprep.subr.mxu0 %v9815
    %10466 = vmatpush1.msra.mxu0 %v9814
    %10467 = vmatprep.subr.mxu0 %v9799
    %10468 = vmatpush1.msra.mxu0 %v9798
    %10469 = vmatprep.subr.mxu0 %v9783
    %10470 = vmatpush1.msra.mxu0 %v9782
    %10471 = vmatprep.subr.mxu0 0.0
    %10472 = vmatpush2.msra.mxu0 0.0
    %10473 = vmatprep.subr.mxu0 0.0
    %10474 = vmatpush2.msra.mxu0 0.0
    %10475 = vmatprep.subr.mxu0 0.0
    %10476 = vmatpush2.msra.mxu0 0.0
    %10477 = vmatprep.subr.mxu0 0.0
    %10478 = vmatpush2.msra.mxu0 0.0
    %10479 = vmatprep.subr.mxu0 0.0
    %10480 = vmatpush2.msra.mxu0 0.0
    %10481 = vmatprep.subr.mxu0 0.0
    %10482 = vmatpush2.msra.mxu0 0.0
    %10483 = vmatprep.subr.mxu0 0.0
    %10484 = vmatpush2.msra.mxu0 0.0
    %10485 = vmatprep.subr.mxu0 0.0
    %10486 = vmatpush2.msra.mxu0 0.0
    %10487 = vmatprep.subr.mxu0 0.0
    %10488 = vmatpush2.msra.mxu0 0.0
    %10489 = vmatprep.subr.mxu0 0.0
    %10490 = vmatpush2.msra.mxu0 0.0
    %10491 = vmatprep.subr.mxu0 0.0
    %10492 = vmatpush2.msra.mxu0 0.0
    %10493 = vmatprep.subr.mxu0 0.0
    %10494 = vmatpush2.msra.mxu0 0.0
    %10495 = vmatprep.subr.mxu0 0.0
    %10496 = vmatpush2.msra.mxu0 0.0
    %10497 = vmatprep.subr.mxu0 0.0
    %10498 = vmatpush2.msra.mxu0 0.0
    %10499 = vmatprep.subr.mxu0 0.0
    %10500 = vmatpush2.msra.mxu0 0.0
    %10501 = vmatprep.subr.mxu0 0.0
    %10502 = vmatpush2.msra.mxu0 0.0
    %10503 = vmatprep.mubr.f32.mxu0 0.0
    %10504 = vmatmul.mubr.f32.gmra.mxu0 %v9892
    %v10505 = vpop.f32.mrf.mxu0
    %v10506 = vadd.f32 %v9890, %v10505
    %v10507 = vpop.f32.mrf.mxu0
    %v10508 = vadd.f32 %v9890, %v10507
    %10509 = vdwg.mxu0
    %v10526 = vcombine.low %v10009, %v10011
    %v10527 = vcombine.low %v10080, %v10082
    %v10528 = vcombine.low %v10151, %v10153
    %v10529 = vcombine.low %v10222, %v10224
    %v10531 = vunpack.c.l.s4 1966171168
    %v10532 = vunpack.c.0.s8 %v10531
    %v10533 = vlaneseq
    %v10534 = vshrl.u32 %v10533, 7
    %v10535 = vsub.s32 %v10532, %v10534
    %v10536 = vrot.slane %v10526, %v10535
    %v10538 = vunpack.c.l.s4 1966171168
    %v10539 = vunpack.c.0.s8 %v10538
    %v10540 = vlaneseq
    %v10541 = vshrl.u32 %v10540, 7
    %v10542 = vsub.s32 %v10539, %v10541
    %v10543 = vrot.slane %v10527, %v10542
    %v10545 = vunpack.c.l.s4 1966171168
    %v10546 = vunpack.c.0.s8 %v10545
    %v10547 = vlaneseq
    %v10548 = vshrl.u32 %v10547, 7
    %v10549 = vsub.s32 %v10546, %v10548
    %v10550 = vrot.slane %v10528, %v10549
    %v10552 = vunpack.c.l.s4 1966171168
    %v10553 = vunpack.c.0.s8 %v10552
    %v10554 = vlaneseq
    %v10555 = vshrl.u32 %v10554, 7
    %v10556 = vsub.s32 %v10553, %v10555
    %v10557 = vrot.slane %v10529, %v10556
    %v10558 = vcombine.low %v10536, %v10543
    %v10559 = vcombine.low %v10550, %v10557
    %v10561 = vunpack.c.l.s4 1966171168
    %v10562 = vunpack.c.0.s8 %v10561
    %v10563 = vlaneseq
    %v10564 = vshrl.u32 %v10563, 7
    %v10565 = vsub.s32 %v10562, %v10564
    %v10566 = vrot.slane %v10558, %v10565
    %v10568 = vunpack.c.l.s4 1966171168
    %v10569 = vunpack.c.0.s8 %v10568
    %v10570 = vlaneseq
    %v10571 = vshrl.u32 %v10570, 7
    %v10572 = vsub.s32 %v10569, %v10571
    %v10573 = vrot.slane %v10559, %v10572
    %v10574 = vcombine.low %v10566, %v10573
    %v10575 = vcombine.low %v10293, %v10295
    %v10576 = vcombine.low %v10364, %v10366
    %v10577 = vcombine.low %v10435, %v10437
    %v10578 = vcombine.low %v10506, %v10508
    %v10580 = vunpack.c.l.s4 1966171168
    %v10581 = vunpack.c.0.s8 %v10580
    %v10582 = vlaneseq
    %v10583 = vshrl.u32 %v10582, 7
    %v10584 = vsub.s32 %v10581, %v10583
    %v10585 = vrot.slane %v10575, %v10584
    %v10587 = vunpack.c.l.s4 1966171168
    %v10588 = vunpack.c.0.s8 %v10587
    %v10589 = vlaneseq
    %v10590 = vshrl.u32 %v10589, 7
    %v10591 = vsub.s32 %v10588, %v10590
    %v10592 = vrot.slane %v10576, %v10591
    %v10594 = vunpack.c.l.s4 1966171168
    %v10595 = vunpack.c.0.s8 %v10594
    %v10596 = vlaneseq
    %v10597 = vshrl.u32 %v10596, 7
    %v10598 = vsub.s32 %v10595, %v10597
    %v10599 = vrot.slane %v10577, %v10598
    %v10601 = vunpack.c.l.s4 1966171168
    %v10602 = vunpack.c.0.s8 %v10601
    %v10603 = vlaneseq
    %v10604 = vshrl.u32 %v10603, 7
    %v10605 = vsub.s32 %v10602, %v10604
    %v10606 = vrot.slane %v10578, %v10605
    %v10607 = vcombine.low %v10585, %v10592
    %v10608 = vcombine.low %v10599, %v10606
    %v10610 = vunpack.c.l.s4 1966171168
    %v10611 = vunpack.c.0.s8 %v10610
    %v10612 = vlaneseq
    %v10613 = vshrl.u32 %v10612, 7
    %v10614 = vsub.s32 %v10611, %v10613
    %v10615 = vrot.slane %v10607, %v10614
    %v10617 = vunpack.c.l.s4 1966171168
    %v10618 = vunpack.c.0.s8 %v10617
    %v10619 = vlaneseq
    %v10620 = vshrl.u32 %v10619, 7
    %v10621 = vsub.s32 %v10618, %v10620
    %v10622 = vrot.slane %v10608, %v10621
    %v10623 = vcombine.low %v10615, %v10622
    %10626 = vst [vmem:[#allocation3] sm:$0xff] %v10574
    %10627 = vst [vmem:[#allocation3 + $0x8] sm:$0xff] %v10623
    // Predicated region
    $region30: #{tpu_custom_call.1} parent=1 // pred_check
      _
    $region31: #{tpu_custom_call.1} parent=1 // pred_check_branch
      %10629 = sbr.rel (0) target = $region33
    $region32: #{tpu_custom_call.1} parent=1 // pred_region
      %s10631 = ssub.s32 256, 256
      %10632 = vsyncadd [#allocation4], %s10631
      %s10634 = sshll.u32 [#allocation3], 4
      %s10635 = int_to_ptr.vmem [resolvable:$true] %s10634
      %10637 = dma.vmem_to_hbm [thread:$0]  %s10635, 256, %s7, [#allocation4]
    $region33: #{tpu_custom_call.1} parent=1 // pred_fallthru
      _
    // Predicated region
    $region34: #{tpu_custom_call.1} parent=1 // pred_check
      _
    $region35: #{tpu_custom_call.1} parent=1 // pred_check_branch
      %10639 = sbr.rel (0) target = $region37
    $region36: #{tpu_custom_call.1} parent=1 // pred_region
      %10640 = dma.done [#allocation4], 256
    $region37: #{tpu_custom_call.1} parent=1 // pred_fallthru
      _
    %10641 = vsyncpa [#allocation4], 1

</llo_original>
